<compile_context>
chip_gen: v6e
topology: v6e:2x2x1
jax: 0.10.0
libtpu: 0.0.40
codegen_flags: <defaults>
</compile_context>

<pallas_src>
import jax
import jax.numpy as jnp
from jax import lax
from jax.experimental import pallas as pl
from jax.experimental.pallas import tpu as pltpu


def lstm_kernel(x_ref, w_ih_ref, w_hh_ref, b_ref, hn_ref, cn_ref,
                seq_scr, gx_scr):
    """Grid = (layers,); one LSTM layer over all timesteps per grid step.

    seq_scr persists across grid iterations: every layer (except the last) writes its
    hidden state h_t into seq_scr[t], so layer l>0 reads layer l-1's output sequence
    in place. gx_scr holds the precomputed input projection (x @ W_ih + b) for all
    timesteps of the current layer.
    """
    layer = pl.program_id(0)
    num_layers = pl.num_programs(0)
    T, TB, H = seq_scr.shape
    H4 = 4 * H

    w_ih = w_ih_ref[0]     # (H, 4H) bf16
    w_hh = w_hh_ref[0]     # (H, 4H) bf16
    b = b_ref[0]           # (1, 4H) f32

    # --- Hoisted input projection: one big MXU matmul per layer -----------------
    @pl.when(layer == 0)
    def _():
        x_flat = x_ref[...].reshape(T * TB, H)                       # bf16 view
        gx = jnp.dot(x_flat, w_ih, preferred_element_type=jnp.float32) + b
        gx_scr[...] = gx.reshape(T, TB, H4)

    @pl.when(layer != 0)
    def _():
        x_flat = seq_scr[...].reshape(T * TB, H)                     # bf16 view
        gx = jnp.dot(x_flat, w_ih, preferred_element_type=jnp.float32) + b
        gx_scr[...] = gx.reshape(T, TB, H4)

    # The last layer's per-timestep outputs have no consumer -> skip the store.
    write_seq = layer != num_layers - 1

    # --- Recurrence: only h_prev @ W_hh remains inside the time loop ------------
    def step(t, carry):
        h_prev, c_prev = carry                                       # f32 (TB, H)
        gates = gx_scr[t] + jnp.dot(h_prev.astype(jnp.bfloat16), w_hh,
                                    preferred_element_type=jnp.float32)  # (TB, 4H) f32
        # PyTorch gate order: i, f, g, o  (H=256 -> 128-lane aligned static slices)
        i_g = jax.nn.sigmoid(gates[:, 0 * H:1 * H])
        f_g = jax.nn.sigmoid(gates[:, 1 * H:2 * H])
        g_g = jnp.tanh(gates[:, 2 * H:3 * H])
        o_g = jax.nn.sigmoid(gates[:, 3 * H:4 * H])
        c_new = f_g * c_prev + i_g * g_g
        h_new = o_g * jnp.tanh(c_new)

        @pl.when(write_seq)
        def _():
            seq_scr[t] = h_new.astype(seq_scr.dtype)   # next layer's input at time t

        return (h_new, c_new)

    h0 = jnp.zeros((TB, H), jnp.float32)
    c0 = jnp.zeros((TB, H), jnp.float32)
    # T is small & static -> fully unroll the recurrence.
    h_fin, c_fin = lax.fori_loop(0, T, step, (h0, c0), unroll=True)

    hn_ref[0] = h_fin
    cn_ref[0] = c_fin


def encoder_forward(token_ids, emb_table, w_ih_t, w_hh_t, bias):
    """Pallas equivalent of Encoder.forward: returns (hn, cn)."""
    B, T = token_ids.shape
    L, H, H4 = w_ih_t.shape
    assert H4 == 4 * H

    # Pad batch to a bf16 sublane multiple (16) so the leading-dim merge before the
    # hoisted projection matmul stays a zero-cost view.
    B_pad = ((B + 15) // 16) * 16
    if B_pad != B:
        token_ids = jnp.pad(token_ids, ((0, B_pad - B), (0, 0)))

    # Glue: embedding gather producing the time-major layout directly, bf16 activations.
    # TODO(synk): fuse the embedding gather into the kernel (scalar-prefetched token ids
    # + manual DMA) to avoid the extra HBM roundtrip at production sequence lengths.
    x_tbh = emb_table[token_ids.T].astype(jnp.bfloat16)              # (T, B_pad, H)
    w_ih_bf = w_ih_t.astype(jnp.bfloat16)                            # (L, H, 4H)
    w_hh_bf = w_hh_t.astype(jnp.bfloat16)                            # (L, H, 4H)
    bias_r = bias.reshape(L, 1, H4).astype(jnp.float32)              # (L, 1, 4H)

    hn, cn = pl.pallas_call(
        lstm_kernel,
        out_shape=(jax.ShapeDtypeStruct((L, B_pad, H), jnp.float32),
                   jax.ShapeDtypeStruct((L, B_pad, H), jnp.float32)),
        grid_spec=pltpu.PrefetchScalarGridSpec(
            num_scalar_prefetch=0,
            grid=(L,),
            in_specs=[
                pl.BlockSpec((T, B_pad, H), lambda l: (0, 0, 0)),    # embedded seq
                pl.BlockSpec((1, H, H4), lambda l: (l, 0, 0)),       # W_ih^T (bf16)
                pl.BlockSpec((1, H, H4), lambda l: (l, 0, 0)),       # W_hh^T (bf16)
                pl.BlockSpec((1, 1, H4), lambda l: (l, 0, 0)),       # bias
            ],
            out_specs=[
                pl.BlockSpec((1, B_pad, H), lambda l: (l, 0, 0)),    # hn
                pl.BlockSpec((1, B_pad, H), lambda l: (l, 0, 0)),    # cn
            ],
            scratch_shapes=[
                pltpu.VMEM((T, B_pad, H), jnp.bfloat16),             # layer-to-layer seq
                pltpu.VMEM((T, B_pad, H4), jnp.float32),             # precomputed x-gates
            ],
        ),
        compiler_params=pltpu.CompilerParams(
            dimension_semantics=("arbitrary",),          # layers are sequential
            vmem_limit_bytes=64 * 1024 * 1024),
    )(x_tbh, w_ih_bf, w_hh_bf, bias_r)

    if B_pad != B:
        hn = hn[:, :B]
        cn = cn[:, :B]
    return hn, cn


def encoder_reference(token_ids, emb_table, w_ih_t, w_hh_t, bias):
    """Pure-JAX f32 reference matching PyTorch nn.LSTM semantics."""
    emb = emb_table[token_ids].astype(jnp.float32)     # (B, T, H)
    L = w_ih_t.shape[0]
    B, T, H = emb.shape
    x = emb
    hn_list, cn_list = [], []
    for l in range(L):
        h = jnp.zeros((B, H), jnp.float32)
        c = jnp.zeros((B, H), jnp.float32)
        outs = []
        for t in range(T):
            g = x[:, t, :] @ w_ih_t[l] + h @ w_hh_t[l] + bias[l]
            i = jax.nn.sigmoid(g[:, :H])
            f = jax.nn.sigmoid(g[:, H:2 * H])
            gg = jnp.tanh(g[:, 2 * H:3 * H])
            o = jax.nn.sigmoid(g[:, 3 * H:])
            c = f * c + i * gg
            h = o * jnp.tanh(c)
            outs.append(h)
        x = jnp.stack(outs, axis=1)
        hn_list.append(h)
        cn_list.append(c)
    return jnp.stack(hn_list), jnp.stack(cn_list)


if __name__ == "__main__":
    # Small shapes consistent with the module (hidden=256, num_layers=2 as in the spec;
    # vocab scaled down from 15005).
    B, T, H, L = 16, 8, 256, 2
    VOCAB = 128

    key = jax.random.PRNGKey(0)
    k_emb, k_tok, *k_w = jax.random.split(key, 2 + 4 * L)

    # nn.Embedding default init: N(0, 1).
    emb_table = jax.random.normal(k_emb, (VOCAB, H), dtype=jnp.float32)
    token_ids = jax.random.randint(k_tok, (B, T), 0, VOCAB, dtype=jnp.int32)

    # nn.LSTM default init: U(-1/sqrt(H), 1/sqrt(H)) for all weights/biases.
    bound = 1.0 / (H ** 0.5)
    w_ih_t_layers, w_hh_t_layers, bias_layers = [], [], []
    for l in range(L):
        kwih, kwhh, kbih, kbhh = k_w[4 * l:4 * l + 4]
        w_ih = jax.random.uniform(kwih, (4 * H, H), jnp.float32, -bound, bound)
        w_hh = jax.random.uniform(kwhh, (4 * H, H), jnp.float32, -bound, bound)
        b_ih = jax.random.uniform(kbih, (4 * H,), jnp.float32, -bound, bound)
        b_hh = jax.random.uniform(kbhh, (4 * H,), jnp.float32, -bound, bound)
        w_ih_t_layers.append(w_ih.T)          # (H, 4H)
        w_hh_t_layers.append(w_hh.T)          # (H, 4H)
        bias_layers.append(b_ih + b_hh)       # (4H,)
    w_ih_t = jnp.stack(w_ih_t_layers)         # (L, H, 4H)
    w_hh_t = jnp.stack(w_hh_t_layers)         # (L, H, 4H)
    bias = jnp.stack(bias_layers)             # (L, 4H)

    hn, cn = encoder_forward(token_ids, emb_table, w_ih_t, w_hh_t, bias)
    jax.block_until_ready((hn, cn))

    hn_ref, cn_ref = encoder_reference(token_ids, emb_table, w_ih_t, w_hh_t, bias)
    assert hn.shape == (L, B, H) and cn.shape == (L, B, H)
    # bf16 weights/activations (f32 accumulation) -> relaxed tolerance vs f32 reference.
    assert jnp.allclose(hn, hn_ref, atol=4e-2, rtol=4e-2), "hn mismatch vs reference"
    assert jnp.allclose(cn, cn_ref, atol=4e-2, rtol=4e-2), "cn mismatch vs reference"

    print("KERNEL_OK")
</pallas_src>

<mosaic_0001>
module attributes {stable_mosaic.version = 11 : i64} {
  func.func @lstm_kernel(%arg0: i32, %arg1: memref<8x16x256xbf16, #tpu.memory_space<vmem>>, %arg2: memref<1x256x1024xbf16, #tpu.memory_space<vmem>>, %arg3: memref<1x256x1024xbf16, #tpu.memory_space<vmem>>, %arg4: memref<1x1x1024xf32, #tpu.memory_space<vmem>>, %arg5: memref<1x16x256xf32, #tpu.memory_space<vmem>>, %arg6: memref<1x16x256xf32, #tpu.memory_space<vmem>>, %arg7: memref<8x16x256xbf16, #tpu.memory_space<vmem>>, %arg8: memref<8x16x1024xf32, #tpu.memory_space<vmem>>) attributes {dimension_semantics = [#tpu.dimension_semantics<arbitrary>], iteration_bounds = array<i64: 2>, scalar_prefetch = 0 : i64, scratch_operands = 2 : i64, tpu.core_type = #tpu.core_type<tc>, window_params = [{pipeline_mode = #tpu.pipeline_mode<synchronous>, transform_indices = @transform_0, window_bounds = array<i64: 8, 16, 256>}, {transform_indices = @transform_1, window_bounds = array<i64: 1, 256, 1024>}, {transform_indices = @transform_2, window_bounds = array<i64: 1, 256, 1024>}, {transform_indices = @transform_3, window_bounds = array<i64: 1, 1, 1024>}, {transform_indices = @transform_4, window_bounds = array<i64: 1, 16, 256>}, {transform_indices = @transform_5, window_bounds = array<i64: 1, 16, 256>}]} {
    %c0 = arith.constant 0 : index
    %c0_0 = arith.constant 0 : index
    %c0_1 = arith.constant 0 : index
    %0 = vector.load %arg2[%c0, %c0_0, %c0_1] : memref<1x256x1024xbf16, #tpu.memory_space<vmem>>, vector<1x256x1024xbf16>
    %1 = vector.shape_cast %0 : vector<1x256x1024xbf16> to vector<256x1024xbf16>
    %c0_2 = arith.constant 0 : index
    %c0_3 = arith.constant 0 : index
    %c0_4 = arith.constant 0 : index
    %2 = vector.load %arg3[%c0_2, %c0_3, %c0_4] : memref<1x256x1024xbf16, #tpu.memory_space<vmem>>, vector<1x256x1024xbf16>
    %3 = vector.shape_cast %2 : vector<1x256x1024xbf16> to vector<256x1024xbf16>
    %c0_5 = arith.constant 0 : index
    %c0_6 = arith.constant 0 : index
    %c0_7 = arith.constant 0 : index
    %4 = vector.load %arg4[%c0_5, %c0_6, %c0_7] : memref<1x1x1024xf32, #tpu.memory_space<vmem>>, vector<1x1x1024xf32>
    %5 = vector.shape_cast %4 : vector<1x1x1024xf32> to vector<1x1024xf32>
    %c0_i32 = arith.constant 0 : i32
    %6 = arith.cmpi eq, %arg0, %c0_i32 : i32
    %7 = arith.extui %6 : i1 to i32
    %c0_i32_8 = arith.constant 0 : i32
    %8 = arith.cmpi ne, %7, %c0_i32_8 : i32
    scf.if %8 {
      %c0_76 = arith.constant 0 : index
      %c0_77 = arith.constant 0 : index
      %c0_78 = arith.constant 0 : index
      %285 = vector.load %arg1[%c0_76, %c0_77, %c0_78] : memref<8x16x256xbf16, #tpu.memory_space<vmem>>, vector<8x16x256xbf16>
      %286 = vector.shape_cast %285 : vector<8x16x256xbf16> to vector<128x256xbf16>
      %cst_79 = arith.constant dense<0.000000e+00> : vector<128x1024xf32>
      %287 = tpu.matmul %286, %1, %cst_79 {dimension_numbers = #tpu.dot_dimension_numbers<[1], [0], [0], [1], [0, 0, 1, 1], [], []>} : vector<128x256xbf16>, vector<256x1024xbf16>, vector<128x1024xf32> -> vector<128x1024xf32>
      %288 = vector.broadcast %5 : vector<1x1024xf32> to vector<128x1024xf32>
      %289 = arith.addf %287, %288 : vector<128x1024xf32>
      %290 = vector.shape_cast %289 : vector<128x1024xf32> to vector<8x16x1024xf32>
      %c0_80 = arith.constant 0 : index
      %c0_81 = arith.constant 0 : index
      %c0_82 = arith.constant 0 : index
      %291 = vector.load %arg8[%c0_80, %c0_81, %c0_82] : memref<8x16x1024xf32, #tpu.memory_space<vmem>>, vector<8x16x1024xf32>
      tpu.vector_store %arg8[%c0_80, %c0_81, %c0_82], %290 {strides = array<i32>} : memref<8x16x1024xf32, #tpu.memory_space<vmem>>, vector<8x16x1024xf32>,
    } else {
    }
    %c0_i32_9 = arith.constant 0 : i32
    %9 = arith.cmpi ne, %arg0, %c0_i32_9 : i32
    %10 = arith.extui %9 : i1 to i32
    %c0_i32_10 = arith.constant 0 : i32
    %11 = arith.cmpi ne, %10, %c0_i32_10 : i32
    scf.if %11 {
      %c0_76 = arith.constant 0 : index
      %c0_77 = arith.constant 0 : index
      %c0_78 = arith.constant 0 : index
      %285 = vector.load %arg7[%c0_76, %c0_77, %c0_78] : memref<8x16x256xbf16, #tpu.memory_space<vmem>>, vector<8x16x256xbf16>
      %286 = vector.shape_cast %285 : vector<8x16x256xbf16> to vector<128x256xbf16>
      %cst_79 = arith.constant dense<0.000000e+00> : vector<128x1024xf32>
      %287 = tpu.matmul %286, %1, %cst_79 {dimension_numbers = #tpu.dot_dimension_numbers<[1], [0], [0], [1], [0, 0, 1, 1], [], []>} : vector<128x256xbf16>, vector<256x1024xbf16>, vector<128x1024xf32> -> vector<128x1024xf32>
      %288 = vector.broadcast %5 : vector<1x1024xf32> to vector<128x1024xf32>
      %289 = arith.addf %287, %288 : vector<128x1024xf32>
      %290 = vector.shape_cast %289 : vector<128x1024xf32> to vector<8x16x1024xf32>
      %c0_80 = arith.constant 0 : index
      %c0_81 = arith.constant 0 : index
      %c0_82 = arith.constant 0 : index
      %291 = vector.load %arg8[%c0_80, %c0_81, %c0_82] : memref<8x16x1024xf32, #tpu.memory_space<vmem>>, vector<8x16x1024xf32>
      tpu.vector_store %arg8[%c0_80, %c0_81, %c0_82], %290 {strides = array<i32>} : memref<8x16x1024xf32, #tpu.memory_space<vmem>>, vector<8x16x1024xf32>,
    } else {
    }
    %c1_i32 = arith.constant 1 : i32
    %12 = arith.cmpi ne, %arg0, %c1_i32 : i32
    %cst = arith.constant 0.000000e+00 : f32
    %13 = vector.broadcast %cst : f32 to vector<16x256xf32>
    %cst_11 = arith.constant 0.000000e+00 : f32
    %14 = vector.broadcast %cst_11 : f32 to vector<16x256xf32>
    %c0_i32_12 = arith.constant 0 : i32
    %15 = arith.index_cast %c0_i32_12 : i32 to index
    %c0_13 = arith.constant 0 : index
    %c0_14 = arith.constant 0 : index
    %16 = vector.load %arg8[%15, %c0_13, %c0_14] : memref<8x16x1024xf32, #tpu.memory_space<vmem>>, vector<1x16x1024xf32>
    %17 = vector.shape_cast %16 : vector<1x16x1024xf32> to vector<16x1024xf32>
    %18 = arith.truncf %13 : vector<16x256xf32> to vector<16x256xbf16>
    %cst_15 = arith.constant dense<0.000000e+00> : vector<16x1024xf32>
    %19 = tpu.matmul %18, %3, %cst_15 {dimension_numbers = #tpu.dot_dimension_numbers<[1], [0], [0], [1], [0, 0, 1, 1], [], []>} : vector<16x256xbf16>, vector<256x1024xbf16>, vector<16x1024xf32> -> vector<16x1024xf32>
    %20 = arith.addf %17, %19 : vector<16x1024xf32>
    %21 = vector.extract_strided_slice %20 {offsets = [0, 0], sizes = [16, 256], strides = [1, 1]} : vector<16x1024xf32> to vector<16x256xf32>
    %22 = arith.negf %21 : vector<16x256xf32>
    %23 = math.exp %22 : vector<16x256xf32>
    %cst_16 = arith.constant 1.000000e+00 : f32
    %24 = vector.broadcast %cst_16 : f32 to vector<16x256xf32>
    %25 = arith.addf %24, %23 : vector<16x256xf32>
    %26 = arith.divf %24, %25 : vector<16x256xf32>
    %27 = vector.extract_strided_slice %20 {offsets = [0, 256], sizes = [16, 256], strides = [1, 1]} : vector<16x1024xf32> to vector<16x256xf32>
    %28 = arith.negf %27 : vector<16x256xf32>
    %29 = math.exp %28 : vector<16x256xf32>
    %cst_17 = arith.constant 1.000000e+00 : f32
    %30 = vector.broadcast %cst_17 : f32 to vector<16x256xf32>
    %31 = arith.addf %30, %29 : vector<16x256xf32>
    %32 = arith.divf %30, %31 : vector<16x256xf32>
    %33 = vector.extract_strided_slice %20 {offsets = [0, 512], sizes = [16, 256], strides = [1, 1]} : vector<16x1024xf32> to vector<16x256xf32>
    %34 = math.tanh %33 : vector<16x256xf32>
    %35 = vector.extract_strided_slice %20 {offsets = [0, 768], sizes = [16, 256], strides = [1, 1]} : vector<16x1024xf32> to vector<16x256xf32>
    %36 = arith.negf %35 : vector<16x256xf32>
    %37 = math.exp %36 : vector<16x256xf32>
    %cst_18 = arith.constant 1.000000e+00 : f32
    %38 = vector.broadcast %cst_18 : f32 to vector<16x256xf32>
    %39 = arith.addf %38, %37 : vector<16x256xf32>
    %40 = arith.divf %38, %39 : vector<16x256xf32>
    %41 = arith.mulf %32, %14 : vector<16x256xf32>
    %42 = arith.mulf %26, %34 : vector<16x256xf32>
    %43 = arith.addf %41, %42 : vector<16x256xf32>
    %44 = math.tanh %43 : vector<16x256xf32>
    %45 = arith.mulf %40, %44 : vector<16x256xf32>
    %46 = arith.extui %12 : i1 to i32
    %c0_i32_19 = arith.constant 0 : i32
    %47 = arith.cmpi ne, %46, %c0_i32_19 : i32
    scf.if %47 {
      %285 = arith.truncf %45 : vector<16x256xf32> to vector<16x256xbf16>
      %286 = arith.index_cast %c0_i32_12 : i32 to index
      %c0_76 = arith.constant 0 : index
      %c0_77 = arith.constant 0 : index
      %287 = vector.load %arg7[%286, %c0_76, %c0_77] : memref<8x16x256xbf16, #tpu.memory_space<vmem>>, vector<1x16x256xbf16>
      %288 = vector.shape_cast %287 : vector<1x16x256xbf16> to vector<16x256xbf16>
      %289 = vector.shape_cast %285 : vector<16x256xbf16> to vector<1x16x256xbf16>
      tpu.vector_store %arg7[%286, %c0_76, %c0_77], %289 {strides = array<i32>} : memref<8x16x256xbf16, #tpu.memory_space<vmem>>, vector<1x16x256xbf16>,
    } else {
    }
    %c1_i32_20 = arith.constant 1 : i32
    %48 = arith.index_cast %c1_i32_20 : i32 to index
    %c0_21 = arith.constant 0 : index
    %c0_22 = arith.constant 0 : index
    %49 = vector.load %arg8[%48, %c0_21, %c0_22] : memref<8x16x1024xf32, #tpu.memory_space<vmem>>, vector<1x16x1024xf32>
    %50 = vector.shape_cast %49 : vector<1x16x1024xf32> to vector<16x1024xf32>
    %51 = arith.truncf %45 : vector<16x256xf32> to vector<16x256xbf16>
    %cst_23 = arith.constant dense<0.000000e+00> : vector<16x1024xf32>
    %52 = tpu.matmul %51, %3, %cst_23 {dimension_numbers = #tpu.dot_dimension_numbers<[1], [0], [0], [1], [0, 0, 1, 1], [], []>} : vector<16x256xbf16>, vector<256x1024xbf16>, vector<16x1024xf32> -> vector<16x1024xf32>
    %53 = arith.addf %50, %52 : vector<16x1024xf32>
    %54 = vector.extract_strided_slice %53 {offsets = [0, 0], sizes = [16, 256], strides = [1, 1]} : vector<16x1024xf32> to vector<16x256xf32>
    %55 = arith.negf %54 : vector<16x256xf32>
    %56 = math.exp %55 : vector<16x256xf32>
    %cst_24 = arith.constant 1.000000e+00 : f32
    %57 = vector.broadcast %cst_24 : f32 to vector<16x256xf32>
    %58 = arith.addf %57, %56 : vector<16x256xf32>
    %59 = arith.divf %57, %58 : vector<16x256xf32>
    %60 = vector.extract_strided_slice %53 {offsets = [0, 256], sizes = [16, 256], strides = [1, 1]} : vector<16x1024xf32> to vector<16x256xf32>
    %61 = arith.negf %60 : vector<16x256xf32>
    %62 = math.exp %61 : vector<16x256xf32>
    %cst_25 = arith.constant 1.000000e+00 : f32
    %63 = vector.broadcast %cst_25 : f32 to vector<16x256xf32>
    %64 = arith.addf %63, %62 : vector<16x256xf32>
    %65 = arith.divf %63, %64 : vector<16x256xf32>
    %66 = vector.extract_strided_slice %53 {offsets = [0, 512], sizes = [16, 256], strides = [1, 1]} : vector<16x1024xf32> to vector<16x256xf32>
    %67 = math.tanh %66 : vector<16x256xf32>
    %68 = vector.extract_strided_slice %53 {offsets = [0, 768], sizes = [16, 256], strides = [1, 1]} : vector<16x1024xf32> to vector<16x256xf32>
    %69 = arith.negf %68 : vector<16x256xf32>
    %70 = math.exp %69 : vector<16x256xf32>
    %cst_26 = arith.constant 1.000000e+00 : f32
    %71 = vector.broadcast %cst_26 : f32 to vector<16x256xf32>
    %72 = arith.addf %71, %70 : vector<16x256xf32>
    %73 = arith.divf %71, %72 : vector<16x256xf32>
    %74 = arith.mulf %65, %43 : vector<16x256xf32>
    %75 = arith.mulf %59, %67 : vector<16x256xf32>
    %76 = arith.addf %74, %75 : vector<16x256xf32>
    %77 = math.tanh %76 : vector<16x256xf32>
    %78 = arith.mulf %73, %77 : vector<16x256xf32>
    %79 = arith.extui %12 : i1 to i32
    %c0_i32_27 = arith.constant 0 : i32
    %80 = arith.cmpi ne, %79, %c0_i32_27 : i32
    scf.if %80 {
      %285 = arith.truncf %78 : vector<16x256xf32> to vector<16x256xbf16>
      %286 = arith.index_cast %c1_i32_20 : i32 to index
      %c0_76 = arith.constant 0 : index
      %c0_77 = arith.constant 0 : index
      %287 = vector.load %arg7[%286, %c0_76, %c0_77] : memref<8x16x256xbf16, #tpu.memory_space<vmem>>, vector<1x16x256xbf16>
      %288 = vector.shape_cast %287 : vector<1x16x256xbf16> to vector<16x256xbf16>
      %289 = vector.shape_cast %285 : vector<16x256xbf16> to vector<1x16x256xbf16>
      tpu.vector_store %arg7[%286, %c0_76, %c0_77], %289 {strides = array<i32>} : memref<8x16x256xbf16, #tpu.memory_space<vmem>>, vector<1x16x256xbf16>,
    } else {
    }
    %c2_i32 = arith.constant 2 : i32
    %81 = arith.index_cast %c2_i32 : i32 to index
    %c0_28 = arith.constant 0 : index
    %c0_29 = arith.constant 0 : index
    %82 = vector.load %arg8[%81, %c0_28, %c0_29] : memref<8x16x1024xf32, #tpu.memory_space<vmem>>, vector<1x16x1024xf32>
    %83 = vector.shape_cast %82 : vector<1x16x1024xf32> to vector<16x1024xf32>
    %84 = arith.truncf %78 : vector<16x256xf32> to vector<16x256xbf16>
    %cst_30 = arith.constant dense<0.000000e+00> : vector<16x1024xf32>
    %85 = tpu.matmul %84, %3, %cst_30 {dimension_numbers = #tpu.dot_dimension_numbers<[1], [0], [0], [1], [0, 0, 1, 1], [], []>} : vector<16x256xbf16>, vector<256x1024xbf16>, vector<16x1024xf32> -> vector<16x1024xf32>
    %86 = arith.addf %83, %85 : vector<16x1024xf32>
    %87 = vector.extract_strided_slice %86 {offsets = [0, 0], sizes = [16, 256], strides = [1, 1]} : vector<16x1024xf32> to vector<16x256xf32>
    %88 = arith.negf %87 : vector<16x256xf32>
    %89 = math.exp %88 : vector<16x256xf32>
    %cst_31 = arith.constant 1.000000e+00 : f32
    %90 = vector.broadcast %cst_31 : f32 to vector<16x256xf32>
    %91 = arith.addf %90, %89 : vector<16x256xf32>
    %92 = arith.divf %90, %91 : vector<16x256xf32>
    %93 = vector.extract_strided_slice %86 {offsets = [0, 256], sizes = [16, 256], strides = [1, 1]} : vector<16x1024xf32> to vector<16x256xf32>
    %94 = arith.negf %93 : vector<16x256xf32>
    %95 = math.exp %94 : vector<16x256xf32>
    %cst_32 = arith.constant 1.000000e+00 : f32
    %96 = vector.broadcast %cst_32 : f32 to vector<16x256xf32>
    %97 = arith.addf %96, %95 : vector<16x256xf32>
    %98 = arith.divf %96, %97 : vector<16x256xf32>
    %99 = vector.extract_strided_slice %86 {offsets = [0, 512], sizes = [16, 256], strides = [1, 1]} : vector<16x1024xf32> to vector<16x256xf32>
    %100 = math.tanh %99 : vector<16x256xf32>
    %101 = vector.extract_strided_slice %86 {offsets = [0, 768], sizes = [16, 256], strides = [1, 1]} : vector<16x1024xf32> to vector<16x256xf32>
    %102 = arith.negf %101 : vector<16x256xf32>
    %103 = math.exp %102 : vector<16x256xf32>
    %cst_33 = arith.constant 1.000000e+00 : f32
    %104 = vector.broadcast %cst_33 : f32 to vector<16x256xf32>
    %105 = arith.addf %104, %103 : vector<16x256xf32>
    %106 = arith.divf %104, %105 : vector<16x256xf32>
    %107 = arith.mulf %98, %76 : vector<16x256xf32>
    %108 = arith.mulf %92, %100 : vector<16x256xf32>
    %109 = arith.addf %107, %108 : vector<16x256xf32>
    %110 = math.tanh %109 : vector<16x256xf32>
    %111 = arith.mulf %106, %110 : vector<16x256xf32>
    %112 = arith.extui %12 : i1 to i32
    %c0_i32_34 = arith.constant 0 : i32
    %113 = arith.cmpi ne, %112, %c0_i32_34 : i32
    scf.if %113 {
      %285 = arith.truncf %111 : vector<16x256xf32> to vector<16x256xbf16>
      %286 = arith.index_cast %c2_i32 : i32 to index
      %c0_76 = arith.constant 0 : index
      %c0_77 = arith.constant 0 : index
      %287 = vector.load %arg7[%286, %c0_76, %c0_77] : memref<8x16x256xbf16, #tpu.memory_space<vmem>>, vector<1x16x256xbf16>
      %288 = vector.shape_cast %287 : vector<1x16x256xbf16> to vector<16x256xbf16>
      %289 = vector.shape_cast %285 : vector<16x256xbf16> to vector<1x16x256xbf16>
      tpu.vector_store %arg7[%286, %c0_76, %c0_77], %289 {strides = array<i32>} : memref<8x16x256xbf16, #tpu.memory_space<vmem>>, vector<1x16x256xbf16>,
    } else {
    }
    %c3_i32 = arith.constant 3 : i32
    %114 = arith.index_cast %c3_i32 : i32 to index
    %c0_35 = arith.constant 0 : index
    %c0_36 = arith.constant 0 : index
    %115 = vector.load %arg8[%114, %c0_35, %c0_36] : memref<8x16x1024xf32, #tpu.memory_space<vmem>>, vector<1x16x1024xf32>
    %116 = vector.shape_cast %115 : vector<1x16x1024xf32> to vector<16x1024xf32>
    %117 = arith.truncf %111 : vector<16x256xf32> to vector<16x256xbf16>
    %cst_37 = arith.constant dense<0.000000e+00> : vector<16x1024xf32>
    %118 = tpu.matmul %117, %3, %cst_37 {dimension_numbers = #tpu.dot_dimension_numbers<[1], [0], [0], [1], [0, 0, 1, 1], [], []>} : vector<16x256xbf16>, vector<256x1024xbf16>, vector<16x1024xf32> -> vector<16x1024xf32>
    %119 = arith.addf %116, %118 : vector<16x1024xf32>
    %120 = vector.extract_strided_slice %119 {offsets = [0, 0], sizes = [16, 256], strides = [1, 1]} : vector<16x1024xf32> to vector<16x256xf32>
    %121 = arith.negf %120 : vector<16x256xf32>
    %122 = math.exp %121 : vector<16x256xf32>
    %cst_38 = arith.constant 1.000000e+00 : f32
    %123 = vector.broadcast %cst_38 : f32 to vector<16x256xf32>
    %124 = arith.addf %123, %122 : vector<16x256xf32>
    %125 = arith.divf %123, %124 : vector<16x256xf32>
    %126 = vector.extract_strided_slice %119 {offsets = [0, 256], sizes = [16, 256], strides = [1, 1]} : vector<16x1024xf32> to vector<16x256xf32>
    %127 = arith.negf %126 : vector<16x256xf32>
    %128 = math.exp %127 : vector<16x256xf32>
    %cst_39 = arith.constant 1.000000e+00 : f32
    %129 = vector.broadcast %cst_39 : f32 to vector<16x256xf32>
    %130 = arith.addf %129, %128 : vector<16x256xf32>
    %131 = arith.divf %129, %130 : vector<16x256xf32>
    %132 = vector.extract_strided_slice %119 {offsets = [0, 512], sizes = [16, 256], strides = [1, 1]} : vector<16x1024xf32> to vector<16x256xf32>
    %133 = math.tanh %132 : vector<16x256xf32>
    %134 = vector.extract_strided_slice %119 {offsets = [0, 768], sizes = [16, 256], strides = [1, 1]} : vector<16x1024xf32> to vector<16x256xf32>
    %135 = arith.negf %134 : vector<16x256xf32>
    %136 = math.exp %135 : vector<16x256xf32>
    %cst_40 = arith.constant 1.000000e+00 : f32
    %137 = vector.broadcast %cst_40 : f32 to vector<16x256xf32>
    %138 = arith.addf %137, %136 : vector<16x256xf32>
    %139 = arith.divf %137, %138 : vector<16x256xf32>
    %140 = arith.mulf %131, %109 : vector<16x256xf32>
    %141 = arith.mulf %125, %133 : vector<16x256xf32>
    %142 = arith.addf %140, %141 : vector<16x256xf32>
    %143 = math.tanh %142 : vector<16x256xf32>
    %144 = arith.mulf %139, %143 : vector<16x256xf32>
    %145 = arith.extui %12 : i1 to i32
    %c0_i32_41 = arith.constant 0 : i32
    %146 = arith.cmpi ne, %145, %c0_i32_41 : i32
    scf.if %146 {
      %285 = arith.truncf %144 : vector<16x256xf32> to vector<16x256xbf16>
      %286 = arith.index_cast %c3_i32 : i32 to index
      %c0_76 = arith.constant 0 : index
      %c0_77 = arith.constant 0 : index
      %287 = vector.load %arg7[%286, %c0_76, %c0_77] : memref<8x16x256xbf16, #tpu.memory_space<vmem>>, vector<1x16x256xbf16>
      %288 = vector.shape_cast %287 : vector<1x16x256xbf16> to vector<16x256xbf16>
      %289 = vector.shape_cast %285 : vector<16x256xbf16> to vector<1x16x256xbf16>
      tpu.vector_store %arg7[%286, %c0_76, %c0_77], %289 {strides = array<i32>} : memref<8x16x256xbf16, #tpu.memory_space<vmem>>, vector<1x16x256xbf16>,
    } else {
    }
    %c4_i32 = arith.constant 4 : i32
    %147 = arith.index_cast %c4_i32 : i32 to index
    %c0_42 = arith.constant 0 : index
    %c0_43 = arith.constant 0 : index
    %148 = vector.load %arg8[%147, %c0_42, %c0_43] : memref<8x16x1024xf32, #tpu.memory_space<vmem>>, vector<1x16x1024xf32>
    %149 = vector.shape_cast %148 : vector<1x16x1024xf32> to vector<16x1024xf32>
    %150 = arith.truncf %144 : vector<16x256xf32> to vector<16x256xbf16>
    %cst_44 = arith.constant dense<0.000000e+00> : vector<16x1024xf32>
    %151 = tpu.matmul %150, %3, %cst_44 {dimension_numbers = #tpu.dot_dimension_numbers<[1], [0], [0], [1], [0, 0, 1, 1], [], []>} : vector<16x256xbf16>, vector<256x1024xbf16>, vector<16x1024xf32> -> vector<16x1024xf32>
    %152 = arith.addf %149, %151 : vector<16x1024xf32>
    %153 = vector.extract_strided_slice %152 {offsets = [0, 0], sizes = [16, 256], strides = [1, 1]} : vector<16x1024xf32> to vector<16x256xf32>
    %154 = arith.negf %153 : vector<16x256xf32>
    %155 = math.exp %154 : vector<16x256xf32>
    %cst_45 = arith.constant 1.000000e+00 : f32
    %156 = vector.broadcast %cst_45 : f32 to vector<16x256xf32>
    %157 = arith.addf %156, %155 : vector<16x256xf32>
    %158 = arith.divf %156, %157 : vector<16x256xf32>
    %159 = vector.extract_strided_slice %152 {offsets = [0, 256], sizes = [16, 256], strides = [1, 1]} : vector<16x1024xf32> to vector<16x256xf32>
    %160 = arith.negf %159 : vector<16x256xf32>
    %161 = math.exp %160 : vector<16x256xf32>
    %cst_46 = arith.constant 1.000000e+00 : f32
    %162 = vector.broadcast %cst_46 : f32 to vector<16x256xf32>
    %163 = arith.addf %162, %161 : vector<16x256xf32>
    %164 = arith.divf %162, %163 : vector<16x256xf32>
    %165 = vector.extract_strided_slice %152 {offsets = [0, 512], sizes = [16, 256], strides = [1, 1]} : vector<16x1024xf32> to vector<16x256xf32>
    %166 = math.tanh %165 : vector<16x256xf32>
    %167 = vector.extract_strided_slice %152 {offsets = [0, 768], sizes = [16, 256], strides = [1, 1]} : vector<16x1024xf32> to vector<16x256xf32>
    %168 = arith.negf %167 : vector<16x256xf32>
    %169 = math.exp %168 : vector<16x256xf32>
    %cst_47 = arith.constant 1.000000e+00 : f32
    %170 = vector.broadcast %cst_47 : f32 to vector<16x256xf32>
    %171 = arith.addf %170, %169 : vector<16x256xf32>
    %172 = arith.divf %170, %171 : vector<16x256xf32>
    %173 = arith.mulf %164, %142 : vector<16x256xf32>
    %174 = arith.mulf %158, %166 : vector<16x256xf32>
    %175 = arith.addf %173, %174 : vector<16x256xf32>
    %176 = math.tanh %175 : vector<16x256xf32>
    %177 = arith.mulf %172, %176 : vector<16x256xf32>
    %178 = arith.extui %12 : i1 to i32
    %c0_i32_48 = arith.constant 0 : i32
    %179 = arith.cmpi ne, %178, %c0_i32_48 : i32
    scf.if %179 {
      %285 = arith.truncf %177 : vector<16x256xf32> to vector<16x256xbf16>
      %286 = arith.index_cast %c4_i32 : i32 to index
      %c0_76 = arith.constant 0 : index
      %c0_77 = arith.constant 0 : index
      %287 = vector.load %arg7[%286, %c0_76, %c0_77] : memref<8x16x256xbf16, #tpu.memory_space<vmem>>, vector<1x16x256xbf16>
      %288 = vector.shape_cast %287 : vector<1x16x256xbf16> to vector<16x256xbf16>
      %289 = vector.shape_cast %285 : vector<16x256xbf16> to vector<1x16x256xbf16>
      tpu.vector_store %arg7[%286, %c0_76, %c0_77], %289 {strides = array<i32>} : memref<8x16x256xbf16, #tpu.memory_space<vmem>>, vector<1x16x256xbf16>,
    } else {
    }
    %c5_i32 = arith.constant 5 : i32
    %180 = arith.index_cast %c5_i32 : i32 to index
    %c0_49 = arith.constant 0 : index
    %c0_50 = arith.constant 0 : index
    %181 = vector.load %arg8[%180, %c0_49, %c0_50] : memref<8x16x1024xf32, #tpu.memory_space<vmem>>, vector<1x16x1024xf32>
    %182 = vector.shape_cast %181 : vector<1x16x1024xf32> to vector<16x1024xf32>
    %183 = arith.truncf %177 : vector<16x256xf32> to vector<16x256xbf16>
    %cst_51 = arith.constant dense<0.000000e+00> : vector<16x1024xf32>
    %184 = tpu.matmul %183, %3, %cst_51 {dimension_numbers = #tpu.dot_dimension_numbers<[1], [0], [0], [1], [0, 0, 1, 1], [], []>} : vector<16x256xbf16>, vector<256x1024xbf16>, vector<16x1024xf32> -> vector<16x1024xf32>
    %185 = arith.addf %182, %184 : vector<16x1024xf32>
    %186 = vector.extract_strided_slice %185 {offsets = [0, 0], sizes = [16, 256], strides = [1, 1]} : vector<16x1024xf32> to vector<16x256xf32>
    %187 = arith.negf %186 : vector<16x256xf32>
    %188 = math.exp %187 : vector<16x256xf32>
    %cst_52 = arith.constant 1.000000e+00 : f32
    %189 = vector.broadcast %cst_52 : f32 to vector<16x256xf32>
    %190 = arith.addf %189, %188 : vector<16x256xf32>
    %191 = arith.divf %189, %190 : vector<16x256xf32>
    %192 = vector.extract_strided_slice %185 {offsets = [0, 256], sizes = [16, 256], strides = [1, 1]} : vector<16x1024xf32> to vector<16x256xf32>
    %193 = arith.negf %192 : vector<16x256xf32>
    %194 = math.exp %193 : vector<16x256xf32>
    %cst_53 = arith.constant 1.000000e+00 : f32
    %195 = vector.broadcast %cst_53 : f32 to vector<16x256xf32>
    %196 = arith.addf %195, %194 : vector<16x256xf32>
    %197 = arith.divf %195, %196 : vector<16x256xf32>
    %198 = vector.extract_strided_slice %185 {offsets = [0, 512], sizes = [16, 256], strides = [1, 1]} : vector<16x1024xf32> to vector<16x256xf32>
    %199 = math.tanh %198 : vector<16x256xf32>
    %200 = vector.extract_strided_slice %185 {offsets = [0, 768], sizes = [16, 256], strides = [1, 1]} : vector<16x1024xf32> to vector<16x256xf32>
    %201 = arith.negf %200 : vector<16x256xf32>
    %202 = math.exp %201 : vector<16x256xf32>
    %cst_54 = arith.constant 1.000000e+00 : f32
    %203 = vector.broadcast %cst_54 : f32 to vector<16x256xf32>
    %204 = arith.addf %203, %202 : vector<16x256xf32>
    %205 = arith.divf %203, %204 : vector<16x256xf32>
    %206 = arith.mulf %197, %175 : vector<16x256xf32>
    %207 = arith.mulf %191, %199 : vector<16x256xf32>
    %208 = arith.addf %206, %207 : vector<16x256xf32>
    %209 = math.tanh %208 : vector<16x256xf32>
    %210 = arith.mulf %205, %209 : vector<16x256xf32>
    %211 = arith.extui %12 : i1 to i32
    %c0_i32_55 = arith.constant 0 : i32
    %212 = arith.cmpi ne, %211, %c0_i32_55 : i32
    scf.if %212 {
      %285 = arith.truncf %210 : vector<16x256xf32> to vector<16x256xbf16>
      %286 = arith.index_cast %c5_i32 : i32 to index
      %c0_76 = arith.constant 0 : index
      %c0_77 = arith.constant 0 : index
      %287 = vector.load %arg7[%286, %c0_76, %c0_77] : memref<8x16x256xbf16, #tpu.memory_space<vmem>>, vector<1x16x256xbf16>
      %288 = vector.shape_cast %287 : vector<1x16x256xbf16> to vector<16x256xbf16>
      %289 = vector.shape_cast %285 : vector<16x256xbf16> to vector<1x16x256xbf16>
      tpu.vector_store %arg7[%286, %c0_76, %c0_77], %289 {strides = array<i32>} : memref<8x16x256xbf16, #tpu.memory_space<vmem>>, vector<1x16x256xbf16>,
    } else {
    }
    %c6_i32 = arith.constant 6 : i32
    %213 = arith.index_cast %c6_i32 : i32 to index
    %c0_56 = arith.constant 0 : index
    %c0_57 = arith.constant 0 : index
    %214 = vector.load %arg8[%213, %c0_56, %c0_57] : memref<8x16x1024xf32, #tpu.memory_space<vmem>>, vector<1x16x1024xf32>
    %215 = vector.shape_cast %214 : vector<1x16x1024xf32> to vector<16x1024xf32>
    %216 = arith.truncf %210 : vector<16x256xf32> to vector<16x256xbf16>
    %cst_58 = arith.constant dense<0.000000e+00> : vector<16x1024xf32>
    %217 = tpu.matmul %216, %3, %cst_58 {dimension_numbers = #tpu.dot_dimension_numbers<[1], [0], [0], [1], [0, 0, 1, 1], [], []>} : vector<16x256xbf16>, vector<256x1024xbf16>, vector<16x1024xf32> -> vector<16x1024xf32>
    %218 = arith.addf %215, %217 : vector<16x1024xf32>
    %219 = vector.extract_strided_slice %218 {offsets = [0, 0], sizes = [16, 256], strides = [1, 1]} : vector<16x1024xf32> to vector<16x256xf32>
    %220 = arith.negf %219 : vector<16x256xf32>
    %221 = math.exp %220 : vector<16x256xf32>
    %cst_59 = arith.constant 1.000000e+00 : f32
    %222 = vector.broadcast %cst_59 : f32 to vector<16x256xf32>
    %223 = arith.addf %222, %221 : vector<16x256xf32>
    %224 = arith.divf %222, %223 : vector<16x256xf32>
    %225 = vector.extract_strided_slice %218 {offsets = [0, 256], sizes = [16, 256], strides = [1, 1]} : vector<16x1024xf32> to vector<16x256xf32>
    %226 = arith.negf %225 : vector<16x256xf32>
    %227 = math.exp %226 : vector<16x256xf32>
    %cst_60 = arith.constant 1.000000e+00 : f32
    %228 = vector.broadcast %cst_60 : f32 to vector<16x256xf32>
    %229 = arith.addf %228, %227 : vector<16x256xf32>
    %230 = arith.divf %228, %229 : vector<16x256xf32>
    %231 = vector.extract_strided_slice %218 {offsets = [0, 512], sizes = [16, 256], strides = [1, 1]} : vector<16x1024xf32> to vector<16x256xf32>
    %232 = math.tanh %231 : vector<16x256xf32>
    %233 = vector.extract_strided_slice %218 {offsets = [0, 768], sizes = [16, 256], strides = [1, 1]} : vector<16x1024xf32> to vector<16x256xf32>
    %234 = arith.negf %233 : vector<16x256xf32>
    %235 = math.exp %234 : vector<16x256xf32>
    %cst_61 = arith.constant 1.000000e+00 : f32
    %236 = vector.broadcast %cst_61 : f32 to vector<16x256xf32>
    %237 = arith.addf %236, %235 : vector<16x256xf32>
    %238 = arith.divf %236, %237 : vector<16x256xf32>
    %239 = arith.mulf %230, %208 : vector<16x256xf32>
    %240 = arith.mulf %224, %232 : vector<16x256xf32>
    %241 = arith.addf %239, %240 : vector<16x256xf32>
    %242 = math.tanh %241 : vector<16x256xf32>
    %243 = arith.mulf %238, %242 : vector<16x256xf32>
    %244 = arith.extui %12 : i1 to i32
    %c0_i32_62 = arith.constant 0 : i32
    %245 = arith.cmpi ne, %244, %c0_i32_62 : i32
    scf.if %245 {
      %285 = arith.truncf %243 : vector<16x256xf32> to vector<16x256xbf16>
      %286 = arith.index_cast %c6_i32 : i32 to index
      %c0_76 = arith.constant 0 : index
      %c0_77 = arith.constant 0 : index
      %287 = vector.load %arg7[%286, %c0_76, %c0_77] : memref<8x16x256xbf16, #tpu.memory_space<vmem>>, vector<1x16x256xbf16>
      %288 = vector.shape_cast %287 : vector<1x16x256xbf16> to vector<16x256xbf16>
      %289 = vector.shape_cast %285 : vector<16x256xbf16> to vector<1x16x256xbf16>
      tpu.vector_store %arg7[%286, %c0_76, %c0_77], %289 {strides = array<i32>} : memref<8x16x256xbf16, #tpu.memory_space<vmem>>, vector<1x16x256xbf16>,
    } else {
    }
    %c7_i32 = arith.constant 7 : i32
    %246 = arith.index_cast %c7_i32 : i32 to index
    %c0_63 = arith.constant 0 : index
    %c0_64 = arith.constant 0 : index
    %247 = vector.load %arg8[%246, %c0_63, %c0_64] : memref<8x16x1024xf32, #tpu.memory_space<vmem>>, vector<1x16x1024xf32>
    %248 = vector.shape_cast %247 : vector<1x16x1024xf32> to vector<16x1024xf32>
    %249 = arith.truncf %243 : vector<16x256xf32> to vector<16x256xbf16>
    %cst_65 = arith.constant dense<0.000000e+00> : vector<16x1024xf32>
    %250 = tpu.matmul %249, %3, %cst_65 {dimension_numbers = #tpu.dot_dimension_numbers<[1], [0], [0], [1], [0, 0, 1, 1], [], []>} : vector<16x256xbf16>, vector<256x1024xbf16>, vector<16x1024xf32> -> vector<16x1024xf32>
    %251 = arith.addf %248, %250 : vector<16x1024xf32>
    %252 = vector.extract_strided_slice %251 {offsets = [0, 0], sizes = [16, 256], strides = [1, 1]} : vector<16x1024xf32> to vector<16x256xf32>
    %253 = arith.negf %252 : vector<16x256xf32>
    %254 = math.exp %253 : vector<16x256xf32>
    %cst_66 = arith.constant 1.000000e+00 : f32
    %255 = vector.broadcast %cst_66 : f32 to vector<16x256xf32>
    %256 = arith.addf %255, %254 : vector<16x256xf32>
    %257 = arith.divf %255, %256 : vector<16x256xf32>
    %258 = vector.extract_strided_slice %251 {offsets = [0, 256], sizes = [16, 256], strides = [1, 1]} : vector<16x1024xf32> to vector<16x256xf32>
    %259 = arith.negf %258 : vector<16x256xf32>
    %260 = math.exp %259 : vector<16x256xf32>
    %cst_67 = arith.constant 1.000000e+00 : f32
    %261 = vector.broadcast %cst_67 : f32 to vector<16x256xf32>
    %262 = arith.addf %261, %260 : vector<16x256xf32>
    %263 = arith.divf %261, %262 : vector<16x256xf32>
    %264 = vector.extract_strided_slice %251 {offsets = [0, 512], sizes = [16, 256], strides = [1, 1]} : vector<16x1024xf32> to vector<16x256xf32>
    %265 = math.tanh %264 : vector<16x256xf32>
    %266 = vector.extract_strided_slice %251 {offsets = [0, 768], sizes = [16, 256], strides = [1, 1]} : vector<16x1024xf32> to vector<16x256xf32>
    %267 = arith.negf %266 : vector<16x256xf32>
    %268 = math.exp %267 : vector<16x256xf32>
    %cst_68 = arith.constant 1.000000e+00 : f32
    %269 = vector.broadcast %cst_68 : f32 to vector<16x256xf32>
    %270 = arith.addf %269, %268 : vector<16x256xf32>
    %271 = arith.divf %269, %270 : vector<16x256xf32>
    %272 = arith.mulf %263, %241 : vector<16x256xf32>
    %273 = arith.mulf %257, %265 : vector<16x256xf32>
    %274 = arith.addf %272, %273 : vector<16x256xf32>
    %275 = math.tanh %274 : vector<16x256xf32>
    %276 = arith.mulf %271, %275 : vector<16x256xf32>
    %277 = arith.extui %12 : i1 to i32
    %c0_i32_69 = arith.constant 0 : i32
    %278 = arith.cmpi ne, %277, %c0_i32_69 : i32
    scf.if %278 {
      %285 = arith.truncf %276 : vector<16x256xf32> to vector<16x256xbf16>
      %286 = arith.index_cast %c7_i32 : i32 to index
      %c0_76 = arith.constant 0 : index
      %c0_77 = arith.constant 0 : index
      %287 = vector.load %arg7[%286, %c0_76, %c0_77] : memref<8x16x256xbf16, #tpu.memory_space<vmem>>, vector<1x16x256xbf16>
      %288 = vector.shape_cast %287 : vector<1x16x256xbf16> to vector<16x256xbf16>
      %289 = vector.shape_cast %285 : vector<16x256xbf16> to vector<1x16x256xbf16>
      tpu.vector_store %arg7[%286, %c0_76, %c0_77], %289 {strides = array<i32>} : memref<8x16x256xbf16, #tpu.memory_space<vmem>>, vector<1x16x256xbf16>,
    } else {
    }
    %c8_i32 = arith.constant 8 : i32
    %c0_70 = arith.constant 0 : index
    %c0_71 = arith.constant 0 : index
    %c0_72 = arith.constant 0 : index
    %279 = vector.load %arg5[%c0_70, %c0_71, %c0_72] : memref<1x16x256xf32, #tpu.memory_space<vmem>>, vector<1x16x256xf32>
    %280 = vector.shape_cast %279 : vector<1x16x256xf32> to vector<16x256xf32>
    %281 = vector.shape_cast %276 : vector<16x256xf32> to vector<1x16x256xf32>
    tpu.vector_store %arg5[%c0_70, %c0_71, %c0_72], %281 {strides = array<i32>} : memref<1x16x256xf32, #tpu.memory_space<vmem>>, vector<1x16x256xf32>,
    %c0_73 = arith.constant 0 : index
    %c0_74 = arith.constant 0 : index
    %c0_75 = arith.constant 0 : index
    %282 = vector.load %arg6[%c0_73, %c0_74, %c0_75] : memref<1x16x256xf32, #tpu.memory_space<vmem>>, vector<1x16x256xf32>
    %283 = vector.shape_cast %282 : vector<1x16x256xf32> to vector<16x256xf32>
    %284 = vector.shape_cast %274 : vector<16x256xf32> to vector<1x16x256xf32>
    tpu.vector_store %arg6[%c0_73, %c0_74, %c0_75], %284 {strides = array<i32>} : memref<1x16x256xf32, #tpu.memory_space<vmem>>, vector<1x16x256xf32>,
    return
  }
  func.func @transform_0(%arg0: i32) -> (i32, i32, i32) {
    %c0_i32 = arith.constant 0 : i32
    %c0_i32_0 = arith.constant 0 : i32
    %c0_i32_1 = arith.constant 0 : i32
    %c0_i32_2 = arith.constant 0 : i32
    return %c0_i32, %c0_i32_0, %c0_i32_1 : i32, i32, i32
  }
  func.func @transform_1(%arg0: i32) -> (i32, i32, i32) {
    %c0_i32 = arith.constant 0 : i32
    %c0_i32_0 = arith.constant 0 : i32
    %c0_i32_1 = arith.constant 0 : i32
    return %arg0, %c0_i32, %c0_i32_0 : i32, i32, i32
  }
  func.func @transform_2(%arg0: i32) -> (i32, i32, i32) {
    %c0_i32 = arith.constant 0 : i32
    %c0_i32_0 = arith.constant 0 : i32
    %c0_i32_1 = arith.constant 0 : i32
    return %arg0, %c0_i32, %c0_i32_0 : i32, i32, i32
  }
  func.func @transform_3(%arg0: i32) -> (i32, i32, i32) {
    %c0_i32 = arith.constant 0 : i32
    %c0_i32_0 = arith.constant 0 : i32
    %c0_i32_1 = arith.constant 0 : i32
    return %arg0, %c0_i32, %c0_i32_0 : i32, i32, i32
  }
  func.func @transform_4(%arg0: i32) -> (i32, i32, i32) {
    %c0_i32 = arith.constant 0 : i32
    %c0_i32_0 = arith.constant 0 : i32
    %c0_i32_1 = arith.constant 0 : i32
    return %arg0, %c0_i32, %c0_i32_0 : i32, i32, i32
  }
  func.func @transform_5(%arg0: i32) -> (i32, i32, i32) {
    %c0_i32 = arith.constant 0 : i32
    %c0_i32_0 = arith.constant 0 : i32
    %c0_i32_1 = arith.constant 0 : i32
    return %arg0, %c0_i32, %c0_i32_0 : i32, i32, i32
  }
}

</mosaic_0001>

<llo_original>
// kernel: tpu_custom_call.1
$region0: #{tpu_custom_call.1}
  #allocation0 [shape = 'u32[]', space=smem, size = 0x4, offset = 0x4, fixed_abs, tag = 'smem constant byte address 0x4 - core index']
  #allocation1 [shape = 'u32[144,128]{1,0:T(1,128)}', space=vmem, size = 0x12000, scoped, tag = 'internal scratch']
  #allocation2 [shape = 'bf16[8,16,256]{2,1,0:T(8,128)(2,1)}', space=vmem, size = 0x10000, scoped, tag = 'scratch operand']
  #allocation3 [shape = 'f32[8,16,1024]{2,1,0:T(8,128)}', space=vmem, size = 0x80000, scoped, tag = 'scratch operand']
  %s0 = inlined_call_operand.hbm [shape: bf16[8,16,256], index: 0, kind: input, shape index: {}]
  %s1 = inlined_call_operand.hbm [shape: bf16[2,256,1024], index: 1, kind: input, shape index: {}]
  %s2 = inlined_call_operand.hbm [shape: bf16[2,256,1024], index: 2, kind: input, shape index: {}]
  %s3 = inlined_call_operand.hbm [shape: f32[2,1,1024], index: 3, kind: input, shape index: {}]
  %s4 = inlined_call_operand.hbm [shape: f32[2,16,256], index: 4, kind: output, shape index: {0}]
  %s5 = inlined_call_operand.hbm [shape: f32[2,16,256], index: 5, kind: output, shape index: {1}]
  %6 = xla_tuple %s4, %s5
  %s7 = sld [smem:[#allocation0]]
  $region113: #{tpu_custom_call.1} parent=0
    _
  %s9 = ssub.s32 1, %s7
  %s10 = scalar_select 0, %s9, %s7
  $region1: #{tpu_custom_call.1} parent=0
    #allocation4 [shape = 'u8[65536]{0}', space=vmem, size = 0x10000, scoped, tag = 'input window, operand 0, single buffered']
    #allocation5 [shape = 's32[2]{0}', space=sflag, size = 0x8, scoped, tag = 'scoped memory for tpu_custom_call.1']
    #allocation6 [shape = 's32[2]{0}', space=sflag, size = 0x8, scoped, tag = 'scoped memory for tpu_custom_call.1']
    #allocation7 [shape = 'u8[1048576]{0}', space=vmem, size = 0x100000, scoped, tag = 'input window, operand 1']
    #allocation8 [shape = 's32[2]{0}', space=sflag, size = 0x8, scoped, tag = 'scoped memory for tpu_custom_call.1']
    #allocation9 [shape = 'u8[1048576]{0}', space=vmem, size = 0x100000, scoped, tag = 'input window, operand 2']
    #allocation10 [shape = 'u8[8192]{0}', space=vmem, size = 0x2000, scoped, tag = 'input window, operand 3']
    #allocation11 [shape = 's32[2]{0}', space=sflag, size = 0x8, scoped, tag = 'scoped memory for tpu_custom_call.1']
    #allocation12 [shape = 'u8[32768]{0}', space=vmem, size = 0x8000, scoped, tag = 'output window, operand 0']
    #allocation13 [shape = 'u8[32768]{0}', space=vmem, size = 0x8000, scoped, tag = 'output window, operand 1']
    #allocation14 [shape = 's32[2]{0}', space=sflag, size = 0x8, scoped, tag = 'scoped memory for tpu_custom_call.1']
    %11 = vsyncpa [#allocation5], 0
    %12 = vsyncpa [#allocation8], 0
    %s13 = scalar_lea.sflag [#allocation8], 1
    %14 = vsyncpa %s13, 0
    %15 = vsyncpa [#allocation11], 0
    %s16 = scalar_lea.sflag [#allocation11], 1
    %17 = vsyncpa %s16, 0
    %18 = vsyncpa [#allocation6], 0
    %s19 = scalar_lea.sflag [#allocation6], 1
    %20 = vsyncpa %s19, 0
    %21 = vsyncpa [#allocation14], 0
    %s22 = scalar_lea.sflag [#allocation14], 1
    %23 = vsyncpa %s22, 0
    loop: start=0, step=1, limit=4
    $region2: #{tpu_custom_call.1} parent=1 // loop_pre_header
      _
    $region3: #{tpu_custom_call.1} parent=1 // loop_header
      %s25 = sphi 0, %s29
      %p26 = scmp.ge.s32.totalorder %s25, 4
      %s33 = sphi 0, %s33
      %s35 = sphi 0, %s33
      %s36 = sphi 0, %s35
      %s50 = sphi 0, %s36
      %s56 = sphi 0, %s58
      %s59 = sphi 0, %s56
      %s60 = sphi 0, %s59
      %s76 = sphi 0, %s60
      %s82 = sphi 0, %s84
      %s85 = sphi 0, %s82
      %s86 = sphi 0, %s85
      %s102 = sphi 0, %s86
      %s108 = sphi 0, %s110
      %s111 = sphi 0, %s108
      %s112 = sphi 0, %s111
      %s128 = sphi 0, %s112
      %s134 = sphi 0, %s136
      %s137 = sphi 0, %s134
      %s138 = sphi 0, %s137
      %s154 = sphi 0, %s138
      %s160 = sphi 0, %s162
      %s163 = sphi 0, %s160
      %s164 = sphi 0, %s163
      %s180 = sphi 0, %s164
    $region4: #{tpu_custom_call.1} parent=1 // loop_header_branch
      %28 = sbr.rel (%p26) target = $region8
    $region5: #{tpu_custom_call.1} parent=1 // loop_body
      %s30 = ssub.s32 %s25, 1
      %s31 = ssub.s32 %s25, 2
      %s32 = sadd.s32 %s25, 1
      %s34 = sadd.s32 %s33, 1
      %p37 = scmp.eq.s32.totalorder %s25, 1
      %p38 = scmp.ne.s32.totalorder %s33, %s35
      %p39 = scmp.eq.s32.totalorder %s25, 0
      %p40 = por %p38, %p39
      %p41 = scmp.ne.s32.totalorder %s33, %s35
      %p42 = scmp.eq.s32.totalorder %s30, 1
      %p43 = por %p41, %p42
      %p44 = scmp.ne.s32.totalorder %s35, %s36
      %p45 = scmp.eq.s32.totalorder %s30, 0
      %p46 = por %p44, %p45
      %p47 = scmp.ne.s32.totalorder %s35, %s36
      %p48 = scmp.eq.s32.totalorder %s31, 1
      %p49 = por %p47, %p48
      %p51 = scmp.ne.s32.totalorder %s36, %s50
      %p52 = scmp.eq.s32.totalorder %s31, 0
      %p53 = por %p51, %p52
      %s54 = ssub.s32 %s25, %s32
      %p55 = scmp.eq.s32.totalorder %s54, 0
      %s57 = sadd.s32 %s56, 1
      %s58 = scalar_select %p55, %s56, %s57
      %p61 = pneg %p55
      %p62 = scmp.eq.s32.totalorder %s25, 1
      %p63 = por %p61, %p62
      %p64 = scmp.ne.s32.totalorder %s56, %s59
      %p65 = scmp.eq.s32.totalorder %s25, 0
      %p66 = por %p64, %p65
      %p67 = scmp.ne.s32.totalorder %s56, %s59
      %p68 = scmp.eq.s32.totalorder %s30, 1
      %p69 = por %p67, %p68
      %p70 = scmp.ne.s32.totalorder %s59, %s60
      %p71 = scmp.eq.s32.totalorder %s30, 0
      %p72 = por %p70, %p71
      %p73 = scmp.ne.s32.totalorder %s59, %s60
      %p74 = scmp.eq.s32.totalorder %s31, 1
      %p75 = por %p73, %p74
      %p77 = scmp.ne.s32.totalorder %s60, %s76
      %p78 = scmp.eq.s32.totalorder %s31, 0
      %p79 = por %p77, %p78
      %s80 = ssub.s32 %s25, %s32
      %p81 = scmp.eq.s32.totalorder %s80, 0
      %s83 = sadd.s32 %s82, 1
      %s84 = scalar_select %p81, %s82, %s83
      %p87 = pneg %p81
      %p88 = scmp.eq.s32.totalorder %s25, 1
      %p89 = por %p87, %p88
      %p90 = scmp.ne.s32.totalorder %s82, %s85
      %p91 = scmp.eq.s32.totalorder %s25, 0
      %p92 = por %p90, %p91
      %p93 = scmp.ne.s32.totalorder %s82, %s85
      %p94 = scmp.eq.s32.totalorder %s30, 1
      %p95 = por %p93, %p94
      %p96 = scmp.ne.s32.totalorder %s85, %s86
      %p97 = scmp.eq.s32.totalorder %s30, 0
      %p98 = por %p96, %p97
      %p99 = scmp.ne.s32.totalorder %s85, %s86
      %p100 = scmp.eq.s32.totalorder %s31, 1
      %p101 = por %p99, %p100
      %p103 = scmp.ne.s32.totalorder %s86, %s102
      %p104 = scmp.eq.s32.totalorder %s31, 0
      %p105 = por %p103, %p104
      %s106 = ssub.s32 %s25, %s32
      %p107 = scmp.eq.s32.totalorder %s106, 0
      %s109 = sadd.s32 %s108, 1
      %s110 = scalar_select %p107, %s108, %s109
      %p113 = pneg %p107
      %p114 = scmp.eq.s32.totalorder %s25, 1
      %p115 = por %p113, %p114
      %p116 = scmp.ne.s32.totalorder %s108, %s111
      %p117 = scmp.eq.s32.totalorder %s25, 0
      %p118 = por %p116, %p117
      %p119 = scmp.ne.s32.totalorder %s108, %s111
      %p120 = scmp.eq.s32.totalorder %s30, 1
      %p121 = por %p119, %p120
      %p122 = scmp.ne.s32.totalorder %s111, %s112
      %p123 = scmp.eq.s32.totalorder %s30, 0
      %p124 = por %p122, %p123
      %p125 = scmp.ne.s32.totalorder %s111, %s112
      %p126 = scmp.eq.s32.totalorder %s31, 1
      %p127 = por %p125, %p126
      %p129 = scmp.ne.s32.totalorder %s112, %s128
      %p130 = scmp.eq.s32.totalorder %s31, 0
      %p131 = por %p129, %p130
      %s132 = ssub.s32 %s25, %s32
      %p133 = scmp.eq.s32.totalorder %s132, 0
      %s135 = sadd.s32 %s134, 1
      %s136 = scalar_select %p133, %s134, %s135
      %p139 = pneg %p133
      %p140 = scmp.eq.s32.totalorder %s25, 1
      %p141 = por %p139, %p140
      %p142 = scmp.ne.s32.totalorder %s134, %s137
      %p143 = scmp.eq.s32.totalorder %s25, 0
      %p144 = por %p142, %p143
      %p145 = scmp.ne.s32.totalorder %s134, %s137
      %p146 = scmp.eq.s32.totalorder %s30, 1
      %p147 = por %p145, %p146
      %p148 = scmp.ne.s32.totalorder %s137, %s138
      %p149 = scmp.eq.s32.totalorder %s30, 0
      %p150 = por %p148, %p149
      %p151 = scmp.ne.s32.totalorder %s137, %s138
      %p152 = scmp.eq.s32.totalorder %s31, 1
      %p153 = por %p151, %p152
      %p155 = scmp.ne.s32.totalorder %s138, %s154
      %p156 = scmp.eq.s32.totalorder %s31, 0
      %p157 = por %p155, %p156
      %s158 = ssub.s32 %s25, %s32
      %p159 = scmp.eq.s32.totalorder %s158, 0
      %s161 = sadd.s32 %s160, 1
      %s162 = scalar_select %p159, %s160, %s161
      %p165 = pneg %p159
      %p166 = scmp.eq.s32.totalorder %s25, 1
      %p167 = por %p165, %p166
      %p168 = scmp.ne.s32.totalorder %s160, %s163
      %p169 = scmp.eq.s32.totalorder %s25, 0
      %p170 = por %p168, %p169
      %p171 = scmp.ne.s32.totalorder %s160, %s163
      %p172 = scmp.eq.s32.totalorder %s30, 1
      %p173 = por %p171, %p172
      %p174 = scmp.ne.s32.totalorder %s163, %s164
      %p175 = scmp.eq.s32.totalorder %s30, 0
      %p176 = por %p174, %p175
      %p177 = scmp.ne.s32.totalorder %s163, %s164
      %p178 = scmp.eq.s32.totalorder %s31, 1
      %p179 = por %p177, %p178
      %p181 = scmp.ne.s32.totalorder %s164, %s180
      %p182 = scmp.eq.s32.totalorder %s31, 0
      %p183 = por %p181, %p182
      %p184 = scmp.le.s32.totalorder 1, %s25
      %p185 = scmp.lt.s32.totalorder %s25, 3
      %p186 = pnand %p184, %p185
      %p187 = pneg %p186
      // Predicated region
      $region9: #{tpu_custom_call.1} parent=5 // pred_check
        _
      $region10: #{tpu_custom_call.1} parent=5 // pred_check_branch
        %189 = sbr.rel (%p186) target = $region12
      $region11: #{tpu_custom_call.1} parent=5 // pred_region
        %s190 = ssub.s32 %s25, 1
        // Predicated region
        $region13: #{tpu_custom_call.1} parent=11 // pred_check
          %p191 = pneg %p46
        $region14: #{tpu_custom_call.1} parent=11 // pred_check_branch
          %193 = sbr.rel (%p191) target = $region16
        $region15: #{tpu_custom_call.1} parent=11 // pred_region
          %s195 = ssub.s32 2048, 2048
          %196 = vsyncadd [#allocation5], %s195
          %s197 = sshll.u32 [#allocation4], 4
          %s198 = int_to_ptr.vmem [resolvable:$true] %s197
          %203 = dma.hbm_to_vmem [thread:$0]  %s0, 2048, %s198, [#allocation5], 128, 128, 8
        $region16: #{tpu_custom_call.1} parent=11 // pred_fallthru
          _
      $region12: #{tpu_custom_call.1} parent=5 // pred_fallthru
        _
      %p204 = scmp.lt.s32.totalorder %s25, 2
      // Predicated region
      $region17: #{tpu_custom_call.1} parent=5 // pred_check
        %p205 = pneg %p204
      $region18: #{tpu_custom_call.1} parent=5 // pred_check_branch
        %207 = sbr.rel (%p205) target = $region20
      $region19: #{tpu_custom_call.1} parent=5 // pred_region
        // Predicated region
        $region21: #{tpu_custom_call.1} parent=19 // pred_check
          %p208 = pneg %p66
        $region22: #{tpu_custom_call.1} parent=19 // pred_check_branch
          %210 = sbr.rel (%p208) target = $region24
        $region23: #{tpu_custom_call.1} parent=19 // pred_region
          %s211 = sand.u32 %s25, 1
          %s212 = scalar_lea.sflag [#allocation8], %s211
          %s213 = sand.u32 %s56, 1
          %s214 = smul.addr %s213, 1024
          %s215 = scalar_lea.vmem [#allocation7], %s214
          %s217 = ssub.s32 16384, 16384
          %218 = vsyncadd %s212, %s217
          %s219 = smul.addr %s25, 256
          %s220 = smul.addr %s219, 64
          %s221 = scalar_lea.hbm %s1, %s220
          %s222 = sshll.u32 %s215, 4
          %s223 = int_to_ptr.vmem [resolvable:$true] %s222
          %228 = dma.hbm_to_vmem [thread:$0]  %s221, 16384, %s223, %s212, 512, 512, 32
        $region24: #{tpu_custom_call.1} parent=19 // pred_fallthru
          _
        // Predicated region
        $region25: #{tpu_custom_call.1} parent=19 // pred_check
          %p229 = pneg %p92
        $region26: #{tpu_custom_call.1} parent=19 // pred_check_branch
          %231 = sbr.rel (%p229) target = $region28
        $region27: #{tpu_custom_call.1} parent=19 // pred_region
          %s232 = sand.u32 %s25, 1
          %s233 = scalar_lea.sflag [#allocation8], %s232
          %s234 = sand.u32 %s82, 1
          %s235 = smul.addr %s234, 1024
          %s236 = scalar_lea.vmem [#allocation9], %s235
          %s238 = ssub.s32 16384, 16384
          %239 = vsyncadd %s233, %s238
          %s240 = smul.addr %s25, 256
          %s241 = smul.addr %s240, 64
          %s242 = scalar_lea.hbm %s2, %s241
          %s243 = sshll.u32 %s236, 4
          %s244 = int_to_ptr.vmem [resolvable:$true] %s243
          %249 = dma.hbm_to_vmem [thread:$0]  %s242, 16384, %s244, %s233, 512, 512, 32
        $region28: #{tpu_custom_call.1} parent=19 // pred_fallthru
          _
        // Predicated region
        $region29: #{tpu_custom_call.1} parent=19 // pred_check
          %p250 = pneg %p118
        $region30: #{tpu_custom_call.1} parent=19 // pred_check_branch
          %252 = sbr.rel (%p250) target = $region32
        $region31: #{tpu_custom_call.1} parent=19 // pred_region
          %s253 = sand.u32 %s108, 1
          %s254 = scalar_lea.sflag [#allocation11], %s253
          %s255 = sand.u32 %s108, 1
          %s256 = smul.addr %s255, 8
          %s257 = scalar_lea.vmem [#allocation10], %s256
          %s259 = ssub.s32 128, 128
          %260 = vsyncadd %s254, %s259
          %s261 = smul.addr %s25, 8
          %s262 = smul.addr %s261, 16
          %s263 = scalar_lea.hbm %s3, %s262
          %s265 = sshll.u32 %s257, 4
          %s266 = int_to_ptr.vmem [resolvable:$true] %s265
          %268 = dma.hbm_to_vmem [thread:$0]  %s263, 128, %s266, %s254
        $region32: #{tpu_custom_call.1} parent=19 // pred_fallthru
          _
      $region20: #{tpu_custom_call.1} parent=5 // pred_fallthru
        _
      %p269 = scmp.le.s32.totalorder 1, %s25
      %p270 = scmp.lt.s32.totalorder %s25, 3
      %p271 = pnand %p269, %p270
      %p272 = pneg %p271
      // Predicated region
      $region33: #{tpu_custom_call.1} parent=5 // pred_check
        _
      $region34: #{tpu_custom_call.1} parent=5 // pred_check_branch
        %274 = sbr.rel (%p271) target = $region36
      $region35: #{tpu_custom_call.1} parent=5 // pred_region
        %s275 = ssub.s32 %s25, 1
        // Predicated region
        $region37: #{tpu_custom_call.1} parent=35 // pred_check
          %p276 = pneg %p46
        $region38: #{tpu_custom_call.1} parent=35 // pred_check_branch
          %278 = sbr.rel (%p276) target = $region40
        $region39: #{tpu_custom_call.1} parent=35 // pred_region
          %279 = dma.done [#allocation5], 2048
        $region40: #{tpu_custom_call.1} parent=35 // pred_fallthru
          _
        %s280 = sand.u32 %s30, 1
        %s281 = scalar_lea.sflag [#allocation8], %s280
        %s282 = sand.u32 %s59, 1
        %s283 = smul.addr %s282, 1024
        %s284 = scalar_lea.vmem [#allocation7], %s283
        // Predicated region
        $region41: #{tpu_custom_call.1} parent=35 // pred_check
          %p285 = pneg %p72
        $region42: #{tpu_custom_call.1} parent=35 // pred_check_branch
          %287 = sbr.rel (%p285) target = $region44
        $region43: #{tpu_custom_call.1} parent=35 // pred_region
          %288 = dma.done %s281, 16384
        $region44: #{tpu_custom_call.1} parent=35 // pred_fallthru
          _
        %s289 = sand.u32 %s30, 1
        %s290 = scalar_lea.sflag [#allocation8], %s289
        %s291 = sand.u32 %s85, 1
        %s292 = smul.addr %s291, 1024
        %s293 = scalar_lea.vmem [#allocation9], %s292
        // Predicated region
        $region45: #{tpu_custom_call.1} parent=35 // pred_check
          %p294 = pneg %p98
        $region46: #{tpu_custom_call.1} parent=35 // pred_check_branch
          %296 = sbr.rel (%p294) target = $region48
        $region47: #{tpu_custom_call.1} parent=35 // pred_region
          %297 = dma.done %s290, 16384
        $region48: #{tpu_custom_call.1} parent=35 // pred_fallthru
          _
        %s298 = sand.u32 %s111, 1
        %s299 = scalar_lea.sflag [#allocation11], %s298
        %s300 = sand.u32 %s111, 1
        %s301 = smul.addr %s300, 8
        %s302 = scalar_lea.vmem [#allocation10], %s301
        // Predicated region
        $region49: #{tpu_custom_call.1} parent=35 // pred_check
          %p303 = pneg %p124
        $region50: #{tpu_custom_call.1} parent=35 // pred_check_branch
          %305 = sbr.rel (%p303) target = $region52
        $region51: #{tpu_custom_call.1} parent=35 // pred_region
          %306 = dma.done %s299, 128
        $region52: #{tpu_custom_call.1} parent=35 // pred_fallthru
          _
        %p307 = pneg %p46
        %p308 = pneg %p43
        %s309 = sand.u32 %s30, 1
        %s310 = scalar_lea.sflag [#allocation8], %s309
        %s311 = sand.u32 %s59, 1
        %s312 = smul.addr %s311, 1024
        %s313 = scalar_lea.vmem [#allocation7], %s312
        %p314 = pneg %p72
        %p315 = pneg %p69
        %s316 = sand.u32 %s30, 1
        %s317 = scalar_lea.sflag [#allocation8], %s316
        %s318 = sand.u32 %s85, 1
        %s319 = smul.addr %s318, 1024
        %s320 = scalar_lea.vmem [#allocation9], %s319
        %p321 = pneg %p98
        %p322 = pneg %p95
        %s323 = sand.u32 %s111, 1
        %s324 = scalar_lea.sflag [#allocation11], %s323
        %s325 = sand.u32 %s111, 1
        %s326 = smul.addr %s325, 8
        %s327 = scalar_lea.vmem [#allocation10], %s326
        %p328 = pneg %p124
        %p329 = pneg %p121
        %p330 = pneg %p150
        %p331 = pneg %p147
        %s332 = sand.u32 %s137, 1
        %s333 = scalar_lea.sflag [#allocation6], %s332
        %s334 = sand.u32 %s137, 1
        %s335 = smul.addr %s334, 32
        %s336 = scalar_lea.vmem [#allocation12], %s335
        %p337 = pneg %p176
        %p338 = pneg %p173
        %s339 = sand.u32 %s163, 1
        %s340 = scalar_lea.sflag [#allocation14], %s339
        %s341 = sand.u32 %s163, 1
        %s342 = smul.addr %s341, 32
        %s343 = scalar_lea.vmem [#allocation13], %s342
        %v345 = vld [vmem:[%s284] sm:$0xff]
        %v346 = vld [vmem:[%s284 + $0x8] sm:$0xff]
        %v347 = vld [vmem:[%s284 + $0x10] sm:$0xff]
        %v348 = vld [vmem:[%s284 + $0x18] sm:$0xff]
        %v349 = vld [vmem:[%s284 + $0x20] sm:$0xff]
        %v350 = vld [vmem:[%s284 + $0x28] sm:$0xff]
        %v351 = vld [vmem:[%s284 + $0x30] sm:$0xff]
        %v352 = vld [vmem:[%s284 + $0x38] sm:$0xff]
        %v353 = vld [vmem:[%s284 + $0x40] sm:$0xff]
        %v354 = vld [vmem:[%s284 + $0x48] sm:$0xff]
        %v355 = vld [vmem:[%s284 + $0x50] sm:$0xff]
        %v356 = vld [vmem:[%s284 + $0x58] sm:$0xff]
        %v357 = vld [vmem:[%s284 + $0x60] sm:$0xff]
        %v358 = vld [vmem:[%s284 + $0x68] sm:$0xff]
        %v359 = vld [vmem:[%s284 + $0x70] sm:$0xff]
        %v360 = vld [vmem:[%s284 + $0x78] sm:$0xff]
        %v361 = vld [vmem:[%s284 + $0x80] sm:$0xff]
        %v362 = vld [vmem:[%s284 + $0x88] sm:$0xff]
        %v363 = vld [vmem:[%s284 + $0x90] sm:$0xff]
        %v364 = vld [vmem:[%s284 + $0x98] sm:$0xff]
        %v365 = vld [vmem:[%s284 + $0xa0] sm:$0xff]
        %v366 = vld [vmem:[%s284 + $0xa8] sm:$0xff]
        %v367 = vld [vmem:[%s284 + $0xb0] sm:$0xff]
        %v368 = vld [vmem:[%s284 + $0xb8] sm:$0xff]
        %v369 = vld [vmem:[%s284 + $0xc0] sm:$0xff]
        %v370 = vld [vmem:[%s284 + $0xc8] sm:$0xff]
        %v371 = vld [vmem:[%s284 + $0xd0] sm:$0xff]
        %v372 = vld [vmem:[%s284 + $0xd8] sm:$0xff]
        %v373 = vld [vmem:[%s284 + $0xe0] sm:$0xff]
        %v374 = vld [vmem:[%s284 + $0xe8] sm:$0xff]
        %v375 = vld [vmem:[%s284 + $0xf0] sm:$0xff]
        %v376 = vld [vmem:[%s284 + $0xf8] sm:$0xff]
        %v377 = vld [vmem:[%s284 + $0x100] sm:$0xff]
        %v378 = vld [vmem:[%s284 + $0x108] sm:$0xff]
        %v379 = vld [vmem:[%s284 + $0x110] sm:$0xff]
        %v380 = vld [vmem:[%s284 + $0x118] sm:$0xff]
        %v381 = vld [vmem:[%s284 + $0x120] sm:$0xff]
        %v382 = vld [vmem:[%s284 + $0x128] sm:$0xff]
        %v383 = vld [vmem:[%s284 + $0x130] sm:$0xff]
        %v384 = vld [vmem:[%s284 + $0x138] sm:$0xff]
        %v385 = vld [vmem:[%s284 + $0x140] sm:$0xff]
        %v386 = vld [vmem:[%s284 + $0x148] sm:$0xff]
        %v387 = vld [vmem:[%s284 + $0x150] sm:$0xff]
        %v388 = vld [vmem:[%s284 + $0x158] sm:$0xff]
        %v389 = vld [vmem:[%s284 + $0x160] sm:$0xff]
        %v390 = vld [vmem:[%s284 + $0x168] sm:$0xff]
        %v391 = vld [vmem:[%s284 + $0x170] sm:$0xff]
        %v392 = vld [vmem:[%s284 + $0x178] sm:$0xff]
        %v393 = vld [vmem:[%s284 + $0x180] sm:$0xff]
        %v394 = vld [vmem:[%s284 + $0x188] sm:$0xff]
        %v395 = vld [vmem:[%s284 + $0x190] sm:$0xff]
        %v396 = vld [vmem:[%s284 + $0x198] sm:$0xff]
        %v397 = vld [vmem:[%s284 + $0x1a0] sm:$0xff]
        %v398 = vld [vmem:[%s284 + $0x1a8] sm:$0xff]
        %v399 = vld [vmem:[%s284 + $0x1b0] sm:$0xff]
        %v400 = vld [vmem:[%s284 + $0x1b8] sm:$0xff]
        %v401 = vld [vmem:[%s284 + $0x1c0] sm:$0xff]
        %v402 = vld [vmem:[%s284 + $0x1c8] sm:$0xff]
        %v403 = vld [vmem:[%s284 + $0x1d0] sm:$0xff]
        %v404 = vld [vmem:[%s284 + $0x1d8] sm:$0xff]
        %v405 = vld [vmem:[%s284 + $0x1e0] sm:$0xff]
        %v406 = vld [vmem:[%s284 + $0x1e8] sm:$0xff]
        %v407 = vld [vmem:[%s284 + $0x1f0] sm:$0xff]
        %v408 = vld [vmem:[%s284 + $0x1f8] sm:$0xff]
        %v409 = vld [vmem:[%s284 + $0x200] sm:$0xff]
        %v410 = vld [vmem:[%s284 + $0x208] sm:$0xff]
        %v411 = vld [vmem:[%s284 + $0x210] sm:$0xff]
        %v412 = vld [vmem:[%s284 + $0x218] sm:$0xff]
        %v413 = vld [vmem:[%s284 + $0x220] sm:$0xff]
        %v414 = vld [vmem:[%s284 + $0x228] sm:$0xff]
        %v415 = vld [vmem:[%s284 + $0x230] sm:$0xff]
        %v416 = vld [vmem:[%s284 + $0x238] sm:$0xff]
        %v417 = vld [vmem:[%s284 + $0x240] sm:$0xff]
        %v418 = vld [vmem:[%s284 + $0x248] sm:$0xff]
        %v419 = vld [vmem:[%s284 + $0x250] sm:$0xff]
        %v420 = vld [vmem:[%s284 + $0x258] sm:$0xff]
        %v421 = vld [vmem:[%s284 + $0x260] sm:$0xff]
        %v422 = vld [vmem:[%s284 + $0x268] sm:$0xff]
        %v423 = vld [vmem:[%s284 + $0x270] sm:$0xff]
        %v424 = vld [vmem:[%s284 + $0x278] sm:$0xff]
        %v425 = vld [vmem:[%s284 + $0x280] sm:$0xff]
        %v426 = vld [vmem:[%s284 + $0x288] sm:$0xff]
        %v427 = vld [vmem:[%s284 + $0x290] sm:$0xff]
        %v428 = vld [vmem:[%s284 + $0x298] sm:$0xff]
        %v429 = vld [vmem:[%s284 + $0x2a0] sm:$0xff]
        %v430 = vld [vmem:[%s284 + $0x2a8] sm:$0xff]
        %v431 = vld [vmem:[%s284 + $0x2b0] sm:$0xff]
        %v432 = vld [vmem:[%s284 + $0x2b8] sm:$0xff]
        %v433 = vld [vmem:[%s284 + $0x2c0] sm:$0xff]
        %v434 = vld [vmem:[%s284 + $0x2c8] sm:$0xff]
        %v435 = vld [vmem:[%s284 + $0x2d0] sm:$0xff]
        %v436 = vld [vmem:[%s284 + $0x2d8] sm:$0xff]
        %v437 = vld [vmem:[%s284 + $0x2e0] sm:$0xff]
        %v438 = vld [vmem:[%s284 + $0x2e8] sm:$0xff]
        %v439 = vld [vmem:[%s284 + $0x2f0] sm:$0xff]
        %v440 = vld [vmem:[%s284 + $0x2f8] sm:$0xff]
        %v441 = vld [vmem:[%s284 + $0x300] sm:$0xff]
        %v442 = vld [vmem:[%s284 + $0x308] sm:$0xff]
        %v443 = vld [vmem:[%s284 + $0x310] sm:$0xff]
        %v444 = vld [vmem:[%s284 + $0x318] sm:$0xff]
        %v445 = vld [vmem:[%s284 + $0x320] sm:$0xff]
        %v446 = vld [vmem:[%s284 + $0x328] sm:$0xff]
        %v447 = vld [vmem:[%s284 + $0x330] sm:$0xff]
        %v448 = vld [vmem:[%s284 + $0x338] sm:$0xff]
        %v449 = vld [vmem:[%s284 + $0x340] sm:$0xff]
        %v450 = vld [vmem:[%s284 + $0x348] sm:$0xff]
        %v451 = vld [vmem:[%s284 + $0x350] sm:$0xff]
        %v452 = vld [vmem:[%s284 + $0x358] sm:$0xff]
        %v453 = vld [vmem:[%s284 + $0x360] sm:$0xff]
        %v454 = vld [vmem:[%s284 + $0x368] sm:$0xff]
        %v455 = vld [vmem:[%s284 + $0x370] sm:$0xff]
        %v456 = vld [vmem:[%s284 + $0x378] sm:$0xff]
        %v457 = vld [vmem:[%s284 + $0x380] sm:$0xff]
        %v458 = vld [vmem:[%s284 + $0x388] sm:$0xff]
        %v459 = vld [vmem:[%s284 + $0x390] sm:$0xff]
        %v460 = vld [vmem:[%s284 + $0x398] sm:$0xff]
        %v461 = vld [vmem:[%s284 + $0x3a0] sm:$0xff]
        %v462 = vld [vmem:[%s284 + $0x3a8] sm:$0xff]
        %v463 = vld [vmem:[%s284 + $0x3b0] sm:$0xff]
        %v464 = vld [vmem:[%s284 + $0x3b8] sm:$0xff]
        %v465 = vld [vmem:[%s284 + $0x3c0] sm:$0xff]
        %v466 = vld [vmem:[%s284 + $0x3c8] sm:$0xff]
        %v467 = vld [vmem:[%s284 + $0x3d0] sm:$0xff]
        %v468 = vld [vmem:[%s284 + $0x3d8] sm:$0xff]
        %v469 = vld [vmem:[%s284 + $0x3e0] sm:$0xff]
        %v470 = vld [vmem:[%s284 + $0x3e8] sm:$0xff]
        %v471 = vld [vmem:[%s284 + $0x3f0] sm:$0xff]
        %v472 = vld [vmem:[%s284 + $0x3f8] sm:$0xff]
        %v473 = vld [vmem:[%s293] sm:$0xff]
        %v474 = vld [vmem:[%s293 + $0x8] sm:$0xff]
        %v475 = vld [vmem:[%s293 + $0x10] sm:$0xff]
        %v476 = vld [vmem:[%s293 + $0x18] sm:$0xff]
        %v477 = vld [vmem:[%s293 + $0x20] sm:$0xff]
        %v478 = vld [vmem:[%s293 + $0x28] sm:$0xff]
        %v479 = vld [vmem:[%s293 + $0x30] sm:$0xff]
        %v480 = vld [vmem:[%s293 + $0x38] sm:$0xff]
        %v481 = vld [vmem:[%s293 + $0x40] sm:$0xff]
        %v482 = vld [vmem:[%s293 + $0x48] sm:$0xff]
        %v483 = vld [vmem:[%s293 + $0x50] sm:$0xff]
        %v484 = vld [vmem:[%s293 + $0x58] sm:$0xff]
        %v485 = vld [vmem:[%s293 + $0x60] sm:$0xff]
        %v486 = vld [vmem:[%s293 + $0x68] sm:$0xff]
        %v487 = vld [vmem:[%s293 + $0x70] sm:$0xff]
        %v488 = vld [vmem:[%s293 + $0x78] sm:$0xff]
        %v489 = vld [vmem:[%s293 + $0x80] sm:$0xff]
        %v490 = vld [vmem:[%s293 + $0x88] sm:$0xff]
        %v491 = vld [vmem:[%s293 + $0x90] sm:$0xff]
        %v492 = vld [vmem:[%s293 + $0x98] sm:$0xff]
        %v493 = vld [vmem:[%s293 + $0xa0] sm:$0xff]
        %v494 = vld [vmem:[%s293 + $0xa8] sm:$0xff]
        %v495 = vld [vmem:[%s293 + $0xb0] sm:$0xff]
        %v496 = vld [vmem:[%s293 + $0xb8] sm:$0xff]
        %v497 = vld [vmem:[%s293 + $0xc0] sm:$0xff]
        %v498 = vld [vmem:[%s293 + $0xc8] sm:$0xff]
        %v499 = vld [vmem:[%s293 + $0xd0] sm:$0xff]
        %v500 = vld [vmem:[%s293 + $0xd8] sm:$0xff]
        %v501 = vld [vmem:[%s293 + $0xe0] sm:$0xff]
        %v502 = vld [vmem:[%s293 + $0xe8] sm:$0xff]
        %v503 = vld [vmem:[%s293 + $0xf0] sm:$0xff]
        %v504 = vld [vmem:[%s293 + $0xf8] sm:$0xff]
        %v505 = vld [vmem:[%s293 + $0x100] sm:$0xff]
        %v506 = vld [vmem:[%s293 + $0x108] sm:$0xff]
        %v507 = vld [vmem:[%s293 + $0x110] sm:$0xff]
        %v508 = vld [vmem:[%s293 + $0x118] sm:$0xff]
        %v509 = vld [vmem:[%s293 + $0x120] sm:$0xff]
        %v510 = vld [vmem:[%s293 + $0x128] sm:$0xff]
        %v511 = vld [vmem:[%s293 + $0x130] sm:$0xff]
        %v512 = vld [vmem:[%s293 + $0x138] sm:$0xff]
        %v513 = vld [vmem:[%s293 + $0x140] sm:$0xff]
        %v514 = vld [vmem:[%s293 + $0x148] sm:$0xff]
        %v515 = vld [vmem:[%s293 + $0x150] sm:$0xff]
        %v516 = vld [vmem:[%s293 + $0x158] sm:$0xff]
        %v517 = vld [vmem:[%s293 + $0x160] sm:$0xff]
        %v518 = vld [vmem:[%s293 + $0x168] sm:$0xff]
        %v519 = vld [vmem:[%s293 + $0x170] sm:$0xff]
        %v520 = vld [vmem:[%s293 + $0x178] sm:$0xff]
        %v521 = vld [vmem:[%s293 + $0x180] sm:$0xff]
        %v522 = vld [vmem:[%s293 + $0x188] sm:$0xff]
        %v523 = vld [vmem:[%s293 + $0x190] sm:$0xff]
        %v524 = vld [vmem:[%s293 + $0x198] sm:$0xff]
        %v525 = vld [vmem:[%s293 + $0x1a0] sm:$0xff]
        %v526 = vld [vmem:[%s293 + $0x1a8] sm:$0xff]
        %v527 = vld [vmem:[%s293 + $0x1b0] sm:$0xff]
        %v528 = vld [vmem:[%s293 + $0x1b8] sm:$0xff]
        %v529 = vld [vmem:[%s293 + $0x1c0] sm:$0xff]
        %v530 = vld [vmem:[%s293 + $0x1c8] sm:$0xff]
        %v531 = vld [vmem:[%s293 + $0x1d0] sm:$0xff]
        %v532 = vld [vmem:[%s293 + $0x1d8] sm:$0xff]
        %v533 = vld [vmem:[%s293 + $0x1e0] sm:$0xff]
        %v534 = vld [vmem:[%s293 + $0x1e8] sm:$0xff]
        %v535 = vld [vmem:[%s293 + $0x1f0] sm:$0xff]
        %v536 = vld [vmem:[%s293 + $0x1f8] sm:$0xff]
        %v537 = vld [vmem:[%s293 + $0x200] sm:$0xff]
        %v538 = vld [vmem:[%s293 + $0x208] sm:$0xff]
        %v539 = vld [vmem:[%s293 + $0x210] sm:$0xff]
        %v540 = vld [vmem:[%s293 + $0x218] sm:$0xff]
        %v541 = vld [vmem:[%s293 + $0x220] sm:$0xff]
        %v542 = vld [vmem:[%s293 + $0x228] sm:$0xff]
        %v543 = vld [vmem:[%s293 + $0x230] sm:$0xff]
        %v544 = vld [vmem:[%s293 + $0x238] sm:$0xff]
        %v545 = vld [vmem:[%s293 + $0x240] sm:$0xff]
        %v546 = vld [vmem:[%s293 + $0x248] sm:$0xff]
        %v547 = vld [vmem:[%s293 + $0x250] sm:$0xff]
        %v548 = vld [vmem:[%s293 + $0x258] sm:$0xff]
        %v549 = vld [vmem:[%s293 + $0x260] sm:$0xff]
        %v550 = vld [vmem:[%s293 + $0x268] sm:$0xff]
        %v551 = vld [vmem:[%s293 + $0x270] sm:$0xff]
        %v552 = vld [vmem:[%s293 + $0x278] sm:$0xff]
        %v553 = vld [vmem:[%s293 + $0x280] sm:$0xff]
        %v554 = vld [vmem:[%s293 + $0x288] sm:$0xff]
        %v555 = vld [vmem:[%s293 + $0x290] sm:$0xff]
        %v556 = vld [vmem:[%s293 + $0x298] sm:$0xff]
        %v557 = vld [vmem:[%s293 + $0x2a0] sm:$0xff]
        %v558 = vld [vmem:[%s293 + $0x2a8] sm:$0xff]
        %v559 = vld [vmem:[%s293 + $0x2b0] sm:$0xff]
        %v560 = vld [vmem:[%s293 + $0x2b8] sm:$0xff]
        %v561 = vld [vmem:[%s293 + $0x2c0] sm:$0xff]
        %v562 = vld [vmem:[%s293 + $0x2c8] sm:$0xff]
        %v563 = vld [vmem:[%s293 + $0x2d0] sm:$0xff]
        %v564 = vld [vmem:[%s293 + $0x2d8] sm:$0xff]
        %v565 = vld [vmem:[%s293 + $0x2e0] sm:$0xff]
        %v566 = vld [vmem:[%s293 + $0x2e8] sm:$0xff]
        %v567 = vld [vmem:[%s293 + $0x2f0] sm:$0xff]
        %v568 = vld [vmem:[%s293 + $0x2f8] sm:$0xff]
        %v569 = vld [vmem:[%s293 + $0x300] sm:$0xff]
        %v570 = vld [vmem:[%s293 + $0x308] sm:$0xff]
        %v571 = vld [vmem:[%s293 + $0x310] sm:$0xff]
        %v572 = vld [vmem:[%s293 + $0x318] sm:$0xff]
        %v573 = vld [vmem:[%s293 + $0x320] sm:$0xff]
        %v574 = vld [vmem:[%s293 + $0x328] sm:$0xff]
        %v575 = vld [vmem:[%s293 + $0x330] sm:$0xff]
        %v576 = vld [vmem:[%s293 + $0x338] sm:$0xff]
        %v577 = vld [vmem:[%s293 + $0x340] sm:$0xff]
        %v578 = vld [vmem:[%s293 + $0x348] sm:$0xff]
        %v579 = vld [vmem:[%s293 + $0x350] sm:$0xff]
        %v580 = vld [vmem:[%s293 + $0x358] sm:$0xff]
        %v581 = vld [vmem:[%s293 + $0x360] sm:$0xff]
        %v582 = vld [vmem:[%s293 + $0x368] sm:$0xff]
        %v583 = vld [vmem:[%s293 + $0x370] sm:$0xff]
        %v584 = vld [vmem:[%s293 + $0x378] sm:$0xff]
        %v585 = vld [vmem:[%s293 + $0x380] sm:$0xff]
        %v586 = vld [vmem:[%s293 + $0x388] sm:$0xff]
        %v587 = vld [vmem:[%s293 + $0x390] sm:$0xff]
        %v588 = vld [vmem:[%s293 + $0x398] sm:$0xff]
        %v589 = vld [vmem:[%s293 + $0x3a0] sm:$0xff]
        %v590 = vld [vmem:[%s293 + $0x3a8] sm:$0xff]
        %v591 = vld [vmem:[%s293 + $0x3b0] sm:$0xff]
        %v592 = vld [vmem:[%s293 + $0x3b8] sm:$0xff]
        %v593 = vld [vmem:[%s293 + $0x3c0] sm:$0xff]
        %v594 = vld [vmem:[%s293 + $0x3c8] sm:$0xff]
        %v595 = vld [vmem:[%s293 + $0x3d0] sm:$0xff]
        %v596 = vld [vmem:[%s293 + $0x3d8] sm:$0xff]
        %v597 = vld [vmem:[%s293 + $0x3e0] sm:$0xff]
        %v598 = vld [vmem:[%s293 + $0x3e8] sm:$0xff]
        %v599 = vld [vmem:[%s293 + $0x3f0] sm:$0xff]
        %v600 = vld [vmem:[%s293 + $0x3f8] sm:$0xff]
        %v601 = vld [vmem:[%s302] sm:$0xff]
        %p602 = scmp.eq.s32.totalorder %s30, 0
        // Predicated region
        $region53: #{tpu_custom_call.1} parent=35 // pred_check
          %p603 = pneg %p602
        $region54: #{tpu_custom_call.1} parent=35 // pred_check_branch
          %605 = sbr.rel (%p603) target = $region56
        $region55: #{tpu_custom_call.1} parent=35 // pred_region
          %v606 = vld [vmem:[#allocation4] sm:$0xff]
          %v607 = vld [vmem:[#allocation4 + $0x8] sm:$0xff]
          %v608 = vld [vmem:[#allocation4 + $0x10] sm:$0xff]
          %v609 = vld [vmem:[#allocation4 + $0x18] sm:$0xff]
          %v610 = vld [vmem:[#allocation4 + $0x20] sm:$0xff]
          %v611 = vld [vmem:[#allocation4 + $0x28] sm:$0xff]
          %v612 = vld [vmem:[#allocation4 + $0x30] sm:$0xff]
          %v613 = vld [vmem:[#allocation4 + $0x38] sm:$0xff]
          %v614 = vld [vmem:[#allocation4 + $0x40] sm:$0xff]
          %v615 = vld [vmem:[#allocation4 + $0x48] sm:$0xff]
          %v616 = vld [vmem:[#allocation4 + $0x50] sm:$0xff]
          %v617 = vld [vmem:[#allocation4 + $0x58] sm:$0xff]
          %v618 = vld [vmem:[#allocation4 + $0x60] sm:$0xff]
          %v619 = vld [vmem:[#allocation4 + $0x68] sm:$0xff]
          %v620 = vld [vmem:[#allocation4 + $0x70] sm:$0xff]
          %v621 = vld [vmem:[#allocation4 + $0x78] sm:$0xff]
          %v623 = vlaneseq
          %v624 = vshrl.u32 %v623, 7
          %v625 = vsub.s32 0, %v624
          %v626 = vrot.slane %v601, %v625
          %v627 = vlaneseq
          %v628 = vshrl.u32 %v627, 7
          %v629 = vsub.s32 1, %v628
          %v630 = vrot.slane %v601, %v629
          %v631 = vlaneseq
          %v632 = vshrl.u32 %v631, 7
          %v633 = vsub.s32 2, %v632
          %v634 = vrot.slane %v601, %v633
          %v635 = vlaneseq
          %v636 = vshrl.u32 %v635, 7
          %v637 = vsub.s32 3, %v636
          %v638 = vrot.slane %v601, %v637
          %v639 = vlaneseq
          %v640 = vshrl.u32 %v639, 7
          %v641 = vsub.s32 4, %v640
          %v642 = vrot.slane %v601, %v641
          %v643 = vlaneseq
          %v644 = vshrl.u32 %v643, 7
          %v645 = vsub.s32 5, %v644
          %v646 = vrot.slane %v601, %v645
          %v647 = vlaneseq
          %v648 = vshrl.u32 %v647, 7
          %v649 = vsub.s32 6, %v648
          %v650 = vrot.slane %v601, %v649
          %v651 = vlaneseq
          %v652 = vshrl.u32 %v651, 7
          %v653 = vsub.s32 7, %v652
          %v654 = vrot.slane %v601, %v653
          %v679 = vunpack.c.l.b16 %v606
          %v680 = vunpack.c.h.b16 %v606
          %v681 = vunpack.c.l.b16 %v607
          %v682 = vunpack.c.h.b16 %v607
          %v683 = vunpack.c.l.b16 %v608
          %v684 = vunpack.c.h.b16 %v608
          %v685 = vunpack.c.l.b16 %v609
          %v686 = vunpack.c.h.b16 %v609
          %v687 = vunpack.c.l.b16 %v610
          %v688 = vunpack.c.h.b16 %v610
          %v689 = vunpack.c.l.b16 %v611
          %v690 = vunpack.c.h.b16 %v611
          %v691 = vunpack.c.l.b16 %v612
          %v692 = vunpack.c.h.b16 %v612
          %v693 = vunpack.c.l.b16 %v613
          %v694 = vunpack.c.h.b16 %v613
          %v695 = vunpack.c.l.b16 %v614
          %v696 = vunpack.c.h.b16 %v614
          %v697 = vunpack.c.l.b16 %v615
          %v698 = vunpack.c.h.b16 %v615
          %v699 = vunpack.c.l.b16 %v616
          %v700 = vunpack.c.h.b16 %v616
          %v701 = vunpack.c.l.b16 %v617
          %v702 = vunpack.c.h.b16 %v617
          %v703 = vunpack.c.l.b16 %v618
          %v704 = vunpack.c.h.b16 %v618
          %v705 = vunpack.c.l.b16 %v619
          %v706 = vunpack.c.h.b16 %v619
          %v707 = vunpack.c.l.b16 %v620
          %v708 = vunpack.c.h.b16 %v620
          %v709 = vunpack.c.l.b16 %v621
          %v710 = vunpack.c.h.b16 %v621
          %v711 = vpack.c.b16 %v681, %v679
          %v712 = vpack.c.b16 %v682, %v680
          %v713 = vpack.c.b16 %v685, %v683
          %v714 = vpack.c.b16 %v686, %v684
          %v715 = vpack.c.b16 %v689, %v687
          %v716 = vpack.c.b16 %v690, %v688
          %v717 = vpack.c.b16 %v693, %v691
          %v718 = vpack.c.b16 %v694, %v692
          %v719 = vpack.c.b16 %v697, %v695
          %v720 = vpack.c.b16 %v698, %v696
          %v721 = vpack.c.b16 %v701, %v699
          %v722 = vpack.c.b16 %v702, %v700
          %v723 = vpack.c.b16 %v705, %v703
          %v724 = vpack.c.b16 %v706, %v704
          %v725 = vpack.c.b16 %v709, %v707
          %v726 = vpack.c.b16 %v710, %v708
          %v871 = vunpack.c.l.b16 %v345
          %v872 = vunpack.c.h.b16 %v345
          %v873 = vunpack.c.l.b16 %v346
          %v874 = vunpack.c.h.b16 %v346
          %v875 = vunpack.c.l.b16 %v347
          %v876 = vunpack.c.h.b16 %v347
          %v877 = vunpack.c.l.b16 %v348
          %v878 = vunpack.c.h.b16 %v348
          %v879 = vunpack.c.l.b16 %v349
          %v880 = vunpack.c.h.b16 %v349
          %v881 = vunpack.c.l.b16 %v350
          %v882 = vunpack.c.h.b16 %v350
          %v883 = vunpack.c.l.b16 %v351
          %v884 = vunpack.c.h.b16 %v351
          %v885 = vunpack.c.l.b16 %v352
          %v886 = vunpack.c.h.b16 %v352
          %v887 = vunpack.c.l.b16 %v353
          %v888 = vunpack.c.h.b16 %v353
          %v889 = vunpack.c.l.b16 %v354
          %v890 = vunpack.c.h.b16 %v354
          %v891 = vunpack.c.l.b16 %v355
          %v892 = vunpack.c.h.b16 %v355
          %v893 = vunpack.c.l.b16 %v356
          %v894 = vunpack.c.h.b16 %v356
          %v895 = vunpack.c.l.b16 %v357
          %v896 = vunpack.c.h.b16 %v357
          %v897 = vunpack.c.l.b16 %v358
          %v898 = vunpack.c.h.b16 %v358
          %v899 = vunpack.c.l.b16 %v359
          %v900 = vunpack.c.h.b16 %v359
          %v901 = vunpack.c.l.b16 %v360
          %v902 = vunpack.c.h.b16 %v360
          %v903 = vunpack.c.l.b16 %v361
          %v904 = vunpack.c.h.b16 %v361
          %v905 = vunpack.c.l.b16 %v362
          %v906 = vunpack.c.h.b16 %v362
          %v907 = vunpack.c.l.b16 %v363
          %v908 = vunpack.c.h.b16 %v363
          %v909 = vunpack.c.l.b16 %v364
          %v910 = vunpack.c.h.b16 %v364
          %v911 = vunpack.c.l.b16 %v365
          %v912 = vunpack.c.h.b16 %v365
          %v913 = vunpack.c.l.b16 %v366
          %v914 = vunpack.c.h.b16 %v366
          %v915 = vunpack.c.l.b16 %v367
          %v916 = vunpack.c.h.b16 %v367
          %v917 = vunpack.c.l.b16 %v368
          %v918 = vunpack.c.h.b16 %v368
          %v919 = vunpack.c.l.b16 %v369
          %v920 = vunpack.c.h.b16 %v369
          %v921 = vunpack.c.l.b16 %v370
          %v922 = vunpack.c.h.b16 %v370
          %v923 = vunpack.c.l.b16 %v371
          %v924 = vunpack.c.h.b16 %v371
          %v925 = vunpack.c.l.b16 %v372
          %v926 = vunpack.c.h.b16 %v372
          %v927 = vunpack.c.l.b16 %v373
          %v928 = vunpack.c.h.b16 %v373
          %v929 = vunpack.c.l.b16 %v374
          %v930 = vunpack.c.h.b16 %v374
          %v931 = vunpack.c.l.b16 %v375
          %v932 = vunpack.c.h.b16 %v375
          %v933 = vunpack.c.l.b16 %v376
          %v934 = vunpack.c.h.b16 %v376
          %v935 = vunpack.c.l.b16 %v377
          %v936 = vunpack.c.h.b16 %v377
          %v937 = vunpack.c.l.b16 %v378
          %v938 = vunpack.c.h.b16 %v378
          %v939 = vunpack.c.l.b16 %v379
          %v940 = vunpack.c.h.b16 %v379
          %v941 = vunpack.c.l.b16 %v380
          %v942 = vunpack.c.h.b16 %v380
          %v943 = vunpack.c.l.b16 %v381
          %v944 = vunpack.c.h.b16 %v381
          %v945 = vunpack.c.l.b16 %v382
          %v946 = vunpack.c.h.b16 %v382
          %v947 = vunpack.c.l.b16 %v383
          %v948 = vunpack.c.h.b16 %v383
          %v949 = vunpack.c.l.b16 %v384
          %v950 = vunpack.c.h.b16 %v384
          %v951 = vunpack.c.l.b16 %v385
          %v952 = vunpack.c.h.b16 %v385
          %v953 = vunpack.c.l.b16 %v386
          %v954 = vunpack.c.h.b16 %v386
          %v955 = vunpack.c.l.b16 %v387
          %v956 = vunpack.c.h.b16 %v387
          %v957 = vunpack.c.l.b16 %v388
          %v958 = vunpack.c.h.b16 %v388
          %v959 = vunpack.c.l.b16 %v389
          %v960 = vunpack.c.h.b16 %v389
          %v961 = vunpack.c.l.b16 %v390
          %v962 = vunpack.c.h.b16 %v390
          %v963 = vunpack.c.l.b16 %v391
          %v964 = vunpack.c.h.b16 %v391
          %v965 = vunpack.c.l.b16 %v392
          %v966 = vunpack.c.h.b16 %v392
          %v967 = vunpack.c.l.b16 %v393
          %v968 = vunpack.c.h.b16 %v393
          %v969 = vunpack.c.l.b16 %v394
          %v970 = vunpack.c.h.b16 %v394
          %v971 = vunpack.c.l.b16 %v395
          %v972 = vunpack.c.h.b16 %v395
          %v973 = vunpack.c.l.b16 %v396
          %v974 = vunpack.c.h.b16 %v396
          %v975 = vunpack.c.l.b16 %v397
          %v976 = vunpack.c.h.b16 %v397
          %v977 = vunpack.c.l.b16 %v398
          %v978 = vunpack.c.h.b16 %v398
          %v979 = vunpack.c.l.b16 %v399
          %v980 = vunpack.c.h.b16 %v399
          %v981 = vunpack.c.l.b16 %v400
          %v982 = vunpack.c.h.b16 %v400
          %v983 = vunpack.c.l.b16 %v401
          %v984 = vunpack.c.h.b16 %v401
          %v985 = vunpack.c.l.b16 %v402
          %v986 = vunpack.c.h.b16 %v402
          %v987 = vunpack.c.l.b16 %v403
          %v988 = vunpack.c.h.b16 %v403
          %v989 = vunpack.c.l.b16 %v404
          %v990 = vunpack.c.h.b16 %v404
          %v991 = vunpack.c.l.b16 %v405
          %v992 = vunpack.c.h.b16 %v405
          %v993 = vunpack.c.l.b16 %v406
          %v994 = vunpack.c.h.b16 %v406
          %v995 = vunpack.c.l.b16 %v407
          %v996 = vunpack.c.h.b16 %v407
          %v997 = vunpack.c.l.b16 %v408
          %v998 = vunpack.c.h.b16 %v408
          %v999 = vunpack.c.l.b16 %v409
          %v1000 = vunpack.c.h.b16 %v409
          %v1001 = vunpack.c.l.b16 %v410
          %v1002 = vunpack.c.h.b16 %v410
          %v1003 = vunpack.c.l.b16 %v411
          %v1004 = vunpack.c.h.b16 %v411
          %v1005 = vunpack.c.l.b16 %v412
          %v1006 = vunpack.c.h.b16 %v412
          %v1007 = vunpack.c.l.b16 %v413
          %v1008 = vunpack.c.h.b16 %v413
          %v1009 = vunpack.c.l.b16 %v414
          %v1010 = vunpack.c.h.b16 %v414
          %v1011 = vunpack.c.l.b16 %v415
          %v1012 = vunpack.c.h.b16 %v415
          %v1013 = vunpack.c.l.b16 %v416
          %v1014 = vunpack.c.h.b16 %v416
          %v1015 = vunpack.c.l.b16 %v417
          %v1016 = vunpack.c.h.b16 %v417
          %v1017 = vunpack.c.l.b16 %v418
          %v1018 = vunpack.c.h.b16 %v418
          %v1019 = vunpack.c.l.b16 %v419
          %v1020 = vunpack.c.h.b16 %v419
          %v1021 = vunpack.c.l.b16 %v420
          %v1022 = vunpack.c.h.b16 %v420
          %v1023 = vunpack.c.l.b16 %v421
          %v1024 = vunpack.c.h.b16 %v421
          %v1025 = vunpack.c.l.b16 %v422
          %v1026 = vunpack.c.h.b16 %v422
          %v1027 = vunpack.c.l.b16 %v423
          %v1028 = vunpack.c.h.b16 %v423
          %v1029 = vunpack.c.l.b16 %v424
          %v1030 = vunpack.c.h.b16 %v424
          %v1031 = vunpack.c.l.b16 %v425
          %v1032 = vunpack.c.h.b16 %v425
          %v1033 = vunpack.c.l.b16 %v426
          %v1034 = vunpack.c.h.b16 %v426
          %v1035 = vunpack.c.l.b16 %v427
          %v1036 = vunpack.c.h.b16 %v427
          %v1037 = vunpack.c.l.b16 %v428
          %v1038 = vunpack.c.h.b16 %v428
          %v1039 = vunpack.c.l.b16 %v429
          %v1040 = vunpack.c.h.b16 %v429
          %v1041 = vunpack.c.l.b16 %v430
          %v1042 = vunpack.c.h.b16 %v430
          %v1043 = vunpack.c.l.b16 %v431
          %v1044 = vunpack.c.h.b16 %v431
          %v1045 = vunpack.c.l.b16 %v432
          %v1046 = vunpack.c.h.b16 %v432
          %v1047 = vunpack.c.l.b16 %v433
          %v1048 = vunpack.c.h.b16 %v433
          %v1049 = vunpack.c.l.b16 %v434
          %v1050 = vunpack.c.h.b16 %v434
          %v1051 = vunpack.c.l.b16 %v435
          %v1052 = vunpack.c.h.b16 %v435
          %v1053 = vunpack.c.l.b16 %v436
          %v1054 = vunpack.c.h.b16 %v436
          %v1055 = vunpack.c.l.b16 %v437
          %v1056 = vunpack.c.h.b16 %v437
          %v1057 = vunpack.c.l.b16 %v438
          %v1058 = vunpack.c.h.b16 %v438
          %v1059 = vunpack.c.l.b16 %v439
          %v1060 = vunpack.c.h.b16 %v439
          %v1061 = vunpack.c.l.b16 %v440
          %v1062 = vunpack.c.h.b16 %v440
          %v1063 = vunpack.c.l.b16 %v441
          %v1064 = vunpack.c.h.b16 %v441
          %v1065 = vunpack.c.l.b16 %v442
          %v1066 = vunpack.c.h.b16 %v442
          %v1067 = vunpack.c.l.b16 %v443
          %v1068 = vunpack.c.h.b16 %v443
          %v1069 = vunpack.c.l.b16 %v444
          %v1070 = vunpack.c.h.b16 %v444
          %v1071 = vunpack.c.l.b16 %v445
          %v1072 = vunpack.c.h.b16 %v445
          %v1073 = vunpack.c.l.b16 %v446
          %v1074 = vunpack.c.h.b16 %v446
          %v1075 = vunpack.c.l.b16 %v447
          %v1076 = vunpack.c.h.b16 %v447
          %v1077 = vunpack.c.l.b16 %v448
          %v1078 = vunpack.c.h.b16 %v448
          %v1079 = vunpack.c.l.b16 %v449
          %v1080 = vunpack.c.h.b16 %v449
          %v1081 = vunpack.c.l.b16 %v450
          %v1082 = vunpack.c.h.b16 %v450
          %v1083 = vunpack.c.l.b16 %v451
          %v1084 = vunpack.c.h.b16 %v451
          %v1085 = vunpack.c.l.b16 %v452
          %v1086 = vunpack.c.h.b16 %v452
          %v1087 = vunpack.c.l.b16 %v453
          %v1088 = vunpack.c.h.b16 %v453
          %v1089 = vunpack.c.l.b16 %v454
          %v1090 = vunpack.c.h.b16 %v454
          %v1091 = vunpack.c.l.b16 %v455
          %v1092 = vunpack.c.h.b16 %v455
          %v1093 = vunpack.c.l.b16 %v456
          %v1094 = vunpack.c.h.b16 %v456
          %v1095 = vunpack.c.l.b16 %v457
          %v1096 = vunpack.c.h.b16 %v457
          %v1097 = vunpack.c.l.b16 %v458
          %v1098 = vunpack.c.h.b16 %v458
          %v1099 = vunpack.c.l.b16 %v459
          %v1100 = vunpack.c.h.b16 %v459
          %v1101 = vunpack.c.l.b16 %v460
          %v1102 = vunpack.c.h.b16 %v460
          %v1103 = vunpack.c.l.b16 %v461
          %v1104 = vunpack.c.h.b16 %v461
          %v1105 = vunpack.c.l.b16 %v462
          %v1106 = vunpack.c.h.b16 %v462
          %v1107 = vunpack.c.l.b16 %v463
          %v1108 = vunpack.c.h.b16 %v463
          %v1109 = vunpack.c.l.b16 %v464
          %v1110 = vunpack.c.h.b16 %v464
          %v1111 = vunpack.c.l.b16 %v465
          %v1112 = vunpack.c.h.b16 %v465
          %v1113 = vunpack.c.l.b16 %v466
          %v1114 = vunpack.c.h.b16 %v466
          %v1115 = vunpack.c.l.b16 %v467
          %v1116 = vunpack.c.h.b16 %v467
          %v1117 = vunpack.c.l.b16 %v468
          %v1118 = vunpack.c.h.b16 %v468
          %v1119 = vunpack.c.l.b16 %v469
          %v1120 = vunpack.c.h.b16 %v469
          %v1121 = vunpack.c.l.b16 %v470
          %v1122 = vunpack.c.h.b16 %v470
          %v1123 = vunpack.c.l.b16 %v471
          %v1124 = vunpack.c.h.b16 %v471
          %v1125 = vunpack.c.l.b16 %v472
          %v1126 = vunpack.c.h.b16 %v472
          %v1127 = vpack.c.b16 %v879, %v871
          %v1128 = vpack.c.b16 %v880, %v872
          %v1129 = vpack.c.b16 %v881, %v873
          %v1130 = vpack.c.b16 %v882, %v874
          %v1131 = vpack.c.b16 %v883, %v875
          %v1132 = vpack.c.b16 %v884, %v876
          %v1133 = vpack.c.b16 %v885, %v877
          %v1134 = vpack.c.b16 %v886, %v878
          %v1135 = vpack.c.b16 %v895, %v887
          %v1136 = vpack.c.b16 %v896, %v888
          %v1137 = vpack.c.b16 %v897, %v889
          %v1138 = vpack.c.b16 %v898, %v890
          %v1139 = vpack.c.b16 %v899, %v891
          %v1140 = vpack.c.b16 %v900, %v892
          %v1141 = vpack.c.b16 %v901, %v893
          %v1142 = vpack.c.b16 %v902, %v894
          %v1143 = vpack.c.b16 %v911, %v903
          %v1144 = vpack.c.b16 %v912, %v904
          %v1145 = vpack.c.b16 %v913, %v905
          %v1146 = vpack.c.b16 %v914, %v906
          %v1147 = vpack.c.b16 %v915, %v907
          %v1148 = vpack.c.b16 %v916, %v908
          %v1149 = vpack.c.b16 %v917, %v909
          %v1150 = vpack.c.b16 %v918, %v910
          %v1151 = vpack.c.b16 %v927, %v919
          %v1152 = vpack.c.b16 %v928, %v920
          %v1153 = vpack.c.b16 %v929, %v921
          %v1154 = vpack.c.b16 %v930, %v922
          %v1155 = vpack.c.b16 %v931, %v923
          %v1156 = vpack.c.b16 %v932, %v924
          %v1157 = vpack.c.b16 %v933, %v925
          %v1158 = vpack.c.b16 %v934, %v926
          %v1159 = vpack.c.b16 %v943, %v935
          %v1160 = vpack.c.b16 %v944, %v936
          %v1161 = vpack.c.b16 %v945, %v937
          %v1162 = vpack.c.b16 %v946, %v938
          %v1163 = vpack.c.b16 %v947, %v939
          %v1164 = vpack.c.b16 %v948, %v940
          %v1165 = vpack.c.b16 %v949, %v941
          %v1166 = vpack.c.b16 %v950, %v942
          %v1167 = vpack.c.b16 %v959, %v951
          %v1168 = vpack.c.b16 %v960, %v952
          %v1169 = vpack.c.b16 %v961, %v953
          %v1170 = vpack.c.b16 %v962, %v954
          %v1171 = vpack.c.b16 %v963, %v955
          %v1172 = vpack.c.b16 %v964, %v956
          %v1173 = vpack.c.b16 %v965, %v957
          %v1174 = vpack.c.b16 %v966, %v958
          %v1175 = vpack.c.b16 %v975, %v967
          %v1176 = vpack.c.b16 %v976, %v968
          %v1177 = vpack.c.b16 %v977, %v969
          %v1178 = vpack.c.b16 %v978, %v970
          %v1179 = vpack.c.b16 %v979, %v971
          %v1180 = vpack.c.b16 %v980, %v972
          %v1181 = vpack.c.b16 %v981, %v973
          %v1182 = vpack.c.b16 %v982, %v974
          %v1183 = vpack.c.b16 %v991, %v983
          %v1184 = vpack.c.b16 %v992, %v984
          %v1185 = vpack.c.b16 %v993, %v985
          %v1186 = vpack.c.b16 %v994, %v986
          %v1187 = vpack.c.b16 %v995, %v987
          %v1188 = vpack.c.b16 %v996, %v988
          %v1189 = vpack.c.b16 %v997, %v989
          %v1190 = vpack.c.b16 %v998, %v990
          %v1191 = vpack.c.b16 %v1007, %v999
          %v1192 = vpack.c.b16 %v1008, %v1000
          %v1193 = vpack.c.b16 %v1009, %v1001
          %v1194 = vpack.c.b16 %v1010, %v1002
          %v1195 = vpack.c.b16 %v1011, %v1003
          %v1196 = vpack.c.b16 %v1012, %v1004
          %v1197 = vpack.c.b16 %v1013, %v1005
          %v1198 = vpack.c.b16 %v1014, %v1006
          %v1199 = vpack.c.b16 %v1023, %v1015
          %v1200 = vpack.c.b16 %v1024, %v1016
          %v1201 = vpack.c.b16 %v1025, %v1017
          %v1202 = vpack.c.b16 %v1026, %v1018
          %v1203 = vpack.c.b16 %v1027, %v1019
          %v1204 = vpack.c.b16 %v1028, %v1020
          %v1205 = vpack.c.b16 %v1029, %v1021
          %v1206 = vpack.c.b16 %v1030, %v1022
          %v1207 = vpack.c.b16 %v1039, %v1031
          %v1208 = vpack.c.b16 %v1040, %v1032
          %v1209 = vpack.c.b16 %v1041, %v1033
          %v1210 = vpack.c.b16 %v1042, %v1034
          %v1211 = vpack.c.b16 %v1043, %v1035
          %v1212 = vpack.c.b16 %v1044, %v1036
          %v1213 = vpack.c.b16 %v1045, %v1037
          %v1214 = vpack.c.b16 %v1046, %v1038
          %v1215 = vpack.c.b16 %v1055, %v1047
          %v1216 = vpack.c.b16 %v1056, %v1048
          %v1217 = vpack.c.b16 %v1057, %v1049
          %v1218 = vpack.c.b16 %v1058, %v1050
          %v1219 = vpack.c.b16 %v1059, %v1051
          %v1220 = vpack.c.b16 %v1060, %v1052
          %v1221 = vpack.c.b16 %v1061, %v1053
          %v1222 = vpack.c.b16 %v1062, %v1054
          %v1223 = vpack.c.b16 %v1071, %v1063
          %v1224 = vpack.c.b16 %v1072, %v1064
          %v1225 = vpack.c.b16 %v1073, %v1065
          %v1226 = vpack.c.b16 %v1074, %v1066
          %v1227 = vpack.c.b16 %v1075, %v1067
          %v1228 = vpack.c.b16 %v1076, %v1068
          %v1229 = vpack.c.b16 %v1077, %v1069
          %v1230 = vpack.c.b16 %v1078, %v1070
          %v1231 = vpack.c.b16 %v1087, %v1079
          %v1232 = vpack.c.b16 %v1088, %v1080
          %v1233 = vpack.c.b16 %v1089, %v1081
          %v1234 = vpack.c.b16 %v1090, %v1082
          %v1235 = vpack.c.b16 %v1091, %v1083
          %v1236 = vpack.c.b16 %v1092, %v1084
          %v1237 = vpack.c.b16 %v1093, %v1085
          %v1238 = vpack.c.b16 %v1094, %v1086
          %v1239 = vpack.c.b16 %v1103, %v1095
          %v1240 = vpack.c.b16 %v1104, %v1096
          %v1241 = vpack.c.b16 %v1105, %v1097
          %v1242 = vpack.c.b16 %v1106, %v1098
          %v1243 = vpack.c.b16 %v1107, %v1099
          %v1244 = vpack.c.b16 %v1108, %v1100
          %v1245 = vpack.c.b16 %v1109, %v1101
          %v1246 = vpack.c.b16 %v1110, %v1102
          %v1247 = vpack.c.b16 %v1119, %v1111
          %v1248 = vpack.c.b16 %v1120, %v1112
          %v1249 = vpack.c.b16 %v1121, %v1113
          %v1250 = vpack.c.b16 %v1122, %v1114
          %v1251 = vpack.c.b16 %v1123, %v1115
          %v1252 = vpack.c.b16 %v1124, %v1116
          %v1253 = vpack.c.b16 %v1125, %v1117
          %v1254 = vpack.c.b16 %v1126, %v1118
          %1383 = vmatprep.subr.bf16.mxu0 %v1184
          %1384 = vmatpush1.bf16.msra.mxu0 %v1183
          %1385 = vmatprep.subr.bf16.mxu0 %v1176
          %1386 = vmatpush1.bf16.msra.mxu0 %v1175
          %1387 = vmatprep.subr.bf16.mxu0 %v1168
          %1388 = vmatpush1.bf16.msra.mxu0 %v1167
          %1389 = vmatprep.subr.bf16.mxu0 %v1160
          %1390 = vmatpush1.bf16.msra.mxu0 %v1159
          %1391 = vmatprep.subr.bf16.mxu0 %v1152
          %1392 = vmatpush1.bf16.msra.mxu0 %v1151
          %1393 = vmatprep.subr.bf16.mxu0 %v1144
          %1394 = vmatpush1.bf16.msra.mxu0 %v1143
          %1395 = vmatprep.subr.bf16.mxu0 %v1136
          %1396 = vmatpush1.bf16.msra.mxu0 %v1135
          %1397 = vmatprep.subr.bf16.mxu0 %v1128
          %1398 = vmatpush1.bf16.msra.mxu0 %v1127
          %1399 = vmatprep.subr.bf16.mxu0 %v1248
          %1400 = vmatpush2.bf16.msra.mxu0 %v1247
          %1401 = vmatprep.subr.bf16.mxu0 %v1240
          %1402 = vmatpush2.bf16.msra.mxu0 %v1239
          %1403 = vmatprep.subr.bf16.mxu0 %v1232
          %1404 = vmatpush2.bf16.msra.mxu0 %v1231
          %1405 = vmatprep.subr.bf16.mxu0 %v1224
          %1406 = vmatpush2.bf16.msra.mxu0 %v1223
          %1407 = vmatprep.subr.bf16.mxu0 %v1216
          %1408 = vmatpush2.bf16.msra.mxu0 %v1215
          %1409 = vmatprep.subr.bf16.mxu0 %v1208
          %1410 = vmatpush2.bf16.msra.mxu0 %v1207
          %1411 = vmatprep.subr.bf16.mxu0 %v1200
          %1412 = vmatpush2.bf16.msra.mxu0 %v1199
          %1413 = vmatprep.subr.bf16.mxu0 %v1192
          %1414 = vmatpush2.bf16.msra.mxu0 %v1191
          %1415 = vmatprep.mubr.bf16.mxu0 %v712
          %1416 = vmatmul.mubr.bf16.gmra.mxu0 %v711
          %v1417 = vpop.f32.mrf.mxu0
          %v1418 = vadd.f32 %v626, %v1417
          %v1419 = vpop.f32.mrf.mxu0
          %v1420 = vadd.f32 %v630, %v1419
          %v1421 = vpop.f32.mrf.mxu0
          %v1422 = vadd.f32 %v626, %v1421
          %v1423 = vpop.f32.mrf.mxu0
          %v1424 = vadd.f32 %v630, %v1423
          %1425 = vmatprep.mubr.bf16.mxu0 %v714
          %1426 = vmatmul.mubr.bf16.gmra.mxu0 %v713
          %v1427 = vpop.f32.mrf.mxu0
          %v1428 = vadd.f32 %v626, %v1427
          %v1429 = vpop.f32.mrf.mxu0
          %v1430 = vadd.f32 %v630, %v1429
          %v1431 = vpop.f32.mrf.mxu0
          %v1432 = vadd.f32 %v626, %v1431
          %v1433 = vpop.f32.mrf.mxu0
          %v1434 = vadd.f32 %v630, %v1433
          %1435 = vmatprep.mubr.bf16.mxu0 %v716
          %1436 = vmatmul.mubr.bf16.gmra.mxu0 %v715
          %v1437 = vpop.f32.mrf.mxu0
          %v1438 = vadd.f32 %v626, %v1437
          %v1439 = vpop.f32.mrf.mxu0
          %v1440 = vadd.f32 %v630, %v1439
          %v1441 = vpop.f32.mrf.mxu0
          %v1442 = vadd.f32 %v626, %v1441
          %v1443 = vpop.f32.mrf.mxu0
          %v1444 = vadd.f32 %v630, %v1443
          %1445 = vmatprep.mubr.bf16.mxu0 %v718
          %1446 = vmatmul.mubr.bf16.gmra.mxu0 %v717
          %v1447 = vpop.f32.mrf.mxu0
          %v1448 = vadd.f32 %v626, %v1447
          %v1449 = vpop.f32.mrf.mxu0
          %v1450 = vadd.f32 %v630, %v1449
          %v1451 = vpop.f32.mrf.mxu0
          %v1452 = vadd.f32 %v626, %v1451
          %v1453 = vpop.f32.mrf.mxu0
          %v1454 = vadd.f32 %v630, %v1453
          %1455 = vmatprep.mubr.bf16.mxu0 %v720
          %1456 = vmatmul.mubr.bf16.gmra.mxu0 %v719
          %v1457 = vpop.f32.mrf.mxu0
          %v1458 = vadd.f32 %v626, %v1457
          %v1459 = vpop.f32.mrf.mxu0
          %v1460 = vadd.f32 %v630, %v1459
          %v1461 = vpop.f32.mrf.mxu0
          %v1462 = vadd.f32 %v626, %v1461
          %v1463 = vpop.f32.mrf.mxu0
          %v1464 = vadd.f32 %v630, %v1463
          %1465 = vmatprep.mubr.bf16.mxu0 %v722
          %1466 = vmatmul.mubr.bf16.gmra.mxu0 %v721
          %v1467 = vpop.f32.mrf.mxu0
          %v1468 = vadd.f32 %v626, %v1467
          %v1469 = vpop.f32.mrf.mxu0
          %v1470 = vadd.f32 %v630, %v1469
          %v1471 = vpop.f32.mrf.mxu0
          %v1472 = vadd.f32 %v626, %v1471
          %v1473 = vpop.f32.mrf.mxu0
          %v1474 = vadd.f32 %v630, %v1473
          %1475 = vmatprep.mubr.bf16.mxu0 %v724
          %1476 = vmatmul.mubr.bf16.gmra.mxu0 %v723
          %v1477 = vpop.f32.mrf.mxu0
          %v1478 = vadd.f32 %v626, %v1477
          %v1479 = vpop.f32.mrf.mxu0
          %v1480 = vadd.f32 %v630, %v1479
          %v1481 = vpop.f32.mrf.mxu0
          %v1482 = vadd.f32 %v626, %v1481
          %v1483 = vpop.f32.mrf.mxu0
          %v1484 = vadd.f32 %v630, %v1483
          %1485 = vmatprep.mubr.bf16.mxu0 %v726
          %1486 = vmatmul.mubr.bf16.gmra.mxu0 %v725
          %v1487 = vpop.f32.mrf.mxu0
          %v1488 = vadd.f32 %v626, %v1487
          %v1489 = vpop.f32.mrf.mxu0
          %v1490 = vadd.f32 %v630, %v1489
          %v1491 = vpop.f32.mrf.mxu0
          %v1492 = vadd.f32 %v626, %v1491
          %v1493 = vpop.f32.mrf.mxu0
          %v1494 = vadd.f32 %v630, %v1493
          %1495 = vdwg.mxu0
          %1496 = vmatprep.subr.bf16.mxu0 %v1186
          %1497 = vmatpush1.bf16.msra.mxu0 %v1185
          %1498 = vmatprep.subr.bf16.mxu0 %v1178
          %1499 = vmatpush1.bf16.msra.mxu0 %v1177
          %1500 = vmatprep.subr.bf16.mxu0 %v1170
          %1501 = vmatpush1.bf16.msra.mxu0 %v1169
          %1502 = vmatprep.subr.bf16.mxu0 %v1162
          %1503 = vmatpush1.bf16.msra.mxu0 %v1161
          %1504 = vmatprep.subr.bf16.mxu0 %v1154
          %1505 = vmatpush1.bf16.msra.mxu0 %v1153
          %1506 = vmatprep.subr.bf16.mxu0 %v1146
          %1507 = vmatpush1.bf16.msra.mxu0 %v1145
          %1508 = vmatprep.subr.bf16.mxu0 %v1138
          %1509 = vmatpush1.bf16.msra.mxu0 %v1137
          %1510 = vmatprep.subr.bf16.mxu0 %v1130
          %1511 = vmatpush1.bf16.msra.mxu0 %v1129
          %1512 = vmatprep.subr.bf16.mxu0 %v1250
          %1513 = vmatpush2.bf16.msra.mxu0 %v1249
          %1514 = vmatprep.subr.bf16.mxu0 %v1242
          %1515 = vmatpush2.bf16.msra.mxu0 %v1241
          %1516 = vmatprep.subr.bf16.mxu0 %v1234
          %1517 = vmatpush2.bf16.msra.mxu0 %v1233
          %1518 = vmatprep.subr.bf16.mxu0 %v1226
          %1519 = vmatpush2.bf16.msra.mxu0 %v1225
          %1520 = vmatprep.subr.bf16.mxu0 %v1218
          %1521 = vmatpush2.bf16.msra.mxu0 %v1217
          %1522 = vmatprep.subr.bf16.mxu0 %v1210
          %1523 = vmatpush2.bf16.msra.mxu0 %v1209
          %1524 = vmatprep.subr.bf16.mxu0 %v1202
          %1525 = vmatpush2.bf16.msra.mxu0 %v1201
          %1526 = vmatprep.subr.bf16.mxu0 %v1194
          %1527 = vmatpush2.bf16.msra.mxu0 %v1193
          %1528 = vmatprep.mubr.bf16.mxu0 %v712
          %1529 = vmatmul.mubr.bf16.gmra.mxu0 %v711
          %v1530 = vpop.f32.mrf.mxu0
          %v1531 = vadd.f32 %v634, %v1530
          %v1532 = vpop.f32.mrf.mxu0
          %v1533 = vadd.f32 %v638, %v1532
          %v1534 = vpop.f32.mrf.mxu0
          %v1535 = vadd.f32 %v634, %v1534
          %v1536 = vpop.f32.mrf.mxu0
          %v1537 = vadd.f32 %v638, %v1536
          %1538 = vmatprep.mubr.bf16.mxu0 %v714
          %1539 = vmatmul.mubr.bf16.gmra.mxu0 %v713
          %v1540 = vpop.f32.mrf.mxu0
          %v1541 = vadd.f32 %v634, %v1540
          %v1542 = vpop.f32.mrf.mxu0
          %v1543 = vadd.f32 %v638, %v1542
          %v1544 = vpop.f32.mrf.mxu0
          %v1545 = vadd.f32 %v634, %v1544
          %v1546 = vpop.f32.mrf.mxu0
          %v1547 = vadd.f32 %v638, %v1546
          %1548 = vmatprep.mubr.bf16.mxu0 %v716
          %1549 = vmatmul.mubr.bf16.gmra.mxu0 %v715
          %v1550 = vpop.f32.mrf.mxu0
          %v1551 = vadd.f32 %v634, %v1550
          %v1552 = vpop.f32.mrf.mxu0
          %v1553 = vadd.f32 %v638, %v1552
          %v1554 = vpop.f32.mrf.mxu0
          %v1555 = vadd.f32 %v634, %v1554
          %v1556 = vpop.f32.mrf.mxu0
          %v1557 = vadd.f32 %v638, %v1556
          %1558 = vmatprep.mubr.bf16.mxu0 %v718
          %1559 = vmatmul.mubr.bf16.gmra.mxu0 %v717
          %v1560 = vpop.f32.mrf.mxu0
          %v1561 = vadd.f32 %v634, %v1560
          %v1562 = vpop.f32.mrf.mxu0
          %v1563 = vadd.f32 %v638, %v1562
          %v1564 = vpop.f32.mrf.mxu0
          %v1565 = vadd.f32 %v634, %v1564
          %v1566 = vpop.f32.mrf.mxu0
          %v1567 = vadd.f32 %v638, %v1566
          %1568 = vmatprep.mubr.bf16.mxu0 %v720
          %1569 = vmatmul.mubr.bf16.gmra.mxu0 %v719
          %v1570 = vpop.f32.mrf.mxu0
          %v1571 = vadd.f32 %v634, %v1570
          %v1572 = vpop.f32.mrf.mxu0
          %v1573 = vadd.f32 %v638, %v1572
          %v1574 = vpop.f32.mrf.mxu0
          %v1575 = vadd.f32 %v634, %v1574
          %v1576 = vpop.f32.mrf.mxu0
          %v1577 = vadd.f32 %v638, %v1576
          %1578 = vmatprep.mubr.bf16.mxu0 %v722
          %1579 = vmatmul.mubr.bf16.gmra.mxu0 %v721
          %v1580 = vpop.f32.mrf.mxu0
          %v1581 = vadd.f32 %v634, %v1580
          %v1582 = vpop.f32.mrf.mxu0
          %v1583 = vadd.f32 %v638, %v1582
          %v1584 = vpop.f32.mrf.mxu0
          %v1585 = vadd.f32 %v634, %v1584
          %v1586 = vpop.f32.mrf.mxu0
          %v1587 = vadd.f32 %v638, %v1586
          %1588 = vmatprep.mubr.bf16.mxu0 %v724
          %1589 = vmatmul.mubr.bf16.gmra.mxu0 %v723
          %v1590 = vpop.f32.mrf.mxu0
          %v1591 = vadd.f32 %v634, %v1590
          %v1592 = vpop.f32.mrf.mxu0
          %v1593 = vadd.f32 %v638, %v1592
          %v1594 = vpop.f32.mrf.mxu0
          %v1595 = vadd.f32 %v634, %v1594
          %v1596 = vpop.f32.mrf.mxu0
          %v1597 = vadd.f32 %v638, %v1596
          %1598 = vmatprep.mubr.bf16.mxu0 %v726
          %1599 = vmatmul.mubr.bf16.gmra.mxu0 %v725
          %v1600 = vpop.f32.mrf.mxu0
          %v1601 = vadd.f32 %v634, %v1600
          %v1602 = vpop.f32.mrf.mxu0
          %v1603 = vadd.f32 %v638, %v1602
          %v1604 = vpop.f32.mrf.mxu0
          %v1605 = vadd.f32 %v634, %v1604
          %v1606 = vpop.f32.mrf.mxu0
          %v1607 = vadd.f32 %v638, %v1606
          %1608 = vdwg.mxu0
          %1609 = vmatprep.subr.bf16.mxu0 %v1188
          %1610 = vmatpush1.bf16.msra.mxu0 %v1187
          %1611 = vmatprep.subr.bf16.mxu0 %v1180
          %1612 = vmatpush1.bf16.msra.mxu0 %v1179
          %1613 = vmatprep.subr.bf16.mxu0 %v1172
          %1614 = vmatpush1.bf16.msra.mxu0 %v1171
          %1615 = vmatprep.subr.bf16.mxu0 %v1164
          %1616 = vmatpush1.bf16.msra.mxu0 %v1163
          %1617 = vmatprep.subr.bf16.mxu0 %v1156
          %1618 = vmatpush1.bf16.msra.mxu0 %v1155
          %1619 = vmatprep.subr.bf16.mxu0 %v1148
          %1620 = vmatpush1.bf16.msra.mxu0 %v1147
          %1621 = vmatprep.subr.bf16.mxu0 %v1140
          %1622 = vmatpush1.bf16.msra.mxu0 %v1139
          %1623 = vmatprep.subr.bf16.mxu0 %v1132
          %1624 = vmatpush1.bf16.msra.mxu0 %v1131
          %1625 = vmatprep.subr.bf16.mxu0 %v1252
          %1626 = vmatpush2.bf16.msra.mxu0 %v1251
          %1627 = vmatprep.subr.bf16.mxu0 %v1244
          %1628 = vmatpush2.bf16.msra.mxu0 %v1243
          %1629 = vmatprep.subr.bf16.mxu0 %v1236
          %1630 = vmatpush2.bf16.msra.mxu0 %v1235
          %1631 = vmatprep.subr.bf16.mxu0 %v1228
          %1632 = vmatpush2.bf16.msra.mxu0 %v1227
          %1633 = vmatprep.subr.bf16.mxu0 %v1220
          %1634 = vmatpush2.bf16.msra.mxu0 %v1219
          %1635 = vmatprep.subr.bf16.mxu0 %v1212
          %1636 = vmatpush2.bf16.msra.mxu0 %v1211
          %1637 = vmatprep.subr.bf16.mxu0 %v1204
          %1638 = vmatpush2.bf16.msra.mxu0 %v1203
          %1639 = vmatprep.subr.bf16.mxu0 %v1196
          %1640 = vmatpush2.bf16.msra.mxu0 %v1195
          %1641 = vmatprep.mubr.bf16.mxu0 %v712
          %1642 = vmatmul.mubr.bf16.gmra.mxu0 %v711
          %v1643 = vpop.f32.mrf.mxu0
          %v1644 = vadd.f32 %v642, %v1643
          %v1645 = vpop.f32.mrf.mxu0
          %v1646 = vadd.f32 %v646, %v1645
          %v1647 = vpop.f32.mrf.mxu0
          %v1648 = vadd.f32 %v642, %v1647
          %v1649 = vpop.f32.mrf.mxu0
          %v1650 = vadd.f32 %v646, %v1649
          %1651 = vmatprep.mubr.bf16.mxu0 %v714
          %1652 = vmatmul.mubr.bf16.gmra.mxu0 %v713
          %v1653 = vpop.f32.mrf.mxu0
          %v1654 = vadd.f32 %v642, %v1653
          %v1655 = vpop.f32.mrf.mxu0
          %v1656 = vadd.f32 %v646, %v1655
          %v1657 = vpop.f32.mrf.mxu0
          %v1658 = vadd.f32 %v642, %v1657
          %v1659 = vpop.f32.mrf.mxu0
          %v1660 = vadd.f32 %v646, %v1659
          %1661 = vmatprep.mubr.bf16.mxu0 %v716
          %1662 = vmatmul.mubr.bf16.gmra.mxu0 %v715
          %v1663 = vpop.f32.mrf.mxu0
          %v1664 = vadd.f32 %v642, %v1663
          %v1665 = vpop.f32.mrf.mxu0
          %v1666 = vadd.f32 %v646, %v1665
          %v1667 = vpop.f32.mrf.mxu0
          %v1668 = vadd.f32 %v642, %v1667
          %v1669 = vpop.f32.mrf.mxu0
          %v1670 = vadd.f32 %v646, %v1669
          %1671 = vmatprep.mubr.bf16.mxu0 %v718
          %1672 = vmatmul.mubr.bf16.gmra.mxu0 %v717
          %v1673 = vpop.f32.mrf.mxu0
          %v1674 = vadd.f32 %v642, %v1673
          %v1675 = vpop.f32.mrf.mxu0
          %v1676 = vadd.f32 %v646, %v1675
          %v1677 = vpop.f32.mrf.mxu0
          %v1678 = vadd.f32 %v642, %v1677
          %v1679 = vpop.f32.mrf.mxu0
          %v1680 = vadd.f32 %v646, %v1679
          %1681 = vmatprep.mubr.bf16.mxu0 %v720
          %1682 = vmatmul.mubr.bf16.gmra.mxu0 %v719
          %v1683 = vpop.f32.mrf.mxu0
          %v1684 = vadd.f32 %v642, %v1683
          %v1685 = vpop.f32.mrf.mxu0
          %v1686 = vadd.f32 %v646, %v1685
          %v1687 = vpop.f32.mrf.mxu0
          %v1688 = vadd.f32 %v642, %v1687
          %v1689 = vpop.f32.mrf.mxu0
          %v1690 = vadd.f32 %v646, %v1689
          %1691 = vmatprep.mubr.bf16.mxu0 %v722
          %1692 = vmatmul.mubr.bf16.gmra.mxu0 %v721
          %v1693 = vpop.f32.mrf.mxu0
          %v1694 = vadd.f32 %v642, %v1693
          %v1695 = vpop.f32.mrf.mxu0
          %v1696 = vadd.f32 %v646, %v1695
          %v1697 = vpop.f32.mrf.mxu0
          %v1698 = vadd.f32 %v642, %v1697
          %v1699 = vpop.f32.mrf.mxu0
          %v1700 = vadd.f32 %v646, %v1699
          %1701 = vmatprep.mubr.bf16.mxu0 %v724
          %1702 = vmatmul.mubr.bf16.gmra.mxu0 %v723
          %v1703 = vpop.f32.mrf.mxu0
          %v1704 = vadd.f32 %v642, %v1703
          %v1705 = vpop.f32.mrf.mxu0
          %v1706 = vadd.f32 %v646, %v1705
          %v1707 = vpop.f32.mrf.mxu0
          %v1708 = vadd.f32 %v642, %v1707
          %v1709 = vpop.f32.mrf.mxu0
          %v1710 = vadd.f32 %v646, %v1709
          %1711 = vmatprep.mubr.bf16.mxu0 %v726
          %1712 = vmatmul.mubr.bf16.gmra.mxu0 %v725
          %v1713 = vpop.f32.mrf.mxu0
          %v1714 = vadd.f32 %v642, %v1713
          %v1715 = vpop.f32.mrf.mxu0
          %v1716 = vadd.f32 %v646, %v1715
          %v1717 = vpop.f32.mrf.mxu0
          %v1718 = vadd.f32 %v642, %v1717
          %v1719 = vpop.f32.mrf.mxu0
          %v1720 = vadd.f32 %v646, %v1719
          %1721 = vdwg.mxu0
          %1722 = vmatprep.subr.bf16.mxu0 %v1190
          %1723 = vmatpush1.bf16.msra.mxu0 %v1189
          %1724 = vmatprep.subr.bf16.mxu0 %v1182
          %1725 = vmatpush1.bf16.msra.mxu0 %v1181
          %1726 = vmatprep.subr.bf16.mxu0 %v1174
          %1727 = vmatpush1.bf16.msra.mxu0 %v1173
          %1728 = vmatprep.subr.bf16.mxu0 %v1166
          %1729 = vmatpush1.bf16.msra.mxu0 %v1165
          %1730 = vmatprep.subr.bf16.mxu0 %v1158
          %1731 = vmatpush1.bf16.msra.mxu0 %v1157
          %1732 = vmatprep.subr.bf16.mxu0 %v1150
          %1733 = vmatpush1.bf16.msra.mxu0 %v1149
          %1734 = vmatprep.subr.bf16.mxu0 %v1142
          %1735 = vmatpush1.bf16.msra.mxu0 %v1141
          %1736 = vmatprep.subr.bf16.mxu0 %v1134
          %1737 = vmatpush1.bf16.msra.mxu0 %v1133
          %1738 = vmatprep.subr.bf16.mxu0 %v1254
          %1739 = vmatpush2.bf16.msra.mxu0 %v1253
          %1740 = vmatprep.subr.bf16.mxu0 %v1246
          %1741 = vmatpush2.bf16.msra.mxu0 %v1245
          %1742 = vmatprep.subr.bf16.mxu0 %v1238
          %1743 = vmatpush2.bf16.msra.mxu0 %v1237
          %1744 = vmatprep.subr.bf16.mxu0 %v1230
          %1745 = vmatpush2.bf16.msra.mxu0 %v1229
          %1746 = vmatprep.subr.bf16.mxu0 %v1222
          %1747 = vmatpush2.bf16.msra.mxu0 %v1221
          %1748 = vmatprep.subr.bf16.mxu0 %v1214
          %1749 = vmatpush2.bf16.msra.mxu0 %v1213
          %1750 = vmatprep.subr.bf16.mxu0 %v1206
          %1751 = vmatpush2.bf16.msra.mxu0 %v1205
          %1752 = vmatprep.subr.bf16.mxu0 %v1198
          %1753 = vmatpush2.bf16.msra.mxu0 %v1197
          %1754 = vmatprep.mubr.bf16.mxu0 %v712
          %1755 = vmatmul.mubr.bf16.gmra.mxu0 %v711
          %v1756 = vpop.f32.mrf.mxu0
          %v1757 = vadd.f32 %v650, %v1756
          %v1758 = vpop.f32.mrf.mxu0
          %v1759 = vadd.f32 %v654, %v1758
          %v1760 = vpop.f32.mrf.mxu0
          %v1761 = vadd.f32 %v650, %v1760
          %v1762 = vpop.f32.mrf.mxu0
          %v1763 = vadd.f32 %v654, %v1762
          %1764 = vmatprep.mubr.bf16.mxu0 %v714
          %1765 = vmatmul.mubr.bf16.gmra.mxu0 %v713
          %v1766 = vpop.f32.mrf.mxu0
          %v1767 = vadd.f32 %v650, %v1766
          %v1768 = vpop.f32.mrf.mxu0
          %v1769 = vadd.f32 %v654, %v1768
          %v1770 = vpop.f32.mrf.mxu0
          %v1771 = vadd.f32 %v650, %v1770
          %v1772 = vpop.f32.mrf.mxu0
          %v1773 = vadd.f32 %v654, %v1772
          %1774 = vmatprep.mubr.bf16.mxu0 %v716
          %1775 = vmatmul.mubr.bf16.gmra.mxu0 %v715
          %v1776 = vpop.f32.mrf.mxu0
          %v1777 = vadd.f32 %v650, %v1776
          %v1778 = vpop.f32.mrf.mxu0
          %v1779 = vadd.f32 %v654, %v1778
          %v1780 = vpop.f32.mrf.mxu0
          %v1781 = vadd.f32 %v650, %v1780
          %v1782 = vpop.f32.mrf.mxu0
          %v1783 = vadd.f32 %v654, %v1782
          %1784 = vmatprep.mubr.bf16.mxu0 %v718
          %1785 = vmatmul.mubr.bf16.gmra.mxu0 %v717
          %v1786 = vpop.f32.mrf.mxu0
          %v1787 = vadd.f32 %v650, %v1786
          %v1788 = vpop.f32.mrf.mxu0
          %v1789 = vadd.f32 %v654, %v1788
          %v1790 = vpop.f32.mrf.mxu0
          %v1791 = vadd.f32 %v650, %v1790
          %v1792 = vpop.f32.mrf.mxu0
          %v1793 = vadd.f32 %v654, %v1792
          %1794 = vmatprep.mubr.bf16.mxu0 %v720
          %1795 = vmatmul.mubr.bf16.gmra.mxu0 %v719
          %v1796 = vpop.f32.mrf.mxu0
          %v1797 = vadd.f32 %v650, %v1796
          %v1798 = vpop.f32.mrf.mxu0
          %v1799 = vadd.f32 %v654, %v1798
          %v1800 = vpop.f32.mrf.mxu0
          %v1801 = vadd.f32 %v650, %v1800
          %v1802 = vpop.f32.mrf.mxu0
          %v1803 = vadd.f32 %v654, %v1802
          %1804 = vmatprep.mubr.bf16.mxu0 %v722
          %1805 = vmatmul.mubr.bf16.gmra.mxu0 %v721
          %v1806 = vpop.f32.mrf.mxu0
          %v1807 = vadd.f32 %v650, %v1806
          %v1808 = vpop.f32.mrf.mxu0
          %v1809 = vadd.f32 %v654, %v1808
          %v1810 = vpop.f32.mrf.mxu0
          %v1811 = vadd.f32 %v650, %v1810
          %v1812 = vpop.f32.mrf.mxu0
          %v1813 = vadd.f32 %v654, %v1812
          %1814 = vmatprep.mubr.bf16.mxu0 %v724
          %1815 = vmatmul.mubr.bf16.gmra.mxu0 %v723
          %v1816 = vpop.f32.mrf.mxu0
          %v1817 = vadd.f32 %v650, %v1816
          %v1818 = vpop.f32.mrf.mxu0
          %v1819 = vadd.f32 %v654, %v1818
          %v1820 = vpop.f32.mrf.mxu0
          %v1821 = vadd.f32 %v650, %v1820
          %v1822 = vpop.f32.mrf.mxu0
          %v1823 = vadd.f32 %v654, %v1822
          %1824 = vmatprep.mubr.bf16.mxu0 %v726
          %1825 = vmatmul.mubr.bf16.gmra.mxu0 %v725
          %v1826 = vpop.f32.mrf.mxu0
          %v1827 = vadd.f32 %v650, %v1826
          %v1828 = vpop.f32.mrf.mxu0
          %v1829 = vadd.f32 %v654, %v1828
          %v1830 = vpop.f32.mrf.mxu0
          %v1831 = vadd.f32 %v650, %v1830
          %v1832 = vpop.f32.mrf.mxu0
          %v1833 = vadd.f32 %v654, %v1832
          %1834 = vdwg.mxu0
          %1835 = vst [vmem:[#allocation3] sm:$0xff] %v1418
          %1836 = vst [vmem:[#allocation3 + $0x8] sm:$0xff] %v1420
          %1837 = vst [vmem:[#allocation3 + $0x10] sm:$0xff] %v1531
          %1838 = vst [vmem:[#allocation3 + $0x18] sm:$0xff] %v1533
          %1839 = vst [vmem:[#allocation3 + $0x20] sm:$0xff] %v1644
          %1840 = vst [vmem:[#allocation3 + $0x28] sm:$0xff] %v1646
          %1841 = vst [vmem:[#allocation3 + $0x30] sm:$0xff] %v1757
          %1842 = vst [vmem:[#allocation3 + $0x38] sm:$0xff] %v1759
          %1843 = vst [vmem:[#allocation3 + $0x40] sm:$0xff] %v1422
          %1844 = vst [vmem:[#allocation3 + $0x48] sm:$0xff] %v1424
          %1845 = vst [vmem:[#allocation3 + $0x50] sm:$0xff] %v1535
          %1846 = vst [vmem:[#allocation3 + $0x58] sm:$0xff] %v1537
          %1847 = vst [vmem:[#allocation3 + $0x60] sm:$0xff] %v1648
          %1848 = vst [vmem:[#allocation3 + $0x68] sm:$0xff] %v1650
          %1849 = vst [vmem:[#allocation3 + $0x70] sm:$0xff] %v1761
          %1850 = vst [vmem:[#allocation3 + $0x78] sm:$0xff] %v1763
          %1851 = vst [vmem:[#allocation3 + $0x80] sm:$0xff] %v1428
          %1852 = vst [vmem:[#allocation3 + $0x88] sm:$0xff] %v1430
          %1853 = vst [vmem:[#allocation3 + $0x90] sm:$0xff] %v1541
          %1854 = vst [vmem:[#allocation3 + $0x98] sm:$0xff] %v1543
          %1855 = vst [vmem:[#allocation3 + $0xa0] sm:$0xff] %v1654
          %1856 = vst [vmem:[#allocation3 + $0xa8] sm:$0xff] %v1656
          %1857 = vst [vmem:[#allocation3 + $0xb0] sm:$0xff] %v1767
          %1858 = vst [vmem:[#allocation3 + $0xb8] sm:$0xff] %v1769
          %1859 = vst [vmem:[#allocation3 + $0xc0] sm:$0xff] %v1432
          %1860 = vst [vmem:[#allocation3 + $0xc8] sm:$0xff] %v1434
          %1861 = vst [vmem:[#allocation3 + $0xd0] sm:$0xff] %v1545
          %1862 = vst [vmem:[#allocation3 + $0xd8] sm:$0xff] %v1547
          %1863 = vst [vmem:[#allocation3 + $0xe0] sm:$0xff] %v1658
          %1864 = vst [vmem:[#allocation3 + $0xe8] sm:$0xff] %v1660
          %1865 = vst [vmem:[#allocation3 + $0xf0] sm:$0xff] %v1771
          %1866 = vst [vmem:[#allocation3 + $0xf8] sm:$0xff] %v1773
          %1867 = vst [vmem:[#allocation3 + $0x100] sm:$0xff] %v1438
          %1868 = vst [vmem:[#allocation3 + $0x108] sm:$0xff] %v1440
          %1869 = vst [vmem:[#allocation3 + $0x110] sm:$0xff] %v1551
          %1870 = vst [vmem:[#allocation3 + $0x118] sm:$0xff] %v1553
          %1871 = vst [vmem:[#allocation3 + $0x120] sm:$0xff] %v1664
          %1872 = vst [vmem:[#allocation3 + $0x128] sm:$0xff] %v1666
          %1873 = vst [vmem:[#allocation3 + $0x130] sm:$0xff] %v1777
          %1874 = vst [vmem:[#allocation3 + $0x138] sm:$0xff] %v1779
          %1875 = vst [vmem:[#allocation3 + $0x140] sm:$0xff] %v1442
          %1876 = vst [vmem:[#allocation3 + $0x148] sm:$0xff] %v1444
          %1877 = vst [vmem:[#allocation3 + $0x150] sm:$0xff] %v1555
          %1878 = vst [vmem:[#allocation3 + $0x158] sm:$0xff] %v1557
          %1879 = vst [vmem:[#allocation3 + $0x160] sm:$0xff] %v1668
          %1880 = vst [vmem:[#allocation3 + $0x168] sm:$0xff] %v1670
          %1881 = vst [vmem:[#allocation3 + $0x170] sm:$0xff] %v1781
          %1882 = vst [vmem:[#allocation3 + $0x178] sm:$0xff] %v1783
          %1883 = vst [vmem:[#allocation3 + $0x180] sm:$0xff] %v1448
          %1884 = vst [vmem:[#allocation3 + $0x188] sm:$0xff] %v1450
          %1885 = vst [vmem:[#allocation3 + $0x190] sm:$0xff] %v1561
          %1886 = vst [vmem:[#allocation3 + $0x198] sm:$0xff] %v1563
          %1887 = vst [vmem:[#allocation3 + $0x1a0] sm:$0xff] %v1674
          %1888 = vst [vmem:[#allocation3 + $0x1a8] sm:$0xff] %v1676
          %1889 = vst [vmem:[#allocation3 + $0x1b0] sm:$0xff] %v1787
          %1890 = vst [vmem:[#allocation3 + $0x1b8] sm:$0xff] %v1789
          %1891 = vst [vmem:[#allocation3 + $0x1c0] sm:$0xff] %v1452
          %1892 = vst [vmem:[#allocation3 + $0x1c8] sm:$0xff] %v1454
          %1893 = vst [vmem:[#allocation3 + $0x1d0] sm:$0xff] %v1565
          %1894 = vst [vmem:[#allocation3 + $0x1d8] sm:$0xff] %v1567
          %1895 = vst [vmem:[#allocation3 + $0x1e0] sm:$0xff] %v1678
          %1896 = vst [vmem:[#allocation3 + $0x1e8] sm:$0xff] %v1680
          %1897 = vst [vmem:[#allocation3 + $0x1f0] sm:$0xff] %v1791
          %1898 = vst [vmem:[#allocation3 + $0x1f8] sm:$0xff] %v1793
          %1899 = vst [vmem:[#allocation3 + $0x200] sm:$0xff] %v1458
          %1900 = vst [vmem:[#allocation3 + $0x208] sm:$0xff] %v1460
          %1901 = vst [vmem:[#allocation3 + $0x210] sm:$0xff] %v1571
          %1902 = vst [vmem:[#allocation3 + $0x218] sm:$0xff] %v1573
          %1903 = vst [vmem:[#allocation3 + $0x220] sm:$0xff] %v1684
          %1904 = vst [vmem:[#allocation3 + $0x228] sm:$0xff] %v1686
          %1905 = vst [vmem:[#allocation3 + $0x230] sm:$0xff] %v1797
          %1906 = vst [vmem:[#allocation3 + $0x238] sm:$0xff] %v1799
          %1907 = vst [vmem:[#allocation3 + $0x240] sm:$0xff] %v1462
          %1908 = vst [vmem:[#allocation3 + $0x248] sm:$0xff] %v1464
          %1909 = vst [vmem:[#allocation3 + $0x250] sm:$0xff] %v1575
          %1910 = vst [vmem:[#allocation3 + $0x258] sm:$0xff] %v1577
          %1911 = vst [vmem:[#allocation3 + $0x260] sm:$0xff] %v1688
          %1912 = vst [vmem:[#allocation3 + $0x268] sm:$0xff] %v1690
          %1913 = vst [vmem:[#allocation3 + $0x270] sm:$0xff] %v1801
          %1914 = vst [vmem:[#allocation3 + $0x278] sm:$0xff] %v1803
          %1915 = vst [vmem:[#allocation3 + $0x280] sm:$0xff] %v1468
          %1916 = vst [vmem:[#allocation3 + $0x288] sm:$0xff] %v1470
          %1917 = vst [vmem:[#allocation3 + $0x290] sm:$0xff] %v1581
          %1918 = vst [vmem:[#allocation3 + $0x298] sm:$0xff] %v1583
          %1919 = vst [vmem:[#allocation3 + $0x2a0] sm:$0xff] %v1694
          %1920 = vst [vmem:[#allocation3 + $0x2a8] sm:$0xff] %v1696
          %1921 = vst [vmem:[#allocation3 + $0x2b0] sm:$0xff] %v1807
          %1922 = vst [vmem:[#allocation3 + $0x2b8] sm:$0xff] %v1809
          %1923 = vst [vmem:[#allocation3 + $0x2c0] sm:$0xff] %v1472
          %1924 = vst [vmem:[#allocation3 + $0x2c8] sm:$0xff] %v1474
          %1925 = vst [vmem:[#allocation3 + $0x2d0] sm:$0xff] %v1585
          %1926 = vst [vmem:[#allocation3 + $0x2d8] sm:$0xff] %v1587
          %1927 = vst [vmem:[#allocation3 + $0x2e0] sm:$0xff] %v1698
          %1928 = vst [vmem:[#allocation3 + $0x2e8] sm:$0xff] %v1700
          %1929 = vst [vmem:[#allocation3 + $0x2f0] sm:$0xff] %v1811
          %1930 = vst [vmem:[#allocation3 + $0x2f8] sm:$0xff] %v1813
          %1931 = vst [vmem:[#allocation3 + $0x300] sm:$0xff] %v1478
          %1932 = vst [vmem:[#allocation3 + $0x308] sm:$0xff] %v1480
          %1933 = vst [vmem:[#allocation3 + $0x310] sm:$0xff] %v1591
          %1934 = vst [vmem:[#allocation3 + $0x318] sm:$0xff] %v1593
          %1935 = vst [vmem:[#allocation3 + $0x320] sm:$0xff] %v1704
          %1936 = vst [vmem:[#allocation3 + $0x328] sm:$0xff] %v1706
          %1937 = vst [vmem:[#allocation3 + $0x330] sm:$0xff] %v1817
          %1938 = vst [vmem:[#allocation3 + $0x338] sm:$0xff] %v1819
          %1939 = vst [vmem:[#allocation3 + $0x340] sm:$0xff] %v1482
          %1940 = vst [vmem:[#allocation3 + $0x348] sm:$0xff] %v1484
          %1941 = vst [vmem:[#allocation3 + $0x350] sm:$0xff] %v1595
          %1942 = vst [vmem:[#allocation3 + $0x358] sm:$0xff] %v1597
          %1943 = vst [vmem:[#allocation3 + $0x360] sm:$0xff] %v1708
          %1944 = vst [vmem:[#allocation3 + $0x368] sm:$0xff] %v1710
          %1945 = vst [vmem:[#allocation3 + $0x370] sm:$0xff] %v1821
          %1946 = vst [vmem:[#allocation3 + $0x378] sm:$0xff] %v1823
          %1947 = vst [vmem:[#allocation3 + $0x380] sm:$0xff] %v1488
          %1948 = vst [vmem:[#allocation3 + $0x388] sm:$0xff] %v1490
          %1949 = vst [vmem:[#allocation3 + $0x390] sm:$0xff] %v1601
          %1950 = vst [vmem:[#allocation3 + $0x398] sm:$0xff] %v1603
          %1951 = vst [vmem:[#allocation3 + $0x3a0] sm:$0xff] %v1714
          %1952 = vst [vmem:[#allocation3 + $0x3a8] sm:$0xff] %v1716
          %1953 = vst [vmem:[#allocation3 + $0x3b0] sm:$0xff] %v1827
          %1954 = vst [vmem:[#allocation3 + $0x3b8] sm:$0xff] %v1829
          %1955 = vst [vmem:[#allocation3 + $0x3c0] sm:$0xff] %v1492
          %1956 = vst [vmem:[#allocation3 + $0x3c8] sm:$0xff] %v1494
          %1957 = vst [vmem:[#allocation3 + $0x3d0] sm:$0xff] %v1605
          %1958 = vst [vmem:[#allocation3 + $0x3d8] sm:$0xff] %v1607
          %1959 = vst [vmem:[#allocation3 + $0x3e0] sm:$0xff] %v1718
          %1960 = vst [vmem:[#allocation3 + $0x3e8] sm:$0xff] %v1720
          %1961 = vst [vmem:[#allocation3 + $0x3f0] sm:$0xff] %v1831
          %1962 = vst [vmem:[#allocation3 + $0x3f8] sm:$0xff] %v1833
        $region56: #{tpu_custom_call.1} parent=35 // pred_fallthru
          _
        %p1963 = scmp.ne.s32.totalorder %s30, 0
        // Predicated region
        $region57: #{tpu_custom_call.1} parent=35 // pred_check
          %p1964 = pneg %p1963
        $region58: #{tpu_custom_call.1} parent=35 // pred_check_branch
          %1966 = sbr.rel (%p1964) target = $region60
        $region59: #{tpu_custom_call.1} parent=35 // pred_region
          %v1967 = vld [vmem:[#allocation2] sm:$0xff]
          %v1968 = vld [vmem:[#allocation2 + $0x8] sm:$0xff]
          %v1969 = vld [vmem:[#allocation2 + $0x10] sm:$0xff]
          %v1970 = vld [vmem:[#allocation2 + $0x18] sm:$0xff]
          %v1971 = vld [vmem:[#allocation2 + $0x20] sm:$0xff]
          %v1972 = vld [vmem:[#allocation2 + $0x28] sm:$0xff]
          %v1973 = vld [vmem:[#allocation2 + $0x30] sm:$0xff]
          %v1974 = vld [vmem:[#allocation2 + $0x38] sm:$0xff]
          %v1975 = vld [vmem:[#allocation2 + $0x40] sm:$0xff]
          %v1976 = vld [vmem:[#allocation2 + $0x48] sm:$0xff]
          %v1977 = vld [vmem:[#allocation2 + $0x50] sm:$0xff]
          %v1978 = vld [vmem:[#allocation2 + $0x58] sm:$0xff]
          %v1979 = vld [vmem:[#allocation2 + $0x60] sm:$0xff]
          %v1980 = vld [vmem:[#allocation2 + $0x68] sm:$0xff]
          %v1981 = vld [vmem:[#allocation2 + $0x70] sm:$0xff]
          %v1982 = vld [vmem:[#allocation2 + $0x78] sm:$0xff]
          %v1984 = vlaneseq
          %v1985 = vshrl.u32 %v1984, 7
          %v1986 = vsub.s32 0, %v1985
          %v1987 = vrot.slane %v601, %v1986
          %v1988 = vlaneseq
          %v1989 = vshrl.u32 %v1988, 7
          %v1990 = vsub.s32 1, %v1989
          %v1991 = vrot.slane %v601, %v1990
          %v1992 = vlaneseq
          %v1993 = vshrl.u32 %v1992, 7
          %v1994 = vsub.s32 2, %v1993
          %v1995 = vrot.slane %v601, %v1994
          %v1996 = vlaneseq
          %v1997 = vshrl.u32 %v1996, 7
          %v1998 = vsub.s32 3, %v1997
          %v1999 = vrot.slane %v601, %v1998
          %v2000 = vlaneseq
          %v2001 = vshrl.u32 %v2000, 7
          %v2002 = vsub.s32 4, %v2001
          %v2003 = vrot.slane %v601, %v2002
          %v2004 = vlaneseq
          %v2005 = vshrl.u32 %v2004, 7
          %v2006 = vsub.s32 5, %v2005
          %v2007 = vrot.slane %v601, %v2006
          %v2008 = vlaneseq
          %v2009 = vshrl.u32 %v2008, 7
          %v2010 = vsub.s32 6, %v2009
          %v2011 = vrot.slane %v601, %v2010
          %v2012 = vlaneseq
          %v2013 = vshrl.u32 %v2012, 7
          %v2014 = vsub.s32 7, %v2013
          %v2015 = vrot.slane %v601, %v2014
          %v2040 = vunpack.c.l.b16 %v1967
          %v2041 = vunpack.c.h.b16 %v1967
          %v2042 = vunpack.c.l.b16 %v1968
          %v2043 = vunpack.c.h.b16 %v1968
          %v2044 = vunpack.c.l.b16 %v1969
          %v2045 = vunpack.c.h.b16 %v1969
          %v2046 = vunpack.c.l.b16 %v1970
          %v2047 = vunpack.c.h.b16 %v1970
          %v2048 = vunpack.c.l.b16 %v1971
          %v2049 = vunpack.c.h.b16 %v1971
          %v2050 = vunpack.c.l.b16 %v1972
          %v2051 = vunpack.c.h.b16 %v1972
          %v2052 = vunpack.c.l.b16 %v1973
          %v2053 = vunpack.c.h.b16 %v1973
          %v2054 = vunpack.c.l.b16 %v1974
          %v2055 = vunpack.c.h.b16 %v1974
          %v2056 = vunpack.c.l.b16 %v1975
          %v2057 = vunpack.c.h.b16 %v1975
          %v2058 = vunpack.c.l.b16 %v1976
          %v2059 = vunpack.c.h.b16 %v1976
          %v2060 = vunpack.c.l.b16 %v1977
          %v2061 = vunpack.c.h.b16 %v1977
          %v2062 = vunpack.c.l.b16 %v1978
          %v2063 = vunpack.c.h.b16 %v1978
          %v2064 = vunpack.c.l.b16 %v1979
          %v2065 = vunpack.c.h.b16 %v1979
          %v2066 = vunpack.c.l.b16 %v1980
          %v2067 = vunpack.c.h.b16 %v1980
          %v2068 = vunpack.c.l.b16 %v1981
          %v2069 = vunpack.c.h.b16 %v1981
          %v2070 = vunpack.c.l.b16 %v1982
          %v2071 = vunpack.c.h.b16 %v1982
          %v2072 = vpack.c.b16 %v2042, %v2040
          %v2073 = vpack.c.b16 %v2043, %v2041
          %v2074 = vpack.c.b16 %v2046, %v2044
          %v2075 = vpack.c.b16 %v2047, %v2045
          %v2076 = vpack.c.b16 %v2050, %v2048
          %v2077 = vpack.c.b16 %v2051, %v2049
          %v2078 = vpack.c.b16 %v2054, %v2052
          %v2079 = vpack.c.b16 %v2055, %v2053
          %v2080 = vpack.c.b16 %v2058, %v2056
          %v2081 = vpack.c.b16 %v2059, %v2057
          %v2082 = vpack.c.b16 %v2062, %v2060
          %v2083 = vpack.c.b16 %v2063, %v2061
          %v2084 = vpack.c.b16 %v2066, %v2064
          %v2085 = vpack.c.b16 %v2067, %v2065
          %v2086 = vpack.c.b16 %v2070, %v2068
          %v2087 = vpack.c.b16 %v2071, %v2069
          %v2232 = vunpack.c.l.b16 %v345
          %v2233 = vunpack.c.h.b16 %v345
          %v2234 = vunpack.c.l.b16 %v346
          %v2235 = vunpack.c.h.b16 %v346
          %v2236 = vunpack.c.l.b16 %v347
          %v2237 = vunpack.c.h.b16 %v347
          %v2238 = vunpack.c.l.b16 %v348
          %v2239 = vunpack.c.h.b16 %v348
          %v2240 = vunpack.c.l.b16 %v349
          %v2241 = vunpack.c.h.b16 %v349
          %v2242 = vunpack.c.l.b16 %v350
          %v2243 = vunpack.c.h.b16 %v350
          %v2244 = vunpack.c.l.b16 %v351
          %v2245 = vunpack.c.h.b16 %v351
          %v2246 = vunpack.c.l.b16 %v352
          %v2247 = vunpack.c.h.b16 %v352
          %v2248 = vunpack.c.l.b16 %v353
          %v2249 = vunpack.c.h.b16 %v353
          %v2250 = vunpack.c.l.b16 %v354
          %v2251 = vunpack.c.h.b16 %v354
          %v2252 = vunpack.c.l.b16 %v355
          %v2253 = vunpack.c.h.b16 %v355
          %v2254 = vunpack.c.l.b16 %v356
          %v2255 = vunpack.c.h.b16 %v356
          %v2256 = vunpack.c.l.b16 %v357
          %v2257 = vunpack.c.h.b16 %v357
          %v2258 = vunpack.c.l.b16 %v358
          %v2259 = vunpack.c.h.b16 %v358
          %v2260 = vunpack.c.l.b16 %v359
          %v2261 = vunpack.c.h.b16 %v359
          %v2262 = vunpack.c.l.b16 %v360
          %v2263 = vunpack.c.h.b16 %v360
          %v2264 = vunpack.c.l.b16 %v361
          %v2265 = vunpack.c.h.b16 %v361
          %v2266 = vunpack.c.l.b16 %v362
          %v2267 = vunpack.c.h.b16 %v362
          %v2268 = vunpack.c.l.b16 %v363
          %v2269 = vunpack.c.h.b16 %v363
          %v2270 = vunpack.c.l.b16 %v364
          %v2271 = vunpack.c.h.b16 %v364
          %v2272 = vunpack.c.l.b16 %v365
          %v2273 = vunpack.c.h.b16 %v365
          %v2274 = vunpack.c.l.b16 %v366
          %v2275 = vunpack.c.h.b16 %v366
          %v2276 = vunpack.c.l.b16 %v367
          %v2277 = vunpack.c.h.b16 %v367
          %v2278 = vunpack.c.l.b16 %v368
          %v2279 = vunpack.c.h.b16 %v368
          %v2280 = vunpack.c.l.b16 %v369
          %v2281 = vunpack.c.h.b16 %v369
          %v2282 = vunpack.c.l.b16 %v370
          %v2283 = vunpack.c.h.b16 %v370
          %v2284 = vunpack.c.l.b16 %v371
          %v2285 = vunpack.c.h.b16 %v371
          %v2286 = vunpack.c.l.b16 %v372
          %v2287 = vunpack.c.h.b16 %v372
          %v2288 = vunpack.c.l.b16 %v373
          %v2289 = vunpack.c.h.b16 %v373
          %v2290 = vunpack.c.l.b16 %v374
          %v2291 = vunpack.c.h.b16 %v374
          %v2292 = vunpack.c.l.b16 %v375
          %v2293 = vunpack.c.h.b16 %v375
          %v2294 = vunpack.c.l.b16 %v376
          %v2295 = vunpack.c.h.b16 %v376
          %v2296 = vunpack.c.l.b16 %v377
          %v2297 = vunpack.c.h.b16 %v377
          %v2298 = vunpack.c.l.b16 %v378
          %v2299 = vunpack.c.h.b16 %v378
          %v2300 = vunpack.c.l.b16 %v379
          %v2301 = vunpack.c.h.b16 %v379
          %v2302 = vunpack.c.l.b16 %v380
          %v2303 = vunpack.c.h.b16 %v380
          %v2304 = vunpack.c.l.b16 %v381
          %v2305 = vunpack.c.h.b16 %v381
          %v2306 = vunpack.c.l.b16 %v382
          %v2307 = vunpack.c.h.b16 %v382
          %v2308 = vunpack.c.l.b16 %v383
          %v2309 = vunpack.c.h.b16 %v383
          %v2310 = vunpack.c.l.b16 %v384
          %v2311 = vunpack.c.h.b16 %v384
          %v2312 = vunpack.c.l.b16 %v385
          %v2313 = vunpack.c.h.b16 %v385
          %v2314 = vunpack.c.l.b16 %v386
          %v2315 = vunpack.c.h.b16 %v386
          %v2316 = vunpack.c.l.b16 %v387
          %v2317 = vunpack.c.h.b16 %v387
          %v2318 = vunpack.c.l.b16 %v388
          %v2319 = vunpack.c.h.b16 %v388
          %v2320 = vunpack.c.l.b16 %v389
          %v2321 = vunpack.c.h.b16 %v389
          %v2322 = vunpack.c.l.b16 %v390
          %v2323 = vunpack.c.h.b16 %v390
          %v2324 = vunpack.c.l.b16 %v391
          %v2325 = vunpack.c.h.b16 %v391
          %v2326 = vunpack.c.l.b16 %v392
          %v2327 = vunpack.c.h.b16 %v392
          %v2328 = vunpack.c.l.b16 %v393
          %v2329 = vunpack.c.h.b16 %v393
          %v2330 = vunpack.c.l.b16 %v394
          %v2331 = vunpack.c.h.b16 %v394
          %v2332 = vunpack.c.l.b16 %v395
          %v2333 = vunpack.c.h.b16 %v395
          %v2334 = vunpack.c.l.b16 %v396
          %v2335 = vunpack.c.h.b16 %v396
          %v2336 = vunpack.c.l.b16 %v397
          %v2337 = vunpack.c.h.b16 %v397
          %v2338 = vunpack.c.l.b16 %v398
          %v2339 = vunpack.c.h.b16 %v398
          %v2340 = vunpack.c.l.b16 %v399
          %v2341 = vunpack.c.h.b16 %v399
          %v2342 = vunpack.c.l.b16 %v400
          %v2343 = vunpack.c.h.b16 %v400
          %v2344 = vunpack.c.l.b16 %v401
          %v2345 = vunpack.c.h.b16 %v401
          %v2346 = vunpack.c.l.b16 %v402
          %v2347 = vunpack.c.h.b16 %v402
          %v2348 = vunpack.c.l.b16 %v403
          %v2349 = vunpack.c.h.b16 %v403
          %v2350 = vunpack.c.l.b16 %v404
          %v2351 = vunpack.c.h.b16 %v404
          %v2352 = vunpack.c.l.b16 %v405
          %v2353 = vunpack.c.h.b16 %v405
          %v2354 = vunpack.c.l.b16 %v406
          %v2355 = vunpack.c.h.b16 %v406
          %v2356 = vunpack.c.l.b16 %v407
          %v2357 = vunpack.c.h.b16 %v407
          %v2358 = vunpack.c.l.b16 %v408
          %v2359 = vunpack.c.h.b16 %v408
          %v2360 = vunpack.c.l.b16 %v409
          %v2361 = vunpack.c.h.b16 %v409
          %v2362 = vunpack.c.l.b16 %v410
          %v2363 = vunpack.c.h.b16 %v410
          %v2364 = vunpack.c.l.b16 %v411
          %v2365 = vunpack.c.h.b16 %v411
          %v2366 = vunpack.c.l.b16 %v412
          %v2367 = vunpack.c.h.b16 %v412
          %v2368 = vunpack.c.l.b16 %v413
          %v2369 = vunpack.c.h.b16 %v413
          %v2370 = vunpack.c.l.b16 %v414
          %v2371 = vunpack.c.h.b16 %v414
          %v2372 = vunpack.c.l.b16 %v415
          %v2373 = vunpack.c.h.b16 %v415
          %v2374 = vunpack.c.l.b16 %v416
          %v2375 = vunpack.c.h.b16 %v416
          %v2376 = vunpack.c.l.b16 %v417
          %v2377 = vunpack.c.h.b16 %v417
          %v2378 = vunpack.c.l.b16 %v418
          %v2379 = vunpack.c.h.b16 %v418
          %v2380 = vunpack.c.l.b16 %v419
          %v2381 = vunpack.c.h.b16 %v419
          %v2382 = vunpack.c.l.b16 %v420
          %v2383 = vunpack.c.h.b16 %v420
          %v2384 = vunpack.c.l.b16 %v421
          %v2385 = vunpack.c.h.b16 %v421
          %v2386 = vunpack.c.l.b16 %v422
          %v2387 = vunpack.c.h.b16 %v422
          %v2388 = vunpack.c.l.b16 %v423
          %v2389 = vunpack.c.h.b16 %v423
          %v2390 = vunpack.c.l.b16 %v424
          %v2391 = vunpack.c.h.b16 %v424
          %v2392 = vunpack.c.l.b16 %v425
          %v2393 = vunpack.c.h.b16 %v425
          %v2394 = vunpack.c.l.b16 %v426
          %v2395 = vunpack.c.h.b16 %v426
          %v2396 = vunpack.c.l.b16 %v427
          %v2397 = vunpack.c.h.b16 %v427
          %v2398 = vunpack.c.l.b16 %v428
          %v2399 = vunpack.c.h.b16 %v428
          %v2400 = vunpack.c.l.b16 %v429
          %v2401 = vunpack.c.h.b16 %v429
          %v2402 = vunpack.c.l.b16 %v430
          %v2403 = vunpack.c.h.b16 %v430
          %v2404 = vunpack.c.l.b16 %v431
          %v2405 = vunpack.c.h.b16 %v431
          %v2406 = vunpack.c.l.b16 %v432
          %v2407 = vunpack.c.h.b16 %v432
          %v2408 = vunpack.c.l.b16 %v433
          %v2409 = vunpack.c.h.b16 %v433
          %v2410 = vunpack.c.l.b16 %v434
          %v2411 = vunpack.c.h.b16 %v434
          %v2412 = vunpack.c.l.b16 %v435
          %v2413 = vunpack.c.h.b16 %v435
          %v2414 = vunpack.c.l.b16 %v436
          %v2415 = vunpack.c.h.b16 %v436
          %v2416 = vunpack.c.l.b16 %v437
          %v2417 = vunpack.c.h.b16 %v437
          %v2418 = vunpack.c.l.b16 %v438
          %v2419 = vunpack.c.h.b16 %v438
          %v2420 = vunpack.c.l.b16 %v439
          %v2421 = vunpack.c.h.b16 %v439
          %v2422 = vunpack.c.l.b16 %v440
          %v2423 = vunpack.c.h.b16 %v440
          %v2424 = vunpack.c.l.b16 %v441
          %v2425 = vunpack.c.h.b16 %v441
          %v2426 = vunpack.c.l.b16 %v442
          %v2427 = vunpack.c.h.b16 %v442
          %v2428 = vunpack.c.l.b16 %v443
          %v2429 = vunpack.c.h.b16 %v443
          %v2430 = vunpack.c.l.b16 %v444
          %v2431 = vunpack.c.h.b16 %v444
          %v2432 = vunpack.c.l.b16 %v445
          %v2433 = vunpack.c.h.b16 %v445
          %v2434 = vunpack.c.l.b16 %v446
          %v2435 = vunpack.c.h.b16 %v446
          %v2436 = vunpack.c.l.b16 %v447
          %v2437 = vunpack.c.h.b16 %v447
          %v2438 = vunpack.c.l.b16 %v448
          %v2439 = vunpack.c.h.b16 %v448
          %v2440 = vunpack.c.l.b16 %v449
          %v2441 = vunpack.c.h.b16 %v449
          %v2442 = vunpack.c.l.b16 %v450
          %v2443 = vunpack.c.h.b16 %v450
          %v2444 = vunpack.c.l.b16 %v451
          %v2445 = vunpack.c.h.b16 %v451
          %v2446 = vunpack.c.l.b16 %v452
          %v2447 = vunpack.c.h.b16 %v452
          %v2448 = vunpack.c.l.b16 %v453
          %v2449 = vunpack.c.h.b16 %v453
          %v2450 = vunpack.c.l.b16 %v454
          %v2451 = vunpack.c.h.b16 %v454
          %v2452 = vunpack.c.l.b16 %v455
          %v2453 = vunpack.c.h.b16 %v455
          %v2454 = vunpack.c.l.b16 %v456
          %v2455 = vunpack.c.h.b16 %v456
          %v2456 = vunpack.c.l.b16 %v457
          %v2457 = vunpack.c.h.b16 %v457
          %v2458 = vunpack.c.l.b16 %v458
          %v2459 = vunpack.c.h.b16 %v458
          %v2460 = vunpack.c.l.b16 %v459
          %v2461 = vunpack.c.h.b16 %v459
          %v2462 = vunpack.c.l.b16 %v460
          %v2463 = vunpack.c.h.b16 %v460
          %v2464 = vunpack.c.l.b16 %v461
          %v2465 = vunpack.c.h.b16 %v461
          %v2466 = vunpack.c.l.b16 %v462
          %v2467 = vunpack.c.h.b16 %v462
          %v2468 = vunpack.c.l.b16 %v463
          %v2469 = vunpack.c.h.b16 %v463
          %v2470 = vunpack.c.l.b16 %v464
          %v2471 = vunpack.c.h.b16 %v464
          %v2472 = vunpack.c.l.b16 %v465
          %v2473 = vunpack.c.h.b16 %v465
          %v2474 = vunpack.c.l.b16 %v466
          %v2475 = vunpack.c.h.b16 %v466
          %v2476 = vunpack.c.l.b16 %v467
          %v2477 = vunpack.c.h.b16 %v467
          %v2478 = vunpack.c.l.b16 %v468
          %v2479 = vunpack.c.h.b16 %v468
          %v2480 = vunpack.c.l.b16 %v469
          %v2481 = vunpack.c.h.b16 %v469
          %v2482 = vunpack.c.l.b16 %v470
          %v2483 = vunpack.c.h.b16 %v470
          %v2484 = vunpack.c.l.b16 %v471
          %v2485 = vunpack.c.h.b16 %v471
          %v2486 = vunpack.c.l.b16 %v472
          %v2487 = vunpack.c.h.b16 %v472
          %v2488 = vpack.c.b16 %v2240, %v2232
          %v2489 = vpack.c.b16 %v2241, %v2233
          %v2490 = vpack.c.b16 %v2242, %v2234
          %v2491 = vpack.c.b16 %v2243, %v2235
          %v2492 = vpack.c.b16 %v2244, %v2236
          %v2493 = vpack.c.b16 %v2245, %v2237
          %v2494 = vpack.c.b16 %v2246, %v2238
          %v2495 = vpack.c.b16 %v2247, %v2239
          %v2496 = vpack.c.b16 %v2256, %v2248
          %v2497 = vpack.c.b16 %v2257, %v2249
          %v2498 = vpack.c.b16 %v2258, %v2250
          %v2499 = vpack.c.b16 %v2259, %v2251
          %v2500 = vpack.c.b16 %v2260, %v2252
          %v2501 = vpack.c.b16 %v2261, %v2253
          %v2502 = vpack.c.b16 %v2262, %v2254
          %v2503 = vpack.c.b16 %v2263, %v2255
          %v2504 = vpack.c.b16 %v2272, %v2264
          %v2505 = vpack.c.b16 %v2273, %v2265
          %v2506 = vpack.c.b16 %v2274, %v2266
          %v2507 = vpack.c.b16 %v2275, %v2267
          %v2508 = vpack.c.b16 %v2276, %v2268
          %v2509 = vpack.c.b16 %v2277, %v2269
          %v2510 = vpack.c.b16 %v2278, %v2270
          %v2511 = vpack.c.b16 %v2279, %v2271
          %v2512 = vpack.c.b16 %v2288, %v2280
          %v2513 = vpack.c.b16 %v2289, %v2281
          %v2514 = vpack.c.b16 %v2290, %v2282
          %v2515 = vpack.c.b16 %v2291, %v2283
          %v2516 = vpack.c.b16 %v2292, %v2284
          %v2517 = vpack.c.b16 %v2293, %v2285
          %v2518 = vpack.c.b16 %v2294, %v2286
          %v2519 = vpack.c.b16 %v2295, %v2287
          %v2520 = vpack.c.b16 %v2304, %v2296
          %v2521 = vpack.c.b16 %v2305, %v2297
          %v2522 = vpack.c.b16 %v2306, %v2298
          %v2523 = vpack.c.b16 %v2307, %v2299
          %v2524 = vpack.c.b16 %v2308, %v2300
          %v2525 = vpack.c.b16 %v2309, %v2301
          %v2526 = vpack.c.b16 %v2310, %v2302
          %v2527 = vpack.c.b16 %v2311, %v2303
          %v2528 = vpack.c.b16 %v2320, %v2312
          %v2529 = vpack.c.b16 %v2321, %v2313
          %v2530 = vpack.c.b16 %v2322, %v2314
          %v2531 = vpack.c.b16 %v2323, %v2315
          %v2532 = vpack.c.b16 %v2324, %v2316
          %v2533 = vpack.c.b16 %v2325, %v2317
          %v2534 = vpack.c.b16 %v2326, %v2318
          %v2535 = vpack.c.b16 %v2327, %v2319
          %v2536 = vpack.c.b16 %v2336, %v2328
          %v2537 = vpack.c.b16 %v2337, %v2329
          %v2538 = vpack.c.b16 %v2338, %v2330
          %v2539 = vpack.c.b16 %v2339, %v2331
          %v2540 = vpack.c.b16 %v2340, %v2332
          %v2541 = vpack.c.b16 %v2341, %v2333
          %v2542 = vpack.c.b16 %v2342, %v2334
          %v2543 = vpack.c.b16 %v2343, %v2335
          %v2544 = vpack.c.b16 %v2352, %v2344
          %v2545 = vpack.c.b16 %v2353, %v2345
          %v2546 = vpack.c.b16 %v2354, %v2346
          %v2547 = vpack.c.b16 %v2355, %v2347
          %v2548 = vpack.c.b16 %v2356, %v2348
          %v2549 = vpack.c.b16 %v2357, %v2349
          %v2550 = vpack.c.b16 %v2358, %v2350
          %v2551 = vpack.c.b16 %v2359, %v2351
          %v2552 = vpack.c.b16 %v2368, %v2360
          %v2553 = vpack.c.b16 %v2369, %v2361
          %v2554 = vpack.c.b16 %v2370, %v2362
          %v2555 = vpack.c.b16 %v2371, %v2363
          %v2556 = vpack.c.b16 %v2372, %v2364
          %v2557 = vpack.c.b16 %v2373, %v2365
          %v2558 = vpack.c.b16 %v2374, %v2366
          %v2559 = vpack.c.b16 %v2375, %v2367
          %v2560 = vpack.c.b16 %v2384, %v2376
          %v2561 = vpack.c.b16 %v2385, %v2377
          %v2562 = vpack.c.b16 %v2386, %v2378
          %v2563 = vpack.c.b16 %v2387, %v2379
          %v2564 = vpack.c.b16 %v2388, %v2380
          %v2565 = vpack.c.b16 %v2389, %v2381
          %v2566 = vpack.c.b16 %v2390, %v2382
          %v2567 = vpack.c.b16 %v2391, %v2383
          %v2568 = vpack.c.b16 %v2400, %v2392
          %v2569 = vpack.c.b16 %v2401, %v2393
          %v2570 = vpack.c.b16 %v2402, %v2394
          %v2571 = vpack.c.b16 %v2403, %v2395
          %v2572 = vpack.c.b16 %v2404, %v2396
          %v2573 = vpack.c.b16 %v2405, %v2397
          %v2574 = vpack.c.b16 %v2406, %v2398
          %v2575 = vpack.c.b16 %v2407, %v2399
          %v2576 = vpack.c.b16 %v2416, %v2408
          %v2577 = vpack.c.b16 %v2417, %v2409
          %v2578 = vpack.c.b16 %v2418, %v2410
          %v2579 = vpack.c.b16 %v2419, %v2411
          %v2580 = vpack.c.b16 %v2420, %v2412
          %v2581 = vpack.c.b16 %v2421, %v2413
          %v2582 = vpack.c.b16 %v2422, %v2414
          %v2583 = vpack.c.b16 %v2423, %v2415
          %v2584 = vpack.c.b16 %v2432, %v2424
          %v2585 = vpack.c.b16 %v2433, %v2425
          %v2586 = vpack.c.b16 %v2434, %v2426
          %v2587 = vpack.c.b16 %v2435, %v2427
          %v2588 = vpack.c.b16 %v2436, %v2428
          %v2589 = vpack.c.b16 %v2437, %v2429
          %v2590 = vpack.c.b16 %v2438, %v2430
          %v2591 = vpack.c.b16 %v2439, %v2431
          %v2592 = vpack.c.b16 %v2448, %v2440
          %v2593 = vpack.c.b16 %v2449, %v2441
          %v2594 = vpack.c.b16 %v2450, %v2442
          %v2595 = vpack.c.b16 %v2451, %v2443
          %v2596 = vpack.c.b16 %v2452, %v2444
          %v2597 = vpack.c.b16 %v2453, %v2445
          %v2598 = vpack.c.b16 %v2454, %v2446
          %v2599 = vpack.c.b16 %v2455, %v2447
          %v2600 = vpack.c.b16 %v2464, %v2456
          %v2601 = vpack.c.b16 %v2465, %v2457
          %v2602 = vpack.c.b16 %v2466, %v2458
          %v2603 = vpack.c.b16 %v2467, %v2459
          %v2604 = vpack.c.b16 %v2468, %v2460
          %v2605 = vpack.c.b16 %v2469, %v2461
          %v2606 = vpack.c.b16 %v2470, %v2462
          %v2607 = vpack.c.b16 %v2471, %v2463
          %v2608 = vpack.c.b16 %v2480, %v2472
          %v2609 = vpack.c.b16 %v2481, %v2473
          %v2610 = vpack.c.b16 %v2482, %v2474
          %v2611 = vpack.c.b16 %v2483, %v2475
          %v2612 = vpack.c.b16 %v2484, %v2476
          %v2613 = vpack.c.b16 %v2485, %v2477
          %v2614 = vpack.c.b16 %v2486, %v2478
          %v2615 = vpack.c.b16 %v2487, %v2479
          %2744 = vmatprep.subr.bf16.mxu0 %v2545
          %2745 = vmatpush1.bf16.msra.mxu0 %v2544
          %2746 = vmatprep.subr.bf16.mxu0 %v2537
          %2747 = vmatpush1.bf16.msra.mxu0 %v2536
          %2748 = vmatprep.subr.bf16.mxu0 %v2529
          %2749 = vmatpush1.bf16.msra.mxu0 %v2528
          %2750 = vmatprep.subr.bf16.mxu0 %v2521
          %2751 = vmatpush1.bf16.msra.mxu0 %v2520
          %2752 = vmatprep.subr.bf16.mxu0 %v2513
          %2753 = vmatpush1.bf16.msra.mxu0 %v2512
          %2754 = vmatprep.subr.bf16.mxu0 %v2505
          %2755 = vmatpush1.bf16.msra.mxu0 %v2504
          %2756 = vmatprep.subr.bf16.mxu0 %v2497
          %2757 = vmatpush1.bf16.msra.mxu0 %v2496
          %2758 = vmatprep.subr.bf16.mxu0 %v2489
          %2759 = vmatpush1.bf16.msra.mxu0 %v2488
          %2760 = vmatprep.subr.bf16.mxu0 %v2609
          %2761 = vmatpush2.bf16.msra.mxu0 %v2608
          %2762 = vmatprep.subr.bf16.mxu0 %v2601
          %2763 = vmatpush2.bf16.msra.mxu0 %v2600
          %2764 = vmatprep.subr.bf16.mxu0 %v2593
          %2765 = vmatpush2.bf16.msra.mxu0 %v2592
          %2766 = vmatprep.subr.bf16.mxu0 %v2585
          %2767 = vmatpush2.bf16.msra.mxu0 %v2584
          %2768 = vmatprep.subr.bf16.mxu0 %v2577
          %2769 = vmatpush2.bf16.msra.mxu0 %v2576
          %2770 = vmatprep.subr.bf16.mxu0 %v2569
          %2771 = vmatpush2.bf16.msra.mxu0 %v2568
          %2772 = vmatprep.subr.bf16.mxu0 %v2561
          %2773 = vmatpush2.bf16.msra.mxu0 %v2560
          %2774 = vmatprep.subr.bf16.mxu0 %v2553
          %2775 = vmatpush2.bf16.msra.mxu0 %v2552
          %2776 = vmatprep.mubr.bf16.mxu0 %v2073
          %2777 = vmatmul.mubr.bf16.gmra.mxu0 %v2072
          %v2778 = vpop.f32.mrf.mxu0
          %v2779 = vadd.f32 %v1987, %v2778
          %v2780 = vpop.f32.mrf.mxu0
          %v2781 = vadd.f32 %v1991, %v2780
          %v2782 = vpop.f32.mrf.mxu0
          %v2783 = vadd.f32 %v1987, %v2782
          %v2784 = vpop.f32.mrf.mxu0
          %v2785 = vadd.f32 %v1991, %v2784
          %2786 = vmatprep.mubr.bf16.mxu0 %v2075
          %2787 = vmatmul.mubr.bf16.gmra.mxu0 %v2074
          %v2788 = vpop.f32.mrf.mxu0
          %v2789 = vadd.f32 %v1987, %v2788
          %v2790 = vpop.f32.mrf.mxu0
          %v2791 = vadd.f32 %v1991, %v2790
          %v2792 = vpop.f32.mrf.mxu0
          %v2793 = vadd.f32 %v1987, %v2792
          %v2794 = vpop.f32.mrf.mxu0
          %v2795 = vadd.f32 %v1991, %v2794
          %2796 = vmatprep.mubr.bf16.mxu0 %v2077
          %2797 = vmatmul.mubr.bf16.gmra.mxu0 %v2076
          %v2798 = vpop.f32.mrf.mxu0
          %v2799 = vadd.f32 %v1987, %v2798
          %v2800 = vpop.f32.mrf.mxu0
          %v2801 = vadd.f32 %v1991, %v2800
          %v2802 = vpop.f32.mrf.mxu0
          %v2803 = vadd.f32 %v1987, %v2802
          %v2804 = vpop.f32.mrf.mxu0
          %v2805 = vadd.f32 %v1991, %v2804
          %2806 = vmatprep.mubr.bf16.mxu0 %v2079
          %2807 = vmatmul.mubr.bf16.gmra.mxu0 %v2078
          %v2808 = vpop.f32.mrf.mxu0
          %v2809 = vadd.f32 %v1987, %v2808
          %v2810 = vpop.f32.mrf.mxu0
          %v2811 = vadd.f32 %v1991, %v2810
          %v2812 = vpop.f32.mrf.mxu0
          %v2813 = vadd.f32 %v1987, %v2812
          %v2814 = vpop.f32.mrf.mxu0
          %v2815 = vadd.f32 %v1991, %v2814
          %2816 = vmatprep.mubr.bf16.mxu0 %v2081
          %2817 = vmatmul.mubr.bf16.gmra.mxu0 %v2080
          %v2818 = vpop.f32.mrf.mxu0
          %v2819 = vadd.f32 %v1987, %v2818
          %v2820 = vpop.f32.mrf.mxu0
          %v2821 = vadd.f32 %v1991, %v2820
          %v2822 = vpop.f32.mrf.mxu0
          %v2823 = vadd.f32 %v1987, %v2822
          %v2824 = vpop.f32.mrf.mxu0
          %v2825 = vadd.f32 %v1991, %v2824
          %2826 = vmatprep.mubr.bf16.mxu0 %v2083
          %2827 = vmatmul.mubr.bf16.gmra.mxu0 %v2082
          %v2828 = vpop.f32.mrf.mxu0
          %v2829 = vadd.f32 %v1987, %v2828
          %v2830 = vpop.f32.mrf.mxu0
          %v2831 = vadd.f32 %v1991, %v2830
          %v2832 = vpop.f32.mrf.mxu0
          %v2833 = vadd.f32 %v1987, %v2832
          %v2834 = vpop.f32.mrf.mxu0
          %v2835 = vadd.f32 %v1991, %v2834
          %2836 = vmatprep.mubr.bf16.mxu0 %v2085
          %2837 = vmatmul.mubr.bf16.gmra.mxu0 %v2084
          %v2838 = vpop.f32.mrf.mxu0
          %v2839 = vadd.f32 %v1987, %v2838
          %v2840 = vpop.f32.mrf.mxu0
          %v2841 = vadd.f32 %v1991, %v2840
          %v2842 = vpop.f32.mrf.mxu0
          %v2843 = vadd.f32 %v1987, %v2842
          %v2844 = vpop.f32.mrf.mxu0
          %v2845 = vadd.f32 %v1991, %v2844
          %2846 = vmatprep.mubr.bf16.mxu0 %v2087
          %2847 = vmatmul.mubr.bf16.gmra.mxu0 %v2086
          %v2848 = vpop.f32.mrf.mxu0
          %v2849 = vadd.f32 %v1987, %v2848
          %v2850 = vpop.f32.mrf.mxu0
          %v2851 = vadd.f32 %v1991, %v2850
          %v2852 = vpop.f32.mrf.mxu0
          %v2853 = vadd.f32 %v1987, %v2852
          %v2854 = vpop.f32.mrf.mxu0
          %v2855 = vadd.f32 %v1991, %v2854
          %2856 = vdwg.mxu0
          %2857 = vmatprep.subr.bf16.mxu0 %v2547
          %2858 = vmatpush1.bf16.msra.mxu0 %v2546
          %2859 = vmatprep.subr.bf16.mxu0 %v2539
          %2860 = vmatpush1.bf16.msra.mxu0 %v2538
          %2861 = vmatprep.subr.bf16.mxu0 %v2531
          %2862 = vmatpush1.bf16.msra.mxu0 %v2530
          %2863 = vmatprep.subr.bf16.mxu0 %v2523
          %2864 = vmatpush1.bf16.msra.mxu0 %v2522
          %2865 = vmatprep.subr.bf16.mxu0 %v2515
          %2866 = vmatpush1.bf16.msra.mxu0 %v2514
          %2867 = vmatprep.subr.bf16.mxu0 %v2507
          %2868 = vmatpush1.bf16.msra.mxu0 %v2506
          %2869 = vmatprep.subr.bf16.mxu0 %v2499
          %2870 = vmatpush1.bf16.msra.mxu0 %v2498
          %2871 = vmatprep.subr.bf16.mxu0 %v2491
          %2872 = vmatpush1.bf16.msra.mxu0 %v2490
          %2873 = vmatprep.subr.bf16.mxu0 %v2611
          %2874 = vmatpush2.bf16.msra.mxu0 %v2610
          %2875 = vmatprep.subr.bf16.mxu0 %v2603
          %2876 = vmatpush2.bf16.msra.mxu0 %v2602
          %2877 = vmatprep.subr.bf16.mxu0 %v2595
          %2878 = vmatpush2.bf16.msra.mxu0 %v2594
          %2879 = vmatprep.subr.bf16.mxu0 %v2587
          %2880 = vmatpush2.bf16.msra.mxu0 %v2586
          %2881 = vmatprep.subr.bf16.mxu0 %v2579
          %2882 = vmatpush2.bf16.msra.mxu0 %v2578
          %2883 = vmatprep.subr.bf16.mxu0 %v2571
          %2884 = vmatpush2.bf16.msra.mxu0 %v2570
          %2885 = vmatprep.subr.bf16.mxu0 %v2563
          %2886 = vmatpush2.bf16.msra.mxu0 %v2562
          %2887 = vmatprep.subr.bf16.mxu0 %v2555
          %2888 = vmatpush2.bf16.msra.mxu0 %v2554
          %2889 = vmatprep.mubr.bf16.mxu0 %v2073
          %2890 = vmatmul.mubr.bf16.gmra.mxu0 %v2072
          %v2891 = vpop.f32.mrf.mxu0
          %v2892 = vadd.f32 %v1995, %v2891
          %v2893 = vpop.f32.mrf.mxu0
          %v2894 = vadd.f32 %v1999, %v2893
          %v2895 = vpop.f32.mrf.mxu0
          %v2896 = vadd.f32 %v1995, %v2895
          %v2897 = vpop.f32.mrf.mxu0
          %v2898 = vadd.f32 %v1999, %v2897
          %2899 = vmatprep.mubr.bf16.mxu0 %v2075
          %2900 = vmatmul.mubr.bf16.gmra.mxu0 %v2074
          %v2901 = vpop.f32.mrf.mxu0
          %v2902 = vadd.f32 %v1995, %v2901
          %v2903 = vpop.f32.mrf.mxu0
          %v2904 = vadd.f32 %v1999, %v2903
          %v2905 = vpop.f32.mrf.mxu0
          %v2906 = vadd.f32 %v1995, %v2905
          %v2907 = vpop.f32.mrf.mxu0
          %v2908 = vadd.f32 %v1999, %v2907
          %2909 = vmatprep.mubr.bf16.mxu0 %v2077
          %2910 = vmatmul.mubr.bf16.gmra.mxu0 %v2076
          %v2911 = vpop.f32.mrf.mxu0
          %v2912 = vadd.f32 %v1995, %v2911
          %v2913 = vpop.f32.mrf.mxu0
          %v2914 = vadd.f32 %v1999, %v2913
          %v2915 = vpop.f32.mrf.mxu0
          %v2916 = vadd.f32 %v1995, %v2915
          %v2917 = vpop.f32.mrf.mxu0
          %v2918 = vadd.f32 %v1999, %v2917
          %2919 = vmatprep.mubr.bf16.mxu0 %v2079
          %2920 = vmatmul.mubr.bf16.gmra.mxu0 %v2078
          %v2921 = vpop.f32.mrf.mxu0
          %v2922 = vadd.f32 %v1995, %v2921
          %v2923 = vpop.f32.mrf.mxu0
          %v2924 = vadd.f32 %v1999, %v2923
          %v2925 = vpop.f32.mrf.mxu0
          %v2926 = vadd.f32 %v1995, %v2925
          %v2927 = vpop.f32.mrf.mxu0
          %v2928 = vadd.f32 %v1999, %v2927
          %2929 = vmatprep.mubr.bf16.mxu0 %v2081
          %2930 = vmatmul.mubr.bf16.gmra.mxu0 %v2080
          %v2931 = vpop.f32.mrf.mxu0
          %v2932 = vadd.f32 %v1995, %v2931
          %v2933 = vpop.f32.mrf.mxu0
          %v2934 = vadd.f32 %v1999, %v2933
          %v2935 = vpop.f32.mrf.mxu0
          %v2936 = vadd.f32 %v1995, %v2935
          %v2937 = vpop.f32.mrf.mxu0
          %v2938 = vadd.f32 %v1999, %v2937
          %2939 = vmatprep.mubr.bf16.mxu0 %v2083
          %2940 = vmatmul.mubr.bf16.gmra.mxu0 %v2082
          %v2941 = vpop.f32.mrf.mxu0
          %v2942 = vadd.f32 %v1995, %v2941
          %v2943 = vpop.f32.mrf.mxu0
          %v2944 = vadd.f32 %v1999, %v2943
          %v2945 = vpop.f32.mrf.mxu0
          %v2946 = vadd.f32 %v1995, %v2945
          %v2947 = vpop.f32.mrf.mxu0
          %v2948 = vadd.f32 %v1999, %v2947
          %2949 = vmatprep.mubr.bf16.mxu0 %v2085
          %2950 = vmatmul.mubr.bf16.gmra.mxu0 %v2084
          %v2951 = vpop.f32.mrf.mxu0
          %v2952 = vadd.f32 %v1995, %v2951
          %v2953 = vpop.f32.mrf.mxu0
          %v2954 = vadd.f32 %v1999, %v2953
          %v2955 = vpop.f32.mrf.mxu0
          %v2956 = vadd.f32 %v1995, %v2955
          %v2957 = vpop.f32.mrf.mxu0
          %v2958 = vadd.f32 %v1999, %v2957
          %2959 = vmatprep.mubr.bf16.mxu0 %v2087
          %2960 = vmatmul.mubr.bf16.gmra.mxu0 %v2086
          %v2961 = vpop.f32.mrf.mxu0
          %v2962 = vadd.f32 %v1995, %v2961
          %v2963 = vpop.f32.mrf.mxu0
          %v2964 = vadd.f32 %v1999, %v2963
          %v2965 = vpop.f32.mrf.mxu0
          %v2966 = vadd.f32 %v1995, %v2965
          %v2967 = vpop.f32.mrf.mxu0
          %v2968 = vadd.f32 %v1999, %v2967
          %2969 = vdwg.mxu0
          %2970 = vmatprep.subr.bf16.mxu0 %v2549
          %2971 = vmatpush1.bf16.msra.mxu0 %v2548
          %2972 = vmatprep.subr.bf16.mxu0 %v2541
          %2973 = vmatpush1.bf16.msra.mxu0 %v2540
          %2974 = vmatprep.subr.bf16.mxu0 %v2533
          %2975 = vmatpush1.bf16.msra.mxu0 %v2532
          %2976 = vmatprep.subr.bf16.mxu0 %v2525
          %2977 = vmatpush1.bf16.msra.mxu0 %v2524
          %2978 = vmatprep.subr.bf16.mxu0 %v2517
          %2979 = vmatpush1.bf16.msra.mxu0 %v2516
          %2980 = vmatprep.subr.bf16.mxu0 %v2509
          %2981 = vmatpush1.bf16.msra.mxu0 %v2508
          %2982 = vmatprep.subr.bf16.mxu0 %v2501
          %2983 = vmatpush1.bf16.msra.mxu0 %v2500
          %2984 = vmatprep.subr.bf16.mxu0 %v2493
          %2985 = vmatpush1.bf16.msra.mxu0 %v2492
          %2986 = vmatprep.subr.bf16.mxu0 %v2613
          %2987 = vmatpush2.bf16.msra.mxu0 %v2612
          %2988 = vmatprep.subr.bf16.mxu0 %v2605
          %2989 = vmatpush2.bf16.msra.mxu0 %v2604
          %2990 = vmatprep.subr.bf16.mxu0 %v2597
          %2991 = vmatpush2.bf16.msra.mxu0 %v2596
          %2992 = vmatprep.subr.bf16.mxu0 %v2589
          %2993 = vmatpush2.bf16.msra.mxu0 %v2588
          %2994 = vmatprep.subr.bf16.mxu0 %v2581
          %2995 = vmatpush2.bf16.msra.mxu0 %v2580
          %2996 = vmatprep.subr.bf16.mxu0 %v2573
          %2997 = vmatpush2.bf16.msra.mxu0 %v2572
          %2998 = vmatprep.subr.bf16.mxu0 %v2565
          %2999 = vmatpush2.bf16.msra.mxu0 %v2564
          %3000 = vmatprep.subr.bf16.mxu0 %v2557
          %3001 = vmatpush2.bf16.msra.mxu0 %v2556
          %3002 = vmatprep.mubr.bf16.mxu0 %v2073
          %3003 = vmatmul.mubr.bf16.gmra.mxu0 %v2072
          %v3004 = vpop.f32.mrf.mxu0
          %v3005 = vadd.f32 %v2003, %v3004
          %v3006 = vpop.f32.mrf.mxu0
          %v3007 = vadd.f32 %v2007, %v3006
          %v3008 = vpop.f32.mrf.mxu0
          %v3009 = vadd.f32 %v2003, %v3008
          %v3010 = vpop.f32.mrf.mxu0
          %v3011 = vadd.f32 %v2007, %v3010
          %3012 = vmatprep.mubr.bf16.mxu0 %v2075
          %3013 = vmatmul.mubr.bf16.gmra.mxu0 %v2074
          %v3014 = vpop.f32.mrf.mxu0
          %v3015 = vadd.f32 %v2003, %v3014
          %v3016 = vpop.f32.mrf.mxu0
          %v3017 = vadd.f32 %v2007, %v3016
          %v3018 = vpop.f32.mrf.mxu0
          %v3019 = vadd.f32 %v2003, %v3018
          %v3020 = vpop.f32.mrf.mxu0
          %v3021 = vadd.f32 %v2007, %v3020
          %3022 = vmatprep.mubr.bf16.mxu0 %v2077
          %3023 = vmatmul.mubr.bf16.gmra.mxu0 %v2076
          %v3024 = vpop.f32.mrf.mxu0
          %v3025 = vadd.f32 %v2003, %v3024
          %v3026 = vpop.f32.mrf.mxu0
          %v3027 = vadd.f32 %v2007, %v3026
          %v3028 = vpop.f32.mrf.mxu0
          %v3029 = vadd.f32 %v2003, %v3028
          %v3030 = vpop.f32.mrf.mxu0
          %v3031 = vadd.f32 %v2007, %v3030
          %3032 = vmatprep.mubr.bf16.mxu0 %v2079
          %3033 = vmatmul.mubr.bf16.gmra.mxu0 %v2078
          %v3034 = vpop.f32.mrf.mxu0
          %v3035 = vadd.f32 %v2003, %v3034
          %v3036 = vpop.f32.mrf.mxu0
          %v3037 = vadd.f32 %v2007, %v3036
          %v3038 = vpop.f32.mrf.mxu0
          %v3039 = vadd.f32 %v2003, %v3038
          %v3040 = vpop.f32.mrf.mxu0
          %v3041 = vadd.f32 %v2007, %v3040
          %3042 = vmatprep.mubr.bf16.mxu0 %v2081
          %3043 = vmatmul.mubr.bf16.gmra.mxu0 %v2080
          %v3044 = vpop.f32.mrf.mxu0
          %v3045 = vadd.f32 %v2003, %v3044
          %v3046 = vpop.f32.mrf.mxu0
          %v3047 = vadd.f32 %v2007, %v3046
          %v3048 = vpop.f32.mrf.mxu0
          %v3049 = vadd.f32 %v2003, %v3048
          %v3050 = vpop.f32.mrf.mxu0
          %v3051 = vadd.f32 %v2007, %v3050
          %3052 = vmatprep.mubr.bf16.mxu0 %v2083
          %3053 = vmatmul.mubr.bf16.gmra.mxu0 %v2082
          %v3054 = vpop.f32.mrf.mxu0
          %v3055 = vadd.f32 %v2003, %v3054
          %v3056 = vpop.f32.mrf.mxu0
          %v3057 = vadd.f32 %v2007, %v3056
          %v3058 = vpop.f32.mrf.mxu0
          %v3059 = vadd.f32 %v2003, %v3058
          %v3060 = vpop.f32.mrf.mxu0
          %v3061 = vadd.f32 %v2007, %v3060
          %3062 = vmatprep.mubr.bf16.mxu0 %v2085
          %3063 = vmatmul.mubr.bf16.gmra.mxu0 %v2084
          %v3064 = vpop.f32.mrf.mxu0
          %v3065 = vadd.f32 %v2003, %v3064
          %v3066 = vpop.f32.mrf.mxu0
          %v3067 = vadd.f32 %v2007, %v3066
          %v3068 = vpop.f32.mrf.mxu0
          %v3069 = vadd.f32 %v2003, %v3068
          %v3070 = vpop.f32.mrf.mxu0
          %v3071 = vadd.f32 %v2007, %v3070
          %3072 = vmatprep.mubr.bf16.mxu0 %v2087
          %3073 = vmatmul.mubr.bf16.gmra.mxu0 %v2086
          %v3074 = vpop.f32.mrf.mxu0
          %v3075 = vadd.f32 %v2003, %v3074
          %v3076 = vpop.f32.mrf.mxu0
          %v3077 = vadd.f32 %v2007, %v3076
          %v3078 = vpop.f32.mrf.mxu0
          %v3079 = vadd.f32 %v2003, %v3078
          %v3080 = vpop.f32.mrf.mxu0
          %v3081 = vadd.f32 %v2007, %v3080
          %3082 = vdwg.mxu0
          %3083 = vmatprep.subr.bf16.mxu0 %v2551
          %3084 = vmatpush1.bf16.msra.mxu0 %v2550
          %3085 = vmatprep.subr.bf16.mxu0 %v2543
          %3086 = vmatpush1.bf16.msra.mxu0 %v2542
          %3087 = vmatprep.subr.bf16.mxu0 %v2535
          %3088 = vmatpush1.bf16.msra.mxu0 %v2534
          %3089 = vmatprep.subr.bf16.mxu0 %v2527
          %3090 = vmatpush1.bf16.msra.mxu0 %v2526
          %3091 = vmatprep.subr.bf16.mxu0 %v2519
          %3092 = vmatpush1.bf16.msra.mxu0 %v2518
          %3093 = vmatprep.subr.bf16.mxu0 %v2511
          %3094 = vmatpush1.bf16.msra.mxu0 %v2510
          %3095 = vmatprep.subr.bf16.mxu0 %v2503
          %3096 = vmatpush1.bf16.msra.mxu0 %v2502
          %3097 = vmatprep.subr.bf16.mxu0 %v2495
          %3098 = vmatpush1.bf16.msra.mxu0 %v2494
          %3099 = vmatprep.subr.bf16.mxu0 %v2615
          %3100 = vmatpush2.bf16.msra.mxu0 %v2614
          %3101 = vmatprep.subr.bf16.mxu0 %v2607
          %3102 = vmatpush2.bf16.msra.mxu0 %v2606
          %3103 = vmatprep.subr.bf16.mxu0 %v2599
          %3104 = vmatpush2.bf16.msra.mxu0 %v2598
          %3105 = vmatprep.subr.bf16.mxu0 %v2591
          %3106 = vmatpush2.bf16.msra.mxu0 %v2590
          %3107 = vmatprep.subr.bf16.mxu0 %v2583
          %3108 = vmatpush2.bf16.msra.mxu0 %v2582
          %3109 = vmatprep.subr.bf16.mxu0 %v2575
          %3110 = vmatpush2.bf16.msra.mxu0 %v2574
          %3111 = vmatprep.subr.bf16.mxu0 %v2567
          %3112 = vmatpush2.bf16.msra.mxu0 %v2566
          %3113 = vmatprep.subr.bf16.mxu0 %v2559
          %3114 = vmatpush2.bf16.msra.mxu0 %v2558
          %3115 = vmatprep.mubr.bf16.mxu0 %v2073
          %3116 = vmatmul.mubr.bf16.gmra.mxu0 %v2072
          %v3117 = vpop.f32.mrf.mxu0
          %v3118 = vadd.f32 %v2011, %v3117
          %v3119 = vpop.f32.mrf.mxu0
          %v3120 = vadd.f32 %v2015, %v3119
          %v3121 = vpop.f32.mrf.mxu0
          %v3122 = vadd.f32 %v2011, %v3121
          %v3123 = vpop.f32.mrf.mxu0
          %v3124 = vadd.f32 %v2015, %v3123
          %3125 = vmatprep.mubr.bf16.mxu0 %v2075
          %3126 = vmatmul.mubr.bf16.gmra.mxu0 %v2074
          %v3127 = vpop.f32.mrf.mxu0
          %v3128 = vadd.f32 %v2011, %v3127
          %v3129 = vpop.f32.mrf.mxu0
          %v3130 = vadd.f32 %v2015, %v3129
          %v3131 = vpop.f32.mrf.mxu0
          %v3132 = vadd.f32 %v2011, %v3131
          %v3133 = vpop.f32.mrf.mxu0
          %v3134 = vadd.f32 %v2015, %v3133
          %3135 = vmatprep.mubr.bf16.mxu0 %v2077
          %3136 = vmatmul.mubr.bf16.gmra.mxu0 %v2076
          %v3137 = vpop.f32.mrf.mxu0
          %v3138 = vadd.f32 %v2011, %v3137
          %v3139 = vpop.f32.mrf.mxu0
          %v3140 = vadd.f32 %v2015, %v3139
          %v3141 = vpop.f32.mrf.mxu0
          %v3142 = vadd.f32 %v2011, %v3141
          %v3143 = vpop.f32.mrf.mxu0
          %v3144 = vadd.f32 %v2015, %v3143
          %3145 = vmatprep.mubr.bf16.mxu0 %v2079
          %3146 = vmatmul.mubr.bf16.gmra.mxu0 %v2078
          %v3147 = vpop.f32.mrf.mxu0
          %v3148 = vadd.f32 %v2011, %v3147
          %v3149 = vpop.f32.mrf.mxu0
          %v3150 = vadd.f32 %v2015, %v3149
          %v3151 = vpop.f32.mrf.mxu0
          %v3152 = vadd.f32 %v2011, %v3151
          %v3153 = vpop.f32.mrf.mxu0
          %v3154 = vadd.f32 %v2015, %v3153
          %3155 = vmatprep.mubr.bf16.mxu0 %v2081
          %3156 = vmatmul.mubr.bf16.gmra.mxu0 %v2080
          %v3157 = vpop.f32.mrf.mxu0
          %v3158 = vadd.f32 %v2011, %v3157
          %v3159 = vpop.f32.mrf.mxu0
          %v3160 = vadd.f32 %v2015, %v3159
          %v3161 = vpop.f32.mrf.mxu0
          %v3162 = vadd.f32 %v2011, %v3161
          %v3163 = vpop.f32.mrf.mxu0
          %v3164 = vadd.f32 %v2015, %v3163
          %3165 = vmatprep.mubr.bf16.mxu0 %v2083
          %3166 = vmatmul.mubr.bf16.gmra.mxu0 %v2082
          %v3167 = vpop.f32.mrf.mxu0
          %v3168 = vadd.f32 %v2011, %v3167
          %v3169 = vpop.f32.mrf.mxu0
          %v3170 = vadd.f32 %v2015, %v3169
          %v3171 = vpop.f32.mrf.mxu0
          %v3172 = vadd.f32 %v2011, %v3171
          %v3173 = vpop.f32.mrf.mxu0
          %v3174 = vadd.f32 %v2015, %v3173
          %3175 = vmatprep.mubr.bf16.mxu0 %v2085
          %3176 = vmatmul.mubr.bf16.gmra.mxu0 %v2084
          %v3177 = vpop.f32.mrf.mxu0
          %v3178 = vadd.f32 %v2011, %v3177
          %v3179 = vpop.f32.mrf.mxu0
          %v3180 = vadd.f32 %v2015, %v3179
          %v3181 = vpop.f32.mrf.mxu0
          %v3182 = vadd.f32 %v2011, %v3181
          %v3183 = vpop.f32.mrf.mxu0
          %v3184 = vadd.f32 %v2015, %v3183
          %3185 = vmatprep.mubr.bf16.mxu0 %v2087
          %3186 = vmatmul.mubr.bf16.gmra.mxu0 %v2086
          %v3187 = vpop.f32.mrf.mxu0
          %v3188 = vadd.f32 %v2011, %v3187
          %v3189 = vpop.f32.mrf.mxu0
          %v3190 = vadd.f32 %v2015, %v3189
          %v3191 = vpop.f32.mrf.mxu0
          %v3192 = vadd.f32 %v2011, %v3191
          %v3193 = vpop.f32.mrf.mxu0
          %v3194 = vadd.f32 %v2015, %v3193
          %3195 = vdwg.mxu0
          %3196 = vst [vmem:[#allocation3] sm:$0xff] %v2779
          %3197 = vst [vmem:[#allocation3 + $0x8] sm:$0xff] %v2781
          %3198 = vst [vmem:[#allocation3 + $0x10] sm:$0xff] %v2892
          %3199 = vst [vmem:[#allocation3 + $0x18] sm:$0xff] %v2894
          %3200 = vst [vmem:[#allocation3 + $0x20] sm:$0xff] %v3005
          %3201 = vst [vmem:[#allocation3 + $0x28] sm:$0xff] %v3007
          %3202 = vst [vmem:[#allocation3 + $0x30] sm:$0xff] %v3118
          %3203 = vst [vmem:[#allocation3 + $0x38] sm:$0xff] %v3120
          %3204 = vst [vmem:[#allocation3 + $0x40] sm:$0xff] %v2783
          %3205 = vst [vmem:[#allocation3 + $0x48] sm:$0xff] %v2785
          %3206 = vst [vmem:[#allocation3 + $0x50] sm:$0xff] %v2896
          %3207 = vst [vmem:[#allocation3 + $0x58] sm:$0xff] %v2898
          %3208 = vst [vmem:[#allocation3 + $0x60] sm:$0xff] %v3009
          %3209 = vst [vmem:[#allocation3 + $0x68] sm:$0xff] %v3011
          %3210 = vst [vmem:[#allocation3 + $0x70] sm:$0xff] %v3122
          %3211 = vst [vmem:[#allocation3 + $0x78] sm:$0xff] %v3124
          %3212 = vst [vmem:[#allocation3 + $0x80] sm:$0xff] %v2789
          %3213 = vst [vmem:[#allocation3 + $0x88] sm:$0xff] %v2791
          %3214 = vst [vmem:[#allocation3 + $0x90] sm:$0xff] %v2902
          %3215 = vst [vmem:[#allocation3 + $0x98] sm:$0xff] %v2904
          %3216 = vst [vmem:[#allocation3 + $0xa0] sm:$0xff] %v3015
          %3217 = vst [vmem:[#allocation3 + $0xa8] sm:$0xff] %v3017
          %3218 = vst [vmem:[#allocation3 + $0xb0] sm:$0xff] %v3128
          %3219 = vst [vmem:[#allocation3 + $0xb8] sm:$0xff] %v3130
          %3220 = vst [vmem:[#allocation3 + $0xc0] sm:$0xff] %v2793
          %3221 = vst [vmem:[#allocation3 + $0xc8] sm:$0xff] %v2795
          %3222 = vst [vmem:[#allocation3 + $0xd0] sm:$0xff] %v2906
          %3223 = vst [vmem:[#allocation3 + $0xd8] sm:$0xff] %v2908
          %3224 = vst [vmem:[#allocation3 + $0xe0] sm:$0xff] %v3019
          %3225 = vst [vmem:[#allocation3 + $0xe8] sm:$0xff] %v3021
          %3226 = vst [vmem:[#allocation3 + $0xf0] sm:$0xff] %v3132
          %3227 = vst [vmem:[#allocation3 + $0xf8] sm:$0xff] %v3134
          %3228 = vst [vmem:[#allocation3 + $0x100] sm:$0xff] %v2799
          %3229 = vst [vmem:[#allocation3 + $0x108] sm:$0xff] %v2801
          %3230 = vst [vmem:[#allocation3 + $0x110] sm:$0xff] %v2912
          %3231 = vst [vmem:[#allocation3 + $0x118] sm:$0xff] %v2914
          %3232 = vst [vmem:[#allocation3 + $0x120] sm:$0xff] %v3025
          %3233 = vst [vmem:[#allocation3 + $0x128] sm:$0xff] %v3027
          %3234 = vst [vmem:[#allocation3 + $0x130] sm:$0xff] %v3138
          %3235 = vst [vmem:[#allocation3 + $0x138] sm:$0xff] %v3140
          %3236 = vst [vmem:[#allocation3 + $0x140] sm:$0xff] %v2803
          %3237 = vst [vmem:[#allocation3 + $0x148] sm:$0xff] %v2805
          %3238 = vst [vmem:[#allocation3 + $0x150] sm:$0xff] %v2916
          %3239 = vst [vmem:[#allocation3 + $0x158] sm:$0xff] %v2918
          %3240 = vst [vmem:[#allocation3 + $0x160] sm:$0xff] %v3029
          %3241 = vst [vmem:[#allocation3 + $0x168] sm:$0xff] %v3031
          %3242 = vst [vmem:[#allocation3 + $0x170] sm:$0xff] %v3142
          %3243 = vst [vmem:[#allocation3 + $0x178] sm:$0xff] %v3144
          %3244 = vst [vmem:[#allocation3 + $0x180] sm:$0xff] %v2809
          %3245 = vst [vmem:[#allocation3 + $0x188] sm:$0xff] %v2811
          %3246 = vst [vmem:[#allocation3 + $0x190] sm:$0xff] %v2922
          %3247 = vst [vmem:[#allocation3 + $0x198] sm:$0xff] %v2924
          %3248 = vst [vmem:[#allocation3 + $0x1a0] sm:$0xff] %v3035
          %3249 = vst [vmem:[#allocation3 + $0x1a8] sm:$0xff] %v3037
          %3250 = vst [vmem:[#allocation3 + $0x1b0] sm:$0xff] %v3148
          %3251 = vst [vmem:[#allocation3 + $0x1b8] sm:$0xff] %v3150
          %3252 = vst [vmem:[#allocation3 + $0x1c0] sm:$0xff] %v2813
          %3253 = vst [vmem:[#allocation3 + $0x1c8] sm:$0xff] %v2815
          %3254 = vst [vmem:[#allocation3 + $0x1d0] sm:$0xff] %v2926
          %3255 = vst [vmem:[#allocation3 + $0x1d8] sm:$0xff] %v2928
          %3256 = vst [vmem:[#allocation3 + $0x1e0] sm:$0xff] %v3039
          %3257 = vst [vmem:[#allocation3 + $0x1e8] sm:$0xff] %v3041
          %3258 = vst [vmem:[#allocation3 + $0x1f0] sm:$0xff] %v3152
          %3259 = vst [vmem:[#allocation3 + $0x1f8] sm:$0xff] %v3154
          %3260 = vst [vmem:[#allocation3 + $0x200] sm:$0xff] %v2819
          %3261 = vst [vmem:[#allocation3 + $0x208] sm:$0xff] %v2821
          %3262 = vst [vmem:[#allocation3 + $0x210] sm:$0xff] %v2932
          %3263 = vst [vmem:[#allocation3 + $0x218] sm:$0xff] %v2934
          %3264 = vst [vmem:[#allocation3 + $0x220] sm:$0xff] %v3045
          %3265 = vst [vmem:[#allocation3 + $0x228] sm:$0xff] %v3047
          %3266 = vst [vmem:[#allocation3 + $0x230] sm:$0xff] %v3158
          %3267 = vst [vmem:[#allocation3 + $0x238] sm:$0xff] %v3160
          %3268 = vst [vmem:[#allocation3 + $0x240] sm:$0xff] %v2823
          %3269 = vst [vmem:[#allocation3 + $0x248] sm:$0xff] %v2825
          %3270 = vst [vmem:[#allocation3 + $0x250] sm:$0xff] %v2936
          %3271 = vst [vmem:[#allocation3 + $0x258] sm:$0xff] %v2938
          %3272 = vst [vmem:[#allocation3 + $0x260] sm:$0xff] %v3049
          %3273 = vst [vmem:[#allocation3 + $0x268] sm:$0xff] %v3051
          %3274 = vst [vmem:[#allocation3 + $0x270] sm:$0xff] %v3162
          %3275 = vst [vmem:[#allocation3 + $0x278] sm:$0xff] %v3164
          %3276 = vst [vmem:[#allocation3 + $0x280] sm:$0xff] %v2829
          %3277 = vst [vmem:[#allocation3 + $0x288] sm:$0xff] %v2831
          %3278 = vst [vmem:[#allocation3 + $0x290] sm:$0xff] %v2942
          %3279 = vst [vmem:[#allocation3 + $0x298] sm:$0xff] %v2944
          %3280 = vst [vmem:[#allocation3 + $0x2a0] sm:$0xff] %v3055
          %3281 = vst [vmem:[#allocation3 + $0x2a8] sm:$0xff] %v3057
          %3282 = vst [vmem:[#allocation3 + $0x2b0] sm:$0xff] %v3168
          %3283 = vst [vmem:[#allocation3 + $0x2b8] sm:$0xff] %v3170
          %3284 = vst [vmem:[#allocation3 + $0x2c0] sm:$0xff] %v2833
          %3285 = vst [vmem:[#allocation3 + $0x2c8] sm:$0xff] %v2835
          %3286 = vst [vmem:[#allocation3 + $0x2d0] sm:$0xff] %v2946
          %3287 = vst [vmem:[#allocation3 + $0x2d8] sm:$0xff] %v2948
          %3288 = vst [vmem:[#allocation3 + $0x2e0] sm:$0xff] %v3059
          %3289 = vst [vmem:[#allocation3 + $0x2e8] sm:$0xff] %v3061
          %3290 = vst [vmem:[#allocation3 + $0x2f0] sm:$0xff] %v3172
          %3291 = vst [vmem:[#allocation3 + $0x2f8] sm:$0xff] %v3174
          %3292 = vst [vmem:[#allocation3 + $0x300] sm:$0xff] %v2839
          %3293 = vst [vmem:[#allocation3 + $0x308] sm:$0xff] %v2841
          %3294 = vst [vmem:[#allocation3 + $0x310] sm:$0xff] %v2952
          %3295 = vst [vmem:[#allocation3 + $0x318] sm:$0xff] %v2954
          %3296 = vst [vmem:[#allocation3 + $0x320] sm:$0xff] %v3065
          %3297 = vst [vmem:[#allocation3 + $0x328] sm:$0xff] %v3067
          %3298 = vst [vmem:[#allocation3 + $0x330] sm:$0xff] %v3178
          %3299 = vst [vmem:[#allocation3 + $0x338] sm:$0xff] %v3180
          %3300 = vst [vmem:[#allocation3 + $0x340] sm:$0xff] %v2843
          %3301 = vst [vmem:[#allocation3 + $0x348] sm:$0xff] %v2845
          %3302 = vst [vmem:[#allocation3 + $0x350] sm:$0xff] %v2956
          %3303 = vst [vmem:[#allocation3 + $0x358] sm:$0xff] %v2958
          %3304 = vst [vmem:[#allocation3 + $0x360] sm:$0xff] %v3069
          %3305 = vst [vmem:[#allocation3 + $0x368] sm:$0xff] %v3071
          %3306 = vst [vmem:[#allocation3 + $0x370] sm:$0xff] %v3182
          %3307 = vst [vmem:[#allocation3 + $0x378] sm:$0xff] %v3184
          %3308 = vst [vmem:[#allocation3 + $0x380] sm:$0xff] %v2849
          %3309 = vst [vmem:[#allocation3 + $0x388] sm:$0xff] %v2851
          %3310 = vst [vmem:[#allocation3 + $0x390] sm:$0xff] %v2962
          %3311 = vst [vmem:[#allocation3 + $0x398] sm:$0xff] %v2964
          %3312 = vst [vmem:[#allocation3 + $0x3a0] sm:$0xff] %v3075
          %3313 = vst [vmem:[#allocation3 + $0x3a8] sm:$0xff] %v3077
          %3314 = vst [vmem:[#allocation3 + $0x3b0] sm:$0xff] %v3188
          %3315 = vst [vmem:[#allocation3 + $0x3b8] sm:$0xff] %v3190
          %3316 = vst [vmem:[#allocation3 + $0x3c0] sm:$0xff] %v2853
          %3317 = vst [vmem:[#allocation3 + $0x3c8] sm:$0xff] %v2855
          %3318 = vst [vmem:[#allocation3 + $0x3d0] sm:$0xff] %v2966
          %3319 = vst [vmem:[#allocation3 + $0x3d8] sm:$0xff] %v2968
          %3320 = vst [vmem:[#allocation3 + $0x3e0] sm:$0xff] %v3079
          %3321 = vst [vmem:[#allocation3 + $0x3e8] sm:$0xff] %v3081
          %3322 = vst [vmem:[#allocation3 + $0x3f0] sm:$0xff] %v3192
          %3323 = vst [vmem:[#allocation3 + $0x3f8] sm:$0xff] %v3194
        $region60: #{tpu_custom_call.1} parent=35 // pred_fallthru
          _
        %p3324 = scmp.ne.s32.totalorder %s30, 1
        %v3325 = vld [vmem:[#allocation3] sm:$0xff]
        %v3326 = vld [vmem:[#allocation3 + $0x8] sm:$0xff]
        %v3327 = vld [vmem:[#allocation3 + $0x10] sm:$0xff]
        %v3328 = vld [vmem:[#allocation3 + $0x18] sm:$0xff]
        %v3329 = vld [vmem:[#allocation3 + $0x20] sm:$0xff]
        %v3330 = vld [vmem:[#allocation3 + $0x28] sm:$0xff]
        %v3331 = vld [vmem:[#allocation3 + $0x30] sm:$0xff]
        %v3332 = vld [vmem:[#allocation3 + $0x38] sm:$0xff]
        %v3333 = vld [vmem:[#allocation3 + $0x40] sm:$0xff]
        %v3334 = vld [vmem:[#allocation3 + $0x48] sm:$0xff]
        %v3335 = vld [vmem:[#allocation3 + $0x50] sm:$0xff]
        %v3336 = vld [vmem:[#allocation3 + $0x58] sm:$0xff]
        %v3337 = vld [vmem:[#allocation3 + $0x60] sm:$0xff]
        %v3338 = vld [vmem:[#allocation3 + $0x68] sm:$0xff]
        %v3339 = vld [vmem:[#allocation3 + $0x70] sm:$0xff]
        %v3340 = vld [vmem:[#allocation3 + $0x78] sm:$0xff]
        %v3469 = vunpack.c.l.b16 %v473
        %v3470 = vunpack.c.h.b16 %v473
        %v3471 = vunpack.c.l.b16 %v474
        %v3472 = vunpack.c.h.b16 %v474
        %v3473 = vunpack.c.l.b16 %v475
        %v3474 = vunpack.c.h.b16 %v475
        %v3475 = vunpack.c.l.b16 %v476
        %v3476 = vunpack.c.h.b16 %v476
        %v3477 = vunpack.c.l.b16 %v477
        %v3478 = vunpack.c.h.b16 %v477
        %v3479 = vunpack.c.l.b16 %v478
        %v3480 = vunpack.c.h.b16 %v478
        %v3481 = vunpack.c.l.b16 %v479
        %v3482 = vunpack.c.h.b16 %v479
        %v3483 = vunpack.c.l.b16 %v480
        %v3484 = vunpack.c.h.b16 %v480
        %v3485 = vunpack.c.l.b16 %v481
        %v3486 = vunpack.c.h.b16 %v481
        %v3487 = vunpack.c.l.b16 %v482
        %v3488 = vunpack.c.h.b16 %v482
        %v3489 = vunpack.c.l.b16 %v483
        %v3490 = vunpack.c.h.b16 %v483
        %v3491 = vunpack.c.l.b16 %v484
        %v3492 = vunpack.c.h.b16 %v484
        %v3493 = vunpack.c.l.b16 %v485
        %v3494 = vunpack.c.h.b16 %v485
        %v3495 = vunpack.c.l.b16 %v486
        %v3496 = vunpack.c.h.b16 %v486
        %v3497 = vunpack.c.l.b16 %v487
        %v3498 = vunpack.c.h.b16 %v487
        %v3499 = vunpack.c.l.b16 %v488
        %v3500 = vunpack.c.h.b16 %v488
        %v3501 = vunpack.c.l.b16 %v489
        %v3502 = vunpack.c.h.b16 %v489
        %v3503 = vunpack.c.l.b16 %v490
        %v3504 = vunpack.c.h.b16 %v490
        %v3505 = vunpack.c.l.b16 %v491
        %v3506 = vunpack.c.h.b16 %v491
        %v3507 = vunpack.c.l.b16 %v492
        %v3508 = vunpack.c.h.b16 %v492
        %v3509 = vunpack.c.l.b16 %v493
        %v3510 = vunpack.c.h.b16 %v493
        %v3511 = vunpack.c.l.b16 %v494
        %v3512 = vunpack.c.h.b16 %v494
        %v3513 = vunpack.c.l.b16 %v495
        %v3514 = vunpack.c.h.b16 %v495
        %v3515 = vunpack.c.l.b16 %v496
        %v3516 = vunpack.c.h.b16 %v496
        %v3517 = vunpack.c.l.b16 %v497
        %v3518 = vunpack.c.h.b16 %v497
        %v3519 = vunpack.c.l.b16 %v498
        %v3520 = vunpack.c.h.b16 %v498
        %v3521 = vunpack.c.l.b16 %v499
        %v3522 = vunpack.c.h.b16 %v499
        %v3523 = vunpack.c.l.b16 %v500
        %v3524 = vunpack.c.h.b16 %v500
        %v3525 = vunpack.c.l.b16 %v501
        %v3526 = vunpack.c.h.b16 %v501
        %v3527 = vunpack.c.l.b16 %v502
        %v3528 = vunpack.c.h.b16 %v502
        %v3529 = vunpack.c.l.b16 %v503
        %v3530 = vunpack.c.h.b16 %v503
        %v3531 = vunpack.c.l.b16 %v504
        %v3532 = vunpack.c.h.b16 %v504
        %v3533 = vunpack.c.l.b16 %v505
        %v3534 = vunpack.c.h.b16 %v505
        %v3535 = vunpack.c.l.b16 %v506
        %v3536 = vunpack.c.h.b16 %v506
        %v3537 = vunpack.c.l.b16 %v507
        %v3538 = vunpack.c.h.b16 %v507
        %v3539 = vunpack.c.l.b16 %v508
        %v3540 = vunpack.c.h.b16 %v508
        %v3541 = vunpack.c.l.b16 %v509
        %v3542 = vunpack.c.h.b16 %v509
        %v3543 = vunpack.c.l.b16 %v510
        %v3544 = vunpack.c.h.b16 %v510
        %v3545 = vunpack.c.l.b16 %v511
        %v3546 = vunpack.c.h.b16 %v511
        %v3547 = vunpack.c.l.b16 %v512
        %v3548 = vunpack.c.h.b16 %v512
        %v3549 = vunpack.c.l.b16 %v513
        %v3550 = vunpack.c.h.b16 %v513
        %v3551 = vunpack.c.l.b16 %v514
        %v3552 = vunpack.c.h.b16 %v514
        %v3553 = vunpack.c.l.b16 %v515
        %v3554 = vunpack.c.h.b16 %v515
        %v3555 = vunpack.c.l.b16 %v516
        %v3556 = vunpack.c.h.b16 %v516
        %v3557 = vunpack.c.l.b16 %v517
        %v3558 = vunpack.c.h.b16 %v517
        %v3559 = vunpack.c.l.b16 %v518
        %v3560 = vunpack.c.h.b16 %v518
        %v3561 = vunpack.c.l.b16 %v519
        %v3562 = vunpack.c.h.b16 %v519
        %v3563 = vunpack.c.l.b16 %v520
        %v3564 = vunpack.c.h.b16 %v520
        %v3565 = vunpack.c.l.b16 %v521
        %v3566 = vunpack.c.h.b16 %v521
        %v3567 = vunpack.c.l.b16 %v522
        %v3568 = vunpack.c.h.b16 %v522
        %v3569 = vunpack.c.l.b16 %v523
        %v3570 = vunpack.c.h.b16 %v523
        %v3571 = vunpack.c.l.b16 %v524
        %v3572 = vunpack.c.h.b16 %v524
        %v3573 = vunpack.c.l.b16 %v525
        %v3574 = vunpack.c.h.b16 %v525
        %v3575 = vunpack.c.l.b16 %v526
        %v3576 = vunpack.c.h.b16 %v526
        %v3577 = vunpack.c.l.b16 %v527
        %v3578 = vunpack.c.h.b16 %v527
        %v3579 = vunpack.c.l.b16 %v528
        %v3580 = vunpack.c.h.b16 %v528
        %v3581 = vunpack.c.l.b16 %v529
        %v3582 = vunpack.c.h.b16 %v529
        %v3583 = vunpack.c.l.b16 %v530
        %v3584 = vunpack.c.h.b16 %v530
        %v3585 = vunpack.c.l.b16 %v531
        %v3586 = vunpack.c.h.b16 %v531
        %v3587 = vunpack.c.l.b16 %v532
        %v3588 = vunpack.c.h.b16 %v532
        %v3589 = vunpack.c.l.b16 %v533
        %v3590 = vunpack.c.h.b16 %v533
        %v3591 = vunpack.c.l.b16 %v534
        %v3592 = vunpack.c.h.b16 %v534
        %v3593 = vunpack.c.l.b16 %v535
        %v3594 = vunpack.c.h.b16 %v535
        %v3595 = vunpack.c.l.b16 %v536
        %v3596 = vunpack.c.h.b16 %v536
        %v3597 = vunpack.c.l.b16 %v537
        %v3598 = vunpack.c.h.b16 %v537
        %v3599 = vunpack.c.l.b16 %v538
        %v3600 = vunpack.c.h.b16 %v538
        %v3601 = vunpack.c.l.b16 %v539
        %v3602 = vunpack.c.h.b16 %v539
        %v3603 = vunpack.c.l.b16 %v540
        %v3604 = vunpack.c.h.b16 %v540
        %v3605 = vunpack.c.l.b16 %v541
        %v3606 = vunpack.c.h.b16 %v541
        %v3607 = vunpack.c.l.b16 %v542
        %v3608 = vunpack.c.h.b16 %v542
        %v3609 = vunpack.c.l.b16 %v543
        %v3610 = vunpack.c.h.b16 %v543
        %v3611 = vunpack.c.l.b16 %v544
        %v3612 = vunpack.c.h.b16 %v544
        %v3613 = vunpack.c.l.b16 %v545
        %v3614 = vunpack.c.h.b16 %v545
        %v3615 = vunpack.c.l.b16 %v546
        %v3616 = vunpack.c.h.b16 %v546
        %v3617 = vunpack.c.l.b16 %v547
        %v3618 = vunpack.c.h.b16 %v547
        %v3619 = vunpack.c.l.b16 %v548
        %v3620 = vunpack.c.h.b16 %v548
        %v3621 = vunpack.c.l.b16 %v549
        %v3622 = vunpack.c.h.b16 %v549
        %v3623 = vunpack.c.l.b16 %v550
        %v3624 = vunpack.c.h.b16 %v550
        %v3625 = vunpack.c.l.b16 %v551
        %v3626 = vunpack.c.h.b16 %v551
        %v3627 = vunpack.c.l.b16 %v552
        %v3628 = vunpack.c.h.b16 %v552
        %v3629 = vunpack.c.l.b16 %v553
        %v3630 = vunpack.c.h.b16 %v553
        %v3631 = vunpack.c.l.b16 %v554
        %v3632 = vunpack.c.h.b16 %v554
        %v3633 = vunpack.c.l.b16 %v555
        %v3634 = vunpack.c.h.b16 %v555
        %v3635 = vunpack.c.l.b16 %v556
        %v3636 = vunpack.c.h.b16 %v556
        %v3637 = vunpack.c.l.b16 %v557
        %v3638 = vunpack.c.h.b16 %v557
        %v3639 = vunpack.c.l.b16 %v558
        %v3640 = vunpack.c.h.b16 %v558
        %v3641 = vunpack.c.l.b16 %v559
        %v3642 = vunpack.c.h.b16 %v559
        %v3643 = vunpack.c.l.b16 %v560
        %v3644 = vunpack.c.h.b16 %v560
        %v3645 = vunpack.c.l.b16 %v561
        %v3646 = vunpack.c.h.b16 %v561
        %v3647 = vunpack.c.l.b16 %v562
        %v3648 = vunpack.c.h.b16 %v562
        %v3649 = vunpack.c.l.b16 %v563
        %v3650 = vunpack.c.h.b16 %v563
        %v3651 = vunpack.c.l.b16 %v564
        %v3652 = vunpack.c.h.b16 %v564
        %v3653 = vunpack.c.l.b16 %v565
        %v3654 = vunpack.c.h.b16 %v565
        %v3655 = vunpack.c.l.b16 %v566
        %v3656 = vunpack.c.h.b16 %v566
        %v3657 = vunpack.c.l.b16 %v567
        %v3658 = vunpack.c.h.b16 %v567
        %v3659 = vunpack.c.l.b16 %v568
        %v3660 = vunpack.c.h.b16 %v568
        %v3661 = vunpack.c.l.b16 %v569
        %v3662 = vunpack.c.h.b16 %v569
        %v3663 = vunpack.c.l.b16 %v570
        %v3664 = vunpack.c.h.b16 %v570
        %v3665 = vunpack.c.l.b16 %v571
        %v3666 = vunpack.c.h.b16 %v571
        %v3667 = vunpack.c.l.b16 %v572
        %v3668 = vunpack.c.h.b16 %v572
        %v3669 = vunpack.c.l.b16 %v573
        %v3670 = vunpack.c.h.b16 %v573
        %v3671 = vunpack.c.l.b16 %v574
        %v3672 = vunpack.c.h.b16 %v574
        %v3673 = vunpack.c.l.b16 %v575
        %v3674 = vunpack.c.h.b16 %v575
        %v3675 = vunpack.c.l.b16 %v576
        %v3676 = vunpack.c.h.b16 %v576
        %v3677 = vunpack.c.l.b16 %v577
        %v3678 = vunpack.c.h.b16 %v577
        %v3679 = vunpack.c.l.b16 %v578
        %v3680 = vunpack.c.h.b16 %v578
        %v3681 = vunpack.c.l.b16 %v579
        %v3682 = vunpack.c.h.b16 %v579
        %v3683 = vunpack.c.l.b16 %v580
        %v3684 = vunpack.c.h.b16 %v580
        %v3685 = vunpack.c.l.b16 %v581
        %v3686 = vunpack.c.h.b16 %v581
        %v3687 = vunpack.c.l.b16 %v582
        %v3688 = vunpack.c.h.b16 %v582
        %v3689 = vunpack.c.l.b16 %v583
        %v3690 = vunpack.c.h.b16 %v583
        %v3691 = vunpack.c.l.b16 %v584
        %v3692 = vunpack.c.h.b16 %v584
        %v3693 = vunpack.c.l.b16 %v585
        %v3694 = vunpack.c.h.b16 %v585
        %v3695 = vunpack.c.l.b16 %v586
        %v3696 = vunpack.c.h.b16 %v586
        %v3697 = vunpack.c.l.b16 %v587
        %v3698 = vunpack.c.h.b16 %v587
        %v3699 = vunpack.c.l.b16 %v588
        %v3700 = vunpack.c.h.b16 %v588
        %v3701 = vunpack.c.l.b16 %v589
        %v3702 = vunpack.c.h.b16 %v589
        %v3703 = vunpack.c.l.b16 %v590
        %v3704 = vunpack.c.h.b16 %v590
        %v3705 = vunpack.c.l.b16 %v591
        %v3706 = vunpack.c.h.b16 %v591
        %v3707 = vunpack.c.l.b16 %v592
        %v3708 = vunpack.c.h.b16 %v592
        %v3709 = vunpack.c.l.b16 %v593
        %v3710 = vunpack.c.h.b16 %v593
        %v3711 = vunpack.c.l.b16 %v594
        %v3712 = vunpack.c.h.b16 %v594
        %v3713 = vunpack.c.l.b16 %v595
        %v3714 = vunpack.c.h.b16 %v595
        %v3715 = vunpack.c.l.b16 %v596
        %v3716 = vunpack.c.h.b16 %v596
        %v3717 = vunpack.c.l.b16 %v597
        %v3718 = vunpack.c.h.b16 %v597
        %v3719 = vunpack.c.l.b16 %v598
        %v3720 = vunpack.c.h.b16 %v598
        %v3721 = vunpack.c.l.b16 %v599
        %v3722 = vunpack.c.h.b16 %v599
        %v3723 = vunpack.c.l.b16 %v600
        %v3724 = vunpack.c.h.b16 %v600
        %v3725 = vpack.c.b16 %v3477, %v3469
        %v3726 = vpack.c.b16 %v3478, %v3470
        %v3727 = vpack.c.b16 %v3479, %v3471
        %v3728 = vpack.c.b16 %v3480, %v3472
        %v3729 = vpack.c.b16 %v3481, %v3473
        %v3730 = vpack.c.b16 %v3482, %v3474
        %v3731 = vpack.c.b16 %v3483, %v3475
        %v3732 = vpack.c.b16 %v3484, %v3476
        %v3733 = vpack.c.b16 %v3493, %v3485
        %v3734 = vpack.c.b16 %v3494, %v3486
        %v3735 = vpack.c.b16 %v3495, %v3487
        %v3736 = vpack.c.b16 %v3496, %v3488
        %v3737 = vpack.c.b16 %v3497, %v3489
        %v3738 = vpack.c.b16 %v3498, %v3490
        %v3739 = vpack.c.b16 %v3499, %v3491
        %v3740 = vpack.c.b16 %v3500, %v3492
        %v3741 = vpack.c.b16 %v3509, %v3501
        %v3742 = vpack.c.b16 %v3510, %v3502
        %v3743 = vpack.c.b16 %v3511, %v3503
        %v3744 = vpack.c.b16 %v3512, %v3504
        %v3745 = vpack.c.b16 %v3513, %v3505
        %v3746 = vpack.c.b16 %v3514, %v3506
        %v3747 = vpack.c.b16 %v3515, %v3507
        %v3748 = vpack.c.b16 %v3516, %v3508
        %v3749 = vpack.c.b16 %v3525, %v3517
        %v3750 = vpack.c.b16 %v3526, %v3518
        %v3751 = vpack.c.b16 %v3527, %v3519
        %v3752 = vpack.c.b16 %v3528, %v3520
        %v3753 = vpack.c.b16 %v3529, %v3521
        %v3754 = vpack.c.b16 %v3530, %v3522
        %v3755 = vpack.c.b16 %v3531, %v3523
        %v3756 = vpack.c.b16 %v3532, %v3524
        %v3757 = vpack.c.b16 %v3541, %v3533
        %v3758 = vpack.c.b16 %v3542, %v3534
        %v3759 = vpack.c.b16 %v3543, %v3535
        %v3760 = vpack.c.b16 %v3544, %v3536
        %v3761 = vpack.c.b16 %v3545, %v3537
        %v3762 = vpack.c.b16 %v3546, %v3538
        %v3763 = vpack.c.b16 %v3547, %v3539
        %v3764 = vpack.c.b16 %v3548, %v3540
        %v3765 = vpack.c.b16 %v3557, %v3549
        %v3766 = vpack.c.b16 %v3558, %v3550
        %v3767 = vpack.c.b16 %v3559, %v3551
        %v3768 = vpack.c.b16 %v3560, %v3552
        %v3769 = vpack.c.b16 %v3561, %v3553
        %v3770 = vpack.c.b16 %v3562, %v3554
        %v3771 = vpack.c.b16 %v3563, %v3555
        %v3772 = vpack.c.b16 %v3564, %v3556
        %v3773 = vpack.c.b16 %v3573, %v3565
        %v3774 = vpack.c.b16 %v3574, %v3566
        %v3775 = vpack.c.b16 %v3575, %v3567
        %v3776 = vpack.c.b16 %v3576, %v3568
        %v3777 = vpack.c.b16 %v3577, %v3569
        %v3778 = vpack.c.b16 %v3578, %v3570
        %v3779 = vpack.c.b16 %v3579, %v3571
        %v3780 = vpack.c.b16 %v3580, %v3572
        %v3781 = vpack.c.b16 %v3589, %v3581
        %v3782 = vpack.c.b16 %v3590, %v3582
        %v3783 = vpack.c.b16 %v3591, %v3583
        %v3784 = vpack.c.b16 %v3592, %v3584
        %v3785 = vpack.c.b16 %v3593, %v3585
        %v3786 = vpack.c.b16 %v3594, %v3586
        %v3787 = vpack.c.b16 %v3595, %v3587
        %v3788 = vpack.c.b16 %v3596, %v3588
        %v3789 = vpack.c.b16 %v3605, %v3597
        %v3790 = vpack.c.b16 %v3606, %v3598
        %v3791 = vpack.c.b16 %v3607, %v3599
        %v3792 = vpack.c.b16 %v3608, %v3600
        %v3793 = vpack.c.b16 %v3609, %v3601
        %v3794 = vpack.c.b16 %v3610, %v3602
        %v3795 = vpack.c.b16 %v3611, %v3603
        %v3796 = vpack.c.b16 %v3612, %v3604
        %v3797 = vpack.c.b16 %v3621, %v3613
        %v3798 = vpack.c.b16 %v3622, %v3614
        %v3799 = vpack.c.b16 %v3623, %v3615
        %v3800 = vpack.c.b16 %v3624, %v3616
        %v3801 = vpack.c.b16 %v3625, %v3617
        %v3802 = vpack.c.b16 %v3626, %v3618
        %v3803 = vpack.c.b16 %v3627, %v3619
        %v3804 = vpack.c.b16 %v3628, %v3620
        %v3805 = vpack.c.b16 %v3637, %v3629
        %v3806 = vpack.c.b16 %v3638, %v3630
        %v3807 = vpack.c.b16 %v3639, %v3631
        %v3808 = vpack.c.b16 %v3640, %v3632
        %v3809 = vpack.c.b16 %v3641, %v3633
        %v3810 = vpack.c.b16 %v3642, %v3634
        %v3811 = vpack.c.b16 %v3643, %v3635
        %v3812 = vpack.c.b16 %v3644, %v3636
        %v3813 = vpack.c.b16 %v3653, %v3645
        %v3814 = vpack.c.b16 %v3654, %v3646
        %v3815 = vpack.c.b16 %v3655, %v3647
        %v3816 = vpack.c.b16 %v3656, %v3648
        %v3817 = vpack.c.b16 %v3657, %v3649
        %v3818 = vpack.c.b16 %v3658, %v3650
        %v3819 = vpack.c.b16 %v3659, %v3651
        %v3820 = vpack.c.b16 %v3660, %v3652
        %v3821 = vpack.c.b16 %v3669, %v3661
        %v3822 = vpack.c.b16 %v3670, %v3662
        %v3823 = vpack.c.b16 %v3671, %v3663
        %v3824 = vpack.c.b16 %v3672, %v3664
        %v3825 = vpack.c.b16 %v3673, %v3665
        %v3826 = vpack.c.b16 %v3674, %v3666
        %v3827 = vpack.c.b16 %v3675, %v3667
        %v3828 = vpack.c.b16 %v3676, %v3668
        %v3829 = vpack.c.b16 %v3685, %v3677
        %v3830 = vpack.c.b16 %v3686, %v3678
        %v3831 = vpack.c.b16 %v3687, %v3679
        %v3832 = vpack.c.b16 %v3688, %v3680
        %v3833 = vpack.c.b16 %v3689, %v3681
        %v3834 = vpack.c.b16 %v3690, %v3682
        %v3835 = vpack.c.b16 %v3691, %v3683
        %v3836 = vpack.c.b16 %v3692, %v3684
        %v3837 = vpack.c.b16 %v3701, %v3693
        %v3838 = vpack.c.b16 %v3702, %v3694
        %v3839 = vpack.c.b16 %v3703, %v3695
        %v3840 = vpack.c.b16 %v3704, %v3696
        %v3841 = vpack.c.b16 %v3705, %v3697
        %v3842 = vpack.c.b16 %v3706, %v3698
        %v3843 = vpack.c.b16 %v3707, %v3699
        %v3844 = vpack.c.b16 %v3708, %v3700
        %v3845 = vpack.c.b16 %v3717, %v3709
        %v3846 = vpack.c.b16 %v3718, %v3710
        %v3847 = vpack.c.b16 %v3719, %v3711
        %v3848 = vpack.c.b16 %v3720, %v3712
        %v3849 = vpack.c.b16 %v3721, %v3713
        %v3850 = vpack.c.b16 %v3722, %v3714
        %v3851 = vpack.c.b16 %v3723, %v3715
        %v3852 = vpack.c.b16 %v3724, %v3716
        %3981 = vmatprep.subr.bf16.mxu0 %v3782
        %3982 = vmatpush1.bf16.msra.mxu0 %v3781
        %3983 = vmatprep.subr.bf16.mxu0 %v3774
        %3984 = vmatpush1.bf16.msra.mxu0 %v3773
        %3985 = vmatprep.subr.bf16.mxu0 %v3766
        %3986 = vmatpush1.bf16.msra.mxu0 %v3765
        %3987 = vmatprep.subr.bf16.mxu0 %v3758
        %3988 = vmatpush1.bf16.msra.mxu0 %v3757
        %3989 = vmatprep.subr.bf16.mxu0 %v3750
        %3990 = vmatpush1.bf16.msra.mxu0 %v3749
        %3991 = vmatprep.subr.bf16.mxu0 %v3742
        %3992 = vmatpush1.bf16.msra.mxu0 %v3741
        %3993 = vmatprep.subr.bf16.mxu0 %v3734
        %3994 = vmatpush1.bf16.msra.mxu0 %v3733
        %3995 = vmatprep.subr.bf16.mxu0 %v3726
        %3996 = vmatpush1.bf16.msra.mxu0 %v3725
        %3997 = vmatprep.subr.bf16.mxu0 %v3846
        %3998 = vmatpush2.bf16.msra.mxu0 %v3845
        %3999 = vmatprep.subr.bf16.mxu0 %v3838
        %4000 = vmatpush2.bf16.msra.mxu0 %v3837
        %4001 = vmatprep.subr.bf16.mxu0 %v3830
        %4002 = vmatpush2.bf16.msra.mxu0 %v3829
        %4003 = vmatprep.subr.bf16.mxu0 %v3822
        %4004 = vmatpush2.bf16.msra.mxu0 %v3821
        %4005 = vmatprep.subr.bf16.mxu0 %v3814
        %4006 = vmatpush2.bf16.msra.mxu0 %v3813
        %4007 = vmatprep.subr.bf16.mxu0 %v3806
        %4008 = vmatpush2.bf16.msra.mxu0 %v3805
        %4009 = vmatprep.subr.bf16.mxu0 %v3798
        %4010 = vmatpush2.bf16.msra.mxu0 %v3797
        %4011 = vmatprep.subr.bf16.mxu0 %v3790
        %4012 = vmatpush2.bf16.msra.mxu0 %v3789
        %4013 = vmatprep.mubr.bf16.mxu0 0
        %4014 = vmatmul.mubr.bf16.gmra.mxu0 0
        %v4015 = vpop.f32.mrf.mxu0
        %v4016 = vadd.f32 0.0, %v4015
        %v4017 = vpop.f32.mrf.mxu0
        %v4018 = vadd.f32 0.0, %v4017
        %v4019 = vpop.f32.mrf.mxu0
        %v4020 = vadd.f32 0.0, %v4019
        %v4021 = vpop.f32.mrf.mxu0
        %v4022 = vadd.f32 0.0, %v4021
        %4023 = vdwg.mxu0
        %4024 = vmatprep.subr.bf16.mxu0 %v3784
        %4025 = vmatpush1.bf16.msra.mxu0 %v3783
        %4026 = vmatprep.subr.bf16.mxu0 %v3776
        %4027 = vmatpush1.bf16.msra.mxu0 %v3775
        %4028 = vmatprep.subr.bf16.mxu0 %v3768
        %4029 = vmatpush1.bf16.msra.mxu0 %v3767
        %4030 = vmatprep.subr.bf16.mxu0 %v3760
        %4031 = vmatpush1.bf16.msra.mxu0 %v3759
        %4032 = vmatprep.subr.bf16.mxu0 %v3752
        %4033 = vmatpush1.bf16.msra.mxu0 %v3751
        %4034 = vmatprep.subr.bf16.mxu0 %v3744
        %4035 = vmatpush1.bf16.msra.mxu0 %v3743
        %4036 = vmatprep.subr.bf16.mxu0 %v3736
        %4037 = vmatpush1.bf16.msra.mxu0 %v3735
        %4038 = vmatprep.subr.bf16.mxu0 %v3728
        %4039 = vmatpush1.bf16.msra.mxu0 %v3727
        %4040 = vmatprep.subr.bf16.mxu0 %v3848
        %4041 = vmatpush2.bf16.msra.mxu0 %v3847
        %4042 = vmatprep.subr.bf16.mxu0 %v3840
        %4043 = vmatpush2.bf16.msra.mxu0 %v3839
        %4044 = vmatprep.subr.bf16.mxu0 %v3832
        %4045 = vmatpush2.bf16.msra.mxu0 %v3831
        %4046 = vmatprep.subr.bf16.mxu0 %v3824
        %4047 = vmatpush2.bf16.msra.mxu0 %v3823
        %4048 = vmatprep.subr.bf16.mxu0 %v3816
        %4049 = vmatpush2.bf16.msra.mxu0 %v3815
        %4050 = vmatprep.subr.bf16.mxu0 %v3808
        %4051 = vmatpush2.bf16.msra.mxu0 %v3807
        %4052 = vmatprep.subr.bf16.mxu0 %v3800
        %4053 = vmatpush2.bf16.msra.mxu0 %v3799
        %4054 = vmatprep.subr.bf16.mxu0 %v3792
        %4055 = vmatpush2.bf16.msra.mxu0 %v3791
        %4056 = vmatprep.mubr.bf16.mxu0 0
        %4057 = vmatmul.mubr.bf16.gmra.mxu0 0
        %v4058 = vpop.f32.mrf.mxu0
        %v4059 = vadd.f32 0.0, %v4058
        %v4060 = vpop.f32.mrf.mxu0
        %v4061 = vadd.f32 0.0, %v4060
        %v4062 = vpop.f32.mrf.mxu0
        %v4063 = vadd.f32 0.0, %v4062
        %v4064 = vpop.f32.mrf.mxu0
        %v4065 = vadd.f32 0.0, %v4064
        %4066 = vdwg.mxu0
        %4067 = vmatprep.subr.bf16.mxu0 %v3786
        %4068 = vmatpush1.bf16.msra.mxu0 %v3785
        %4069 = vmatprep.subr.bf16.mxu0 %v3778
        %4070 = vmatpush1.bf16.msra.mxu0 %v3777
        %4071 = vmatprep.subr.bf16.mxu0 %v3770
        %4072 = vmatpush1.bf16.msra.mxu0 %v3769
        %4073 = vmatprep.subr.bf16.mxu0 %v3762
        %4074 = vmatpush1.bf16.msra.mxu0 %v3761
        %4075 = vmatprep.subr.bf16.mxu0 %v3754
        %4076 = vmatpush1.bf16.msra.mxu0 %v3753
        %4077 = vmatprep.subr.bf16.mxu0 %v3746
        %4078 = vmatpush1.bf16.msra.mxu0 %v3745
        %4079 = vmatprep.subr.bf16.mxu0 %v3738
        %4080 = vmatpush1.bf16.msra.mxu0 %v3737
        %4081 = vmatprep.subr.bf16.mxu0 %v3730
        %4082 = vmatpush1.bf16.msra.mxu0 %v3729
        %4083 = vmatprep.subr.bf16.mxu0 %v3850
        %4084 = vmatpush2.bf16.msra.mxu0 %v3849
        %4085 = vmatprep.subr.bf16.mxu0 %v3842
        %4086 = vmatpush2.bf16.msra.mxu0 %v3841
        %4087 = vmatprep.subr.bf16.mxu0 %v3834
        %4088 = vmatpush2.bf16.msra.mxu0 %v3833
        %4089 = vmatprep.subr.bf16.mxu0 %v3826
        %4090 = vmatpush2.bf16.msra.mxu0 %v3825
        %4091 = vmatprep.subr.bf16.mxu0 %v3818
        %4092 = vmatpush2.bf16.msra.mxu0 %v3817
        %4093 = vmatprep.subr.bf16.mxu0 %v3810
        %4094 = vmatpush2.bf16.msra.mxu0 %v3809
        %4095 = vmatprep.subr.bf16.mxu0 %v3802
        %4096 = vmatpush2.bf16.msra.mxu0 %v3801
        %4097 = vmatprep.subr.bf16.mxu0 %v3794
        %4098 = vmatpush2.bf16.msra.mxu0 %v3793
        %4099 = vmatprep.mubr.bf16.mxu0 0
        %4100 = vmatmul.mubr.bf16.gmra.mxu0 0
        %v4101 = vpop.f32.mrf.mxu0
        %v4102 = vadd.f32 0.0, %v4101
        %v4103 = vpop.f32.mrf.mxu0
        %v4104 = vadd.f32 0.0, %v4103
        %v4105 = vpop.f32.mrf.mxu0
        %v4106 = vadd.f32 0.0, %v4105
        %v4107 = vpop.f32.mrf.mxu0
        %v4108 = vadd.f32 0.0, %v4107
        %4109 = vdwg.mxu0
        %4110 = vmatprep.subr.bf16.mxu0 %v3788
        %4111 = vmatpush1.bf16.msra.mxu0 %v3787
        %4112 = vmatprep.subr.bf16.mxu0 %v3780
        %4113 = vmatpush1.bf16.msra.mxu0 %v3779
        %4114 = vmatprep.subr.bf16.mxu0 %v3772
        %4115 = vmatpush1.bf16.msra.mxu0 %v3771
        %4116 = vmatprep.subr.bf16.mxu0 %v3764
        %4117 = vmatpush1.bf16.msra.mxu0 %v3763
        %4118 = vmatprep.subr.bf16.mxu0 %v3756
        %4119 = vmatpush1.bf16.msra.mxu0 %v3755
        %4120 = vmatprep.subr.bf16.mxu0 %v3748
        %4121 = vmatpush1.bf16.msra.mxu0 %v3747
        %4122 = vmatprep.subr.bf16.mxu0 %v3740
        %4123 = vmatpush1.bf16.msra.mxu0 %v3739
        %4124 = vmatprep.subr.bf16.mxu0 %v3732
        %4125 = vmatpush1.bf16.msra.mxu0 %v3731
        %4126 = vmatprep.subr.bf16.mxu0 %v3852
        %4127 = vmatpush2.bf16.msra.mxu0 %v3851
        %4128 = vmatprep.subr.bf16.mxu0 %v3844
        %4129 = vmatpush2.bf16.msra.mxu0 %v3843
        %4130 = vmatprep.subr.bf16.mxu0 %v3836
        %4131 = vmatpush2.bf16.msra.mxu0 %v3835
        %4132 = vmatprep.subr.bf16.mxu0 %v3828
        %4133 = vmatpush2.bf16.msra.mxu0 %v3827
        %4134 = vmatprep.subr.bf16.mxu0 %v3820
        %4135 = vmatpush2.bf16.msra.mxu0 %v3819
        %4136 = vmatprep.subr.bf16.mxu0 %v3812
        %4137 = vmatpush2.bf16.msra.mxu0 %v3811
        %4138 = vmatprep.subr.bf16.mxu0 %v3804
        %4139 = vmatpush2.bf16.msra.mxu0 %v3803
        %4140 = vmatprep.subr.bf16.mxu0 %v3796
        %4141 = vmatpush2.bf16.msra.mxu0 %v3795
        %4142 = vmatprep.mubr.bf16.mxu0 0
        %4143 = vmatmul.mubr.bf16.gmra.mxu0 0
        %v4144 = vpop.f32.mrf.mxu0
        %v4145 = vadd.f32 0.0, %v4144
        %v4146 = vpop.f32.mrf.mxu0
        %v4147 = vadd.f32 0.0, %v4146
        %v4148 = vpop.f32.mrf.mxu0
        %v4149 = vadd.f32 0.0, %v4148
        %v4150 = vpop.f32.mrf.mxu0
        %v4151 = vadd.f32 0.0, %v4150
        %4152 = vdwg.mxu0
        %v4153 = vadd.f32 %v3325, %v4016
        %v4154 = vadd.f32 %v3326, %v4018
        %v4155 = vadd.f32 %v3327, %v4059
        %v4156 = vadd.f32 %v3328, %v4061
        %v4157 = vadd.f32 %v3329, %v4102
        %v4158 = vadd.f32 %v3330, %v4104
        %v4159 = vadd.f32 %v3331, %v4145
        %v4160 = vadd.f32 %v3332, %v4147
        %v4161 = vadd.f32 %v3333, %v4020
        %v4162 = vadd.f32 %v3334, %v4022
        %v4163 = vadd.f32 %v3335, %v4063
        %v4164 = vadd.f32 %v3336, %v4065
        %v4165 = vadd.f32 %v3337, %v4106
        %v4166 = vadd.f32 %v3338, %v4108
        %v4167 = vadd.f32 %v3339, %v4149
        %v4168 = vadd.f32 %v3340, %v4151
        %v4169 = vxor.u32 %v4153, 2147483648
        %v4170 = vxor.u32 %v4154, 2147483648
        %v4171 = vxor.u32 %v4161, 2147483648
        %v4172 = vxor.u32 %v4162, 2147483648
        %v4173 = vmul.f32 %v4169, 1.442695
        %v4174 = vpow.pop %v4173
        %v4175 = vmul.f32 %v4170, 1.442695
        %v4176 = vpow.pop %v4175
        %v4177 = vmul.f32 %v4171, 1.442695
        %v4178 = vpow.pop %v4177
        %v4179 = vmul.f32 %v4172, 1.442695
        %v4180 = vpow.pop %v4179
        %v4181 = vadd.f32 %v4174, 1.0
        %v4182 = vadd.f32 %v4176, 1.0
        %v4183 = vadd.f32 %v4178, 1.0
        %v4184 = vadd.f32 %v4180, 1.0
        %v4185 = vrcp.pop %v4181
        %v4186 = vmul.f32 1.0, %v4185
        %v4187 = vrcp.pop %v4182
        %v4188 = vmul.f32 1.0, %v4187
        %v4189 = vrcp.pop %v4183
        %v4190 = vmul.f32 1.0, %v4189
        %v4191 = vrcp.pop %v4184
        %v4192 = vmul.f32 1.0, %v4191
        %v4193 = vxor.u32 %v4155, 2147483648
        %v4194 = vxor.u32 %v4156, 2147483648
        %v4195 = vxor.u32 %v4163, 2147483648
        %v4196 = vxor.u32 %v4164, 2147483648
        %v4197 = vmul.f32 %v4193, 1.442695
        %v4198 = vpow.pop %v4197
        %v4199 = vmul.f32 %v4194, 1.442695
        %v4200 = vpow.pop %v4199
        %v4201 = vmul.f32 %v4195, 1.442695
        %v4202 = vpow.pop %v4201
        %v4203 = vmul.f32 %v4196, 1.442695
        %v4204 = vpow.pop %v4203
        %v4205 = vadd.f32 %v4198, 1.0
        %v4206 = vadd.f32 %v4200, 1.0
        %v4207 = vadd.f32 %v4202, 1.0
        %v4208 = vadd.f32 %v4204, 1.0
        %v4209 = vrcp.pop %v4205
        %v4210 = vmul.f32 1.0, %v4209
        %v4211 = vrcp.pop %v4206
        %v4212 = vmul.f32 1.0, %v4211
        %v4213 = vrcp.pop %v4207
        %v4214 = vmul.f32 1.0, %v4213
        %v4215 = vrcp.pop %v4208
        %v4216 = vmul.f32 1.0, %v4215
        %v4217 = vtanh.pop %v4157
        %v4218 = vtanh.pop %v4158
        %v4219 = vtanh.pop %v4165
        %v4220 = vtanh.pop %v4166
        %v4221 = vxor.u32 %v4159, 2147483648
        %v4222 = vxor.u32 %v4160, 2147483648
        %v4223 = vxor.u32 %v4167, 2147483648
        %v4224 = vxor.u32 %v4168, 2147483648
        %v4225 = vmul.f32 %v4221, 1.442695
        %v4226 = vpow.pop %v4225
        %v4227 = vmul.f32 %v4222, 1.442695
        %v4228 = vpow.pop %v4227
        %v4229 = vmul.f32 %v4223, 1.442695
        %v4230 = vpow.pop %v4229
        %v4231 = vmul.f32 %v4224, 1.442695
        %v4232 = vpow.pop %v4231
        %v4233 = vadd.f32 %v4226, 1.0
        %v4234 = vadd.f32 %v4228, 1.0
        %v4235 = vadd.f32 %v4230, 1.0
        %v4236 = vadd.f32 %v4232, 1.0
        %v4237 = vrcp.pop %v4233
        %v4238 = vmul.f32 1.0, %v4237
        %v4239 = vrcp.pop %v4234
        %v4240 = vmul.f32 1.0, %v4239
        %v4241 = vrcp.pop %v4235
        %v4242 = vmul.f32 1.0, %v4241
        %v4243 = vrcp.pop %v4236
        %v4244 = vmul.f32 1.0, %v4243
        %v4245 = vmul.f32 %v4210, 0.0
        %v4246 = vmul.f32 %v4212, 0.0
        %v4247 = vmul.f32 %v4214, 0.0
        %v4248 = vmul.f32 %v4216, 0.0
        %v4249 = vmul.f32 %v4186, %v4217
        %v4250 = vmul.f32 %v4188, %v4218
        %v4251 = vmul.f32 %v4190, %v4219
        %v4252 = vmul.f32 %v4192, %v4220
        %v4253 = vadd.f32 %v4245, %v4249
        %v4254 = vadd.f32 %v4246, %v4250
        %v4255 = vadd.f32 %v4247, %v4251
        %v4256 = vadd.f32 %v4248, %v4252
        %v4257 = vtanh.pop %v4253
        %v4258 = vtanh.pop %v4254
        %v4259 = vtanh.pop %v4255
        %v4260 = vtanh.pop %v4256
        %v4261 = vmul.f32 %v4238, %v4257
        %v4262 = vmul.f32 %v4240, %v4258
        %v4263 = vmul.f32 %v4242, %v4259
        %v4264 = vmul.f32 %v4244, %v4260
        // Predicated region
        $region61: #{tpu_custom_call.1} parent=35 // pred_check
          %p4265 = pneg %p3324
        $region62: #{tpu_custom_call.1} parent=35 // pred_check_branch
          %4267 = sbr.rel (%p4265) target = $region64
        $region63: #{tpu_custom_call.1} parent=35 // pred_region
          %v4268 = vpack.c.bf16 %v4263, %v4261
          %v4269 = vpack.c.bf16 %v4264, %v4262
          %v4272 = vunpack.c.l.b16 %v4268
          %v4273 = vunpack.c.l.b16 %v4269
          %v4274 = vunpack.c.h.b16 %v4268
          %v4275 = vunpack.c.h.b16 %v4269
          %v4276 = vpack.c.b16 %v4273, %v4272
          %v4277 = vpack.c.b16 %v4275, %v4274
          %4280 = vst [vmem:[#allocation2] sm:$0xff] %v4276
          %4281 = vst [vmem:[#allocation2 + $0x8] sm:$0xff] %v4277
        $region64: #{tpu_custom_call.1} parent=35 // pred_fallthru
          _
        %s4282 = scalar_lea.vmem [#allocation3], 128
        %v4283 = vld [vmem:[%s4282] sm:$0xff]
        %v4284 = vld [vmem:[%s4282 + $0x8] sm:$0xff]
        %v4285 = vld [vmem:[%s4282 + $0x10] sm:$0xff]
        %v4286 = vld [vmem:[%s4282 + $0x18] sm:$0xff]
        %v4287 = vld [vmem:[%s4282 + $0x20] sm:$0xff]
        %v4288 = vld [vmem:[%s4282 + $0x28] sm:$0xff]
        %v4289 = vld [vmem:[%s4282 + $0x30] sm:$0xff]
        %v4290 = vld [vmem:[%s4282 + $0x38] sm:$0xff]
        %v4291 = vld [vmem:[%s4282 + $0x40] sm:$0xff]
        %v4292 = vld [vmem:[%s4282 + $0x48] sm:$0xff]
        %v4293 = vld [vmem:[%s4282 + $0x50] sm:$0xff]
        %v4294 = vld [vmem:[%s4282 + $0x58] sm:$0xff]
        %v4295 = vld [vmem:[%s4282 + $0x60] sm:$0xff]
        %v4296 = vld [vmem:[%s4282 + $0x68] sm:$0xff]
        %v4297 = vld [vmem:[%s4282 + $0x70] sm:$0xff]
        %v4298 = vld [vmem:[%s4282 + $0x78] sm:$0xff]
        %v4299 = vpack.c.bf16 %v4263, %v4261
        %v4300 = vpack.c.bf16 %v4264, %v4262
        %4301 = vmatprep.subr.bf16.mxu0 %v3782
        %4302 = vmatpush1.bf16.msra.mxu0 %v3781
        %4303 = vmatprep.subr.bf16.mxu0 %v3774
        %4304 = vmatpush1.bf16.msra.mxu0 %v3773
        %4305 = vmatprep.subr.bf16.mxu0 %v3766
        %4306 = vmatpush1.bf16.msra.mxu0 %v3765
        %4307 = vmatprep.subr.bf16.mxu0 %v3758
        %4308 = vmatpush1.bf16.msra.mxu0 %v3757
        %4309 = vmatprep.subr.bf16.mxu0 %v3750
        %4310 = vmatpush1.bf16.msra.mxu0 %v3749
        %4311 = vmatprep.subr.bf16.mxu0 %v3742
        %4312 = vmatpush1.bf16.msra.mxu0 %v3741
        %4313 = vmatprep.subr.bf16.mxu0 %v3734
        %4314 = vmatpush1.bf16.msra.mxu0 %v3733
        %4315 = vmatprep.subr.bf16.mxu0 %v3726
        %4316 = vmatpush1.bf16.msra.mxu0 %v3725
        %4317 = vmatprep.subr.bf16.mxu0 %v3846
        %4318 = vmatpush2.bf16.msra.mxu0 %v3845
        %4319 = vmatprep.subr.bf16.mxu0 %v3838
        %4320 = vmatpush2.bf16.msra.mxu0 %v3837
        %4321 = vmatprep.subr.bf16.mxu0 %v3830
        %4322 = vmatpush2.bf16.msra.mxu0 %v3829
        %4323 = vmatprep.subr.bf16.mxu0 %v3822
        %4324 = vmatpush2.bf16.msra.mxu0 %v3821
        %4325 = vmatprep.subr.bf16.mxu0 %v3814
        %4326 = vmatpush2.bf16.msra.mxu0 %v3813
        %4327 = vmatprep.subr.bf16.mxu0 %v3806
        %4328 = vmatpush2.bf16.msra.mxu0 %v3805
        %4329 = vmatprep.subr.bf16.mxu0 %v3798
        %4330 = vmatpush2.bf16.msra.mxu0 %v3797
        %4331 = vmatprep.subr.bf16.mxu0 %v3790
        %4332 = vmatpush2.bf16.msra.mxu0 %v3789
        %4333 = vmatprep.mubr.bf16.mxu0 %v4300
        %4334 = vmatmul.mubr.bf16.gmra.mxu0 %v4299
        %v4335 = vpop.f32.mrf.mxu0
        %v4336 = vadd.f32 0.0, %v4335
        %v4337 = vpop.f32.mrf.mxu0
        %v4338 = vadd.f32 0.0, %v4337
        %v4339 = vpop.f32.mrf.mxu0
        %v4340 = vadd.f32 0.0, %v4339
        %v4341 = vpop.f32.mrf.mxu0
        %v4342 = vadd.f32 0.0, %v4341
        %4343 = vdwg.mxu0
        %4344 = vmatprep.subr.bf16.mxu0 %v3784
        %4345 = vmatpush1.bf16.msra.mxu0 %v3783
        %4346 = vmatprep.subr.bf16.mxu0 %v3776
        %4347 = vmatpush1.bf16.msra.mxu0 %v3775
        %4348 = vmatprep.subr.bf16.mxu0 %v3768
        %4349 = vmatpush1.bf16.msra.mxu0 %v3767
        %4350 = vmatprep.subr.bf16.mxu0 %v3760
        %4351 = vmatpush1.bf16.msra.mxu0 %v3759
        %4352 = vmatprep.subr.bf16.mxu0 %v3752
        %4353 = vmatpush1.bf16.msra.mxu0 %v3751
        %4354 = vmatprep.subr.bf16.mxu0 %v3744
        %4355 = vmatpush1.bf16.msra.mxu0 %v3743
        %4356 = vmatprep.subr.bf16.mxu0 %v3736
        %4357 = vmatpush1.bf16.msra.mxu0 %v3735
        %4358 = vmatprep.subr.bf16.mxu0 %v3728
        %4359 = vmatpush1.bf16.msra.mxu0 %v3727
        %4360 = vmatprep.subr.bf16.mxu0 %v3848
        %4361 = vmatpush2.bf16.msra.mxu0 %v3847
        %4362 = vmatprep.subr.bf16.mxu0 %v3840
        %4363 = vmatpush2.bf16.msra.mxu0 %v3839
        %4364 = vmatprep.subr.bf16.mxu0 %v3832
        %4365 = vmatpush2.bf16.msra.mxu0 %v3831
        %4366 = vmatprep.subr.bf16.mxu0 %v3824
        %4367 = vmatpush2.bf16.msra.mxu0 %v3823
        %4368 = vmatprep.subr.bf16.mxu0 %v3816
        %4369 = vmatpush2.bf16.msra.mxu0 %v3815
        %4370 = vmatprep.subr.bf16.mxu0 %v3808
        %4371 = vmatpush2.bf16.msra.mxu0 %v3807
        %4372 = vmatprep.subr.bf16.mxu0 %v3800
        %4373 = vmatpush2.bf16.msra.mxu0 %v3799
        %4374 = vmatprep.subr.bf16.mxu0 %v3792
        %4375 = vmatpush2.bf16.msra.mxu0 %v3791
        %4376 = vmatprep.mubr.bf16.mxu0 %v4300
        %4377 = vmatmul.mubr.bf16.gmra.mxu0 %v4299
        %v4378 = vpop.f32.mrf.mxu0
        %v4379 = vadd.f32 0.0, %v4378
        %v4380 = vpop.f32.mrf.mxu0
        %v4381 = vadd.f32 0.0, %v4380
        %v4382 = vpop.f32.mrf.mxu0
        %v4383 = vadd.f32 0.0, %v4382
        %v4384 = vpop.f32.mrf.mxu0
        %v4385 = vadd.f32 0.0, %v4384
        %4386 = vdwg.mxu0
        %4387 = vmatprep.subr.bf16.mxu0 %v3786
        %4388 = vmatpush1.bf16.msra.mxu0 %v3785
        %4389 = vmatprep.subr.bf16.mxu0 %v3778
        %4390 = vmatpush1.bf16.msra.mxu0 %v3777
        %4391 = vmatprep.subr.bf16.mxu0 %v3770
        %4392 = vmatpush1.bf16.msra.mxu0 %v3769
        %4393 = vmatprep.subr.bf16.mxu0 %v3762
        %4394 = vmatpush1.bf16.msra.mxu0 %v3761
        %4395 = vmatprep.subr.bf16.mxu0 %v3754
        %4396 = vmatpush1.bf16.msra.mxu0 %v3753
        %4397 = vmatprep.subr.bf16.mxu0 %v3746
        %4398 = vmatpush1.bf16.msra.mxu0 %v3745
        %4399 = vmatprep.subr.bf16.mxu0 %v3738
        %4400 = vmatpush1.bf16.msra.mxu0 %v3737
        %4401 = vmatprep.subr.bf16.mxu0 %v3730
        %4402 = vmatpush1.bf16.msra.mxu0 %v3729
        %4403 = vmatprep.subr.bf16.mxu0 %v3850
        %4404 = vmatpush2.bf16.msra.mxu0 %v3849
        %4405 = vmatprep.subr.bf16.mxu0 %v3842
        %4406 = vmatpush2.bf16.msra.mxu0 %v3841
        %4407 = vmatprep.subr.bf16.mxu0 %v3834
        %4408 = vmatpush2.bf16.msra.mxu0 %v3833
        %4409 = vmatprep.subr.bf16.mxu0 %v3826
        %4410 = vmatpush2.bf16.msra.mxu0 %v3825
        %4411 = vmatprep.subr.bf16.mxu0 %v3818
        %4412 = vmatpush2.bf16.msra.mxu0 %v3817
        %4413 = vmatprep.subr.bf16.mxu0 %v3810
        %4414 = vmatpush2.bf16.msra.mxu0 %v3809
        %4415 = vmatprep.subr.bf16.mxu0 %v3802
        %4416 = vmatpush2.bf16.msra.mxu0 %v3801
        %4417 = vmatprep.subr.bf16.mxu0 %v3794
        %4418 = vmatpush2.bf16.msra.mxu0 %v3793
        %4419 = vmatprep.mubr.bf16.mxu0 %v4300
        %4420 = vmatmul.mubr.bf16.gmra.mxu0 %v4299
        %v4421 = vpop.f32.mrf.mxu0
        %v4422 = vadd.f32 0.0, %v4421
        %v4423 = vpop.f32.mrf.mxu0
        %v4424 = vadd.f32 0.0, %v4423
        %v4425 = vpop.f32.mrf.mxu0
        %v4426 = vadd.f32 0.0, %v4425
        %v4427 = vpop.f32.mrf.mxu0
        %v4428 = vadd.f32 0.0, %v4427
        %4429 = vdwg.mxu0
        %4430 = vmatprep.subr.bf16.mxu0 %v3788
        %4431 = vmatpush1.bf16.msra.mxu0 %v3787
        %4432 = vmatprep.subr.bf16.mxu0 %v3780
        %4433 = vmatpush1.bf16.msra.mxu0 %v3779
        %4434 = vmatprep.subr.bf16.mxu0 %v3772
        %4435 = vmatpush1.bf16.msra.mxu0 %v3771
        %4436 = vmatprep.subr.bf16.mxu0 %v3764
        %4437 = vmatpush1.bf16.msra.mxu0 %v3763
        %4438 = vmatprep.subr.bf16.mxu0 %v3756
        %4439 = vmatpush1.bf16.msra.mxu0 %v3755
        %4440 = vmatprep.subr.bf16.mxu0 %v3748
        %4441 = vmatpush1.bf16.msra.mxu0 %v3747
        %4442 = vmatprep.subr.bf16.mxu0 %v3740
        %4443 = vmatpush1.bf16.msra.mxu0 %v3739
        %4444 = vmatprep.subr.bf16.mxu0 %v3732
        %4445 = vmatpush1.bf16.msra.mxu0 %v3731
        %4446 = vmatprep.subr.bf16.mxu0 %v3852
        %4447 = vmatpush2.bf16.msra.mxu0 %v3851
        %4448 = vmatprep.subr.bf16.mxu0 %v3844
        %4449 = vmatpush2.bf16.msra.mxu0 %v3843
        %4450 = vmatprep.subr.bf16.mxu0 %v3836
        %4451 = vmatpush2.bf16.msra.mxu0 %v3835
        %4452 = vmatprep.subr.bf16.mxu0 %v3828
        %4453 = vmatpush2.bf16.msra.mxu0 %v3827
        %4454 = vmatprep.subr.bf16.mxu0 %v3820
        %4455 = vmatpush2.bf16.msra.mxu0 %v3819
        %4456 = vmatprep.subr.bf16.mxu0 %v3812
        %4457 = vmatpush2.bf16.msra.mxu0 %v3811
        %4458 = vmatprep.subr.bf16.mxu0 %v3804
        %4459 = vmatpush2.bf16.msra.mxu0 %v3803
        %4460 = vmatprep.subr.bf16.mxu0 %v3796
        %4461 = vmatpush2.bf16.msra.mxu0 %v3795
        %4462 = vmatprep.mubr.bf16.mxu0 %v4300
        %4463 = vmatmul.mubr.bf16.gmra.mxu0 %v4299
        %v4464 = vpop.f32.mrf.mxu0
        %v4465 = vadd.f32 0.0, %v4464
        %v4466 = vpop.f32.mrf.mxu0
        %v4467 = vadd.f32 0.0, %v4466
        %v4468 = vpop.f32.mrf.mxu0
        %v4469 = vadd.f32 0.0, %v4468
        %v4470 = vpop.f32.mrf.mxu0
        %v4471 = vadd.f32 0.0, %v4470
        %4472 = vdwg.mxu0
        %v4473 = vadd.f32 %v4283, %v4336
        %v4474 = vadd.f32 %v4284, %v4338
        %v4475 = vadd.f32 %v4285, %v4379
        %v4476 = vadd.f32 %v4286, %v4381
        %v4477 = vadd.f32 %v4287, %v4422
        %v4478 = vadd.f32 %v4288, %v4424
        %v4479 = vadd.f32 %v4289, %v4465
        %v4480 = vadd.f32 %v4290, %v4467
        %v4481 = vadd.f32 %v4291, %v4340
        %v4482 = vadd.f32 %v4292, %v4342
        %v4483 = vadd.f32 %v4293, %v4383
        %v4484 = vadd.f32 %v4294, %v4385
        %v4485 = vadd.f32 %v4295, %v4426
        %v4486 = vadd.f32 %v4296, %v4428
        %v4487 = vadd.f32 %v4297, %v4469
        %v4488 = vadd.f32 %v4298, %v4471
        %v4489 = vxor.u32 %v4473, 2147483648
        %v4490 = vxor.u32 %v4474, 2147483648
        %v4491 = vxor.u32 %v4481, 2147483648
        %v4492 = vxor.u32 %v4482, 2147483648
        %v4493 = vmul.f32 %v4489, 1.442695
        %v4494 = vpow.pop %v4493
        %v4495 = vmul.f32 %v4490, 1.442695
        %v4496 = vpow.pop %v4495
        %v4497 = vmul.f32 %v4491, 1.442695
        %v4498 = vpow.pop %v4497
        %v4499 = vmul.f32 %v4492, 1.442695
        %v4500 = vpow.pop %v4499
        %v4501 = vadd.f32 %v4494, 1.0
        %v4502 = vadd.f32 %v4496, 1.0
        %v4503 = vadd.f32 %v4498, 1.0
        %v4504 = vadd.f32 %v4500, 1.0
        %v4505 = vrcp.pop %v4501
        %v4506 = vmul.f32 1.0, %v4505
        %v4507 = vrcp.pop %v4502
        %v4508 = vmul.f32 1.0, %v4507
        %v4509 = vrcp.pop %v4503
        %v4510 = vmul.f32 1.0, %v4509
        %v4511 = vrcp.pop %v4504
        %v4512 = vmul.f32 1.0, %v4511
        %v4513 = vxor.u32 %v4475, 2147483648
        %v4514 = vxor.u32 %v4476, 2147483648
        %v4515 = vxor.u32 %v4483, 2147483648
        %v4516 = vxor.u32 %v4484, 2147483648
        %v4517 = vmul.f32 %v4513, 1.442695
        %v4518 = vpow.pop %v4517
        %v4519 = vmul.f32 %v4514, 1.442695
        %v4520 = vpow.pop %v4519
        %v4521 = vmul.f32 %v4515, 1.442695
        %v4522 = vpow.pop %v4521
        %v4523 = vmul.f32 %v4516, 1.442695
        %v4524 = vpow.pop %v4523
        %v4525 = vadd.f32 %v4518, 1.0
        %v4526 = vadd.f32 %v4520, 1.0
        %v4527 = vadd.f32 %v4522, 1.0
        %v4528 = vadd.f32 %v4524, 1.0
        %v4529 = vrcp.pop %v4525
        %v4530 = vmul.f32 1.0, %v4529
        %v4531 = vrcp.pop %v4526
        %v4532 = vmul.f32 1.0, %v4531
        %v4533 = vrcp.pop %v4527
        %v4534 = vmul.f32 1.0, %v4533
        %v4535 = vrcp.pop %v4528
        %v4536 = vmul.f32 1.0, %v4535
        %v4537 = vtanh.pop %v4477
        %v4538 = vtanh.pop %v4478
        %v4539 = vtanh.pop %v4485
        %v4540 = vtanh.pop %v4486
        %v4541 = vxor.u32 %v4479, 2147483648
        %v4542 = vxor.u32 %v4480, 2147483648
        %v4543 = vxor.u32 %v4487, 2147483648
        %v4544 = vxor.u32 %v4488, 2147483648
        %v4545 = vmul.f32 %v4541, 1.442695
        %v4546 = vpow.pop %v4545
        %v4547 = vmul.f32 %v4542, 1.442695
        %v4548 = vpow.pop %v4547
        %v4549 = vmul.f32 %v4543, 1.442695
        %v4550 = vpow.pop %v4549
        %v4551 = vmul.f32 %v4544, 1.442695
        %v4552 = vpow.pop %v4551
        %v4553 = vadd.f32 %v4546, 1.0
        %v4554 = vadd.f32 %v4548, 1.0
        %v4555 = vadd.f32 %v4550, 1.0
        %v4556 = vadd.f32 %v4552, 1.0
        %v4557 = vrcp.pop %v4553
        %v4558 = vmul.f32 1.0, %v4557
        %v4559 = vrcp.pop %v4554
        %v4560 = vmul.f32 1.0, %v4559
        %v4561 = vrcp.pop %v4555
        %v4562 = vmul.f32 1.0, %v4561
        %v4563 = vrcp.pop %v4556
        %v4564 = vmul.f32 1.0, %v4563
        %v4565 = vmul.f32 %v4530, %v4253
        %v4566 = vmul.f32 %v4532, %v4254
        %v4567 = vmul.f32 %v4534, %v4255
        %v4568 = vmul.f32 %v4536, %v4256
        %v4569 = vmul.f32 %v4506, %v4537
        %v4570 = vmul.f32 %v4508, %v4538
        %v4571 = vmul.f32 %v4510, %v4539
        %v4572 = vmul.f32 %v4512, %v4540
        %v4573 = vadd.f32 %v4565, %v4569
        %v4574 = vadd.f32 %v4566, %v4570
        %v4575 = vadd.f32 %v4567, %v4571
        %v4576 = vadd.f32 %v4568, %v4572
        %v4577 = vtanh.pop %v4573
        %v4578 = vtanh.pop %v4574
        %v4579 = vtanh.pop %v4575
        %v4580 = vtanh.pop %v4576
        %v4581 = vmul.f32 %v4558, %v4577
        %v4582 = vmul.f32 %v4560, %v4578
        %v4583 = vmul.f32 %v4562, %v4579
        %v4584 = vmul.f32 %v4564, %v4580
        // Predicated region
        $region65: #{tpu_custom_call.1} parent=35 // pred_check
          %p4585 = pneg %p3324
        $region66: #{tpu_custom_call.1} parent=35 // pred_check_branch
          %4587 = sbr.rel (%p4585) target = $region68
        $region67: #{tpu_custom_call.1} parent=35 // pred_region
          %v4588 = vpack.c.bf16 %v4583, %v4581
          %v4589 = vpack.c.bf16 %v4584, %v4582
          %v4592 = vunpack.c.l.b16 %v4588
          %v4593 = vunpack.c.l.b16 %v4589
          %v4594 = vunpack.c.h.b16 %v4588
          %v4595 = vunpack.c.h.b16 %v4589
          %v4596 = vpack.c.b16 %v4593, %v4592
          %v4597 = vpack.c.b16 %v4595, %v4594
          %s4600 = scalar_lea.vmem [#allocation2], 16
          %4601 = vst [vmem:[%s4600] sm:$0xff] %v4596
          %4602 = vst [vmem:[%s4600 + $0x8] sm:$0xff] %v4597
        $region68: #{tpu_custom_call.1} parent=35 // pred_fallthru
          _
        %s4603 = scalar_lea.vmem [#allocation3], 256
        %v4604 = vld [vmem:[%s4603] sm:$0xff]
        %v4605 = vld [vmem:[%s4603 + $0x8] sm:$0xff]
        %v4606 = vld [vmem:[%s4603 + $0x10] sm:$0xff]
        %v4607 = vld [vmem:[%s4603 + $0x18] sm:$0xff]
        %v4608 = vld [vmem:[%s4603 + $0x20] sm:$0xff]
        %v4609 = vld [vmem:[%s4603 + $0x28] sm:$0xff]
        %v4610 = vld [vmem:[%s4603 + $0x30] sm:$0xff]
        %v4611 = vld [vmem:[%s4603 + $0x38] sm:$0xff]
        %v4612 = vld [vmem:[%s4603 + $0x40] sm:$0xff]
        %v4613 = vld [vmem:[%s4603 + $0x48] sm:$0xff]
        %v4614 = vld [vmem:[%s4603 + $0x50] sm:$0xff]
        %v4615 = vld [vmem:[%s4603 + $0x58] sm:$0xff]
        %v4616 = vld [vmem:[%s4603 + $0x60] sm:$0xff]
        %v4617 = vld [vmem:[%s4603 + $0x68] sm:$0xff]
        %v4618 = vld [vmem:[%s4603 + $0x70] sm:$0xff]
        %v4619 = vld [vmem:[%s4603 + $0x78] sm:$0xff]
        %v4620 = vpack.c.bf16 %v4583, %v4581
        %v4621 = vpack.c.bf16 %v4584, %v4582
        %4622 = vmatprep.subr.bf16.mxu0 %v3782
        %4623 = vmatpush1.bf16.msra.mxu0 %v3781
        %4624 = vmatprep.subr.bf16.mxu0 %v3774
        %4625 = vmatpush1.bf16.msra.mxu0 %v3773
        %4626 = vmatprep.subr.bf16.mxu0 %v3766
        %4627 = vmatpush1.bf16.msra.mxu0 %v3765
        %4628 = vmatprep.subr.bf16.mxu0 %v3758
        %4629 = vmatpush1.bf16.msra.mxu0 %v3757
        %4630 = vmatprep.subr.bf16.mxu0 %v3750
        %4631 = vmatpush1.bf16.msra.mxu0 %v3749
        %4632 = vmatprep.subr.bf16.mxu0 %v3742
        %4633 = vmatpush1.bf16.msra.mxu0 %v3741
        %4634 = vmatprep.subr.bf16.mxu0 %v3734
        %4635 = vmatpush1.bf16.msra.mxu0 %v3733
        %4636 = vmatprep.subr.bf16.mxu0 %v3726
        %4637 = vmatpush1.bf16.msra.mxu0 %v3725
        %4638 = vmatprep.subr.bf16.mxu0 %v3846
        %4639 = vmatpush2.bf16.msra.mxu0 %v3845
        %4640 = vmatprep.subr.bf16.mxu0 %v3838
        %4641 = vmatpush2.bf16.msra.mxu0 %v3837
        %4642 = vmatprep.subr.bf16.mxu0 %v3830
        %4643 = vmatpush2.bf16.msra.mxu0 %v3829
        %4644 = vmatprep.subr.bf16.mxu0 %v3822
        %4645 = vmatpush2.bf16.msra.mxu0 %v3821
        %4646 = vmatprep.subr.bf16.mxu0 %v3814
        %4647 = vmatpush2.bf16.msra.mxu0 %v3813
        %4648 = vmatprep.subr.bf16.mxu0 %v3806
        %4649 = vmatpush2.bf16.msra.mxu0 %v3805
        %4650 = vmatprep.subr.bf16.mxu0 %v3798
        %4651 = vmatpush2.bf16.msra.mxu0 %v3797
        %4652 = vmatprep.subr.bf16.mxu0 %v3790
        %4653 = vmatpush2.bf16.msra.mxu0 %v3789
        %4654 = vmatprep.mubr.bf16.mxu0 %v4621
        %4655 = vmatmul.mubr.bf16.gmra.mxu0 %v4620
        %v4656 = vpop.f32.mrf.mxu0
        %v4657 = vadd.f32 0.0, %v4656
        %v4658 = vpop.f32.mrf.mxu0
        %v4659 = vadd.f32 0.0, %v4658
        %v4660 = vpop.f32.mrf.mxu0
        %v4661 = vadd.f32 0.0, %v4660
        %v4662 = vpop.f32.mrf.mxu0
        %v4663 = vadd.f32 0.0, %v4662
        %4664 = vdwg.mxu0
        %4665 = vmatprep.subr.bf16.mxu0 %v3784
        %4666 = vmatpush1.bf16.msra.mxu0 %v3783
        %4667 = vmatprep.subr.bf16.mxu0 %v3776
        %4668 = vmatpush1.bf16.msra.mxu0 %v3775
        %4669 = vmatprep.subr.bf16.mxu0 %v3768
        %4670 = vmatpush1.bf16.msra.mxu0 %v3767
        %4671 = vmatprep.subr.bf16.mxu0 %v3760
        %4672 = vmatpush1.bf16.msra.mxu0 %v3759
        %4673 = vmatprep.subr.bf16.mxu0 %v3752
        %4674 = vmatpush1.bf16.msra.mxu0 %v3751
        %4675 = vmatprep.subr.bf16.mxu0 %v3744
        %4676 = vmatpush1.bf16.msra.mxu0 %v3743
        %4677 = vmatprep.subr.bf16.mxu0 %v3736
        %4678 = vmatpush1.bf16.msra.mxu0 %v3735
        %4679 = vmatprep.subr.bf16.mxu0 %v3728
        %4680 = vmatpush1.bf16.msra.mxu0 %v3727
        %4681 = vmatprep.subr.bf16.mxu0 %v3848
        %4682 = vmatpush2.bf16.msra.mxu0 %v3847
        %4683 = vmatprep.subr.bf16.mxu0 %v3840
        %4684 = vmatpush2.bf16.msra.mxu0 %v3839
        %4685 = vmatprep.subr.bf16.mxu0 %v3832
        %4686 = vmatpush2.bf16.msra.mxu0 %v3831
        %4687 = vmatprep.subr.bf16.mxu0 %v3824
        %4688 = vmatpush2.bf16.msra.mxu0 %v3823
        %4689 = vmatprep.subr.bf16.mxu0 %v3816
        %4690 = vmatpush2.bf16.msra.mxu0 %v3815
        %4691 = vmatprep.subr.bf16.mxu0 %v3808
        %4692 = vmatpush2.bf16.msra.mxu0 %v3807
        %4693 = vmatprep.subr.bf16.mxu0 %v3800
        %4694 = vmatpush2.bf16.msra.mxu0 %v3799
        %4695 = vmatprep.subr.bf16.mxu0 %v3792
        %4696 = vmatpush2.bf16.msra.mxu0 %v3791
        %4697 = vmatprep.mubr.bf16.mxu0 %v4621
        %4698 = vmatmul.mubr.bf16.gmra.mxu0 %v4620
        %v4699 = vpop.f32.mrf.mxu0
        %v4700 = vadd.f32 0.0, %v4699
        %v4701 = vpop.f32.mrf.mxu0
        %v4702 = vadd.f32 0.0, %v4701
        %v4703 = vpop.f32.mrf.mxu0
        %v4704 = vadd.f32 0.0, %v4703
        %v4705 = vpop.f32.mrf.mxu0
        %v4706 = vadd.f32 0.0, %v4705
        %4707 = vdwg.mxu0
        %4708 = vmatprep.subr.bf16.mxu0 %v3786
        %4709 = vmatpush1.bf16.msra.mxu0 %v3785
        %4710 = vmatprep.subr.bf16.mxu0 %v3778
        %4711 = vmatpush1.bf16.msra.mxu0 %v3777
        %4712 = vmatprep.subr.bf16.mxu0 %v3770
        %4713 = vmatpush1.bf16.msra.mxu0 %v3769
        %4714 = vmatprep.subr.bf16.mxu0 %v3762
        %4715 = vmatpush1.bf16.msra.mxu0 %v3761
        %4716 = vmatprep.subr.bf16.mxu0 %v3754
        %4717 = vmatpush1.bf16.msra.mxu0 %v3753
        %4718 = vmatprep.subr.bf16.mxu0 %v3746
        %4719 = vmatpush1.bf16.msra.mxu0 %v3745
        %4720 = vmatprep.subr.bf16.mxu0 %v3738
        %4721 = vmatpush1.bf16.msra.mxu0 %v3737
        %4722 = vmatprep.subr.bf16.mxu0 %v3730
        %4723 = vmatpush1.bf16.msra.mxu0 %v3729
        %4724 = vmatprep.subr.bf16.mxu0 %v3850
        %4725 = vmatpush2.bf16.msra.mxu0 %v3849
        %4726 = vmatprep.subr.bf16.mxu0 %v3842
        %4727 = vmatpush2.bf16.msra.mxu0 %v3841
        %4728 = vmatprep.subr.bf16.mxu0 %v3834
        %4729 = vmatpush2.bf16.msra.mxu0 %v3833
        %4730 = vmatprep.subr.bf16.mxu0 %v3826
        %4731 = vmatpush2.bf16.msra.mxu0 %v3825
        %4732 = vmatprep.subr.bf16.mxu0 %v3818
        %4733 = vmatpush2.bf16.msra.mxu0 %v3817
        %4734 = vmatprep.subr.bf16.mxu0 %v3810
        %4735 = vmatpush2.bf16.msra.mxu0 %v3809
        %4736 = vmatprep.subr.bf16.mxu0 %v3802
        %4737 = vmatpush2.bf16.msra.mxu0 %v3801
        %4738 = vmatprep.subr.bf16.mxu0 %v3794
        %4739 = vmatpush2.bf16.msra.mxu0 %v3793
        %4740 = vmatprep.mubr.bf16.mxu0 %v4621
        %4741 = vmatmul.mubr.bf16.gmra.mxu0 %v4620
        %v4742 = vpop.f32.mrf.mxu0
        %v4743 = vadd.f32 0.0, %v4742
        %v4744 = vpop.f32.mrf.mxu0
        %v4745 = vadd.f32 0.0, %v4744
        %v4746 = vpop.f32.mrf.mxu0
        %v4747 = vadd.f32 0.0, %v4746
        %v4748 = vpop.f32.mrf.mxu0
        %v4749 = vadd.f32 0.0, %v4748
        %4750 = vdwg.mxu0
        %4751 = vmatprep.subr.bf16.mxu0 %v3788
        %4752 = vmatpush1.bf16.msra.mxu0 %v3787
        %4753 = vmatprep.subr.bf16.mxu0 %v3780
        %4754 = vmatpush1.bf16.msra.mxu0 %v3779
        %4755 = vmatprep.subr.bf16.mxu0 %v3772
        %4756 = vmatpush1.bf16.msra.mxu0 %v3771
        %4757 = vmatprep.subr.bf16.mxu0 %v3764
        %4758 = vmatpush1.bf16.msra.mxu0 %v3763
        %4759 = vmatprep.subr.bf16.mxu0 %v3756
        %4760 = vmatpush1.bf16.msra.mxu0 %v3755
        %4761 = vmatprep.subr.bf16.mxu0 %v3748
        %4762 = vmatpush1.bf16.msra.mxu0 %v3747
        %4763 = vmatprep.subr.bf16.mxu0 %v3740
        %4764 = vmatpush1.bf16.msra.mxu0 %v3739
        %4765 = vmatprep.subr.bf16.mxu0 %v3732
        %4766 = vmatpush1.bf16.msra.mxu0 %v3731
        %4767 = vmatprep.subr.bf16.mxu0 %v3852
        %4768 = vmatpush2.bf16.msra.mxu0 %v3851
        %4769 = vmatprep.subr.bf16.mxu0 %v3844
        %4770 = vmatpush2.bf16.msra.mxu0 %v3843
        %4771 = vmatprep.subr.bf16.mxu0 %v3836
        %4772 = vmatpush2.bf16.msra.mxu0 %v3835
        %4773 = vmatprep.subr.bf16.mxu0 %v3828
        %4774 = vmatpush2.bf16.msra.mxu0 %v3827
        %4775 = vmatprep.subr.bf16.mxu0 %v3820
        %4776 = vmatpush2.bf16.msra.mxu0 %v3819
        %4777 = vmatprep.subr.bf16.mxu0 %v3812
        %4778 = vmatpush2.bf16.msra.mxu0 %v3811
        %4779 = vmatprep.subr.bf16.mxu0 %v3804
        %4780 = vmatpush2.bf16.msra.mxu0 %v3803
        %4781 = vmatprep.subr.bf16.mxu0 %v3796
        %4782 = vmatpush2.bf16.msra.mxu0 %v3795
        %4783 = vmatprep.mubr.bf16.mxu0 %v4621
        %4784 = vmatmul.mubr.bf16.gmra.mxu0 %v4620
        %v4785 = vpop.f32.mrf.mxu0
        %v4786 = vadd.f32 0.0, %v4785
        %v4787 = vpop.f32.mrf.mxu0
        %v4788 = vadd.f32 0.0, %v4787
        %v4789 = vpop.f32.mrf.mxu0
        %v4790 = vadd.f32 0.0, %v4789
        %v4791 = vpop.f32.mrf.mxu0
        %v4792 = vadd.f32 0.0, %v4791
        %4793 = vdwg.mxu0
        %v4794 = vadd.f32 %v4604, %v4657
        %v4795 = vadd.f32 %v4605, %v4659
        %v4796 = vadd.f32 %v4606, %v4700
        %v4797 = vadd.f32 %v4607, %v4702
        %v4798 = vadd.f32 %v4608, %v4743
        %v4799 = vadd.f32 %v4609, %v4745
        %v4800 = vadd.f32 %v4610, %v4786
        %v4801 = vadd.f32 %v4611, %v4788
        %v4802 = vadd.f32 %v4612, %v4661
        %v4803 = vadd.f32 %v4613, %v4663
        %v4804 = vadd.f32 %v4614, %v4704
        %v4805 = vadd.f32 %v4615, %v4706
        %v4806 = vadd.f32 %v4616, %v4747
        %v4807 = vadd.f32 %v4617, %v4749
        %v4808 = vadd.f32 %v4618, %v4790
        %v4809 = vadd.f32 %v4619, %v4792
        %v4810 = vxor.u32 %v4794, 2147483648
        %v4811 = vxor.u32 %v4795, 2147483648
        %v4812 = vxor.u32 %v4802, 2147483648
        %v4813 = vxor.u32 %v4803, 2147483648
        %v4814 = vmul.f32 %v4810, 1.442695
        %v4815 = vpow.pop %v4814
        %v4816 = vmul.f32 %v4811, 1.442695
        %v4817 = vpow.pop %v4816
        %v4818 = vmul.f32 %v4812, 1.442695
        %v4819 = vpow.pop %v4818
        %v4820 = vmul.f32 %v4813, 1.442695
        %v4821 = vpow.pop %v4820
        %v4822 = vadd.f32 %v4815, 1.0
        %v4823 = vadd.f32 %v4817, 1.0
        %v4824 = vadd.f32 %v4819, 1.0
        %v4825 = vadd.f32 %v4821, 1.0
        %v4826 = vrcp.pop %v4822
        %v4827 = vmul.f32 1.0, %v4826
        %v4828 = vrcp.pop %v4823
        %v4829 = vmul.f32 1.0, %v4828
        %v4830 = vrcp.pop %v4824
        %v4831 = vmul.f32 1.0, %v4830
        %v4832 = vrcp.pop %v4825
        %v4833 = vmul.f32 1.0, %v4832
        %v4834 = vxor.u32 %v4796, 2147483648
        %v4835 = vxor.u32 %v4797, 2147483648
        %v4836 = vxor.u32 %v4804, 2147483648
        %v4837 = vxor.u32 %v4805, 2147483648
        %v4838 = vmul.f32 %v4834, 1.442695
        %v4839 = vpow.pop %v4838
        %v4840 = vmul.f32 %v4835, 1.442695
        %v4841 = vpow.pop %v4840
        %v4842 = vmul.f32 %v4836, 1.442695
        %v4843 = vpow.pop %v4842
        %v4844 = vmul.f32 %v4837, 1.442695
        %v4845 = vpow.pop %v4844
        %v4846 = vadd.f32 %v4839, 1.0
        %v4847 = vadd.f32 %v4841, 1.0
        %v4848 = vadd.f32 %v4843, 1.0
        %v4849 = vadd.f32 %v4845, 1.0
        %v4850 = vrcp.pop %v4846
        %v4851 = vmul.f32 1.0, %v4850
        %v4852 = vrcp.pop %v4847
        %v4853 = vmul.f32 1.0, %v4852
        %v4854 = vrcp.pop %v4848
        %v4855 = vmul.f32 1.0, %v4854
        %v4856 = vrcp.pop %v4849
        %v4857 = vmul.f32 1.0, %v4856
        %v4858 = vtanh.pop %v4798
        %v4859 = vtanh.pop %v4799
        %v4860 = vtanh.pop %v4806
        %v4861 = vtanh.pop %v4807
        %v4862 = vxor.u32 %v4800, 2147483648
        %v4863 = vxor.u32 %v4801, 2147483648
        %v4864 = vxor.u32 %v4808, 2147483648
        %v4865 = vxor.u32 %v4809, 2147483648
        %v4866 = vmul.f32 %v4862, 1.442695
        %v4867 = vpow.pop %v4866
        %v4868 = vmul.f32 %v4863, 1.442695
        %v4869 = vpow.pop %v4868
        %v4870 = vmul.f32 %v4864, 1.442695
        %v4871 = vpow.pop %v4870
        %v4872 = vmul.f32 %v4865, 1.442695
        %v4873 = vpow.pop %v4872
        %v4874 = vadd.f32 %v4867, 1.0
        %v4875 = vadd.f32 %v4869, 1.0
        %v4876 = vadd.f32 %v4871, 1.0
        %v4877 = vadd.f32 %v4873, 1.0
        %v4878 = vrcp.pop %v4874
        %v4879 = vmul.f32 1.0, %v4878
        %v4880 = vrcp.pop %v4875
        %v4881 = vmul.f32 1.0, %v4880
        %v4882 = vrcp.pop %v4876
        %v4883 = vmul.f32 1.0, %v4882
        %v4884 = vrcp.pop %v4877
        %v4885 = vmul.f32 1.0, %v4884
        %v4886 = vmul.f32 %v4851, %v4573
        %v4887 = vmul.f32 %v4853, %v4574
        %v4888 = vmul.f32 %v4855, %v4575
        %v4889 = vmul.f32 %v4857, %v4576
        %v4890 = vmul.f32 %v4827, %v4858
        %v4891 = vmul.f32 %v4829, %v4859
        %v4892 = vmul.f32 %v4831, %v4860
        %v4893 = vmul.f32 %v4833, %v4861
        %v4894 = vadd.f32 %v4886, %v4890
        %v4895 = vadd.f32 %v4887, %v4891
        %v4896 = vadd.f32 %v4888, %v4892
        %v4897 = vadd.f32 %v4889, %v4893
        %v4898 = vtanh.pop %v4894
        %v4899 = vtanh.pop %v4895
        %v4900 = vtanh.pop %v4896
        %v4901 = vtanh.pop %v4897
        %v4902 = vmul.f32 %v4879, %v4898
        %v4903 = vmul.f32 %v4881, %v4899
        %v4904 = vmul.f32 %v4883, %v4900
        %v4905 = vmul.f32 %v4885, %v4901
        // Predicated region
        $region69: #{tpu_custom_call.1} parent=35 // pred_check
          %p4906 = pneg %p3324
        $region70: #{tpu_custom_call.1} parent=35 // pred_check_branch
          %4908 = sbr.rel (%p4906) target = $region72
        $region71: #{tpu_custom_call.1} parent=35 // pred_region
          %v4909 = vpack.c.bf16 %v4904, %v4902
          %v4910 = vpack.c.bf16 %v4905, %v4903
          %v4913 = vunpack.c.l.b16 %v4909
          %v4914 = vunpack.c.l.b16 %v4910
          %v4915 = vunpack.c.h.b16 %v4909
          %v4916 = vunpack.c.h.b16 %v4910
          %v4917 = vpack.c.b16 %v4914, %v4913
          %v4918 = vpack.c.b16 %v4916, %v4915
          %s4921 = scalar_lea.vmem [#allocation2], 32
          %4922 = vst [vmem:[%s4921] sm:$0xff] %v4917
          %4923 = vst [vmem:[%s4921 + $0x8] sm:$0xff] %v4918
        $region72: #{tpu_custom_call.1} parent=35 // pred_fallthru
          _
        %s4924 = scalar_lea.vmem [#allocation3], 384
        %v4925 = vld [vmem:[%s4924] sm:$0xff]
        %v4926 = vld [vmem:[%s4924 + $0x8] sm:$0xff]
        %v4927 = vld [vmem:[%s4924 + $0x10] sm:$0xff]
        %v4928 = vld [vmem:[%s4924 + $0x18] sm:$0xff]
        %v4929 = vld [vmem:[%s4924 + $0x20] sm:$0xff]
        %v4930 = vld [vmem:[%s4924 + $0x28] sm:$0xff]
        %v4931 = vld [vmem:[%s4924 + $0x30] sm:$0xff]
        %v4932 = vld [vmem:[%s4924 + $0x38] sm:$0xff]
        %v4933 = vld [vmem:[%s4924 + $0x40] sm:$0xff]
        %v4934 = vld [vmem:[%s4924 + $0x48] sm:$0xff]
        %v4935 = vld [vmem:[%s4924 + $0x50] sm:$0xff]
        %v4936 = vld [vmem:[%s4924 + $0x58] sm:$0xff]
        %v4937 = vld [vmem:[%s4924 + $0x60] sm:$0xff]
        %v4938 = vld [vmem:[%s4924 + $0x68] sm:$0xff]
        %v4939 = vld [vmem:[%s4924 + $0x70] sm:$0xff]
        %v4940 = vld [vmem:[%s4924 + $0x78] sm:$0xff]
        %v4941 = vpack.c.bf16 %v4904, %v4902
        %v4942 = vpack.c.bf16 %v4905, %v4903
        %4943 = vmatprep.subr.bf16.mxu0 %v3782
        %4944 = vmatpush1.bf16.msra.mxu0 %v3781
        %4945 = vmatprep.subr.bf16.mxu0 %v3774
        %4946 = vmatpush1.bf16.msra.mxu0 %v3773
        %4947 = vmatprep.subr.bf16.mxu0 %v3766
        %4948 = vmatpush1.bf16.msra.mxu0 %v3765
        %4949 = vmatprep.subr.bf16.mxu0 %v3758
        %4950 = vmatpush1.bf16.msra.mxu0 %v3757
        %4951 = vmatprep.subr.bf16.mxu0 %v3750
        %4952 = vmatpush1.bf16.msra.mxu0 %v3749
        %4953 = vmatprep.subr.bf16.mxu0 %v3742
        %4954 = vmatpush1.bf16.msra.mxu0 %v3741
        %4955 = vmatprep.subr.bf16.mxu0 %v3734
        %4956 = vmatpush1.bf16.msra.mxu0 %v3733
        %4957 = vmatprep.subr.bf16.mxu0 %v3726
        %4958 = vmatpush1.bf16.msra.mxu0 %v3725
        %4959 = vmatprep.subr.bf16.mxu0 %v3846
        %4960 = vmatpush2.bf16.msra.mxu0 %v3845
        %4961 = vmatprep.subr.bf16.mxu0 %v3838
        %4962 = vmatpush2.bf16.msra.mxu0 %v3837
        %4963 = vmatprep.subr.bf16.mxu0 %v3830
        %4964 = vmatpush2.bf16.msra.mxu0 %v3829
        %4965 = vmatprep.subr.bf16.mxu0 %v3822
        %4966 = vmatpush2.bf16.msra.mxu0 %v3821
        %4967 = vmatprep.subr.bf16.mxu0 %v3814
        %4968 = vmatpush2.bf16.msra.mxu0 %v3813
        %4969 = vmatprep.subr.bf16.mxu0 %v3806
        %4970 = vmatpush2.bf16.msra.mxu0 %v3805
        %4971 = vmatprep.subr.bf16.mxu0 %v3798
        %4972 = vmatpush2.bf16.msra.mxu0 %v3797
        %4973 = vmatprep.subr.bf16.mxu0 %v3790
        %4974 = vmatpush2.bf16.msra.mxu0 %v3789
        %4975 = vmatprep.mubr.bf16.mxu0 %v4942
        %4976 = vmatmul.mubr.bf16.gmra.mxu0 %v4941
        %v4977 = vpop.f32.mrf.mxu0
        %v4978 = vadd.f32 0.0, %v4977
        %v4979 = vpop.f32.mrf.mxu0
        %v4980 = vadd.f32 0.0, %v4979
        %v4981 = vpop.f32.mrf.mxu0
        %v4982 = vadd.f32 0.0, %v4981
        %v4983 = vpop.f32.mrf.mxu0
        %v4984 = vadd.f32 0.0, %v4983
        %4985 = vdwg.mxu0
        %4986 = vmatprep.subr.bf16.mxu0 %v3784
        %4987 = vmatpush1.bf16.msra.mxu0 %v3783
        %4988 = vmatprep.subr.bf16.mxu0 %v3776
        %4989 = vmatpush1.bf16.msra.mxu0 %v3775
        %4990 = vmatprep.subr.bf16.mxu0 %v3768
        %4991 = vmatpush1.bf16.msra.mxu0 %v3767
        %4992 = vmatprep.subr.bf16.mxu0 %v3760
        %4993 = vmatpush1.bf16.msra.mxu0 %v3759
        %4994 = vmatprep.subr.bf16.mxu0 %v3752
        %4995 = vmatpush1.bf16.msra.mxu0 %v3751
        %4996 = vmatprep.subr.bf16.mxu0 %v3744
        %4997 = vmatpush1.bf16.msra.mxu0 %v3743
        %4998 = vmatprep.subr.bf16.mxu0 %v3736
        %4999 = vmatpush1.bf16.msra.mxu0 %v3735
        %5000 = vmatprep.subr.bf16.mxu0 %v3728
        %5001 = vmatpush1.bf16.msra.mxu0 %v3727
        %5002 = vmatprep.subr.bf16.mxu0 %v3848
        %5003 = vmatpush2.bf16.msra.mxu0 %v3847
        %5004 = vmatprep.subr.bf16.mxu0 %v3840
        %5005 = vmatpush2.bf16.msra.mxu0 %v3839
        %5006 = vmatprep.subr.bf16.mxu0 %v3832
        %5007 = vmatpush2.bf16.msra.mxu0 %v3831
        %5008 = vmatprep.subr.bf16.mxu0 %v3824
        %5009 = vmatpush2.bf16.msra.mxu0 %v3823
        %5010 = vmatprep.subr.bf16.mxu0 %v3816
        %5011 = vmatpush2.bf16.msra.mxu0 %v3815
        %5012 = vmatprep.subr.bf16.mxu0 %v3808
        %5013 = vmatpush2.bf16.msra.mxu0 %v3807
        %5014 = vmatprep.subr.bf16.mxu0 %v3800
        %5015 = vmatpush2.bf16.msra.mxu0 %v3799
        %5016 = vmatprep.subr.bf16.mxu0 %v3792
        %5017 = vmatpush2.bf16.msra.mxu0 %v3791
        %5018 = vmatprep.mubr.bf16.mxu0 %v4942
        %5019 = vmatmul.mubr.bf16.gmra.mxu0 %v4941
        %v5020 = vpop.f32.mrf.mxu0
        %v5021 = vadd.f32 0.0, %v5020
        %v5022 = vpop.f32.mrf.mxu0
        %v5023 = vadd.f32 0.0, %v5022
        %v5024 = vpop.f32.mrf.mxu0
        %v5025 = vadd.f32 0.0, %v5024
        %v5026 = vpop.f32.mrf.mxu0
        %v5027 = vadd.f32 0.0, %v5026
        %5028 = vdwg.mxu0
        %5029 = vmatprep.subr.bf16.mxu0 %v3786
        %5030 = vmatpush1.bf16.msra.mxu0 %v3785
        %5031 = vmatprep.subr.bf16.mxu0 %v3778
        %5032 = vmatpush1.bf16.msra.mxu0 %v3777
        %5033 = vmatprep.subr.bf16.mxu0 %v3770
        %5034 = vmatpush1.bf16.msra.mxu0 %v3769
        %5035 = vmatprep.subr.bf16.mxu0 %v3762
        %5036 = vmatpush1.bf16.msra.mxu0 %v3761
        %5037 = vmatprep.subr.bf16.mxu0 %v3754
        %5038 = vmatpush1.bf16.msra.mxu0 %v3753
        %5039 = vmatprep.subr.bf16.mxu0 %v3746
        %5040 = vmatpush1.bf16.msra.mxu0 %v3745
        %5041 = vmatprep.subr.bf16.mxu0 %v3738
        %5042 = vmatpush1.bf16.msra.mxu0 %v3737
        %5043 = vmatprep.subr.bf16.mxu0 %v3730
        %5044 = vmatpush1.bf16.msra.mxu0 %v3729
        %5045 = vmatprep.subr.bf16.mxu0 %v3850
        %5046 = vmatpush2.bf16.msra.mxu0 %v3849
        %5047 = vmatprep.subr.bf16.mxu0 %v3842
        %5048 = vmatpush2.bf16.msra.mxu0 %v3841
        %5049 = vmatprep.subr.bf16.mxu0 %v3834
        %5050 = vmatpush2.bf16.msra.mxu0 %v3833
        %5051 = vmatprep.subr.bf16.mxu0 %v3826
        %5052 = vmatpush2.bf16.msra.mxu0 %v3825
        %5053 = vmatprep.subr.bf16.mxu0 %v3818
        %5054 = vmatpush2.bf16.msra.mxu0 %v3817
        %5055 = vmatprep.subr.bf16.mxu0 %v3810
        %5056 = vmatpush2.bf16.msra.mxu0 %v3809
        %5057 = vmatprep.subr.bf16.mxu0 %v3802
        %5058 = vmatpush2.bf16.msra.mxu0 %v3801
        %5059 = vmatprep.subr.bf16.mxu0 %v3794
        %5060 = vmatpush2.bf16.msra.mxu0 %v3793
        %5061 = vmatprep.mubr.bf16.mxu0 %v4942
        %5062 = vmatmul.mubr.bf16.gmra.mxu0 %v4941
        %v5063 = vpop.f32.mrf.mxu0
        %v5064 = vadd.f32 0.0, %v5063
        %v5065 = vpop.f32.mrf.mxu0
        %v5066 = vadd.f32 0.0, %v5065
        %v5067 = vpop.f32.mrf.mxu0
        %v5068 = vadd.f32 0.0, %v5067
        %v5069 = vpop.f32.mrf.mxu0
        %v5070 = vadd.f32 0.0, %v5069
        %5071 = vdwg.mxu0
        %5072 = vmatprep.subr.bf16.mxu0 %v3788
        %5073 = vmatpush1.bf16.msra.mxu0 %v3787
        %5074 = vmatprep.subr.bf16.mxu0 %v3780
        %5075 = vmatpush1.bf16.msra.mxu0 %v3779
        %5076 = vmatprep.subr.bf16.mxu0 %v3772
        %5077 = vmatpush1.bf16.msra.mxu0 %v3771
        %5078 = vmatprep.subr.bf16.mxu0 %v3764
        %5079 = vmatpush1.bf16.msra.mxu0 %v3763
        %5080 = vmatprep.subr.bf16.mxu0 %v3756
        %5081 = vmatpush1.bf16.msra.mxu0 %v3755
        %5082 = vmatprep.subr.bf16.mxu0 %v3748
        %5083 = vmatpush1.bf16.msra.mxu0 %v3747
        %5084 = vmatprep.subr.bf16.mxu0 %v3740
        %5085 = vmatpush1.bf16.msra.mxu0 %v3739
        %5086 = vmatprep.subr.bf16.mxu0 %v3732
        %5087 = vmatpush1.bf16.msra.mxu0 %v3731
        %5088 = vmatprep.subr.bf16.mxu0 %v3852
        %5089 = vmatpush2.bf16.msra.mxu0 %v3851
        %5090 = vmatprep.subr.bf16.mxu0 %v3844
        %5091 = vmatpush2.bf16.msra.mxu0 %v3843
        %5092 = vmatprep.subr.bf16.mxu0 %v3836
        %5093 = vmatpush2.bf16.msra.mxu0 %v3835
        %5094 = vmatprep.subr.bf16.mxu0 %v3828
        %5095 = vmatpush2.bf16.msra.mxu0 %v3827
        %5096 = vmatprep.subr.bf16.mxu0 %v3820
        %5097 = vmatpush2.bf16.msra.mxu0 %v3819
        %5098 = vmatprep.subr.bf16.mxu0 %v3812
        %5099 = vmatpush2.bf16.msra.mxu0 %v3811
        %5100 = vmatprep.subr.bf16.mxu0 %v3804
        %5101 = vmatpush2.bf16.msra.mxu0 %v3803
        %5102 = vmatprep.subr.bf16.mxu0 %v3796
        %5103 = vmatpush2.bf16.msra.mxu0 %v3795
        %5104 = vmatprep.mubr.bf16.mxu0 %v4942
        %5105 = vmatmul.mubr.bf16.gmra.mxu0 %v4941
        %v5106 = vpop.f32.mrf.mxu0
        %v5107 = vadd.f32 0.0, %v5106
        %v5108 = vpop.f32.mrf.mxu0
        %v5109 = vadd.f32 0.0, %v5108
        %v5110 = vpop.f32.mrf.mxu0
        %v5111 = vadd.f32 0.0, %v5110
        %v5112 = vpop.f32.mrf.mxu0
        %v5113 = vadd.f32 0.0, %v5112
        %5114 = vdwg.mxu0
        %v5115 = vadd.f32 %v4925, %v4978
        %v5116 = vadd.f32 %v4926, %v4980
        %v5117 = vadd.f32 %v4927, %v5021
        %v5118 = vadd.f32 %v4928, %v5023
        %v5119 = vadd.f32 %v4929, %v5064
        %v5120 = vadd.f32 %v4930, %v5066
        %v5121 = vadd.f32 %v4931, %v5107
        %v5122 = vadd.f32 %v4932, %v5109
        %v5123 = vadd.f32 %v4933, %v4982
        %v5124 = vadd.f32 %v4934, %v4984
        %v5125 = vadd.f32 %v4935, %v5025
        %v5126 = vadd.f32 %v4936, %v5027
        %v5127 = vadd.f32 %v4937, %v5068
        %v5128 = vadd.f32 %v4938, %v5070
        %v5129 = vadd.f32 %v4939, %v5111
        %v5130 = vadd.f32 %v4940, %v5113
        %v5131 = vxor.u32 %v5115, 2147483648
        %v5132 = vxor.u32 %v5116, 2147483648
        %v5133 = vxor.u32 %v5123, 2147483648
        %v5134 = vxor.u32 %v5124, 2147483648
        %v5135 = vmul.f32 %v5131, 1.442695
        %v5136 = vpow.pop %v5135
        %v5137 = vmul.f32 %v5132, 1.442695
        %v5138 = vpow.pop %v5137
        %v5139 = vmul.f32 %v5133, 1.442695
        %v5140 = vpow.pop %v5139
        %v5141 = vmul.f32 %v5134, 1.442695
        %v5142 = vpow.pop %v5141
        %v5143 = vadd.f32 %v5136, 1.0
        %v5144 = vadd.f32 %v5138, 1.0
        %v5145 = vadd.f32 %v5140, 1.0
        %v5146 = vadd.f32 %v5142, 1.0
        %v5147 = vrcp.pop %v5143
        %v5148 = vmul.f32 1.0, %v5147
        %v5149 = vrcp.pop %v5144
        %v5150 = vmul.f32 1.0, %v5149
        %v5151 = vrcp.pop %v5145
        %v5152 = vmul.f32 1.0, %v5151
        %v5153 = vrcp.pop %v5146
        %v5154 = vmul.f32 1.0, %v5153
        %v5155 = vxor.u32 %v5117, 2147483648
        %v5156 = vxor.u32 %v5118, 2147483648
        %v5157 = vxor.u32 %v5125, 2147483648
        %v5158 = vxor.u32 %v5126, 2147483648
        %v5159 = vmul.f32 %v5155, 1.442695
        %v5160 = vpow.pop %v5159
        %v5161 = vmul.f32 %v5156, 1.442695
        %v5162 = vpow.pop %v5161
        %v5163 = vmul.f32 %v5157, 1.442695
        %v5164 = vpow.pop %v5163
        %v5165 = vmul.f32 %v5158, 1.442695
        %v5166 = vpow.pop %v5165
        %v5167 = vadd.f32 %v5160, 1.0
        %v5168 = vadd.f32 %v5162, 1.0
        %v5169 = vadd.f32 %v5164, 1.0
        %v5170 = vadd.f32 %v5166, 1.0
        %v5171 = vrcp.pop %v5167
        %v5172 = vmul.f32 1.0, %v5171
        %v5173 = vrcp.pop %v5168
        %v5174 = vmul.f32 1.0, %v5173
        %v5175 = vrcp.pop %v5169
        %v5176 = vmul.f32 1.0, %v5175
        %v5177 = vrcp.pop %v5170
        %v5178 = vmul.f32 1.0, %v5177
        %v5179 = vtanh.pop %v5119
        %v5180 = vtanh.pop %v5120
        %v5181 = vtanh.pop %v5127
        %v5182 = vtanh.pop %v5128
        %v5183 = vxor.u32 %v5121, 2147483648
        %v5184 = vxor.u32 %v5122, 2147483648
        %v5185 = vxor.u32 %v5129, 2147483648
        %v5186 = vxor.u32 %v5130, 2147483648
        %v5187 = vmul.f32 %v5183, 1.442695
        %v5188 = vpow.pop %v5187
        %v5189 = vmul.f32 %v5184, 1.442695
        %v5190 = vpow.pop %v5189
        %v5191 = vmul.f32 %v5185, 1.442695
        %v5192 = vpow.pop %v5191
        %v5193 = vmul.f32 %v5186, 1.442695
        %v5194 = vpow.pop %v5193
        %v5195 = vadd.f32 %v5188, 1.0
        %v5196 = vadd.f32 %v5190, 1.0
        %v5197 = vadd.f32 %v5192, 1.0
        %v5198 = vadd.f32 %v5194, 1.0
        %v5199 = vrcp.pop %v5195
        %v5200 = vmul.f32 1.0, %v5199
        %v5201 = vrcp.pop %v5196
        %v5202 = vmul.f32 1.0, %v5201
        %v5203 = vrcp.pop %v5197
        %v5204 = vmul.f32 1.0, %v5203
        %v5205 = vrcp.pop %v5198
        %v5206 = vmul.f32 1.0, %v5205
        %v5207 = vmul.f32 %v5172, %v4894
        %v5208 = vmul.f32 %v5174, %v4895
        %v5209 = vmul.f32 %v5176, %v4896
        %v5210 = vmul.f32 %v5178, %v4897
        %v5211 = vmul.f32 %v5148, %v5179
        %v5212 = vmul.f32 %v5150, %v5180
        %v5213 = vmul.f32 %v5152, %v5181
        %v5214 = vmul.f32 %v5154, %v5182
        %v5215 = vadd.f32 %v5207, %v5211
        %v5216 = vadd.f32 %v5208, %v5212
        %v5217 = vadd.f32 %v5209, %v5213
        %v5218 = vadd.f32 %v5210, %v5214
        %v5219 = vtanh.pop %v5215
        %v5220 = vtanh.pop %v5216
        %v5221 = vtanh.pop %v5217
        %v5222 = vtanh.pop %v5218
        %v5223 = vmul.f32 %v5200, %v5219
        %v5224 = vmul.f32 %v5202, %v5220
        %v5225 = vmul.f32 %v5204, %v5221
        %v5226 = vmul.f32 %v5206, %v5222
        // Predicated region
        $region73: #{tpu_custom_call.1} parent=35 // pred_check
          %p5227 = pneg %p3324
        $region74: #{tpu_custom_call.1} parent=35 // pred_check_branch
          %5229 = sbr.rel (%p5227) target = $region76
        $region75: #{tpu_custom_call.1} parent=35 // pred_region
          %v5230 = vpack.c.bf16 %v5225, %v5223
          %v5231 = vpack.c.bf16 %v5226, %v5224
          %v5234 = vunpack.c.l.b16 %v5230
          %v5235 = vunpack.c.l.b16 %v5231
          %v5236 = vunpack.c.h.b16 %v5230
          %v5237 = vunpack.c.h.b16 %v5231
          %v5238 = vpack.c.b16 %v5235, %v5234
          %v5239 = vpack.c.b16 %v5237, %v5236
          %s5242 = scalar_lea.vmem [#allocation2], 48
          %5243 = vst [vmem:[%s5242] sm:$0xff] %v5238
          %5244 = vst [vmem:[%s5242 + $0x8] sm:$0xff] %v5239
        $region76: #{tpu_custom_call.1} parent=35 // pred_fallthru
          _
        %s5245 = scalar_lea.vmem [#allocation3], 512
        %v5246 = vld [vmem:[%s5245] sm:$0xff]
        %v5247 = vld [vmem:[%s5245 + $0x8] sm:$0xff]
        %v5248 = vld [vmem:[%s5245 + $0x10] sm:$0xff]
        %v5249 = vld [vmem:[%s5245 + $0x18] sm:$0xff]
        %v5250 = vld [vmem:[%s5245 + $0x20] sm:$0xff]
        %v5251 = vld [vmem:[%s5245 + $0x28] sm:$0xff]
        %v5252 = vld [vmem:[%s5245 + $0x30] sm:$0xff]
        %v5253 = vld [vmem:[%s5245 + $0x38] sm:$0xff]
        %v5254 = vld [vmem:[%s5245 + $0x40] sm:$0xff]
        %v5255 = vld [vmem:[%s5245 + $0x48] sm:$0xff]
        %v5256 = vld [vmem:[%s5245 + $0x50] sm:$0xff]
        %v5257 = vld [vmem:[%s5245 + $0x58] sm:$0xff]
        %v5258 = vld [vmem:[%s5245 + $0x60] sm:$0xff]
        %v5259 = vld [vmem:[%s5245 + $0x68] sm:$0xff]
        %v5260 = vld [vmem:[%s5245 + $0x70] sm:$0xff]
        %v5261 = vld [vmem:[%s5245 + $0x78] sm:$0xff]
        %v5262 = vpack.c.bf16 %v5225, %v5223
        %v5263 = vpack.c.bf16 %v5226, %v5224
        %5264 = vmatprep.subr.bf16.mxu0 %v3782
        %5265 = vmatpush1.bf16.msra.mxu0 %v3781
        %5266 = vmatprep.subr.bf16.mxu0 %v3774
        %5267 = vmatpush1.bf16.msra.mxu0 %v3773
        %5268 = vmatprep.subr.bf16.mxu0 %v3766
        %5269 = vmatpush1.bf16.msra.mxu0 %v3765
        %5270 = vmatprep.subr.bf16.mxu0 %v3758
        %5271 = vmatpush1.bf16.msra.mxu0 %v3757
        %5272 = vmatprep.subr.bf16.mxu0 %v3750
        %5273 = vmatpush1.bf16.msra.mxu0 %v3749
        %5274 = vmatprep.subr.bf16.mxu0 %v3742
        %5275 = vmatpush1.bf16.msra.mxu0 %v3741
        %5276 = vmatprep.subr.bf16.mxu0 %v3734
        %5277 = vmatpush1.bf16.msra.mxu0 %v3733
        %5278 = vmatprep.subr.bf16.mxu0 %v3726
        %5279 = vmatpush1.bf16.msra.mxu0 %v3725
        %5280 = vmatprep.subr.bf16.mxu0 %v3846
        %5281 = vmatpush2.bf16.msra.mxu0 %v3845
        %5282 = vmatprep.subr.bf16.mxu0 %v3838
        %5283 = vmatpush2.bf16.msra.mxu0 %v3837
        %5284 = vmatprep.subr.bf16.mxu0 %v3830
        %5285 = vmatpush2.bf16.msra.mxu0 %v3829
        %5286 = vmatprep.subr.bf16.mxu0 %v3822
        %5287 = vmatpush2.bf16.msra.mxu0 %v3821
        %5288 = vmatprep.subr.bf16.mxu0 %v3814
        %5289 = vmatpush2.bf16.msra.mxu0 %v3813
        %5290 = vmatprep.subr.bf16.mxu0 %v3806
        %5291 = vmatpush2.bf16.msra.mxu0 %v3805
        %5292 = vmatprep.subr.bf16.mxu0 %v3798
        %5293 = vmatpush2.bf16.msra.mxu0 %v3797
        %5294 = vmatprep.subr.bf16.mxu0 %v3790
        %5295 = vmatpush2.bf16.msra.mxu0 %v3789
        %5296 = vmatprep.mubr.bf16.mxu0 %v5263
        %5297 = vmatmul.mubr.bf16.gmra.mxu0 %v5262
        %v5298 = vpop.f32.mrf.mxu0
        %v5299 = vadd.f32 0.0, %v5298
        %v5300 = vpop.f32.mrf.mxu0
        %v5301 = vadd.f32 0.0, %v5300
        %v5302 = vpop.f32.mrf.mxu0
        %v5303 = vadd.f32 0.0, %v5302
        %v5304 = vpop.f32.mrf.mxu0
        %v5305 = vadd.f32 0.0, %v5304
        %5306 = vdwg.mxu0
        %5307 = vmatprep.subr.bf16.mxu0 %v3784
        %5308 = vmatpush1.bf16.msra.mxu0 %v3783
        %5309 = vmatprep.subr.bf16.mxu0 %v3776
        %5310 = vmatpush1.bf16.msra.mxu0 %v3775
        %5311 = vmatprep.subr.bf16.mxu0 %v3768
        %5312 = vmatpush1.bf16.msra.mxu0 %v3767
        %5313 = vmatprep.subr.bf16.mxu0 %v3760
        %5314 = vmatpush1.bf16.msra.mxu0 %v3759
        %5315 = vmatprep.subr.bf16.mxu0 %v3752
        %5316 = vmatpush1.bf16.msra.mxu0 %v3751
        %5317 = vmatprep.subr.bf16.mxu0 %v3744
        %5318 = vmatpush1.bf16.msra.mxu0 %v3743
        %5319 = vmatprep.subr.bf16.mxu0 %v3736
        %5320 = vmatpush1.bf16.msra.mxu0 %v3735
        %5321 = vmatprep.subr.bf16.mxu0 %v3728
        %5322 = vmatpush1.bf16.msra.mxu0 %v3727
        %5323 = vmatprep.subr.bf16.mxu0 %v3848
        %5324 = vmatpush2.bf16.msra.mxu0 %v3847
        %5325 = vmatprep.subr.bf16.mxu0 %v3840
        %5326 = vmatpush2.bf16.msra.mxu0 %v3839
        %5327 = vmatprep.subr.bf16.mxu0 %v3832
        %5328 = vmatpush2.bf16.msra.mxu0 %v3831
        %5329 = vmatprep.subr.bf16.mxu0 %v3824
        %5330 = vmatpush2.bf16.msra.mxu0 %v3823
        %5331 = vmatprep.subr.bf16.mxu0 %v3816
        %5332 = vmatpush2.bf16.msra.mxu0 %v3815
        %5333 = vmatprep.subr.bf16.mxu0 %v3808
        %5334 = vmatpush2.bf16.msra.mxu0 %v3807
        %5335 = vmatprep.subr.bf16.mxu0 %v3800
        %5336 = vmatpush2.bf16.msra.mxu0 %v3799
        %5337 = vmatprep.subr.bf16.mxu0 %v3792
        %5338 = vmatpush2.bf16.msra.mxu0 %v3791
        %5339 = vmatprep.mubr.bf16.mxu0 %v5263
        %5340 = vmatmul.mubr.bf16.gmra.mxu0 %v5262
        %v5341 = vpop.f32.mrf.mxu0
        %v5342 = vadd.f32 0.0, %v5341
        %v5343 = vpop.f32.mrf.mxu0
        %v5344 = vadd.f32 0.0, %v5343
        %v5345 = vpop.f32.mrf.mxu0
        %v5346 = vadd.f32 0.0, %v5345
        %v5347 = vpop.f32.mrf.mxu0
        %v5348 = vadd.f32 0.0, %v5347
        %5349 = vdwg.mxu0
        %5350 = vmatprep.subr.bf16.mxu0 %v3786
        %5351 = vmatpush1.bf16.msra.mxu0 %v3785
        %5352 = vmatprep.subr.bf16.mxu0 %v3778
        %5353 = vmatpush1.bf16.msra.mxu0 %v3777
        %5354 = vmatprep.subr.bf16.mxu0 %v3770
        %5355 = vmatpush1.bf16.msra.mxu0 %v3769
        %5356 = vmatprep.subr.bf16.mxu0 %v3762
        %5357 = vmatpush1.bf16.msra.mxu0 %v3761
        %5358 = vmatprep.subr.bf16.mxu0 %v3754
        %5359 = vmatpush1.bf16.msra.mxu0 %v3753
        %5360 = vmatprep.subr.bf16.mxu0 %v3746
        %5361 = vmatpush1.bf16.msra.mxu0 %v3745
        %5362 = vmatprep.subr.bf16.mxu0 %v3738
        %5363 = vmatpush1.bf16.msra.mxu0 %v3737
        %5364 = vmatprep.subr.bf16.mxu0 %v3730
        %5365 = vmatpush1.bf16.msra.mxu0 %v3729
        %5366 = vmatprep.subr.bf16.mxu0 %v3850
        %5367 = vmatpush2.bf16.msra.mxu0 %v3849
        %5368 = vmatprep.subr.bf16.mxu0 %v3842
        %5369 = vmatpush2.bf16.msra.mxu0 %v3841
        %5370 = vmatprep.subr.bf16.mxu0 %v3834
        %5371 = vmatpush2.bf16.msra.mxu0 %v3833
        %5372 = vmatprep.subr.bf16.mxu0 %v3826
        %5373 = vmatpush2.bf16.msra.mxu0 %v3825
        %5374 = vmatprep.subr.bf16.mxu0 %v3818
        %5375 = vmatpush2.bf16.msra.mxu0 %v3817
        %5376 = vmatprep.subr.bf16.mxu0 %v3810
        %5377 = vmatpush2.bf16.msra.mxu0 %v3809
        %5378 = vmatprep.subr.bf16.mxu0 %v3802
        %5379 = vmatpush2.bf16.msra.mxu0 %v3801
        %5380 = vmatprep.subr.bf16.mxu0 %v3794
        %5381 = vmatpush2.bf16.msra.mxu0 %v3793
        %5382 = vmatprep.mubr.bf16.mxu0 %v5263
        %5383 = vmatmul.mubr.bf16.gmra.mxu0 %v5262
        %v5384 = vpop.f32.mrf.mxu0
        %v5385 = vadd.f32 0.0, %v5384
        %v5386 = vpop.f32.mrf.mxu0
        %v5387 = vadd.f32 0.0, %v5386
        %v5388 = vpop.f32.mrf.mxu0
        %v5389 = vadd.f32 0.0, %v5388
        %v5390 = vpop.f32.mrf.mxu0
        %v5391 = vadd.f32 0.0, %v5390
        %5392 = vdwg.mxu0
        %5393 = vmatprep.subr.bf16.mxu0 %v3788
        %5394 = vmatpush1.bf16.msra.mxu0 %v3787
        %5395 = vmatprep.subr.bf16.mxu0 %v3780
        %5396 = vmatpush1.bf16.msra.mxu0 %v3779
        %5397 = vmatprep.subr.bf16.mxu0 %v3772
        %5398 = vmatpush1.bf16.msra.mxu0 %v3771
        %5399 = vmatprep.subr.bf16.mxu0 %v3764
        %5400 = vmatpush1.bf16.msra.mxu0 %v3763
        %5401 = vmatprep.subr.bf16.mxu0 %v3756
        %5402 = vmatpush1.bf16.msra.mxu0 %v3755
        %5403 = vmatprep.subr.bf16.mxu0 %v3748
        %5404 = vmatpush1.bf16.msra.mxu0 %v3747
        %5405 = vmatprep.subr.bf16.mxu0 %v3740
        %5406 = vmatpush1.bf16.msra.mxu0 %v3739
        %5407 = vmatprep.subr.bf16.mxu0 %v3732
        %5408 = vmatpush1.bf16.msra.mxu0 %v3731
        %5409 = vmatprep.subr.bf16.mxu0 %v3852
        %5410 = vmatpush2.bf16.msra.mxu0 %v3851
        %5411 = vmatprep.subr.bf16.mxu0 %v3844
        %5412 = vmatpush2.bf16.msra.mxu0 %v3843
        %5413 = vmatprep.subr.bf16.mxu0 %v3836
        %5414 = vmatpush2.bf16.msra.mxu0 %v3835
        %5415 = vmatprep.subr.bf16.mxu0 %v3828
        %5416 = vmatpush2.bf16.msra.mxu0 %v3827
        %5417 = vmatprep.subr.bf16.mxu0 %v3820
        %5418 = vmatpush2.bf16.msra.mxu0 %v3819
        %5419 = vmatprep.subr.bf16.mxu0 %v3812
        %5420 = vmatpush2.bf16.msra.mxu0 %v3811
        %5421 = vmatprep.subr.bf16.mxu0 %v3804
        %5422 = vmatpush2.bf16.msra.mxu0 %v3803
        %5423 = vmatprep.subr.bf16.mxu0 %v3796
        %5424 = vmatpush2.bf16.msra.mxu0 %v3795
        %5425 = vmatprep.mubr.bf16.mxu0 %v5263
        %5426 = vmatmul.mubr.bf16.gmra.mxu0 %v5262
        %v5427 = vpop.f32.mrf.mxu0
        %v5428 = vadd.f32 0.0, %v5427
        %v5429 = vpop.f32.mrf.mxu0
        %v5430 = vadd.f32 0.0, %v5429
        %v5431 = vpop.f32.mrf.mxu0
        %v5432 = vadd.f32 0.0, %v5431
        %v5433 = vpop.f32.mrf.mxu0
        %v5434 = vadd.f32 0.0, %v5433
        %5435 = vdwg.mxu0
        %v5436 = vadd.f32 %v5246, %v5299
        %v5437 = vadd.f32 %v5247, %v5301
        %v5438 = vadd.f32 %v5248, %v5342
        %v5439 = vadd.f32 %v5249, %v5344
        %v5440 = vadd.f32 %v5250, %v5385
        %v5441 = vadd.f32 %v5251, %v5387
        %v5442 = vadd.f32 %v5252, %v5428
        %v5443 = vadd.f32 %v5253, %v5430
        %v5444 = vadd.f32 %v5254, %v5303
        %v5445 = vadd.f32 %v5255, %v5305
        %v5446 = vadd.f32 %v5256, %v5346
        %v5447 = vadd.f32 %v5257, %v5348
        %v5448 = vadd.f32 %v5258, %v5389
        %v5449 = vadd.f32 %v5259, %v5391
        %v5450 = vadd.f32 %v5260, %v5432
        %v5451 = vadd.f32 %v5261, %v5434
        %v5452 = vxor.u32 %v5436, 2147483648
        %v5453 = vxor.u32 %v5437, 2147483648
        %v5454 = vxor.u32 %v5444, 2147483648
        %v5455 = vxor.u32 %v5445, 2147483648
        %v5456 = vmul.f32 %v5452, 1.442695
        %v5457 = vpow.pop %v5456
        %v5458 = vmul.f32 %v5453, 1.442695
        %v5459 = vpow.pop %v5458
        %v5460 = vmul.f32 %v5454, 1.442695
        %v5461 = vpow.pop %v5460
        %v5462 = vmul.f32 %v5455, 1.442695
        %v5463 = vpow.pop %v5462
        %v5464 = vadd.f32 %v5457, 1.0
        %v5465 = vadd.f32 %v5459, 1.0
        %v5466 = vadd.f32 %v5461, 1.0
        %v5467 = vadd.f32 %v5463, 1.0
        %v5468 = vrcp.pop %v5464
        %v5469 = vmul.f32 1.0, %v5468
        %v5470 = vrcp.pop %v5465
        %v5471 = vmul.f32 1.0, %v5470
        %v5472 = vrcp.pop %v5466
        %v5473 = vmul.f32 1.0, %v5472
        %v5474 = vrcp.pop %v5467
        %v5475 = vmul.f32 1.0, %v5474
        %v5476 = vxor.u32 %v5438, 2147483648
        %v5477 = vxor.u32 %v5439, 2147483648
        %v5478 = vxor.u32 %v5446, 2147483648
        %v5479 = vxor.u32 %v5447, 2147483648
        %v5480 = vmul.f32 %v5476, 1.442695
        %v5481 = vpow.pop %v5480
        %v5482 = vmul.f32 %v5477, 1.442695
        %v5483 = vpow.pop %v5482
        %v5484 = vmul.f32 %v5478, 1.442695
        %v5485 = vpow.pop %v5484
        %v5486 = vmul.f32 %v5479, 1.442695
        %v5487 = vpow.pop %v5486
        %v5488 = vadd.f32 %v5481, 1.0
        %v5489 = vadd.f32 %v5483, 1.0
        %v5490 = vadd.f32 %v5485, 1.0
        %v5491 = vadd.f32 %v5487, 1.0
        %v5492 = vrcp.pop %v5488
        %v5493 = vmul.f32 1.0, %v5492
        %v5494 = vrcp.pop %v5489
        %v5495 = vmul.f32 1.0, %v5494
        %v5496 = vrcp.pop %v5490
        %v5497 = vmul.f32 1.0, %v5496
        %v5498 = vrcp.pop %v5491
        %v5499 = vmul.f32 1.0, %v5498
        %v5500 = vtanh.pop %v5440
        %v5501 = vtanh.pop %v5441
        %v5502 = vtanh.pop %v5448
        %v5503 = vtanh.pop %v5449
        %v5504 = vxor.u32 %v5442, 2147483648
        %v5505 = vxor.u32 %v5443, 2147483648
        %v5506 = vxor.u32 %v5450, 2147483648
        %v5507 = vxor.u32 %v5451, 2147483648
        %v5508 = vmul.f32 %v5504, 1.442695
        %v5509 = vpow.pop %v5508
        %v5510 = vmul.f32 %v5505, 1.442695
        %v5511 = vpow.pop %v5510
        %v5512 = vmul.f32 %v5506, 1.442695
        %v5513 = vpow.pop %v5512
        %v5514 = vmul.f32 %v5507, 1.442695
        %v5515 = vpow.pop %v5514
        %v5516 = vadd.f32 %v5509, 1.0
        %v5517 = vadd.f32 %v5511, 1.0
        %v5518 = vadd.f32 %v5513, 1.0
        %v5519 = vadd.f32 %v5515, 1.0
        %v5520 = vrcp.pop %v5516
        %v5521 = vmul.f32 1.0, %v5520
        %v5522 = vrcp.pop %v5517
        %v5523 = vmul.f32 1.0, %v5522
        %v5524 = vrcp.pop %v5518
        %v5525 = vmul.f32 1.0, %v5524
        %v5526 = vrcp.pop %v5519
        %v5527 = vmul.f32 1.0, %v5526
        %v5528 = vmul.f32 %v5493, %v5215
        %v5529 = vmul.f32 %v5495, %v5216
        %v5530 = vmul.f32 %v5497, %v5217
        %v5531 = vmul.f32 %v5499, %v5218
        %v5532 = vmul.f32 %v5469, %v5500
        %v5533 = vmul.f32 %v5471, %v5501
        %v5534 = vmul.f32 %v5473, %v5502
        %v5535 = vmul.f32 %v5475, %v5503
        %v5536 = vadd.f32 %v5528, %v5532
        %v5537 = vadd.f32 %v5529, %v5533
        %v5538 = vadd.f32 %v5530, %v5534
        %v5539 = vadd.f32 %v5531, %v5535
        %v5540 = vtanh.pop %v5536
        %v5541 = vtanh.pop %v5537
        %v5542 = vtanh.pop %v5538
        %v5543 = vtanh.pop %v5539
        %v5544 = vmul.f32 %v5521, %v5540
        %v5545 = vmul.f32 %v5523, %v5541
        %v5546 = vmul.f32 %v5525, %v5542
        %v5547 = vmul.f32 %v5527, %v5543
        // Predicated region
        $region77: #{tpu_custom_call.1} parent=35 // pred_check
          %p5548 = pneg %p3324
        $region78: #{tpu_custom_call.1} parent=35 // pred_check_branch
          %5550 = sbr.rel (%p5548) target = $region80
        $region79: #{tpu_custom_call.1} parent=35 // pred_region
          %v5551 = vpack.c.bf16 %v5546, %v5544
          %v5552 = vpack.c.bf16 %v5547, %v5545
          %v5555 = vunpack.c.l.b16 %v5551
          %v5556 = vunpack.c.l.b16 %v5552
          %v5557 = vunpack.c.h.b16 %v5551
          %v5558 = vunpack.c.h.b16 %v5552
          %v5559 = vpack.c.b16 %v5556, %v5555
          %v5560 = vpack.c.b16 %v5558, %v5557
          %s5563 = scalar_lea.vmem [#allocation2], 64
          %5564 = vst [vmem:[%s5563] sm:$0xff] %v5559
          %5565 = vst [vmem:[%s5563 + $0x8] sm:$0xff] %v5560
        $region80: #{tpu_custom_call.1} parent=35 // pred_fallthru
          _
        %s5566 = scalar_lea.vmem [#allocation3], 640
        %v5567 = vld [vmem:[%s5566] sm:$0xff]
        %v5568 = vld [vmem:[%s5566 + $0x8] sm:$0xff]
        %v5569 = vld [vmem:[%s5566 + $0x10] sm:$0xff]
        %v5570 = vld [vmem:[%s5566 + $0x18] sm:$0xff]
        %v5571 = vld [vmem:[%s5566 + $0x20] sm:$0xff]
        %v5572 = vld [vmem:[%s5566 + $0x28] sm:$0xff]
        %v5573 = vld [vmem:[%s5566 + $0x30] sm:$0xff]
        %v5574 = vld [vmem:[%s5566 + $0x38] sm:$0xff]
        %v5575 = vld [vmem:[%s5566 + $0x40] sm:$0xff]
        %v5576 = vld [vmem:[%s5566 + $0x48] sm:$0xff]
        %v5577 = vld [vmem:[%s5566 + $0x50] sm:$0xff]
        %v5578 = vld [vmem:[%s5566 + $0x58] sm:$0xff]
        %v5579 = vld [vmem:[%s5566 + $0x60] sm:$0xff]
        %v5580 = vld [vmem:[%s5566 + $0x68] sm:$0xff]
        %v5581 = vld [vmem:[%s5566 + $0x70] sm:$0xff]
        %v5582 = vld [vmem:[%s5566 + $0x78] sm:$0xff]
        %v5583 = vpack.c.bf16 %v5546, %v5544
        %v5584 = vpack.c.bf16 %v5547, %v5545
        %5585 = vmatprep.subr.bf16.mxu0 %v3782
        %5586 = vmatpush1.bf16.msra.mxu0 %v3781
        %5587 = vmatprep.subr.bf16.mxu0 %v3774
        %5588 = vmatpush1.bf16.msra.mxu0 %v3773
        %5589 = vmatprep.subr.bf16.mxu0 %v3766
        %5590 = vmatpush1.bf16.msra.mxu0 %v3765
        %5591 = vmatprep.subr.bf16.mxu0 %v3758
        %5592 = vmatpush1.bf16.msra.mxu0 %v3757
        %5593 = vmatprep.subr.bf16.mxu0 %v3750
        %5594 = vmatpush1.bf16.msra.mxu0 %v3749
        %5595 = vmatprep.subr.bf16.mxu0 %v3742
        %5596 = vmatpush1.bf16.msra.mxu0 %v3741
        %5597 = vmatprep.subr.bf16.mxu0 %v3734
        %5598 = vmatpush1.bf16.msra.mxu0 %v3733
        %5599 = vmatprep.subr.bf16.mxu0 %v3726
        %5600 = vmatpush1.bf16.msra.mxu0 %v3725
        %5601 = vmatprep.subr.bf16.mxu0 %v3846
        %5602 = vmatpush2.bf16.msra.mxu0 %v3845
        %5603 = vmatprep.subr.bf16.mxu0 %v3838
        %5604 = vmatpush2.bf16.msra.mxu0 %v3837
        %5605 = vmatprep.subr.bf16.mxu0 %v3830
        %5606 = vmatpush2.bf16.msra.mxu0 %v3829
        %5607 = vmatprep.subr.bf16.mxu0 %v3822
        %5608 = vmatpush2.bf16.msra.mxu0 %v3821
        %5609 = vmatprep.subr.bf16.mxu0 %v3814
        %5610 = vmatpush2.bf16.msra.mxu0 %v3813
        %5611 = vmatprep.subr.bf16.mxu0 %v3806
        %5612 = vmatpush2.bf16.msra.mxu0 %v3805
        %5613 = vmatprep.subr.bf16.mxu0 %v3798
        %5614 = vmatpush2.bf16.msra.mxu0 %v3797
        %5615 = vmatprep.subr.bf16.mxu0 %v3790
        %5616 = vmatpush2.bf16.msra.mxu0 %v3789
        %5617 = vmatprep.mubr.bf16.mxu0 %v5584
        %5618 = vmatmul.mubr.bf16.gmra.mxu0 %v5583
        %v5619 = vpop.f32.mrf.mxu0
        %v5620 = vadd.f32 0.0, %v5619
        %v5621 = vpop.f32.mrf.mxu0
        %v5622 = vadd.f32 0.0, %v5621
        %v5623 = vpop.f32.mrf.mxu0
        %v5624 = vadd.f32 0.0, %v5623
        %v5625 = vpop.f32.mrf.mxu0
        %v5626 = vadd.f32 0.0, %v5625
        %5627 = vdwg.mxu0
        %5628 = vmatprep.subr.bf16.mxu0 %v3784
        %5629 = vmatpush1.bf16.msra.mxu0 %v3783
        %5630 = vmatprep.subr.bf16.mxu0 %v3776
        %5631 = vmatpush1.bf16.msra.mxu0 %v3775
        %5632 = vmatprep.subr.bf16.mxu0 %v3768
        %5633 = vmatpush1.bf16.msra.mxu0 %v3767
        %5634 = vmatprep.subr.bf16.mxu0 %v3760
        %5635 = vmatpush1.bf16.msra.mxu0 %v3759
        %5636 = vmatprep.subr.bf16.mxu0 %v3752
        %5637 = vmatpush1.bf16.msra.mxu0 %v3751
        %5638 = vmatprep.subr.bf16.mxu0 %v3744
        %5639 = vmatpush1.bf16.msra.mxu0 %v3743
        %5640 = vmatprep.subr.bf16.mxu0 %v3736
        %5641 = vmatpush1.bf16.msra.mxu0 %v3735
        %5642 = vmatprep.subr.bf16.mxu0 %v3728
        %5643 = vmatpush1.bf16.msra.mxu0 %v3727
        %5644 = vmatprep.subr.bf16.mxu0 %v3848
        %5645 = vmatpush2.bf16.msra.mxu0 %v3847
        %5646 = vmatprep.subr.bf16.mxu0 %v3840
        %5647 = vmatpush2.bf16.msra.mxu0 %v3839
        %5648 = vmatprep.subr.bf16.mxu0 %v3832
        %5649 = vmatpush2.bf16.msra.mxu0 %v3831
        %5650 = vmatprep.subr.bf16.mxu0 %v3824
        %5651 = vmatpush2.bf16.msra.mxu0 %v3823
        %5652 = vmatprep.subr.bf16.mxu0 %v3816
        %5653 = vmatpush2.bf16.msra.mxu0 %v3815
        %5654 = vmatprep.subr.bf16.mxu0 %v3808
        %5655 = vmatpush2.bf16.msra.mxu0 %v3807
        %5656 = vmatprep.subr.bf16.mxu0 %v3800
        %5657 = vmatpush2.bf16.msra.mxu0 %v3799
        %5658 = vmatprep.subr.bf16.mxu0 %v3792
        %5659 = vmatpush2.bf16.msra.mxu0 %v3791
        %5660 = vmatprep.mubr.bf16.mxu0 %v5584
        %5661 = vmatmul.mubr.bf16.gmra.mxu0 %v5583
        %v5662 = vpop.f32.mrf.mxu0
        %v5663 = vadd.f32 0.0, %v5662
        %v5664 = vpop.f32.mrf.mxu0
        %v5665 = vadd.f32 0.0, %v5664
        %v5666 = vpop.f32.mrf.mxu0
        %v5667 = vadd.f32 0.0, %v5666
        %v5668 = vpop.f32.mrf.mxu0
        %v5669 = vadd.f32 0.0, %v5668
        %5670 = vdwg.mxu0
        %5671 = vmatprep.subr.bf16.mxu0 %v3786
        %5672 = vmatpush1.bf16.msra.mxu0 %v3785
        %5673 = vmatprep.subr.bf16.mxu0 %v3778
        %5674 = vmatpush1.bf16.msra.mxu0 %v3777
        %5675 = vmatprep.subr.bf16.mxu0 %v3770
        %5676 = vmatpush1.bf16.msra.mxu0 %v3769
        %5677 = vmatprep.subr.bf16.mxu0 %v3762
        %5678 = vmatpush1.bf16.msra.mxu0 %v3761
        %5679 = vmatprep.subr.bf16.mxu0 %v3754
        %5680 = vmatpush1.bf16.msra.mxu0 %v3753
        %5681 = vmatprep.subr.bf16.mxu0 %v3746
        %5682 = vmatpush1.bf16.msra.mxu0 %v3745
        %5683 = vmatprep.subr.bf16.mxu0 %v3738
        %5684 = vmatpush1.bf16.msra.mxu0 %v3737
        %5685 = vmatprep.subr.bf16.mxu0 %v3730
        %5686 = vmatpush1.bf16.msra.mxu0 %v3729
        %5687 = vmatprep.subr.bf16.mxu0 %v3850
        %5688 = vmatpush2.bf16.msra.mxu0 %v3849
        %5689 = vmatprep.subr.bf16.mxu0 %v3842
        %5690 = vmatpush2.bf16.msra.mxu0 %v3841
        %5691 = vmatprep.subr.bf16.mxu0 %v3834
        %5692 = vmatpush2.bf16.msra.mxu0 %v3833
        %5693 = vmatprep.subr.bf16.mxu0 %v3826
        %5694 = vmatpush2.bf16.msra.mxu0 %v3825
        %5695 = vmatprep.subr.bf16.mxu0 %v3818
        %5696 = vmatpush2.bf16.msra.mxu0 %v3817
        %5697 = vmatprep.subr.bf16.mxu0 %v3810
        %5698 = vmatpush2.bf16.msra.mxu0 %v3809
        %5699 = vmatprep.subr.bf16.mxu0 %v3802
        %5700 = vmatpush2.bf16.msra.mxu0 %v3801
        %5701 = vmatprep.subr.bf16.mxu0 %v3794
        %5702 = vmatpush2.bf16.msra.mxu0 %v3793
        %5703 = vmatprep.mubr.bf16.mxu0 %v5584
        %5704 = vmatmul.mubr.bf16.gmra.mxu0 %v5583
        %v5705 = vpop.f32.mrf.mxu0
        %v5706 = vadd.f32 0.0, %v5705
        %v5707 = vpop.f32.mrf.mxu0
        %v5708 = vadd.f32 0.0, %v5707
        %v5709 = vpop.f32.mrf.mxu0
        %v5710 = vadd.f32 0.0, %v5709
        %v5711 = vpop.f32.mrf.mxu0
        %v5712 = vadd.f32 0.0, %v5711
        %5713 = vdwg.mxu0
        %5714 = vmatprep.subr.bf16.mxu0 %v3788
        %5715 = vmatpush1.bf16.msra.mxu0 %v3787
        %5716 = vmatprep.subr.bf16.mxu0 %v3780
        %5717 = vmatpush1.bf16.msra.mxu0 %v3779
        %5718 = vmatprep.subr.bf16.mxu0 %v3772
        %5719 = vmatpush1.bf16.msra.mxu0 %v3771
        %5720 = vmatprep.subr.bf16.mxu0 %v3764
        %5721 = vmatpush1.bf16.msra.mxu0 %v3763
        %5722 = vmatprep.subr.bf16.mxu0 %v3756
        %5723 = vmatpush1.bf16.msra.mxu0 %v3755
        %5724 = vmatprep.subr.bf16.mxu0 %v3748
        %5725 = vmatpush1.bf16.msra.mxu0 %v3747
        %5726 = vmatprep.subr.bf16.mxu0 %v3740
        %5727 = vmatpush1.bf16.msra.mxu0 %v3739
        %5728 = vmatprep.subr.bf16.mxu0 %v3732
        %5729 = vmatpush1.bf16.msra.mxu0 %v3731
        %5730 = vmatprep.subr.bf16.mxu0 %v3852
        %5731 = vmatpush2.bf16.msra.mxu0 %v3851
        %5732 = vmatprep.subr.bf16.mxu0 %v3844
        %5733 = vmatpush2.bf16.msra.mxu0 %v3843
        %5734 = vmatprep.subr.bf16.mxu0 %v3836
        %5735 = vmatpush2.bf16.msra.mxu0 %v3835
        %5736 = vmatprep.subr.bf16.mxu0 %v3828
        %5737 = vmatpush2.bf16.msra.mxu0 %v3827
        %5738 = vmatprep.subr.bf16.mxu0 %v3820
        %5739 = vmatpush2.bf16.msra.mxu0 %v3819
        %5740 = vmatprep.subr.bf16.mxu0 %v3812
        %5741 = vmatpush2.bf16.msra.mxu0 %v3811
        %5742 = vmatprep.subr.bf16.mxu0 %v3804
        %5743 = vmatpush2.bf16.msra.mxu0 %v3803
        %5744 = vmatprep.subr.bf16.mxu0 %v3796
        %5745 = vmatpush2.bf16.msra.mxu0 %v3795
        %5746 = vmatprep.mubr.bf16.mxu0 %v5584
        %5747 = vmatmul.mubr.bf16.gmra.mxu0 %v5583
        %v5748 = vpop.f32.mrf.mxu0
        %v5749 = vadd.f32 0.0, %v5748
        %v5750 = vpop.f32.mrf.mxu0
        %v5751 = vadd.f32 0.0, %v5750
        %v5752 = vpop.f32.mrf.mxu0
        %v5753 = vadd.f32 0.0, %v5752
        %v5754 = vpop.f32.mrf.mxu0
        %v5755 = vadd.f32 0.0, %v5754
        %5756 = vdwg.mxu0
        %v5757 = vadd.f32 %v5567, %v5620
        %v5758 = vadd.f32 %v5568, %v5622
        %v5759 = vadd.f32 %v5569, %v5663
        %v5760 = vadd.f32 %v5570, %v5665
        %v5761 = vadd.f32 %v5571, %v5706
        %v5762 = vadd.f32 %v5572, %v5708
        %v5763 = vadd.f32 %v5573, %v5749
        %v5764 = vadd.f32 %v5574, %v5751
        %v5765 = vadd.f32 %v5575, %v5624
        %v5766 = vadd.f32 %v5576, %v5626
        %v5767 = vadd.f32 %v5577, %v5667
        %v5768 = vadd.f32 %v5578, %v5669
        %v5769 = vadd.f32 %v5579, %v5710
        %v5770 = vadd.f32 %v5580, %v5712
        %v5771 = vadd.f32 %v5581, %v5753
        %v5772 = vadd.f32 %v5582, %v5755
        %v5773 = vxor.u32 %v5757, 2147483648
        %v5774 = vxor.u32 %v5758, 2147483648
        %v5775 = vxor.u32 %v5765, 2147483648
        %v5776 = vxor.u32 %v5766, 2147483648
        %v5777 = vmul.f32 %v5773, 1.442695
        %v5778 = vpow.pop %v5777
        %v5779 = vmul.f32 %v5774, 1.442695
        %v5780 = vpow.pop %v5779
        %v5781 = vmul.f32 %v5775, 1.442695
        %v5782 = vpow.pop %v5781
        %v5783 = vmul.f32 %v5776, 1.442695
        %v5784 = vpow.pop %v5783
        %v5785 = vadd.f32 %v5778, 1.0
        %v5786 = vadd.f32 %v5780, 1.0
        %v5787 = vadd.f32 %v5782, 1.0
        %v5788 = vadd.f32 %v5784, 1.0
        %v5789 = vrcp.pop %v5785
        %v5790 = vmul.f32 1.0, %v5789
        %v5791 = vrcp.pop %v5786
        %v5792 = vmul.f32 1.0, %v5791
        %v5793 = vrcp.pop %v5787
        %v5794 = vmul.f32 1.0, %v5793
        %v5795 = vrcp.pop %v5788
        %v5796 = vmul.f32 1.0, %v5795
        %v5797 = vxor.u32 %v5759, 2147483648
        %v5798 = vxor.u32 %v5760, 2147483648
        %v5799 = vxor.u32 %v5767, 2147483648
        %v5800 = vxor.u32 %v5768, 2147483648
        %v5801 = vmul.f32 %v5797, 1.442695
        %v5802 = vpow.pop %v5801
        %v5803 = vmul.f32 %v5798, 1.442695
        %v5804 = vpow.pop %v5803
        %v5805 = vmul.f32 %v5799, 1.442695
        %v5806 = vpow.pop %v5805
        %v5807 = vmul.f32 %v5800, 1.442695
        %v5808 = vpow.pop %v5807
        %v5809 = vadd.f32 %v5802, 1.0
        %v5810 = vadd.f32 %v5804, 1.0
        %v5811 = vadd.f32 %v5806, 1.0
        %v5812 = vadd.f32 %v5808, 1.0
        %v5813 = vrcp.pop %v5809
        %v5814 = vmul.f32 1.0, %v5813
        %v5815 = vrcp.pop %v5810
        %v5816 = vmul.f32 1.0, %v5815
        %v5817 = vrcp.pop %v5811
        %v5818 = vmul.f32 1.0, %v5817
        %v5819 = vrcp.pop %v5812
        %v5820 = vmul.f32 1.0, %v5819
        %v5821 = vtanh.pop %v5761
        %v5822 = vtanh.pop %v5762
        %v5823 = vtanh.pop %v5769
        %v5824 = vtanh.pop %v5770
        %v5825 = vxor.u32 %v5763, 2147483648
        %v5826 = vxor.u32 %v5764, 2147483648
        %v5827 = vxor.u32 %v5771, 2147483648
        %v5828 = vxor.u32 %v5772, 2147483648
        %v5829 = vmul.f32 %v5825, 1.442695
        %v5830 = vpow.pop %v5829
        %v5831 = vmul.f32 %v5826, 1.442695
        %v5832 = vpow.pop %v5831
        %v5833 = vmul.f32 %v5827, 1.442695
        %v5834 = vpow.pop %v5833
        %v5835 = vmul.f32 %v5828, 1.442695
        %v5836 = vpow.pop %v5835
        %v5837 = vadd.f32 %v5830, 1.0
        %v5838 = vadd.f32 %v5832, 1.0
        %v5839 = vadd.f32 %v5834, 1.0
        %v5840 = vadd.f32 %v5836, 1.0
        %v5841 = vrcp.pop %v5837
        %v5842 = vmul.f32 1.0, %v5841
        %v5843 = vrcp.pop %v5838
        %v5844 = vmul.f32 1.0, %v5843
        %v5845 = vrcp.pop %v5839
        %v5846 = vmul.f32 1.0, %v5845
        %v5847 = vrcp.pop %v5840
        %v5848 = vmul.f32 1.0, %v5847
        %v5849 = vmul.f32 %v5814, %v5536
        %v5850 = vmul.f32 %v5816, %v5537
        %v5851 = vmul.f32 %v5818, %v5538
        %v5852 = vmul.f32 %v5820, %v5539
        %v5853 = vmul.f32 %v5790, %v5821
        %v5854 = vmul.f32 %v5792, %v5822
        %v5855 = vmul.f32 %v5794, %v5823
        %v5856 = vmul.f32 %v5796, %v5824
        %v5857 = vadd.f32 %v5849, %v5853
        %v5858 = vadd.f32 %v5850, %v5854
        %v5859 = vadd.f32 %v5851, %v5855
        %v5860 = vadd.f32 %v5852, %v5856
        %v5861 = vtanh.pop %v5857
        %v5862 = vtanh.pop %v5858
        %v5863 = vtanh.pop %v5859
        %v5864 = vtanh.pop %v5860
        %v5865 = vmul.f32 %v5842, %v5861
        %v5866 = vmul.f32 %v5844, %v5862
        %v5867 = vmul.f32 %v5846, %v5863
        %v5868 = vmul.f32 %v5848, %v5864
        // Predicated region
        $region81: #{tpu_custom_call.1} parent=35 // pred_check
          %p5869 = pneg %p3324
        $region82: #{tpu_custom_call.1} parent=35 // pred_check_branch
          %5871 = sbr.rel (%p5869) target = $region84
        $region83: #{tpu_custom_call.1} parent=35 // pred_region
          %v5872 = vpack.c.bf16 %v5867, %v5865
          %v5873 = vpack.c.bf16 %v5868, %v5866
          %v5876 = vunpack.c.l.b16 %v5872
          %v5877 = vunpack.c.l.b16 %v5873
          %v5878 = vunpack.c.h.b16 %v5872
          %v5879 = vunpack.c.h.b16 %v5873
          %v5880 = vpack.c.b16 %v5877, %v5876
          %v5881 = vpack.c.b16 %v5879, %v5878
          %s5884 = scalar_lea.vmem [#allocation2], 80
          %5885 = vst [vmem:[%s5884] sm:$0xff] %v5880
          %5886 = vst [vmem:[%s5884 + $0x8] sm:$0xff] %v5881
        $region84: #{tpu_custom_call.1} parent=35 // pred_fallthru
          _
        %s5887 = scalar_lea.vmem [#allocation3], 768
        %v5888 = vld [vmem:[%s5887] sm:$0xff]
        %v5889 = vld [vmem:[%s5887 + $0x8] sm:$0xff]
        %v5890 = vld [vmem:[%s5887 + $0x10] sm:$0xff]
        %v5891 = vld [vmem:[%s5887 + $0x18] sm:$0xff]
        %v5892 = vld [vmem:[%s5887 + $0x20] sm:$0xff]
        %v5893 = vld [vmem:[%s5887 + $0x28] sm:$0xff]
        %v5894 = vld [vmem:[%s5887 + $0x30] sm:$0xff]
        %v5895 = vld [vmem:[%s5887 + $0x38] sm:$0xff]
        %v5896 = vld [vmem:[%s5887 + $0x40] sm:$0xff]
        %v5897 = vld [vmem:[%s5887 + $0x48] sm:$0xff]
        %v5898 = vld [vmem:[%s5887 + $0x50] sm:$0xff]
        %v5899 = vld [vmem:[%s5887 + $0x58] sm:$0xff]
        %v5900 = vld [vmem:[%s5887 + $0x60] sm:$0xff]
        %v5901 = vld [vmem:[%s5887 + $0x68] sm:$0xff]
        %v5902 = vld [vmem:[%s5887 + $0x70] sm:$0xff]
        %v5903 = vld [vmem:[%s5887 + $0x78] sm:$0xff]
        %v5904 = vpack.c.bf16 %v5867, %v5865
        %v5905 = vpack.c.bf16 %v5868, %v5866
        %5906 = vmatprep.subr.bf16.mxu0 %v3782
        %5907 = vmatpush1.bf16.msra.mxu0 %v3781
        %5908 = vmatprep.subr.bf16.mxu0 %v3774
        %5909 = vmatpush1.bf16.msra.mxu0 %v3773
        %5910 = vmatprep.subr.bf16.mxu0 %v3766
        %5911 = vmatpush1.bf16.msra.mxu0 %v3765
        %5912 = vmatprep.subr.bf16.mxu0 %v3758
        %5913 = vmatpush1.bf16.msra.mxu0 %v3757
        %5914 = vmatprep.subr.bf16.mxu0 %v3750
        %5915 = vmatpush1.bf16.msra.mxu0 %v3749
        %5916 = vmatprep.subr.bf16.mxu0 %v3742
        %5917 = vmatpush1.bf16.msra.mxu0 %v3741
        %5918 = vmatprep.subr.bf16.mxu0 %v3734
        %5919 = vmatpush1.bf16.msra.mxu0 %v3733
        %5920 = vmatprep.subr.bf16.mxu0 %v3726
        %5921 = vmatpush1.bf16.msra.mxu0 %v3725
        %5922 = vmatprep.subr.bf16.mxu0 %v3846
        %5923 = vmatpush2.bf16.msra.mxu0 %v3845
        %5924 = vmatprep.subr.bf16.mxu0 %v3838
        %5925 = vmatpush2.bf16.msra.mxu0 %v3837
        %5926 = vmatprep.subr.bf16.mxu0 %v3830
        %5927 = vmatpush2.bf16.msra.mxu0 %v3829
        %5928 = vmatprep.subr.bf16.mxu0 %v3822
        %5929 = vmatpush2.bf16.msra.mxu0 %v3821
        %5930 = vmatprep.subr.bf16.mxu0 %v3814
        %5931 = vmatpush2.bf16.msra.mxu0 %v3813
        %5932 = vmatprep.subr.bf16.mxu0 %v3806
        %5933 = vmatpush2.bf16.msra.mxu0 %v3805
        %5934 = vmatprep.subr.bf16.mxu0 %v3798
        %5935 = vmatpush2.bf16.msra.mxu0 %v3797
        %5936 = vmatprep.subr.bf16.mxu0 %v3790
        %5937 = vmatpush2.bf16.msra.mxu0 %v3789
        %5938 = vmatprep.mubr.bf16.mxu0 %v5905
        %5939 = vmatmul.mubr.bf16.gmra.mxu0 %v5904
        %v5940 = vpop.f32.mrf.mxu0
        %v5941 = vadd.f32 0.0, %v5940
        %v5942 = vpop.f32.mrf.mxu0
        %v5943 = vadd.f32 0.0, %v5942
        %v5944 = vpop.f32.mrf.mxu0
        %v5945 = vadd.f32 0.0, %v5944
        %v5946 = vpop.f32.mrf.mxu0
        %v5947 = vadd.f32 0.0, %v5946
        %5948 = vdwg.mxu0
        %5949 = vmatprep.subr.bf16.mxu0 %v3784
        %5950 = vmatpush1.bf16.msra.mxu0 %v3783
        %5951 = vmatprep.subr.bf16.mxu0 %v3776
        %5952 = vmatpush1.bf16.msra.mxu0 %v3775
        %5953 = vmatprep.subr.bf16.mxu0 %v3768
        %5954 = vmatpush1.bf16.msra.mxu0 %v3767
        %5955 = vmatprep.subr.bf16.mxu0 %v3760
        %5956 = vmatpush1.bf16.msra.mxu0 %v3759
        %5957 = vmatprep.subr.bf16.mxu0 %v3752
        %5958 = vmatpush1.bf16.msra.mxu0 %v3751
        %5959 = vmatprep.subr.bf16.mxu0 %v3744
        %5960 = vmatpush1.bf16.msra.mxu0 %v3743
        %5961 = vmatprep.subr.bf16.mxu0 %v3736
        %5962 = vmatpush1.bf16.msra.mxu0 %v3735
        %5963 = vmatprep.subr.bf16.mxu0 %v3728
        %5964 = vmatpush1.bf16.msra.mxu0 %v3727
        %5965 = vmatprep.subr.bf16.mxu0 %v3848
        %5966 = vmatpush2.bf16.msra.mxu0 %v3847
        %5967 = vmatprep.subr.bf16.mxu0 %v3840
        %5968 = vmatpush2.bf16.msra.mxu0 %v3839
        %5969 = vmatprep.subr.bf16.mxu0 %v3832
        %5970 = vmatpush2.bf16.msra.mxu0 %v3831
        %5971 = vmatprep.subr.bf16.mxu0 %v3824
        %5972 = vmatpush2.bf16.msra.mxu0 %v3823
        %5973 = vmatprep.subr.bf16.mxu0 %v3816
        %5974 = vmatpush2.bf16.msra.mxu0 %v3815
        %5975 = vmatprep.subr.bf16.mxu0 %v3808
        %5976 = vmatpush2.bf16.msra.mxu0 %v3807
        %5977 = vmatprep.subr.bf16.mxu0 %v3800
        %5978 = vmatpush2.bf16.msra.mxu0 %v3799
        %5979 = vmatprep.subr.bf16.mxu0 %v3792
        %5980 = vmatpush2.bf16.msra.mxu0 %v3791
        %5981 = vmatprep.mubr.bf16.mxu0 %v5905
        %5982 = vmatmul.mubr.bf16.gmra.mxu0 %v5904
        %v5983 = vpop.f32.mrf.mxu0
        %v5984 = vadd.f32 0.0, %v5983
        %v5985 = vpop.f32.mrf.mxu0
        %v5986 = vadd.f32 0.0, %v5985
        %v5987 = vpop.f32.mrf.mxu0
        %v5988 = vadd.f32 0.0, %v5987
        %v5989 = vpop.f32.mrf.mxu0
        %v5990 = vadd.f32 0.0, %v5989
        %5991 = vdwg.mxu0
        %5992 = vmatprep.subr.bf16.mxu0 %v3786
        %5993 = vmatpush1.bf16.msra.mxu0 %v3785
        %5994 = vmatprep.subr.bf16.mxu0 %v3778
        %5995 = vmatpush1.bf16.msra.mxu0 %v3777
        %5996 = vmatprep.subr.bf16.mxu0 %v3770
        %5997 = vmatpush1.bf16.msra.mxu0 %v3769
        %5998 = vmatprep.subr.bf16.mxu0 %v3762
        %5999 = vmatpush1.bf16.msra.mxu0 %v3761
        %6000 = vmatprep.subr.bf16.mxu0 %v3754
        %6001 = vmatpush1.bf16.msra.mxu0 %v3753
        %6002 = vmatprep.subr.bf16.mxu0 %v3746
        %6003 = vmatpush1.bf16.msra.mxu0 %v3745
        %6004 = vmatprep.subr.bf16.mxu0 %v3738
        %6005 = vmatpush1.bf16.msra.mxu0 %v3737
        %6006 = vmatprep.subr.bf16.mxu0 %v3730
        %6007 = vmatpush1.bf16.msra.mxu0 %v3729
        %6008 = vmatprep.subr.bf16.mxu0 %v3850
        %6009 = vmatpush2.bf16.msra.mxu0 %v3849
        %6010 = vmatprep.subr.bf16.mxu0 %v3842
        %6011 = vmatpush2.bf16.msra.mxu0 %v3841
        %6012 = vmatprep.subr.bf16.mxu0 %v3834
        %6013 = vmatpush2.bf16.msra.mxu0 %v3833
        %6014 = vmatprep.subr.bf16.mxu0 %v3826
        %6015 = vmatpush2.bf16.msra.mxu0 %v3825
        %6016 = vmatprep.subr.bf16.mxu0 %v3818
        %6017 = vmatpush2.bf16.msra.mxu0 %v3817
        %6018 = vmatprep.subr.bf16.mxu0 %v3810
        %6019 = vmatpush2.bf16.msra.mxu0 %v3809
        %6020 = vmatprep.subr.bf16.mxu0 %v3802
        %6021 = vmatpush2.bf16.msra.mxu0 %v3801
        %6022 = vmatprep.subr.bf16.mxu0 %v3794
        %6023 = vmatpush2.bf16.msra.mxu0 %v3793
        %6024 = vmatprep.mubr.bf16.mxu0 %v5905
        %6025 = vmatmul.mubr.bf16.gmra.mxu0 %v5904
        %v6026 = vpop.f32.mrf.mxu0
        %v6027 = vadd.f32 0.0, %v6026
        %v6028 = vpop.f32.mrf.mxu0
        %v6029 = vadd.f32 0.0, %v6028
        %v6030 = vpop.f32.mrf.mxu0
        %v6031 = vadd.f32 0.0, %v6030
        %v6032 = vpop.f32.mrf.mxu0
        %v6033 = vadd.f32 0.0, %v6032
        %6034 = vdwg.mxu0
        %6035 = vmatprep.subr.bf16.mxu0 %v3788
        %6036 = vmatpush1.bf16.msra.mxu0 %v3787
        %6037 = vmatprep.subr.bf16.mxu0 %v3780
        %6038 = vmatpush1.bf16.msra.mxu0 %v3779
        %6039 = vmatprep.subr.bf16.mxu0 %v3772
        %6040 = vmatpush1.bf16.msra.mxu0 %v3771
        %6041 = vmatprep.subr.bf16.mxu0 %v3764
        %6042 = vmatpush1.bf16.msra.mxu0 %v3763
        %6043 = vmatprep.subr.bf16.mxu0 %v3756
        %6044 = vmatpush1.bf16.msra.mxu0 %v3755
        %6045 = vmatprep.subr.bf16.mxu0 %v3748
        %6046 = vmatpush1.bf16.msra.mxu0 %v3747
        %6047 = vmatprep.subr.bf16.mxu0 %v3740
        %6048 = vmatpush1.bf16.msra.mxu0 %v3739
        %6049 = vmatprep.subr.bf16.mxu0 %v3732
        %6050 = vmatpush1.bf16.msra.mxu0 %v3731
        %6051 = vmatprep.subr.bf16.mxu0 %v3852
        %6052 = vmatpush2.bf16.msra.mxu0 %v3851
        %6053 = vmatprep.subr.bf16.mxu0 %v3844
        %6054 = vmatpush2.bf16.msra.mxu0 %v3843
        %6055 = vmatprep.subr.bf16.mxu0 %v3836
        %6056 = vmatpush2.bf16.msra.mxu0 %v3835
        %6057 = vmatprep.subr.bf16.mxu0 %v3828
        %6058 = vmatpush2.bf16.msra.mxu0 %v3827
        %6059 = vmatprep.subr.bf16.mxu0 %v3820
        %6060 = vmatpush2.bf16.msra.mxu0 %v3819
        %6061 = vmatprep.subr.bf16.mxu0 %v3812
        %6062 = vmatpush2.bf16.msra.mxu0 %v3811
        %6063 = vmatprep.subr.bf16.mxu0 %v3804
        %6064 = vmatpush2.bf16.msra.mxu0 %v3803
        %6065 = vmatprep.subr.bf16.mxu0 %v3796
        %6066 = vmatpush2.bf16.msra.mxu0 %v3795
        %6067 = vmatprep.mubr.bf16.mxu0 %v5905
        %6068 = vmatmul.mubr.bf16.gmra.mxu0 %v5904
        %v6069 = vpop.f32.mrf.mxu0
        %v6070 = vadd.f32 0.0, %v6069
        %v6071 = vpop.f32.mrf.mxu0
        %v6072 = vadd.f32 0.0, %v6071
        %v6073 = vpop.f32.mrf.mxu0
        %v6074 = vadd.f32 0.0, %v6073
        %v6075 = vpop.f32.mrf.mxu0
        %v6076 = vadd.f32 0.0, %v6075
        %6077 = vdwg.mxu0
        %v6078 = vadd.f32 %v5888, %v5941
        %v6079 = vadd.f32 %v5889, %v5943
        %v6080 = vadd.f32 %v5890, %v5984
        %v6081 = vadd.f32 %v5891, %v5986
        %v6082 = vadd.f32 %v5892, %v6027
        %v6083 = vadd.f32 %v5893, %v6029
        %v6084 = vadd.f32 %v5894, %v6070
        %v6085 = vadd.f32 %v5895, %v6072
        %v6086 = vadd.f32 %v5896, %v5945
        %v6087 = vadd.f32 %v5897, %v5947
        %v6088 = vadd.f32 %v5898, %v5988
        %v6089 = vadd.f32 %v5899, %v5990
        %v6090 = vadd.f32 %v5900, %v6031
        %v6091 = vadd.f32 %v5901, %v6033
        %v6092 = vadd.f32 %v5902, %v6074
        %v6093 = vadd.f32 %v5903, %v6076
        %v6094 = vxor.u32 %v6078, 2147483648
        %v6095 = vxor.u32 %v6079, 2147483648
        %v6096 = vxor.u32 %v6086, 2147483648
        %v6097 = vxor.u32 %v6087, 2147483648
        %v6098 = vmul.f32 %v6094, 1.442695
        %v6099 = vpow.pop %v6098
        %v6100 = vmul.f32 %v6095, 1.442695
        %v6101 = vpow.pop %v6100
        %v6102 = vmul.f32 %v6096, 1.442695
        %v6103 = vpow.pop %v6102
        %v6104 = vmul.f32 %v6097, 1.442695
        %v6105 = vpow.pop %v6104
        %v6106 = vadd.f32 %v6099, 1.0
        %v6107 = vadd.f32 %v6101, 1.0
        %v6108 = vadd.f32 %v6103, 1.0
        %v6109 = vadd.f32 %v6105, 1.0
        %v6110 = vrcp.pop %v6106
        %v6111 = vmul.f32 1.0, %v6110
        %v6112 = vrcp.pop %v6107
        %v6113 = vmul.f32 1.0, %v6112
        %v6114 = vrcp.pop %v6108
        %v6115 = vmul.f32 1.0, %v6114
        %v6116 = vrcp.pop %v6109
        %v6117 = vmul.f32 1.0, %v6116
        %v6118 = vxor.u32 %v6080, 2147483648
        %v6119 = vxor.u32 %v6081, 2147483648
        %v6120 = vxor.u32 %v6088, 2147483648
        %v6121 = vxor.u32 %v6089, 2147483648
        %v6122 = vmul.f32 %v6118, 1.442695
        %v6123 = vpow.pop %v6122
        %v6124 = vmul.f32 %v6119, 1.442695
        %v6125 = vpow.pop %v6124
        %v6126 = vmul.f32 %v6120, 1.442695
        %v6127 = vpow.pop %v6126
        %v6128 = vmul.f32 %v6121, 1.442695
        %v6129 = vpow.pop %v6128
        %v6130 = vadd.f32 %v6123, 1.0
        %v6131 = vadd.f32 %v6125, 1.0
        %v6132 = vadd.f32 %v6127, 1.0
        %v6133 = vadd.f32 %v6129, 1.0
        %v6134 = vrcp.pop %v6130
        %v6135 = vmul.f32 1.0, %v6134
        %v6136 = vrcp.pop %v6131
        %v6137 = vmul.f32 1.0, %v6136
        %v6138 = vrcp.pop %v6132
        %v6139 = vmul.f32 1.0, %v6138
        %v6140 = vrcp.pop %v6133
        %v6141 = vmul.f32 1.0, %v6140
        %v6142 = vtanh.pop %v6082
        %v6143 = vtanh.pop %v6083
        %v6144 = vtanh.pop %v6090
        %v6145 = vtanh.pop %v6091
        %v6146 = vxor.u32 %v6084, 2147483648
        %v6147 = vxor.u32 %v6085, 2147483648
        %v6148 = vxor.u32 %v6092, 2147483648
        %v6149 = vxor.u32 %v6093, 2147483648
        %v6150 = vmul.f32 %v6146, 1.442695
        %v6151 = vpow.pop %v6150
        %v6152 = vmul.f32 %v6147, 1.442695
        %v6153 = vpow.pop %v6152
        %v6154 = vmul.f32 %v6148, 1.442695
        %v6155 = vpow.pop %v6154
        %v6156 = vmul.f32 %v6149, 1.442695
        %v6157 = vpow.pop %v6156
        %v6158 = vadd.f32 %v6151, 1.0
        %v6159 = vadd.f32 %v6153, 1.0
        %v6160 = vadd.f32 %v6155, 1.0
        %v6161 = vadd.f32 %v6157, 1.0
        %v6162 = vrcp.pop %v6158
        %v6163 = vmul.f32 1.0, %v6162
        %v6164 = vrcp.pop %v6159
        %v6165 = vmul.f32 1.0, %v6164
        %v6166 = vrcp.pop %v6160
        %v6167 = vmul.f32 1.0, %v6166
        %v6168 = vrcp.pop %v6161
        %v6169 = vmul.f32 1.0, %v6168
        %v6170 = vmul.f32 %v6135, %v5857
        %v6171 = vmul.f32 %v6137, %v5858
        %v6172 = vmul.f32 %v6139, %v5859
        %v6173 = vmul.f32 %v6141, %v5860
        %v6174 = vmul.f32 %v6111, %v6142
        %v6175 = vmul.f32 %v6113, %v6143
        %v6176 = vmul.f32 %v6115, %v6144
        %v6177 = vmul.f32 %v6117, %v6145
        %v6178 = vadd.f32 %v6170, %v6174
        %v6179 = vadd.f32 %v6171, %v6175
        %v6180 = vadd.f32 %v6172, %v6176
        %v6181 = vadd.f32 %v6173, %v6177
        %v6182 = vtanh.pop %v6178
        %v6183 = vtanh.pop %v6179
        %v6184 = vtanh.pop %v6180
        %v6185 = vtanh.pop %v6181
        %v6186 = vmul.f32 %v6163, %v6182
        %v6187 = vmul.f32 %v6165, %v6183
        %v6188 = vmul.f32 %v6167, %v6184
        %v6189 = vmul.f32 %v6169, %v6185
        // Predicated region
        $region85: #{tpu_custom_call.1} parent=35 // pred_check
          %p6190 = pneg %p3324
        $region86: #{tpu_custom_call.1} parent=35 // pred_check_branch
          %6192 = sbr.rel (%p6190) target = $region88
        $region87: #{tpu_custom_call.1} parent=35 // pred_region
          %v6193 = vpack.c.bf16 %v6188, %v6186
          %v6194 = vpack.c.bf16 %v6189, %v6187
          %v6197 = vunpack.c.l.b16 %v6193
          %v6198 = vunpack.c.l.b16 %v6194
          %v6199 = vunpack.c.h.b16 %v6193
          %v6200 = vunpack.c.h.b16 %v6194
          %v6201 = vpack.c.b16 %v6198, %v6197
          %v6202 = vpack.c.b16 %v6200, %v6199
          %s6205 = scalar_lea.vmem [#allocation2], 96
          %6206 = vst [vmem:[%s6205] sm:$0xff] %v6201
          %6207 = vst [vmem:[%s6205 + $0x8] sm:$0xff] %v6202
        $region88: #{tpu_custom_call.1} parent=35 // pred_fallthru
          _
        %s6208 = scalar_lea.vmem [#allocation3], 896
        %v6209 = vld [vmem:[%s6208] sm:$0xff]
        %v6210 = vld [vmem:[%s6208 + $0x8] sm:$0xff]
        %v6211 = vld [vmem:[%s6208 + $0x10] sm:$0xff]
        %v6212 = vld [vmem:[%s6208 + $0x18] sm:$0xff]
        %v6213 = vld [vmem:[%s6208 + $0x20] sm:$0xff]
        %v6214 = vld [vmem:[%s6208 + $0x28] sm:$0xff]
        %v6215 = vld [vmem:[%s6208 + $0x30] sm:$0xff]
        %v6216 = vld [vmem:[%s6208 + $0x38] sm:$0xff]
        %v6217 = vld [vmem:[%s6208 + $0x40] sm:$0xff]
        %v6218 = vld [vmem:[%s6208 + $0x48] sm:$0xff]
        %v6219 = vld [vmem:[%s6208 + $0x50] sm:$0xff]
        %v6220 = vld [vmem:[%s6208 + $0x58] sm:$0xff]
        %v6221 = vld [vmem:[%s6208 + $0x60] sm:$0xff]
        %v6222 = vld [vmem:[%s6208 + $0x68] sm:$0xff]
        %v6223 = vld [vmem:[%s6208 + $0x70] sm:$0xff]
        %v6224 = vld [vmem:[%s6208 + $0x78] sm:$0xff]
        %v6225 = vpack.c.bf16 %v6188, %v6186
        %v6226 = vpack.c.bf16 %v6189, %v6187
        %6227 = vmatprep.subr.bf16.mxu0 %v3782
        %6228 = vmatpush1.bf16.msra.mxu0 %v3781
        %6229 = vmatprep.subr.bf16.mxu0 %v3774
        %6230 = vmatpush1.bf16.msra.mxu0 %v3773
        %6231 = vmatprep.subr.bf16.mxu0 %v3766
        %6232 = vmatpush1.bf16.msra.mxu0 %v3765
        %6233 = vmatprep.subr.bf16.mxu0 %v3758
        %6234 = vmatpush1.bf16.msra.mxu0 %v3757
        %6235 = vmatprep.subr.bf16.mxu0 %v3750
        %6236 = vmatpush1.bf16.msra.mxu0 %v3749
        %6237 = vmatprep.subr.bf16.mxu0 %v3742
        %6238 = vmatpush1.bf16.msra.mxu0 %v3741
        %6239 = vmatprep.subr.bf16.mxu0 %v3734
        %6240 = vmatpush1.bf16.msra.mxu0 %v3733
        %6241 = vmatprep.subr.bf16.mxu0 %v3726
        %6242 = vmatpush1.bf16.msra.mxu0 %v3725
        %6243 = vmatprep.subr.bf16.mxu0 %v3846
        %6244 = vmatpush2.bf16.msra.mxu0 %v3845
        %6245 = vmatprep.subr.bf16.mxu0 %v3838
        %6246 = vmatpush2.bf16.msra.mxu0 %v3837
        %6247 = vmatprep.subr.bf16.mxu0 %v3830
        %6248 = vmatpush2.bf16.msra.mxu0 %v3829
        %6249 = vmatprep.subr.bf16.mxu0 %v3822
        %6250 = vmatpush2.bf16.msra.mxu0 %v3821
        %6251 = vmatprep.subr.bf16.mxu0 %v3814
        %6252 = vmatpush2.bf16.msra.mxu0 %v3813
        %6253 = vmatprep.subr.bf16.mxu0 %v3806
        %6254 = vmatpush2.bf16.msra.mxu0 %v3805
        %6255 = vmatprep.subr.bf16.mxu0 %v3798
        %6256 = vmatpush2.bf16.msra.mxu0 %v3797
        %6257 = vmatprep.subr.bf16.mxu0 %v3790
        %6258 = vmatpush2.bf16.msra.mxu0 %v3789
        %6259 = vmatprep.mubr.bf16.mxu0 %v6226
        %6260 = vmatmul.mubr.bf16.gmra.mxu0 %v6225
        %v6261 = vpop.f32.mrf.mxu0
        %v6262 = vadd.f32 0.0, %v6261
        %v6263 = vpop.f32.mrf.mxu0
        %v6264 = vadd.f32 0.0, %v6263
        %v6265 = vpop.f32.mrf.mxu0
        %v6266 = vadd.f32 0.0, %v6265
        %v6267 = vpop.f32.mrf.mxu0
        %v6268 = vadd.f32 0.0, %v6267
        %6269 = vdwg.mxu0
        %6270 = vmatprep.subr.bf16.mxu0 %v3784
        %6271 = vmatpush1.bf16.msra.mxu0 %v3783
        %6272 = vmatprep.subr.bf16.mxu0 %v3776
        %6273 = vmatpush1.bf16.msra.mxu0 %v3775
        %6274 = vmatprep.subr.bf16.mxu0 %v3768
        %6275 = vmatpush1.bf16.msra.mxu0 %v3767
        %6276 = vmatprep.subr.bf16.mxu0 %v3760
        %6277 = vmatpush1.bf16.msra.mxu0 %v3759
        %6278 = vmatprep.subr.bf16.mxu0 %v3752
        %6279 = vmatpush1.bf16.msra.mxu0 %v3751
        %6280 = vmatprep.subr.bf16.mxu0 %v3744
        %6281 = vmatpush1.bf16.msra.mxu0 %v3743
        %6282 = vmatprep.subr.bf16.mxu0 %v3736
        %6283 = vmatpush1.bf16.msra.mxu0 %v3735
        %6284 = vmatprep.subr.bf16.mxu0 %v3728
        %6285 = vmatpush1.bf16.msra.mxu0 %v3727
        %6286 = vmatprep.subr.bf16.mxu0 %v3848
        %6287 = vmatpush2.bf16.msra.mxu0 %v3847
        %6288 = vmatprep.subr.bf16.mxu0 %v3840
        %6289 = vmatpush2.bf16.msra.mxu0 %v3839
        %6290 = vmatprep.subr.bf16.mxu0 %v3832
        %6291 = vmatpush2.bf16.msra.mxu0 %v3831
        %6292 = vmatprep.subr.bf16.mxu0 %v3824
        %6293 = vmatpush2.bf16.msra.mxu0 %v3823
        %6294 = vmatprep.subr.bf16.mxu0 %v3816
        %6295 = vmatpush2.bf16.msra.mxu0 %v3815
        %6296 = vmatprep.subr.bf16.mxu0 %v3808
        %6297 = vmatpush2.bf16.msra.mxu0 %v3807
        %6298 = vmatprep.subr.bf16.mxu0 %v3800
        %6299 = vmatpush2.bf16.msra.mxu0 %v3799
        %6300 = vmatprep.subr.bf16.mxu0 %v3792
        %6301 = vmatpush2.bf16.msra.mxu0 %v3791
        %6302 = vmatprep.mubr.bf16.mxu0 %v6226
        %6303 = vmatmul.mubr.bf16.gmra.mxu0 %v6225
        %v6304 = vpop.f32.mrf.mxu0
        %v6305 = vadd.f32 0.0, %v6304
        %v6306 = vpop.f32.mrf.mxu0
        %v6307 = vadd.f32 0.0, %v6306
        %v6308 = vpop.f32.mrf.mxu0
        %v6309 = vadd.f32 0.0, %v6308
        %v6310 = vpop.f32.mrf.mxu0
        %v6311 = vadd.f32 0.0, %v6310
        %6312 = vdwg.mxu0
        %6313 = vmatprep.subr.bf16.mxu0 %v3786
        %6314 = vmatpush1.bf16.msra.mxu0 %v3785
        %6315 = vmatprep.subr.bf16.mxu0 %v3778
        %6316 = vmatpush1.bf16.msra.mxu0 %v3777
        %6317 = vmatprep.subr.bf16.mxu0 %v3770
        %6318 = vmatpush1.bf16.msra.mxu0 %v3769
        %6319 = vmatprep.subr.bf16.mxu0 %v3762
        %6320 = vmatpush1.bf16.msra.mxu0 %v3761
        %6321 = vmatprep.subr.bf16.mxu0 %v3754
        %6322 = vmatpush1.bf16.msra.mxu0 %v3753
        %6323 = vmatprep.subr.bf16.mxu0 %v3746
        %6324 = vmatpush1.bf16.msra.mxu0 %v3745
        %6325 = vmatprep.subr.bf16.mxu0 %v3738
        %6326 = vmatpush1.bf16.msra.mxu0 %v3737
        %6327 = vmatprep.subr.bf16.mxu0 %v3730
        %6328 = vmatpush1.bf16.msra.mxu0 %v3729
        %6329 = vmatprep.subr.bf16.mxu0 %v3850
        %6330 = vmatpush2.bf16.msra.mxu0 %v3849
        %6331 = vmatprep.subr.bf16.mxu0 %v3842
        %6332 = vmatpush2.bf16.msra.mxu0 %v3841
        %6333 = vmatprep.subr.bf16.mxu0 %v3834
        %6334 = vmatpush2.bf16.msra.mxu0 %v3833
        %6335 = vmatprep.subr.bf16.mxu0 %v3826
        %6336 = vmatpush2.bf16.msra.mxu0 %v3825
        %6337 = vmatprep.subr.bf16.mxu0 %v3818
        %6338 = vmatpush2.bf16.msra.mxu0 %v3817
        %6339 = vmatprep.subr.bf16.mxu0 %v3810
        %6340 = vmatpush2.bf16.msra.mxu0 %v3809
        %6341 = vmatprep.subr.bf16.mxu0 %v3802
        %6342 = vmatpush2.bf16.msra.mxu0 %v3801
        %6343 = vmatprep.subr.bf16.mxu0 %v3794
        %6344 = vmatpush2.bf16.msra.mxu0 %v3793
        %6345 = vmatprep.mubr.bf16.mxu0 %v6226
        %6346 = vmatmul.mubr.bf16.gmra.mxu0 %v6225
        %v6347 = vpop.f32.mrf.mxu0
        %v6348 = vadd.f32 0.0, %v6347
        %v6349 = vpop.f32.mrf.mxu0
        %v6350 = vadd.f32 0.0, %v6349
        %v6351 = vpop.f32.mrf.mxu0
        %v6352 = vadd.f32 0.0, %v6351
        %v6353 = vpop.f32.mrf.mxu0
        %v6354 = vadd.f32 0.0, %v6353
        %6355 = vdwg.mxu0
        %6356 = vmatprep.subr.bf16.mxu0 %v3788
        %6357 = vmatpush1.bf16.msra.mxu0 %v3787
        %6358 = vmatprep.subr.bf16.mxu0 %v3780
        %6359 = vmatpush1.bf16.msra.mxu0 %v3779
        %6360 = vmatprep.subr.bf16.mxu0 %v3772
        %6361 = vmatpush1.bf16.msra.mxu0 %v3771
        %6362 = vmatprep.subr.bf16.mxu0 %v3764
        %6363 = vmatpush1.bf16.msra.mxu0 %v3763
        %6364 = vmatprep.subr.bf16.mxu0 %v3756
        %6365 = vmatpush1.bf16.msra.mxu0 %v3755
        %6366 = vmatprep.subr.bf16.mxu0 %v3748
        %6367 = vmatpush1.bf16.msra.mxu0 %v3747
        %6368 = vmatprep.subr.bf16.mxu0 %v3740
        %6369 = vmatpush1.bf16.msra.mxu0 %v3739
        %6370 = vmatprep.subr.bf16.mxu0 %v3732
        %6371 = vmatpush1.bf16.msra.mxu0 %v3731
        %6372 = vmatprep.subr.bf16.mxu0 %v3852
        %6373 = vmatpush2.bf16.msra.mxu0 %v3851
        %6374 = vmatprep.subr.bf16.mxu0 %v3844
        %6375 = vmatpush2.bf16.msra.mxu0 %v3843
        %6376 = vmatprep.subr.bf16.mxu0 %v3836
        %6377 = vmatpush2.bf16.msra.mxu0 %v3835
        %6378 = vmatprep.subr.bf16.mxu0 %v3828
        %6379 = vmatpush2.bf16.msra.mxu0 %v3827
        %6380 = vmatprep.subr.bf16.mxu0 %v3820
        %6381 = vmatpush2.bf16.msra.mxu0 %v3819
        %6382 = vmatprep.subr.bf16.mxu0 %v3812
        %6383 = vmatpush2.bf16.msra.mxu0 %v3811
        %6384 = vmatprep.subr.bf16.mxu0 %v3804
        %6385 = vmatpush2.bf16.msra.mxu0 %v3803
        %6386 = vmatprep.subr.bf16.mxu0 %v3796
        %6387 = vmatpush2.bf16.msra.mxu0 %v3795
        %6388 = vmatprep.mubr.bf16.mxu0 %v6226
        %6389 = vmatmul.mubr.bf16.gmra.mxu0 %v6225
        %v6390 = vpop.f32.mrf.mxu0
        %v6391 = vadd.f32 0.0, %v6390
        %v6392 = vpop.f32.mrf.mxu0
        %v6393 = vadd.f32 0.0, %v6392
        %v6394 = vpop.f32.mrf.mxu0
        %v6395 = vadd.f32 0.0, %v6394
        %v6396 = vpop.f32.mrf.mxu0
        %v6397 = vadd.f32 0.0, %v6396
        %6398 = vdwg.mxu0
        %v6399 = vadd.f32 %v6209, %v6262
        %v6400 = vadd.f32 %v6210, %v6264
        %v6401 = vadd.f32 %v6211, %v6305
        %v6402 = vadd.f32 %v6212, %v6307
        %v6403 = vadd.f32 %v6213, %v6348
        %v6404 = vadd.f32 %v6214, %v6350
        %v6405 = vadd.f32 %v6215, %v6391
        %v6406 = vadd.f32 %v6216, %v6393
        %v6407 = vadd.f32 %v6217, %v6266
        %v6408 = vadd.f32 %v6218, %v6268
        %v6409 = vadd.f32 %v6219, %v6309
        %v6410 = vadd.f32 %v6220, %v6311
        %v6411 = vadd.f32 %v6221, %v6352
        %v6412 = vadd.f32 %v6222, %v6354
        %v6413 = vadd.f32 %v6223, %v6395
        %v6414 = vadd.f32 %v6224, %v6397
        %v6415 = vxor.u32 %v6399, 2147483648
        %v6416 = vxor.u32 %v6400, 2147483648
        %v6417 = vxor.u32 %v6407, 2147483648
        %v6418 = vxor.u32 %v6408, 2147483648
        %v6419 = vmul.f32 %v6415, 1.442695
        %v6420 = vpow.pop %v6419
        %v6421 = vmul.f32 %v6416, 1.442695
        %v6422 = vpow.pop %v6421
        %v6423 = vmul.f32 %v6417, 1.442695
        %v6424 = vpow.pop %v6423
        %v6425 = vmul.f32 %v6418, 1.442695
        %v6426 = vpow.pop %v6425
        %v6427 = vadd.f32 %v6420, 1.0
        %v6428 = vadd.f32 %v6422, 1.0
        %v6429 = vadd.f32 %v6424, 1.0
        %v6430 = vadd.f32 %v6426, 1.0
        %v6431 = vrcp.pop %v6427
        %v6432 = vmul.f32 1.0, %v6431
        %v6433 = vrcp.pop %v6428
        %v6434 = vmul.f32 1.0, %v6433
        %v6435 = vrcp.pop %v6429
        %v6436 = vmul.f32 1.0, %v6435
        %v6437 = vrcp.pop %v6430
        %v6438 = vmul.f32 1.0, %v6437
        %v6439 = vxor.u32 %v6401, 2147483648
        %v6440 = vxor.u32 %v6402, 2147483648
        %v6441 = vxor.u32 %v6409, 2147483648
        %v6442 = vxor.u32 %v6410, 2147483648
        %v6443 = vmul.f32 %v6439, 1.442695
        %v6444 = vpow.pop %v6443
        %v6445 = vmul.f32 %v6440, 1.442695
        %v6446 = vpow.pop %v6445
        %v6447 = vmul.f32 %v6441, 1.442695
        %v6448 = vpow.pop %v6447
        %v6449 = vmul.f32 %v6442, 1.442695
        %v6450 = vpow.pop %v6449
        %v6451 = vadd.f32 %v6444, 1.0
        %v6452 = vadd.f32 %v6446, 1.0
        %v6453 = vadd.f32 %v6448, 1.0
        %v6454 = vadd.f32 %v6450, 1.0
        %v6455 = vrcp.pop %v6451
        %v6456 = vmul.f32 1.0, %v6455
        %v6457 = vrcp.pop %v6452
        %v6458 = vmul.f32 1.0, %v6457
        %v6459 = vrcp.pop %v6453
        %v6460 = vmul.f32 1.0, %v6459
        %v6461 = vrcp.pop %v6454
        %v6462 = vmul.f32 1.0, %v6461
        %v6463 = vtanh.pop %v6403
        %v6464 = vtanh.pop %v6404
        %v6465 = vtanh.pop %v6411
        %v6466 = vtanh.pop %v6412
        %v6467 = vxor.u32 %v6405, 2147483648
        %v6468 = vxor.u32 %v6406, 2147483648
        %v6469 = vxor.u32 %v6413, 2147483648
        %v6470 = vxor.u32 %v6414, 2147483648
        %v6471 = vmul.f32 %v6467, 1.442695
        %v6472 = vpow.pop %v6471
        %v6473 = vmul.f32 %v6468, 1.442695
        %v6474 = vpow.pop %v6473
        %v6475 = vmul.f32 %v6469, 1.442695
        %v6476 = vpow.pop %v6475
        %v6477 = vmul.f32 %v6470, 1.442695
        %v6478 = vpow.pop %v6477
        %v6479 = vadd.f32 %v6472, 1.0
        %v6480 = vadd.f32 %v6474, 1.0
        %v6481 = vadd.f32 %v6476, 1.0
        %v6482 = vadd.f32 %v6478, 1.0
        %v6483 = vrcp.pop %v6479
        %v6484 = vmul.f32 1.0, %v6483
        %v6485 = vrcp.pop %v6480
        %v6486 = vmul.f32 1.0, %v6485
        %v6487 = vrcp.pop %v6481
        %v6488 = vmul.f32 1.0, %v6487
        %v6489 = vrcp.pop %v6482
        %v6490 = vmul.f32 1.0, %v6489
        %v6491 = vmul.f32 %v6456, %v6178
        %v6492 = vmul.f32 %v6458, %v6179
        %v6493 = vmul.f32 %v6460, %v6180
        %v6494 = vmul.f32 %v6462, %v6181
        %v6495 = vmul.f32 %v6432, %v6463
        %v6496 = vmul.f32 %v6434, %v6464
        %v6497 = vmul.f32 %v6436, %v6465
        %v6498 = vmul.f32 %v6438, %v6466
        %v6499 = vadd.f32 %v6491, %v6495
        %v6500 = vadd.f32 %v6492, %v6496
        %v6501 = vadd.f32 %v6493, %v6497
        %v6502 = vadd.f32 %v6494, %v6498
        %v6503 = vtanh.pop %v6499
        %v6504 = vtanh.pop %v6500
        %v6505 = vtanh.pop %v6501
        %v6506 = vtanh.pop %v6502
        %v6507 = vmul.f32 %v6484, %v6503
        %v6508 = vmul.f32 %v6486, %v6504
        %v6509 = vmul.f32 %v6488, %v6505
        %v6510 = vmul.f32 %v6490, %v6506
        // Predicated region
        $region89: #{tpu_custom_call.1} parent=35 // pred_check
          %p6511 = pneg %p3324
        $region90: #{tpu_custom_call.1} parent=35 // pred_check_branch
          %6513 = sbr.rel (%p6511) target = $region92
        $region91: #{tpu_custom_call.1} parent=35 // pred_region
          %v6514 = vpack.c.bf16 %v6509, %v6507
          %v6515 = vpack.c.bf16 %v6510, %v6508
          %v6518 = vunpack.c.l.b16 %v6514
          %v6519 = vunpack.c.l.b16 %v6515
          %v6520 = vunpack.c.h.b16 %v6514
          %v6521 = vunpack.c.h.b16 %v6515
          %v6522 = vpack.c.b16 %v6519, %v6518
          %v6523 = vpack.c.b16 %v6521, %v6520
          %s6526 = scalar_lea.vmem [#allocation2], 112
          %6527 = vst [vmem:[%s6526] sm:$0xff] %v6522
          %6528 = vst [vmem:[%s6526 + $0x8] sm:$0xff] %v6523
        $region92: #{tpu_custom_call.1} parent=35 // pred_fallthru
          _
        %6529 = vst [vmem:[%s336] sm:$0xff] %v6507
        %6530 = vst [vmem:[%s336 + $0x8] sm:$0xff] %v6508
        %6531 = vst [vmem:[%s336 + $0x10] sm:$0xff] %v6509
        %6532 = vst [vmem:[%s336 + $0x18] sm:$0xff] %v6510
        %6533 = vst [vmem:[%s343] sm:$0xff] %v6499
        %6534 = vst [vmem:[%s343 + $0x8] sm:$0xff] %v6500
        %6535 = vst [vmem:[%s343 + $0x10] sm:$0xff] %v6501
        %6536 = vst [vmem:[%s343 + $0x18] sm:$0xff] %v6502
        %s6537 = sand.u32 %s137, 1
        %s6538 = scalar_lea.sflag [#allocation6], %s6537
        %s6539 = sand.u32 %s137, 1
        %s6540 = smul.addr %s6539, 32
        %s6541 = scalar_lea.vmem [#allocation12], %s6540
        %s6542 = sand.u32 %s163, 1
        %s6543 = scalar_lea.sflag [#allocation14], %s6542
        %s6544 = sand.u32 %s163, 1
        %s6545 = smul.addr %s6544, 32
        %s6546 = scalar_lea.vmem [#allocation13], %s6545
        // Predicated region
        $region93: #{tpu_custom_call.1} parent=35 // pred_check
          %p6547 = pneg %p147
        $region94: #{tpu_custom_call.1} parent=35 // pred_check_branch
          %6549 = sbr.rel (%p6547) target = $region96
        $region95: #{tpu_custom_call.1} parent=35 // pred_region
          %s6551 = ssub.s32 512, 512
          %6552 = vsyncadd %s6538, %s6551
          %s6553 = smul.addr %s30, 4
          %s6554 = smul.addr %s6553, 128
          %s6555 = scalar_lea.hbm %s4, %s6554
          %s6556 = sshll.u32 %s6541, 4
          %s6557 = int_to_ptr.vmem [resolvable:$true] %s6556
          %6562 = dma.vmem_to_hbm [thread:$0]  %s6557, 512, %s6555, %s6538, 256, 256, 16
        $region96: #{tpu_custom_call.1} parent=35 // pred_fallthru
          _
        // Predicated region
        $region97: #{tpu_custom_call.1} parent=35 // pred_check
          %p6563 = pneg %p173
        $region98: #{tpu_custom_call.1} parent=35 // pred_check_branch
          %6565 = sbr.rel (%p6563) target = $region100
        $region99: #{tpu_custom_call.1} parent=35 // pred_region
          %s6567 = ssub.s32 512, 512
          %6568 = vsyncadd %s6543, %s6567
          %s6569 = smul.addr %s30, 4
          %s6570 = smul.addr %s6569, 128
          %s6571 = scalar_lea.hbm %s5, %s6570
          %s6572 = sshll.u32 %s6546, 4
          %s6573 = int_to_ptr.vmem [resolvable:$true] %s6572
          %6578 = dma.vmem_to_hbm [thread:$0]  %s6573, 512, %s6571, %s6543, 256, 256, 16
        $region100: #{tpu_custom_call.1} parent=35 // pred_fallthru
          _
      $region36: #{tpu_custom_call.1} parent=5 // pred_fallthru
        _
      %p6579 = scmp.le.s32.totalorder 2, %s25
      // Predicated region
      $region101: #{tpu_custom_call.1} parent=5 // pred_check
        %p6580 = pneg %p6579
      $region102: #{tpu_custom_call.1} parent=5 // pred_check_branch
        %6582 = sbr.rel (%p6580) target = $region104
      $region103: #{tpu_custom_call.1} parent=5 // pred_region
        %s6583 = ssub.s32 %s25, 2
        // Predicated region
        $region105: #{tpu_custom_call.1} parent=103 // pred_check
          %p6584 = pneg %p153
        $region106: #{tpu_custom_call.1} parent=103 // pred_check_branch
          %6586 = sbr.rel (%p6584) target = $region108
        $region107: #{tpu_custom_call.1} parent=103 // pred_region
          %s6587 = sand.u32 %s138, 1
          %s6588 = scalar_lea.sflag [#allocation6], %s6587
          %s6589 = sand.u32 %s138, 1
          %s6590 = smul.addr %s6589, 32
          %s6591 = scalar_lea.vmem [#allocation12], %s6590
          %6592 = dma.done %s6588, 512
        $region108: #{tpu_custom_call.1} parent=103 // pred_fallthru
          _
        // Predicated region
        $region109: #{tpu_custom_call.1} parent=103 // pred_check
          %p6593 = pneg %p179
        $region110: #{tpu_custom_call.1} parent=103 // pred_check_branch
          %6595 = sbr.rel (%p6593) target = $region112
        $region111: #{tpu_custom_call.1} parent=103 // pred_region
          %s6596 = sand.u32 %s164, 1
          %s6597 = scalar_lea.sflag [#allocation14], %s6596
          %s6598 = sand.u32 %s164, 1
          %s6599 = smul.addr %s6598, 32
          %s6600 = scalar_lea.vmem [#allocation13], %s6599
          %6601 = dma.done %s6597, 512
        $region112: #{tpu_custom_call.1} parent=103 // pred_fallthru
          _
      $region104: #{tpu_custom_call.1} parent=5 // pred_fallthru
        _
    $region6: #{tpu_custom_call.1} parent=1 // loop_footer
      %s29 = sadd.s32 1, %s25
    $region7: #{tpu_custom_call.1} parent=1 // loop_footer_branch
      %24 = sbr.rel target = $region3
    $region8: #{tpu_custom_call.1} parent=1 // loop_exit
      _
    %6602 = vsyncpa [#allocation5], 1
    %s6603 = scalar_lea.sflag [#allocation5], 1
    %6604 = vsyncpa %s6603, 1
    %6605 = vsyncpa [#allocation8], 1
    %s6606 = scalar_lea.sflag [#allocation8], 1
    %6607 = vsyncpa %s6606, 1
    %6608 = vsyncpa [#allocation11], 1
    %s6609 = scalar_lea.sflag [#allocation11], 1
    %6610 = vsyncpa %s6609, 1
    %6611 = vsyncpa [#allocation6], 1
    %s6612 = scalar_lea.sflag [#allocation6], 1
    %6613 = vsyncpa %s6612, 1
    %6614 = vsyncpa [#allocation14], 1
    %s6615 = scalar_lea.sflag [#allocation14], 1
    %6616 = vsyncpa %s6615, 1

</llo_original>
